<compile_context>
chip_gen: v5e
topology: v5e:2x2
jax: 0.10.0
libtpu: 0.0.40
codegen_flags: <defaults>
</compile_context>

<pallas_src>
import functools
import math

import jax
import jax.numpy as jnp
from jax.experimental import pallas as pl
from jax.experimental.pallas import tpu as pltpu

# ----------------------------- configuration (small) -----------------------------
N_DIMS = 3
IN_NODE_NF = 5
CONTEXT_NF = 0
K_GAUSS = 16              # K of GaussianLayer
XH_HIDDEN = 16            # xh_hidden_size
HIDDEN = 32               # backbone hidden_size; pos_embedder_k out = HIDDEN - XH_HIDDEN
POS_EMB_GAMMA = 8         # pos_emb_gamma_size
T_HIDDEN = 16             # t_hidden_size (gamma-path TimestepEmbedder)
ENC_HIDDEN = 32           # gamma_enc hidden/out features
DEC_HIDDEN = 32           # gamma_dec hidden features
DEPTH = 2                 # DiT depth
HEADS = 4
MLP_RATIO = 2.0
FREQ_EMB = 256            # TimestepEmbedder frequency embedding size
BS = 2
N_NODES = 8
OUT_CH = N_DIMS + IN_NODE_NF + CONTEXT_NF
GAMMA_IN = N_DIMS + POS_EMB_GAMMA + T_HIDDEN      # noise_dims = 0

_MXU = jnp.bfloat16       # MXU operand dtype (bf16-native on v5e/v6e/v7x); f32 accum


# ------------------------------ in-kernel helpers --------------------------------

def _dot(a, b):
    return jnp.dot(a.astype(_MXU), b.astype(_MXU), preferred_element_type=jnp.float32)


def _dot_t(a, b):
    # a:[m,d] x b:[k,d] -> [m,k]   (contract last dims; avoids explicit transpose)
    return jax.lax.dot_general(a.astype(_MXU), b.astype(_MXU),
                               (((1,), (1,)), ((), ())),
                               preferred_element_type=jnp.float32)


def _silu(x):
    return x * jax.nn.sigmoid(x)


def _gelu(x):
    return jax.nn.gelu(x, approximate=True)


def _ln(x, eps=1e-6):
    mu = jnp.mean(x, axis=-1, keepdims=True)
    var = jnp.mean(jnp.square(x - mu), axis=-1, keepdims=True)
    return (x - mu) * jax.lax.rsqrt(var + eps)


# ------------------------------- BlockSpec helpers --------------------------------

def _bspec(a):
    """Per-batch block: leading batch dim indexed by the grid, trailing dims full."""
    nd = a.ndim
    return pl.BlockSpec((1,) + a.shape[1:], lambda b, _n=nd: (b,) + (0,) * (_n - 1))


def _wspec(a):
    """Weight block: full array, same block for every grid step."""
    nd = a.ndim
    return pl.BlockSpec(a.shape, lambda b, _n=nd: (0,) * _n)


# ------------------------------- stage A (pre-QR) ----------------------------------

def _stage_a_kernel(x_ref, mask_ref, mrow_ref, tfreq_ref, g_ref,
                    gm_ref, gs_ref,
                    pgw_ref, pgb_ref, pkw_ref, pkb_ref,
                    tg1w_ref, tg1b_ref, tg2w_ref, tg2b_ref,
                    e1w_ref, e1b_ref, e2w_ref, e2b_ref,
                    d1w_ref, d1b_ref, d2w_ref, d2b_ref,
                    gamma_pre_ref, posk_ref):
    x = x_ref[0]                                   # [n, 3]  (CoM-free coordinates)
    mask = mask_ref[0]                             # [n, 1]
    mrow = mrow_ref[0]                             # [1, n]
    n = x.shape[0]

    inv_n_real = pl.reciprocal(jnp.sum(mask, keepdims=True), approx=True)   # [1, 1]

    # ---- GaussianLayer: pairwise-distance RBF bank, masked, summed over keys ----
    diff = x[:, None, :] - x[None, :, :]                                    # [n, n, 3]
    dist = jnp.sqrt(jnp.sum(diff * diff, axis=-1))                          # [n, n]
    mean = gm_ref[...]                                                      # [1, K]
    std = jnp.abs(gs_ref[...]) + 1e-5                                       # [1, K]
    inv_std = pl.reciprocal(std, approx=True)                               # [1, K]
    z = (dist[:, :, None] - mean[None, :, :]) * inv_std[None, :, :]         # [n, n, K]
    rbf = jnp.exp(-0.5 * z * z) * (inv_std[None, :, :] * (1.0 / math.sqrt(2.0 * math.pi)))
    pair = mask * mrow                                                      # [n, n]
    rbf = rbf * pair[:, :, None]
    s = jnp.sum(rbf, axis=1)                       # sum over key node j -> [n, K]

    # per-pair Linear then sum over keys == (sum_j rbf) @ W + n_static * b, then / N
    pos_emb_gamma = (_dot(s, pgw_ref[...]) + float(n) * pgb_ref[...]) * inv_n_real
    pos_emb_k = (_dot(s, pkw_ref[...]) + float(n) * pkb_ref[...]) * inv_n_real
    posk_ref[0] = pos_emb_k                                                 # [n, 16]

    # ---- gamma-path TimestepEmbedder, masked per node ----
    tf = tfreq_ref[0]                                                       # [1, FREQ]
    t_vec = _dot(_silu(_dot(tf, tg1w_ref[...]) + tg1b_ref[...]),
                 tg2w_ref[...]) + tg2b_ref[...]                             # [1, T_HIDDEN]
    t_emb = mask * t_vec                                                    # [n, T_HIDDEN]

    # ---- gamma_enc MLP on concat([x @ g, pos_emb_gamma, t_emb]) ----
    g_inv_x = _dot(x, g_ref[0])                                             # [n, 3]
    w1 = e1w_ref[...]                                                       # [27, ENC]  (f32, row-sliced)
    pre = (_dot(g_inv_x, w1[0:N_DIMS, :])
           + _dot(pos_emb_gamma, w1[N_DIMS:N_DIMS + POS_EMB_GAMMA, :])
           + _dot(t_emb, w1[N_DIMS + POS_EMB_GAMMA:, :])
           + e1b_ref[...])
    enc = _dot(_gelu(pre), e2w_ref[...]) + e2b_ref[...]                     # [n, ENC]

    # ---- masked mean-pool over nodes + gamma_dec MLP -> 3x3 pre-QR matrix ----
    pooled = jnp.sum(mask * enc, axis=0, keepdims=True) * inv_n_real        # [1, ENC]
    dec = _dot(_gelu(_dot(pooled, d1w_ref[...]) + d1b_ref[...]),
               d2w_ref[...]) + d2b_ref[...]                                 # [1, 9]
    gamma_pre_ref[0] = dec


def stage_a(params, x, node_mask, mask_row, tfreq, g):
    B, n, _ = x.shape
    data = [x, node_mask, mask_row, tfreq, g]
    weights = [params[k] for k in (
        "g_means", "g_stds", "pg_w", "pg_b", "pk_w", "pk_b",
        "tg1_w", "tg1_b", "tg2_w", "tg2_b",
        "e1_w", "e1_b", "e2_w", "e2_b", "d1_w", "d1_b", "d2_w", "d2_b")]
    in_specs = [_bspec(a) for a in data] + [_wspec(w) for w in weights]
    out_shape = (jax.ShapeDtypeStruct((B, 1, N_DIMS * N_DIMS), jnp.float32),
                 jax.ShapeDtypeStruct((B, n, HIDDEN - XH_HIDDEN), jnp.float32))
    out_specs = (pl.BlockSpec((1, 1, N_DIMS * N_DIMS), lambda b: (b, 0, 0)),
                 pl.BlockSpec((1, n, HIDDEN - XH_HIDDEN), lambda b: (b, 0, 0)))
    return pl.pallas_call(
        _stage_a_kernel,
        grid=(B,),
        in_specs=in_specs,
        out_specs=out_specs,
        out_shape=out_shape,
        compiler_params=pltpu.CompilerParams(dimension_semantics=("parallel",)),
    )(*data, *weights)


# ------------------------------- stage B (post-QR) ---------------------------------

def _stage_b_kernel(*refs, depth, heads):
    (x_ref, h_ref, mask_ref, mrow_ref, tfreq_ref, q_ref, g_ref, posk_ref,
     xhw_ref, xhb_ref, t1w_ref, t1b_ref, t2w_ref, t2b_ref) = refs[:14]
    blk = refs[14:14 + 10 * depth]
    fadaw_ref, fadab_ref, fw_ref, fb_ref = refs[14 + 10 * depth: 18 + 10 * depth]
    out_ref = refs[18 + 10 * depth]
    feat_ref = refs[19 + 10 * depth]              # VMEM scratch [n, hidden]

    x = x_ref[0]                                  # [n, 3]
    h = h_ref[0]                                  # [n, 5]
    mask = mask_ref[0]                            # [n, 1]
    mrow = mrow_ref[0]                            # [1, n]
    hidden = feat_ref.shape[1]
    dh = hidden // heads
    scale = 1.0 / math.sqrt(dh)

    inv_n_real = pl.reciprocal(jnp.sum(mask, keepdims=True), approx=True)   # [1, 1]

    # gamma = Q @ g^T ;  gamma_inv_x = x @ gamma
    gamma = _dot_t(q_ref[0], g_ref[0])                                      # [3, 3]
    gamma_inv_x = _dot(x, gamma)                                            # [n, 3]

    # xh_embedder on concat([gamma_inv_x, h]) via weight slicing (no concat op)
    xw = xhw_ref[...]                                                       # f32, row-sliced
    xh_emb = _dot(gamma_inv_x, xw[0:N_DIMS, :]) + _dot(h, xw[N_DIMS:, :]) + xhb_ref[...]

    # assemble DiT input (concat + node_mask) in a VMEM scratch slab
    xh_dim = xh_emb.shape[1]
    feat_ref[:, 0:xh_dim] = xh_emb * mask
    feat_ref[:, xh_dim:] = posk_ref[0] * mask
    xd = feat_ref[...]                                                      # [n, hidden]

    # DiT conditioning (its own TimestepEmbedder); SiLU(c) reused by every adaLN
    tf = tfreq_ref[0]
    c = _dot(_silu(_dot(tf, t1w_ref[...]) + t1b_ref[...]), t2w_ref[...]) + t2b_ref[...]
    c_act = _silu(c)                                                        # [1, hidden]

    key_bias = (1.0 - mrow) * (-1e9)              # [1, n] additive key-padding bias

    for d in range(depth):
        (adaw, adab, qkvw, qkvb, projw, projb, f1w, f1b, f2w, f2b) = blk[10 * d: 10 * d + 10]
        mod = _dot(c_act, adaw[...]) + adab[...]                            # [1, 6*hidden]
        sh_msa = mod[:, 0:hidden]
        sc_msa = mod[:, hidden:2 * hidden]
        g_msa = mod[:, 2 * hidden:3 * hidden]
        sh_mlp = mod[:, 3 * hidden:4 * hidden]
        sc_mlp = mod[:, 4 * hidden:5 * hidden]
        g_mlp = mod[:, 5 * hidden:]

        # ---- attention branch ----
        h1 = _ln(xd) * (1.0 + sc_msa) + sh_msa
        qkv = _dot(h1, qkvw[...]) + qkvb[...]                               # [n, 3*hidden]
        projw_v = projw[...]                                                # f32, row-sliced
        acc = None
        for hh in range(heads):
            qh = qkv[:, hh * dh:(hh + 1) * dh]
            kh = qkv[:, hidden + hh * dh: hidden + (hh + 1) * dh]
            vh = qkv[:, 2 * hidden + hh * dh: 2 * hidden + (hh + 1) * dh]
            logits = _dot_t(qh, kh) * scale + key_bias                      # [n, n]
            logits = logits - jnp.max(logits, axis=-1, keepdims=True)
            p = jnp.exp(logits)
            p = p * pl.reciprocal(jnp.sum(p, axis=-1, keepdims=True), approx=True)
            oh = _dot(p, vh)                                                # [n, dh]
            contrib = _dot(oh, projw_v[hh * dh:(hh + 1) * dh, :])           # == concat+proj
            acc = contrib if acc is None else acc + contrib
        xd = xd + g_msa * (acc + projb[...])

        # ---- MLP branch ----
        h2 = _ln(xd) * (1.0 + sc_mlp) + sh_mlp
        m = _gelu(_dot(h2, f1w[...]) + f1b[...])
        xd = xd + g_mlp * (_dot(m, f2w[...]) + f2b[...])

    # final adaLN + projection, then the module-level node_mask
    fmod = _dot(c_act, fadaw_ref[...]) + fadab_ref[...]                     # [1, 2*hidden]
    f_sh = fmod[:, 0:hidden]
    f_sc = fmod[:, hidden:]
    xf = _ln(xd) * (1.0 + f_sc) + f_sh
    out = (_dot(xf, fw_ref[...]) + fb_ref[...]) * mask                      # [n, OUT_CH]

    # split, remove CoM from coordinate part, rotate back by gamma^T
    x_out = out[:, 0:N_DIMS]
    x_mean = jnp.sum(x_out, axis=0, keepdims=True) * inv_n_real
    x_out = x_out - x_mean * mask
    x_out = _dot_t(x_out, gamma)                                            # x @ gamma^T

    out_ref[0] = out
    out_ref[0, :, 0:N_DIMS] = x_out


def stage_b(params, x, h, node_mask, mask_row, tfreq, Q, g, pos_emb_k):
    B, n, _ = x.shape
    data = [x, h, node_mask, mask_row, tfreq, Q, g, pos_emb_k]
    weights = [params["xh_w"], params["xh_b"],
               params["tk1_w"], params["tk1_b"], params["tk2_w"], params["tk2_b"]]
    for blk in params["blocks"]:
        weights += [blk["ada_w"], blk["ada_b"], blk["qkv_w"], blk["qkv_b"],
                    blk["proj_w"], blk["proj_b"], blk["fc1_w"], blk["fc1_b"],
                    blk["fc2_w"], blk["fc2_b"]]
    weights += [params["f_ada_w"], params["f_ada_b"], params["f_w"], params["f_b"]]
    in_specs = [_bspec(a) for a in data] + [_wspec(w) for w in weights]
    return pl.pallas_call(
        functools.partial(_stage_b_kernel, depth=DEPTH, heads=HEADS),
        grid=(B,),
        in_specs=in_specs,
        out_specs=pl.BlockSpec((1, n, OUT_CH), lambda b: (b, 0, 0)),
        out_shape=jax.ShapeDtypeStruct((B, n, OUT_CH), jnp.float32),
        scratch_shapes=[pltpu.VMEM((n, HIDDEN), jnp.float32)],
        compiler_params=pltpu.CompilerParams(dimension_semantics=("parallel",)),
    )(*data, *weights)


# ------------------------------------ XLA glue -------------------------------------

def timestep_embedding(t, dim=FREQ_EMB, max_period=10000.0):
    half = dim // 2
    freqs = jnp.exp(-math.log(max_period) * jnp.arange(half, dtype=jnp.float32) / half)
    args = t[:, None].astype(jnp.float32) * freqs[None]
    return jnp.concatenate([jnp.cos(args), jnp.sin(args)], axis=-1)


def remove_mean_with_mask(x, node_mask):
    N = jnp.sum(node_mask, axis=1, keepdims=True)
    mean = jnp.sum(x, axis=1, keepdims=True) / N
    return x - mean * node_mask


def orthogonal_haar(key, batch, dim):
    noise = jax.random.normal(key, (batch, dim, dim), dtype=jnp.float32)
    q, r = jnp.linalg.qr(noise)
    d = jnp.sign(jnp.diagonal(r, axis1=-2, axis2=-1))
    d = jnp.where(d == 0, 1.0, d)
    return q * d[:, None, :]


def forward(params, t, xh, node_mask, haar_key):
    """DeepSets_DitGaussian_dynamics._forward (context=None, noise_dims=0, com_free)."""
    B, n, _ = xh.shape
    x = remove_mean_with_mask(xh[:, :, :N_DIMS], node_mask)
    h = xh[:, :, N_DIMS:]
    mask_row = jnp.transpose(node_mask, (0, 2, 1))                 # [B, 1, n]
    tfreq = timestep_embedding(t[:, 0], FREQ_EMB)[:, None, :]      # [B, 1, FREQ]
    g = orthogonal_haar(haar_key, B, N_DIMS)                       # [B, 3, 3]

    # stage A: everything up to the gamma_dec output (pre-QR), plus pos_emb_k
    gamma_pre, pos_emb_k = stage_a(params, x, node_mask, mask_row, tfreq, g)

    # TODO(synk): QR / Haar sampling stay in XLA (no Pallas QR primitive).
    Q = jnp.linalg.qr(gamma_pre.reshape(B, N_DIMS, N_DIMS))[0]

    # stage B: gamma = Q g^T, embedders, DiT backbone, CoM removal, rotation back
    return stage_b(params, x, h, node_mask, mask_row, tfreq, Q, g, pos_emb_k)


# -------------------------------- parameter init -----------------------------------

def _xavier(key, shape):
    fan_in, fan_out = shape
    lim = math.sqrt(6.0 / (fan_in + fan_out))
    return jax.random.uniform(key, shape, jnp.float32, -lim, lim)


def init_params(key):
    keys = iter(jax.random.split(key, 64))

    def lin(in_d, out_d):
        return _xavier(next(keys), (in_d, out_d)), jnp.zeros((1, out_d), jnp.float32)

    p = {}
    p["g_means"] = jax.random.uniform(next(keys), (1, K_GAUSS), jnp.float32, 0.0, 3.0)
    p["g_stds"] = jax.random.uniform(next(keys), (1, K_GAUSS), jnp.float32, 0.0, 3.0)
    p["pg_w"], p["pg_b"] = lin(K_GAUSS, POS_EMB_GAMMA)
    p["pk_w"], p["pk_b"] = lin(K_GAUSS, HIDDEN - XH_HIDDEN)
    p["tg1_w"], p["tg1_b"] = lin(FREQ_EMB, T_HIDDEN)
    p["tg2_w"], p["tg2_b"] = lin(T_HIDDEN, T_HIDDEN)
    p["e1_w"], p["e1_b"] = lin(GAMMA_IN, ENC_HIDDEN)
    p["e2_w"], p["e2_b"] = lin(ENC_HIDDEN, ENC_HIDDEN)
    p["d1_w"], p["d1_b"] = lin(ENC_HIDDEN, DEC_HIDDEN)
    p["d2_w"], p["d2_b"] = lin(DEC_HIDDEN, N_DIMS * N_DIMS)
    p["xh_w"], p["xh_b"] = lin(N_DIMS + IN_NODE_NF + CONTEXT_NF, XH_HIDDEN)
    p["tk1_w"], p["tk1_b"] = lin(FREQ_EMB, HIDDEN)
    p["tk2_w"], p["tk2_b"] = lin(HIDDEN, HIDDEN)
    mlp_hidden = int(HIDDEN * MLP_RATIO)
    blocks = []
    for _ in range(DEPTH):
        b = {}
        b["ada_w"], b["ada_b"] = lin(HIDDEN, 6 * HIDDEN)
        b["qkv_w"], b["qkv_b"] = lin(HIDDEN, 3 * HIDDEN)
        b["proj_w"], b["proj_b"] = lin(HIDDEN, HIDDEN)
        b["fc1_w"], b["fc1_b"] = lin(HIDDEN, mlp_hidden)
        b["fc2_w"], b["fc2_b"] = lin(mlp_hidden, HIDDEN)
        blocks.append(b)
    p["blocks"] = blocks
    # DiT adaLN/final layers are zero-init in the reference; Xavier here so the
    # synthetic forward is non-degenerate.
    p["f_ada_w"], p["f_ada_b"] = lin(HIDDEN, 2 * HIDDEN)
    p["f_w"], p["f_b"] = lin(HIDDEN, OUT_CH)

    # Matmul weights that are consumed whole inside the kernels are stored in bf16
    # (halves HBM->VMEM DMA for weights, removes the per-call MXU-operand cast).
    # Weights that get row-sliced in-kernel (e1_w, xh_w, proj_w) and all biases /
    # Gaussian params stay f32.
    for k in ("pg_w", "pk_w", "tg1_w", "tg2_w", "e2_w", "d1_w",
              "tk1_w", "tk2_w", "f_ada_w", "f_w"):
        p[k] = p[k].astype(jnp.bfloat16)
    for b in p["blocks"]:
        for k in ("ada_w", "qkv_w", "fc1_w", "fc2_w"):
            b[k] = b[k].astype(jnp.bfloat16)
    return p


# ------------------------------------- main -----------------------------------------

if __name__ == "__main__":
    key = jax.random.PRNGKey(0)
    k_param, k_xh, k_haar = jax.random.split(key, 3)
    params = init_params(k_param)

    node_mask = jnp.ones((BS, N_NODES, 1), jnp.float32)
    node_mask = node_mask.at[1, 6:, :].set(0.0)          # batch 1 has 2 padded nodes
    xh = jax.random.normal(k_xh, (BS, N_NODES, N_DIMS + IN_NODE_NF), jnp.float32) * node_mask
    t = jnp.array([[0.1], [0.7]], jnp.float32)

    fwd = jax.jit(forward)
    out = jax.block_until_ready(fwd(params, t, xh, node_mask, k_haar))

    assert out.shape == (BS, N_NODES, OUT_CH), out.shape
    assert bool(jnp.all(jnp.isfinite(out)))
    # masked nodes must stay (numerically) zero
    assert float(jnp.max(jnp.abs(out * (1.0 - node_mask)))) < 1e-4
    print("KERNEL_OK")
</pallas_src>

<mosaic_0001>
module attributes {stable_mosaic.version = 11 : i64} {
  func.func @_stage_a_kernel(%arg0: i32, %arg1: memref<1x8x3xf32, #tpu.memory_space<vmem>>, %arg2: memref<1x8x1xf32, #tpu.memory_space<vmem>>, %arg3: memref<1x1x8xf32, #tpu.memory_space<vmem>>, %arg4: memref<1x1x256xf32, #tpu.memory_space<vmem>>, %arg5: memref<1x3x3xf32, #tpu.memory_space<vmem>>, %arg6: memref<1x16xf32, #tpu.memory_space<vmem>>, %arg7: memref<1x16xf32, #tpu.memory_space<vmem>>, %arg8: memref<16x8xbf16, #tpu.memory_space<vmem>>, %arg9: memref<1x8xf32, #tpu.memory_space<vmem>>, %arg10: memref<16x16xbf16, #tpu.memory_space<vmem>>, %arg11: memref<1x16xf32, #tpu.memory_space<vmem>>, %arg12: memref<256x16xbf16, #tpu.memory_space<vmem>>, %arg13: memref<1x16xf32, #tpu.memory_space<vmem>>, %arg14: memref<16x16xbf16, #tpu.memory_space<vmem>>, %arg15: memref<1x16xf32, #tpu.memory_space<vmem>>, %arg16: memref<27x32xf32, #tpu.memory_space<vmem>>, %arg17: memref<1x32xf32, #tpu.memory_space<vmem>>, %arg18: memref<32x32xbf16, #tpu.memory_space<vmem>>, %arg19: memref<1x32xf32, #tpu.memory_space<vmem>>, %arg20: memref<32x32xbf16, #tpu.memory_space<vmem>>, %arg21: memref<1x32xf32, #tpu.memory_space<vmem>>, %arg22: memref<32x9xf32, #tpu.memory_space<vmem>>, %arg23: memref<1x9xf32, #tpu.memory_space<vmem>>, %arg24: memref<1x1x9xf32, #tpu.memory_space<vmem>>, %arg25: memref<1x8x16xf32, #tpu.memory_space<vmem>>) attributes {dimension_semantics = [#tpu.dimension_semantics<parallel>], iteration_bounds = array<i64: 2>, scalar_prefetch = 0 : i64, scratch_operands = 0 : i64, tpu.core_type = #tpu.core_type<tc>, window_params = [{transform_indices = @transform_0, window_bounds = array<i64: 1, 8, 3>}, {transform_indices = @transform_1, window_bounds = array<i64: 1, 8, 1>}, {transform_indices = @transform_2, window_bounds = array<i64: 1, 1, 8>}, {transform_indices = @transform_3, window_bounds = array<i64: 1, 1, 256>}, {transform_indices = @transform_4, window_bounds = array<i64: 1, 3, 3>}, {pipeline_mode = #tpu.pipeline_mode<synchronous>, transform_indices = @transform_5, window_bounds = array<i64: 1, 16>}, {pipeline_mode = #tpu.pipeline_mode<synchronous>, transform_indices = @transform_6, window_bounds = array<i64: 1, 16>}, {pipeline_mode = #tpu.pipeline_mode<synchronous>, transform_indices = @transform_7, window_bounds = array<i64: 16, 8>}, {pipeline_mode = #tpu.pipeline_mode<synchronous>, transform_indices = @transform_8, window_bounds = array<i64: 1, 8>}, {pipeline_mode = #tpu.pipeline_mode<synchronous>, transform_indices = @transform_9, window_bounds = array<i64: 16, 16>}, {pipeline_mode = #tpu.pipeline_mode<synchronous>, transform_indices = @transform_10, window_bounds = array<i64: 1, 16>}, {pipeline_mode = #tpu.pipeline_mode<synchronous>, transform_indices = @transform_11, window_bounds = array<i64: 256, 16>}, {pipeline_mode = #tpu.pipeline_mode<synchronous>, transform_indices = @transform_12, window_bounds = array<i64: 1, 16>}, {pipeline_mode = #tpu.pipeline_mode<synchronous>, transform_indices = @transform_13, window_bounds = array<i64: 16, 16>}, {pipeline_mode = #tpu.pipeline_mode<synchronous>, transform_indices = @transform_14, window_bounds = array<i64: 1, 16>}, {pipeline_mode = #tpu.pipeline_mode<synchronous>, transform_indices = @transform_15, window_bounds = array<i64: 27, 32>}, {pipeline_mode = #tpu.pipeline_mode<synchronous>, transform_indices = @transform_16, window_bounds = array<i64: 1, 32>}, {pipeline_mode = #tpu.pipeline_mode<synchronous>, transform_indices = @transform_17, window_bounds = array<i64: 32, 32>}, {pipeline_mode = #tpu.pipeline_mode<synchronous>, transform_indices = @transform_18, window_bounds = array<i64: 1, 32>}, {pipeline_mode = #tpu.pipeline_mode<synchronous>, transform_indices = @transform_19, window_bounds = array<i64: 32, 32>}, {pipeline_mode = #tpu.pipeline_mode<synchronous>, transform_indices = @transform_20, window_bounds = array<i64: 1, 32>}, {pipeline_mode = #tpu.pipeline_mode<synchronous>, transform_indices = @transform_21, window_bounds = array<i64: 32, 9>}, {pipeline_mode = #tpu.pipeline_mode<synchronous>, transform_indices = @transform_22, window_bounds = array<i64: 1, 9>}, {transform_indices = @transform_23, window_bounds = array<i64: 1, 1, 9>}, {transform_indices = @transform_24, window_bounds = array<i64: 1, 8, 16>}]} {
    %c0 = arith.constant 0 : index
    %c0_0 = arith.constant 0 : index
    %c0_1 = arith.constant 0 : index
    %0 = vector.load %arg1[%c0, %c0_0, %c0_1] : memref<1x8x3xf32, #tpu.memory_space<vmem>>, vector<1x8x3xf32>
    %1 = vector.shape_cast %0 : vector<1x8x3xf32> to vector<8x3xf32>
    %c0_2 = arith.constant 0 : index
    %c0_3 = arith.constant 0 : index
    %c0_4 = arith.constant 0 : index
    %2 = vector.load %arg2[%c0_2, %c0_3, %c0_4] : memref<1x8x1xf32, #tpu.memory_space<vmem>>, vector<1x8x1xf32>
    %3 = vector.shape_cast %2 : vector<1x8x1xf32> to vector<8x1xf32>
    %c0_5 = arith.constant 0 : index
    %c0_6 = arith.constant 0 : index
    %c0_7 = arith.constant 0 : index
    %4 = vector.load %arg3[%c0_5, %c0_6, %c0_7] : memref<1x1x8xf32, #tpu.memory_space<vmem>>, vector<1x1x8xf32>
    %5 = vector.shape_cast %4 : vector<1x1x8xf32> to vector<1x8xf32>
    %6 = vector.shape_cast %3 : vector<8x1xf32> to vector<1x8x1xf32>
    %cst = arith.constant dense<0.000000e+00> : vector<1xf32>
    %7 = vector.multi_reduction <add>, %6, %cst [1, 2] : vector<1x8x1xf32> to vector<1xf32>
    %8 = vector.shape_cast %7 : vector<1xf32> to vector<1x1x1xf32>
    %9 = vector.extract %8[0, 0, 0] : f32 from vector<1x1x1xf32>
    %10 = vector.broadcast %9 : f32 to vector<1x1xf32>
    %11 = tpu.reciprocal %10 {approx = true} : vector<1x1xf32> -> vector<1x1xf32>
    %12 = vector.shape_cast %1 : vector<8x3xf32> to vector<8x1x3xf32>
    %13 = vector.shape_cast %1 : vector<8x3xf32> to vector<1x8x3xf32>
    %14 = vector.broadcast %12 : vector<8x1x3xf32> to vector<8x8x3xf32>
    %15 = vector.broadcast %13 : vector<1x8x3xf32> to vector<8x8x3xf32>
    %16 = arith.subf %14, %15 : vector<8x8x3xf32>
    %17 = arith.mulf %16, %16 : vector<8x8x3xf32>
    %cst_8 = arith.constant dense<0.000000e+00> : vector<8x8xf32>
    %18 = vector.multi_reduction <add>, %17, %cst_8 [2] : vector<8x8x3xf32> to vector<8x8xf32>
    %19 = math.sqrt %18 : vector<8x8xf32>
    %c0_9 = arith.constant 0 : index
    %c0_10 = arith.constant 0 : index
    %20 = vector.load %arg6[%c0_9, %c0_10] : memref<1x16xf32, #tpu.memory_space<vmem>>, vector<1x16xf32>
    %c0_11 = arith.constant 0 : index
    %c0_12 = arith.constant 0 : index
    %21 = vector.load %arg7[%c0_11, %c0_12] : memref<1x16xf32, #tpu.memory_space<vmem>>, vector<1x16xf32>
    %22 = math.absf %21 : vector<1x16xf32>
    %cst_13 = arith.constant 9.99999974E-6 : f32
    %23 = vector.broadcast %cst_13 : f32 to vector<1x16xf32>
    %24 = arith.addf %22, %23 : vector<1x16xf32>
    %25 = tpu.reciprocal %24 {approx = true} : vector<1x16xf32> -> vector<1x16xf32>
    %26 = vector.shape_cast %19 : vector<8x8xf32> to vector<8x8x1xf32>
    %27 = vector.shape_cast %20 : vector<1x16xf32> to vector<1x1x16xf32>
    %28 = vector.broadcast %26 : vector<8x8x1xf32> to vector<8x8x16xf32>
    %29 = vector.broadcast %27 : vector<1x1x16xf32> to vector<8x8x16xf32>
    %30 = arith.subf %28, %29 : vector<8x8x16xf32>
    %31 = vector.shape_cast %25 : vector<1x16xf32> to vector<1x1x16xf32>
    %32 = vector.broadcast %31 : vector<1x1x16xf32> to vector<8x8x16xf32>
    %33 = arith.mulf %30, %32 : vector<8x8x16xf32>
    %cst_14 = arith.constant -5.000000e-01 : f32
    %34 = vector.broadcast %cst_14 : f32 to vector<8x8x16xf32>
    %35 = arith.mulf %34, %33 : vector<8x8x16xf32>
    %36 = arith.mulf %35, %33 : vector<8x8x16xf32>
    %37 = math.exp %36 : vector<8x8x16xf32>
    %38 = vector.shape_cast %25 : vector<1x16xf32> to vector<1x1x16xf32>
    %cst_15 = arith.constant 0.398942292 : f32
    %39 = vector.broadcast %cst_15 : f32 to vector<1x1x16xf32>
    %40 = arith.mulf %38, %39 : vector<1x1x16xf32>
    %41 = vector.broadcast %40 : vector<1x1x16xf32> to vector<8x8x16xf32>
    %42 = arith.mulf %37, %41 : vector<8x8x16xf32>
    %43 = vector.broadcast %3 : vector<8x1xf32> to vector<8x8xf32>
    %44 = vector.broadcast %5 : vector<1x8xf32> to vector<8x8xf32>
    %45 = arith.mulf %43, %44 : vector<8x8xf32>
    %46 = vector.shape_cast %45 : vector<8x8xf32> to vector<8x8x1xf32>
    %47 = vector.broadcast %46 : vector<8x8x1xf32> to vector<8x8x16xf32>
    %48 = arith.mulf %42, %47 : vector<8x8x16xf32>
    %cst_16 = arith.constant dense<0.000000e+00> : vector<8x16xf32>
    %49 = vector.multi_reduction <add>, %48, %cst_16 [1] : vector<8x8x16xf32> to vector<8x16xf32>
    %c0_17 = arith.constant 0 : index
    %c0_18 = arith.constant 0 : index
    %50 = vector.load %arg8[%c0_17, %c0_18] : memref<16x8xbf16, #tpu.memory_space<vmem>>, vector<16x8xbf16>
    %51 = arith.truncf %49 : vector<8x16xf32> to vector<8x16xbf16>
    %cst_19 = arith.constant dense<0.000000e+00> : vector<8x8xf32>
    %52 = tpu.matmul %51, %50, %cst_19 {dimension_numbers = #tpu.dot_dimension_numbers<[1], [0], [0], [1], [0, 0, 1, 1], [], []>} : vector<8x16xbf16>, vector<16x8xbf16>, vector<8x8xf32> -> vector<8x8xf32>
    %c0_20 = arith.constant 0 : index
    %c0_21 = arith.constant 0 : index
    %53 = vector.load %arg9[%c0_20, %c0_21] : memref<1x8xf32, #tpu.memory_space<vmem>>, vector<1x8xf32>
    %cst_22 = arith.constant 8.000000e+00 : f32
    %54 = vector.broadcast %cst_22 : f32 to vector<1x8xf32>
    %55 = arith.mulf %54, %53 : vector<1x8xf32>
    %56 = vector.broadcast %55 : vector<1x8xf32> to vector<8x8xf32>
    %57 = arith.addf %52, %56 : vector<8x8xf32>
    %58 = vector.broadcast %11 : vector<1x1xf32> to vector<8x8xf32>
    %59 = arith.mulf %57, %58 : vector<8x8xf32>
    %c0_23 = arith.constant 0 : index
    %c0_24 = arith.constant 0 : index
    %60 = vector.load %arg10[%c0_23, %c0_24] : memref<16x16xbf16, #tpu.memory_space<vmem>>, vector<16x16xbf16>
    %61 = arith.truncf %49 : vector<8x16xf32> to vector<8x16xbf16>
    %cst_25 = arith.constant dense<0.000000e+00> : vector<8x16xf32>
    %62 = tpu.matmul %61, %60, %cst_25 {dimension_numbers = #tpu.dot_dimension_numbers<[1], [0], [0], [1], [0, 0, 1, 1], [], []>} : vector<8x16xbf16>, vector<16x16xbf16>, vector<8x16xf32> -> vector<8x16xf32>
    %c0_26 = arith.constant 0 : index
    %c0_27 = arith.constant 0 : index
    %63 = vector.load %arg11[%c0_26, %c0_27] : memref<1x16xf32, #tpu.memory_space<vmem>>, vector<1x16xf32>
    %cst_28 = arith.constant 8.000000e+00 : f32
    %64 = vector.broadcast %cst_28 : f32 to vector<1x16xf32>
    %65 = arith.mulf %64, %63 : vector<1x16xf32>
    %66 = vector.broadcast %65 : vector<1x16xf32> to vector<8x16xf32>
    %67 = arith.addf %62, %66 : vector<8x16xf32>
    %68 = vector.broadcast %11 : vector<1x1xf32> to vector<8x16xf32>
    %69 = arith.mulf %67, %68 : vector<8x16xf32>
    %c0_29 = arith.constant 0 : index
    %c0_30 = arith.constant 0 : index
    %c0_31 = arith.constant 0 : index
    %70 = vector.load %arg25[%c0_29, %c0_30, %c0_31] : memref<1x8x16xf32, #tpu.memory_space<vmem>>, vector<1x8x16xf32>
    %71 = vector.shape_cast %70 : vector<1x8x16xf32> to vector<8x16xf32>
    %72 = vector.shape_cast %69 : vector<8x16xf32> to vector<1x8x16xf32>
    tpu.vector_store %arg25[%c0_29, %c0_30, %c0_31], %72 {strides = array<i32>} : memref<1x8x16xf32, #tpu.memory_space<vmem>>, vector<1x8x16xf32>,
    %c0_32 = arith.constant 0 : index
    %c0_33 = arith.constant 0 : index
    %c0_34 = arith.constant 0 : index
    %73 = vector.load %arg4[%c0_32, %c0_33, %c0_34] : memref<1x1x256xf32, #tpu.memory_space<vmem>>, vector<1x1x256xf32>
    %74 = vector.shape_cast %73 : vector<1x1x256xf32> to vector<1x256xf32>
    %c0_35 = arith.constant 0 : index
    %c0_36 = arith.constant 0 : index
    %75 = vector.load %arg12[%c0_35, %c0_36] : memref<256x16xbf16, #tpu.memory_space<vmem>>, vector<256x16xbf16>
    %76 = arith.truncf %74 : vector<1x256xf32> to vector<1x256xbf16>
    %cst_37 = arith.constant dense<0.000000e+00> : vector<1x16xf32>
    %77 = tpu.matmul %76, %75, %cst_37 {dimension_numbers = #tpu.dot_dimension_numbers<[1], [0], [0], [1], [0, 0, 1, 1], [], []>} : vector<1x256xbf16>, vector<256x16xbf16>, vector<1x16xf32> -> vector<1x16xf32>
    %c0_38 = arith.constant 0 : index
    %c0_39 = arith.constant 0 : index
    %78 = vector.load %arg13[%c0_38, %c0_39] : memref<1x16xf32, #tpu.memory_space<vmem>>, vector<1x16xf32>
    %79 = arith.addf %77, %78 : vector<1x16xf32>
    %80 = arith.negf %79 : vector<1x16xf32>
    %81 = math.exp %80 : vector<1x16xf32>
    %cst_40 = arith.constant 1.000000e+00 : f32
    %82 = vector.broadcast %cst_40 : f32 to vector<1x16xf32>
    %83 = arith.addf %82, %81 : vector<1x16xf32>
    %84 = arith.divf %82, %83 : vector<1x16xf32>
    %85 = arith.mulf %79, %84 : vector<1x16xf32>
    %c0_41 = arith.constant 0 : index
    %c0_42 = arith.constant 0 : index
    %86 = vector.load %arg14[%c0_41, %c0_42] : memref<16x16xbf16, #tpu.memory_space<vmem>>, vector<16x16xbf16>
    %87 = arith.truncf %85 : vector<1x16xf32> to vector<1x16xbf16>
    %cst_43 = arith.constant dense<0.000000e+00> : vector<1x16xf32>
    %88 = tpu.matmul %87, %86, %cst_43 {dimension_numbers = #tpu.dot_dimension_numbers<[1], [0], [0], [1], [0, 0, 1, 1], [], []>} : vector<1x16xbf16>, vector<16x16xbf16>, vector<1x16xf32> -> vector<1x16xf32>
    %c0_44 = arith.constant 0 : index
    %c0_45 = arith.constant 0 : index
    %89 = vector.load %arg15[%c0_44, %c0_45] : memref<1x16xf32, #tpu.memory_space<vmem>>, vector<1x16xf32>
    %90 = arith.addf %88, %89 : vector<1x16xf32>
    %91 = vector.broadcast %3 : vector<8x1xf32> to vector<8x16xf32>
    %92 = vector.broadcast %90 : vector<1x16xf32> to vector<8x16xf32>
    %93 = arith.mulf %91, %92 : vector<8x16xf32>
    %c0_46 = arith.constant 0 : index
    %c0_47 = arith.constant 0 : index
    %c0_48 = arith.constant 0 : index
    %94 = vector.load %arg5[%c0_46, %c0_47, %c0_48] : memref<1x3x3xf32, #tpu.memory_space<vmem>>, vector<1x3x3xf32>
    %95 = vector.shape_cast %94 : vector<1x3x3xf32> to vector<3x3xf32>
    %96 = arith.truncf %1 : vector<8x3xf32> to vector<8x3xbf16>
    %97 = arith.truncf %95 : vector<3x3xf32> to vector<3x3xbf16>
    %cst_49 = arith.constant dense<0.000000e+00> : vector<8x3xf32>
    %98 = tpu.matmul %96, %97, %cst_49 {dimension_numbers = #tpu.dot_dimension_numbers<[1], [0], [0], [1], [0, 0, 1, 1], [], []>} : vector<8x3xbf16>, vector<3x3xbf16>, vector<8x3xf32> -> vector<8x3xf32>
    %c0_50 = arith.constant 0 : index
    %c0_51 = arith.constant 0 : index
    %99 = vector.load %arg16[%c0_50, %c0_51] : memref<27x32xf32, #tpu.memory_space<vmem>>, vector<27x32xf32>
    %100 = vector.extract_strided_slice %99 {offsets = [0, 0], sizes = [3, 32], strides = [1, 1]} : vector<27x32xf32> to vector<3x32xf32>
    %101 = arith.truncf %98 : vector<8x3xf32> to vector<8x3xbf16>
    %102 = arith.truncf %100 : vector<3x32xf32> to vector<3x32xbf16>
    %cst_52 = arith.constant dense<0.000000e+00> : vector<8x32xf32>
    %103 = tpu.matmul %101, %102, %cst_52 {dimension_numbers = #tpu.dot_dimension_numbers<[1], [0], [0], [1], [0, 0, 1, 1], [], []>} : vector<8x3xbf16>, vector<3x32xbf16>, vector<8x32xf32> -> vector<8x32xf32>
    %104 = vector.extract_strided_slice %99 {offsets = [3, 0], sizes = [8, 32], strides = [1, 1]} : vector<27x32xf32> to vector<8x32xf32>
    %105 = arith.truncf %59 : vector<8x8xf32> to vector<8x8xbf16>
    %106 = arith.truncf %104 : vector<8x32xf32> to vector<8x32xbf16>
    %cst_53 = arith.constant dense<0.000000e+00> : vector<8x32xf32>
    %107 = tpu.matmul %105, %106, %cst_53 {dimension_numbers = #tpu.dot_dimension_numbers<[1], [0], [0], [1], [0, 0, 1, 1], [], []>} : vector<8x8xbf16>, vector<8x32xbf16>, vector<8x32xf32> -> vector<8x32xf32>
    %108 = arith.addf %103, %107 : vector<8x32xf32>
    %109 = vector.extract_strided_slice %99 {offsets = [11, 0], sizes = [16, 32], strides = [1, 1]} : vector<27x32xf32> to vector<16x32xf32>
    %110 = arith.truncf %93 : vector<8x16xf32> to vector<8x16xbf16>
    %111 = arith.truncf %109 : vector<16x32xf32> to vector<16x32xbf16>
    %cst_54 = arith.constant dense<0.000000e+00> : vector<8x32xf32>
    %112 = tpu.matmul %110, %111, %cst_54 {dimension_numbers = #tpu.dot_dimension_numbers<[1], [0], [0], [1], [0, 0, 1, 1], [], []>} : vector<8x16xbf16>, vector<16x32xbf16>, vector<8x32xf32> -> vector<8x32xf32>
    %113 = arith.addf %108, %112 : vector<8x32xf32>
    %c0_55 = arith.constant 0 : index
    %c0_56 = arith.constant 0 : index
    %114 = vector.load %arg17[%c0_55, %c0_56] : memref<1x32xf32, #tpu.memory_space<vmem>>, vector<1x32xf32>
    %115 = vector.broadcast %114 : vector<1x32xf32> to vector<8x32xf32>
    %116 = arith.addf %113, %115 : vector<8x32xf32>
    %117 = arith.mulf %116, %116 : vector<8x32xf32>
    %118 = arith.mulf %116, %117 : vector<8x32xf32>
    %cst_57 = arith.constant 4.471500e-02 : f32
    %119 = vector.broadcast %cst_57 : f32 to vector<8x32xf32>
    %120 = arith.mulf %119, %118 : vector<8x32xf32>
    %121 = arith.addf %116, %120 : vector<8x32xf32>
    %cst_58 = arith.constant 0.797884583 : f32
    %122 = vector.broadcast %cst_58 : f32 to vector<8x32xf32>
    %123 = arith.mulf %122, %121 : vector<8x32xf32>
    %124 = math.tanh %123 : vector<8x32xf32>
    %cst_59 = arith.constant 1.000000e+00 : f32
    %125 = vector.broadcast %cst_59 : f32 to vector<8x32xf32>
    %126 = arith.addf %125, %124 : vector<8x32xf32>
    %cst_60 = arith.constant 5.000000e-01 : f32
    %127 = vector.broadcast %cst_60 : f32 to vector<8x32xf32>
    %128 = arith.mulf %127, %126 : vector<8x32xf32>
    %129 = arith.mulf %116, %128 : vector<8x32xf32>
    %c0_61 = arith.constant 0 : index
    %c0_62 = arith.constant 0 : index
    %130 = vector.load %arg18[%c0_61, %c0_62] : memref<32x32xbf16, #tpu.memory_space<vmem>>, vector<32x32xbf16>
    %131 = arith.truncf %129 : vector<8x32xf32> to vector<8x32xbf16>
    %cst_63 = arith.constant dense<0.000000e+00> : vector<8x32xf32>
    %132 = tpu.matmul %131, %130, %cst_63 {dimension_numbers = #tpu.dot_dimension_numbers<[1], [0], [0], [1], [0, 0, 1, 1], [], []>} : vector<8x32xbf16>, vector<32x32xbf16>, vector<8x32xf32> -> vector<8x32xf32>
    %c0_64 = arith.constant 0 : index
    %c0_65 = arith.constant 0 : index
    %133 = vector.load %arg19[%c0_64, %c0_65] : memref<1x32xf32, #tpu.memory_space<vmem>>, vector<1x32xf32>
    %134 = vector.broadcast %133 : vector<1x32xf32> to vector<8x32xf32>
    %135 = arith.addf %132, %134 : vector<8x32xf32>
    %136 = vector.broadcast %3 : vector<8x1xf32> to vector<8x32xf32>
    %137 = arith.mulf %136, %135 : vector<8x32xf32>
    %cst_66 = arith.constant dense<0.000000e+00> : vector<32xf32>
    %138 = vector.multi_reduction <add>, %137, %cst_66 [0] : vector<8x32xf32> to vector<32xf32>
    %139 = vector.shape_cast %138 : vector<32xf32> to vector<1x32xf32>
    %140 = vector.broadcast %11 : vector<1x1xf32> to vector<1x32xf32>
    %141 = arith.mulf %139, %140 : vector<1x32xf32>
    %c0_67 = arith.constant 0 : index
    %c0_68 = arith.constant 0 : index
    %142 = vector.load %arg20[%c0_67, %c0_68] : memref<32x32xbf16, #tpu.memory_space<vmem>>, vector<32x32xbf16>
    %143 = arith.truncf %141 : vector<1x32xf32> to vector<1x32xbf16>
    %cst_69 = arith.constant dense<0.000000e+00> : vector<1x32xf32>
    %144 = tpu.matmul %143, %142, %cst_69 {dimension_numbers = #tpu.dot_dimension_numbers<[1], [0], [0], [1], [0, 0, 1, 1], [], []>} : vector<1x32xbf16>, vector<32x32xbf16>, vector<1x32xf32> -> vector<1x32xf32>
    %c0_70 = arith.constant 0 : index
    %c0_71 = arith.constant 0 : index
    %145 = vector.load %arg21[%c0_70, %c0_71] : memref<1x32xf32, #tpu.memory_space<vmem>>, vector<1x32xf32>
    %146 = arith.addf %144, %145 : vector<1x32xf32>
    %147 = arith.mulf %146, %146 : vector<1x32xf32>
    %148 = arith.mulf %146, %147 : vector<1x32xf32>
    %cst_72 = arith.constant 4.471500e-02 : f32
    %149 = vector.broadcast %cst_72 : f32 to vector<1x32xf32>
    %150 = arith.mulf %149, %148 : vector<1x32xf32>
    %151 = arith.addf %146, %150 : vector<1x32xf32>
    %cst_73 = arith.constant 0.797884583 : f32
    %152 = vector.broadcast %cst_73 : f32 to vector<1x32xf32>
    %153 = arith.mulf %152, %151 : vector<1x32xf32>
    %154 = math.tanh %153 : vector<1x32xf32>
    %cst_74 = arith.constant 1.000000e+00 : f32
    %155 = vector.broadcast %cst_74 : f32 to vector<1x32xf32>
    %156 = arith.addf %155, %154 : vector<1x32xf32>
    %cst_75 = arith.constant 5.000000e-01 : f32
    %157 = vector.broadcast %cst_75 : f32 to vector<1x32xf32>
    %158 = arith.mulf %157, %156 : vector<1x32xf32>
    %159 = arith.mulf %146, %158 : vector<1x32xf32>
    %c0_76 = arith.constant 0 : index
    %c0_77 = arith.constant 0 : index
    %160 = vector.load %arg22[%c0_76, %c0_77] : memref<32x9xf32, #tpu.memory_space<vmem>>, vector<32x9xf32>
    %161 = arith.truncf %159 : vector<1x32xf32> to vector<1x32xbf16>
    %162 = arith.truncf %160 : vector<32x9xf32> to vector<32x9xbf16>
    %cst_78 = arith.constant dense<0.000000e+00> : vector<1x9xf32>
    %163 = tpu.matmul %161, %162, %cst_78 {dimension_numbers = #tpu.dot_dimension_numbers<[1], [0], [0], [1], [0, 0, 1, 1], [], []>} : vector<1x32xbf16>, vector<32x9xbf16>, vector<1x9xf32> -> vector<1x9xf32>
    %c0_79 = arith.constant 0 : index
    %c0_80 = arith.constant 0 : index
    %164 = vector.load %arg23[%c0_79, %c0_80] : memref<1x9xf32, #tpu.memory_space<vmem>>, vector<1x9xf32>
    %165 = arith.addf %163, %164 : vector<1x9xf32>
    %c0_81 = arith.constant 0 : index
    %c0_82 = arith.constant 0 : index
    %c0_83 = arith.constant 0 : index
    %166 = vector.load %arg24[%c0_81, %c0_82, %c0_83] : memref<1x1x9xf32, #tpu.memory_space<vmem>>, vector<1x1x9xf32>
    %167 = vector.shape_cast %166 : vector<1x1x9xf32> to vector<1x9xf32>
    %168 = vector.shape_cast %165 : vector<1x9xf32> to vector<1x1x9xf32>
    tpu.vector_store %arg24[%c0_81, %c0_82, %c0_83], %168 {strides = array<i32>} : memref<1x1x9xf32, #tpu.memory_space<vmem>>, vector<1x1x9xf32>,
    return
  }
  func.func @transform_0(%arg0: i32) -> (i32, i32, i32) {
    %c0_i32 = arith.constant 0 : i32
    %c0_i32_0 = arith.constant 0 : i32
    %c0_i32_1 = arith.constant 0 : i32
    return %arg0, %c0_i32, %c0_i32_0 : i32, i32, i32
  }
  func.func @transform_1(%arg0: i32) -> (i32, i32, i32) {
    %c0_i32 = arith.constant 0 : i32
    %c0_i32_0 = arith.constant 0 : i32
    %c0_i32_1 = arith.constant 0 : i32
    return %arg0, %c0_i32, %c0_i32_0 : i32, i32, i32
  }
  func.func @transform_2(%arg0: i32) -> (i32, i32, i32) {
    %c0_i32 = arith.constant 0 : i32
    %c0_i32_0 = arith.constant 0 : i32
    %c0_i32_1 = arith.constant 0 : i32
    return %arg0, %c0_i32, %c0_i32_0 : i32, i32, i32
  }
  func.func @transform_3(%arg0: i32) -> (i32, i32, i32) {
    %c0_i32 = arith.constant 0 : i32
    %c0_i32_0 = arith.constant 0 : i32
    %c0_i32_1 = arith.constant 0 : i32
    return %arg0, %c0_i32, %c0_i32_0 : i32, i32, i32
  }
  func.func @transform_4(%arg0: i32) -> (i32, i32, i32) {
    %c0_i32 = arith.constant 0 : i32
    %c0_i32_0 = arith.constant 0 : i32
    %c0_i32_1 = arith.constant 0 : i32
    return %arg0, %c0_i32, %c0_i32_0 : i32, i32, i32
  }
  func.func @transform_5(%arg0: i32) -> (i32, i32) {
    %c0_i32 = arith.constant 0 : i32
    %c0_i32_0 = arith.constant 0 : i32
    %c0_i32_1 = arith.constant 0 : i32
    return %c0_i32, %c0_i32_0 : i32, i32
  }
  func.func @transform_6(%arg0: i32) -> (i32, i32) {
    %c0_i32 = arith.constant 0 : i32
    %c0_i32_0 = arith.constant 0 : i32
    %c0_i32_1 = arith.constant 0 : i32
    return %c0_i32, %c0_i32_0 : i32, i32
  }
  func.func @transform_7(%arg0: i32) -> (i32, i32) {
    %c0_i32 = arith.constant 0 : i32
    %c0_i32_0 = arith.constant 0 : i32
    %c0_i32_1 = arith.constant 0 : i32
    return %c0_i32, %c0_i32_0 : i32, i32
  }
  func.func @transform_8(%arg0: i32) -> (i32, i32) {
    %c0_i32 = arith.constant 0 : i32
    %c0_i32_0 = arith.constant 0 : i32
    %c0_i32_1 = arith.constant 0 : i32
    return %c0_i32, %c0_i32_0 : i32, i32
  }
  func.func @transform_9(%arg0: i32) -> (i32, i32) {
    %c0_i32 = arith.constant 0 : i32
    %c0_i32_0 = arith.constant 0 : i32
    %c0_i32_1 = arith.constant 0 : i32
    return %c0_i32, %c0_i32_0 : i32, i32
  }
  func.func @transform_10(%arg0: i32) -> (i32, i32) {
    %c0_i32 = arith.constant 0 : i32
    %c0_i32_0 = arith.constant 0 : i32
    %c0_i32_1 = arith.constant 0 : i32
    return %c0_i32, %c0_i32_0 : i32, i32
  }
  func.func @transform_11(%arg0: i32) -> (i32, i32) {
    %c0_i32 = arith.constant 0 : i32
    %c0_i32_0 = arith.constant 0 : i32
    %c0_i32_1 = arith.constant 0 : i32
    return %c0_i32, %c0_i32_0 : i32, i32
  }
  func.func @transform_12(%arg0: i32) -> (i32, i32) {
    %c0_i32 = arith.constant 0 : i32
    %c0_i32_0 = arith.constant 0 : i32
    %c0_i32_1 = arith.constant 0 : i32
    return %c0_i32, %c0_i32_0 : i32, i32
  }
  func.func @transform_13(%arg0: i32) -> (i32, i32) {
    %c0_i32 = arith.constant 0 : i32
    %c0_i32_0 = arith.constant 0 : i32
    %c0_i32_1 = arith.constant 0 : i32
    return %c0_i32, %c0_i32_0 : i32, i32
  }
  func.func @transform_14(%arg0: i32) -> (i32, i32) {
    %c0_i32 = arith.constant 0 : i32
    %c0_i32_0 = arith.constant 0 : i32
    %c0_i32_1 = arith.constant 0 : i32
    return %c0_i32, %c0_i32_0 : i32, i32
  }
  func.func @transform_15(%arg0: i32) -> (i32, i32) {
    %c0_i32 = arith.constant 0 : i32
    %c0_i32_0 = arith.constant 0 : i32
    %c0_i32_1 = arith.constant 0 : i32
    return %c0_i32, %c0_i32_0 : i32, i32
  }
  func.func @transform_16(%arg0: i32) -> (i32, i32) {
    %c0_i32 = arith.constant 0 : i32
    %c0_i32_0 = arith.constant 0 : i32
    %c0_i32_1 = arith.constant 0 : i32
    return %c0_i32, %c0_i32_0 : i32, i32
  }
  func.func @transform_17(%arg0: i32) -> (i32, i32) {
    %c0_i32 = arith.constant 0 : i32
    %c0_i32_0 = arith.constant 0 : i32
    %c0_i32_1 = arith.constant 0 : i32
    return %c0_i32, %c0_i32_0 : i32, i32
  }
  func.func @transform_18(%arg0: i32) -> (i32, i32) {
    %c0_i32 = arith.constant 0 : i32
    %c0_i32_0 = arith.constant 0 : i32
    %c0_i32_1 = arith.constant 0 : i32
    return %c0_i32, %c0_i32_0 : i32, i32
  }
  func.func @transform_19(%arg0: i32) -> (i32, i32) {
    %c0_i32 = arith.constant 0 : i32
    %c0_i32_0 = arith.constant 0 : i32
    %c0_i32_1 = arith.constant 0 : i32
    return %c0_i32, %c0_i32_0 : i32, i32
  }
  func.func @transform_20(%arg0: i32) -> (i32, i32) {
    %c0_i32 = arith.constant 0 : i32
    %c0_i32_0 = arith.constant 0 : i32
    %c0_i32_1 = arith.constant 0 : i32
    return %c0_i32, %c0_i32_0 : i32, i32
  }
  func.func @transform_21(%arg0: i32) -> (i32, i32) {
    %c0_i32 = arith.constant 0 : i32
    %c0_i32_0 = arith.constant 0 : i32
    %c0_i32_1 = arith.constant 0 : i32
    return %c0_i32, %c0_i32_0 : i32, i32
  }
  func.func @transform_22(%arg0: i32) -> (i32, i32) {
    %c0_i32 = arith.constant 0 : i32
    %c0_i32_0 = arith.constant 0 : i32
    %c0_i32_1 = arith.constant 0 : i32
    return %c0_i32, %c0_i32_0 : i32, i32
  }
  func.func @transform_23(%arg0: i32) -> (i32, i32, i32) {
    %c0_i32 = arith.constant 0 : i32
    %c0_i32_0 = arith.constant 0 : i32
    %c0_i32_1 = arith.constant 0 : i32
    return %arg0, %c0_i32, %c0_i32_0 : i32, i32, i32
  }
  func.func @transform_24(%arg0: i32) -> (i32, i32, i32) {
    %c0_i32 = arith.constant 0 : i32
    %c0_i32_0 = arith.constant 0 : i32
    %c0_i32_1 = arith.constant 0 : i32
    return %arg0, %c0_i32, %c0_i32_0 : i32, i32, i32
  }
}

module attributes {stable_mosaic.version = 11 : i64} {
  func.func @_stage_b_kernel(%arg0: i32, %arg1: memref<1x8x3xf32, #tpu.memory_space<vmem>>, %arg2: memref<1x8x5xf32, #tpu.memory_space<vmem>>, %arg3: memref<1x8x1xf32, #tpu.memory_space<vmem>>, %arg4: memref<1x1x8xf32, #tpu.memory_space<vmem>>, %arg5: memref<1x1x256xf32, #tpu.memory_space<vmem>>, %arg6: memref<1x3x3xf32, #tpu.memory_space<vmem>>, %arg7: memref<1x3x3xf32, #tpu.memory_space<vmem>>, %arg8: memref<1x8x16xf32, #tpu.memory_space<vmem>>, %arg9: memref<8x16xf32, #tpu.memory_space<vmem>>, %arg10: memref<1x16xf32, #tpu.memory_space<vmem>>, %arg11: memref<256x32xbf16, #tpu.memory_space<vmem>>, %arg12: memref<1x32xf32, #tpu.memory_space<vmem>>, %arg13: memref<32x32xbf16, #tpu.memory_space<vmem>>, %arg14: memref<1x32xf32, #tpu.memory_space<vmem>>, %arg15: memref<32x192xbf16, #tpu.memory_space<vmem>>, %arg16: memref<1x192xf32, #tpu.memory_space<vmem>>, %arg17: memref<32x96xbf16, #tpu.memory_space<vmem>>, %arg18: memref<1x96xf32, #tpu.memory_space<vmem>>, %arg19: memref<32x32xf32, #tpu.memory_space<vmem>>, %arg20: memref<1x32xf32, #tpu.memory_space<vmem>>, %arg21: memref<32x64xbf16, #tpu.memory_space<vmem>>, %arg22: memref<1x64xf32, #tpu.memory_space<vmem>>, %arg23: memref<64x32xbf16, #tpu.memory_space<vmem>>, %arg24: memref<1x32xf32, #tpu.memory_space<vmem>>, %arg25: memref<32x192xbf16, #tpu.memory_space<vmem>>, %arg26: memref<1x192xf32, #tpu.memory_space<vmem>>, %arg27: memref<32x96xbf16, #tpu.memory_space<vmem>>, %arg28: memref<1x96xf32, #tpu.memory_space<vmem>>, %arg29: memref<32x32xf32, #tpu.memory_space<vmem>>, %arg30: memref<1x32xf32, #tpu.memory_space<vmem>>, %arg31: memref<32x64xbf16, #tpu.memory_space<vmem>>, %arg32: memref<1x64xf32, #tpu.memory_space<vmem>>, %arg33: memref<64x32xbf16, #tpu.memory_space<vmem>>, %arg34: memref<1x32xf32, #tpu.memory_space<vmem>>, %arg35: memref<32x64xbf16, #tpu.memory_space<vmem>>, %arg36: memref<1x64xf32, #tpu.memory_space<vmem>>, %arg37: memref<32x8xbf16, #tpu.memory_space<vmem>>, %arg38: memref<1x8xf32, #tpu.memory_space<vmem>>, %arg39: memref<1x8x8xf32, #tpu.memory_space<vmem>>, %arg40: memref<8x32xf32, #tpu.memory_space<vmem>>) attributes {dimension_semantics = [#tpu.dimension_semantics<parallel>], iteration_bounds = array<i64: 2>, scalar_prefetch = 0 : i64, scratch_operands = 1 : i64, tpu.core_type = #tpu.core_type<tc>, window_params = [{transform_indices = @transform_0, window_bounds = array<i64: 1, 8, 3>}, {transform_indices = @transform_1, window_bounds = array<i64: 1, 8, 5>}, {transform_indices = @transform_2, window_bounds = array<i64: 1, 8, 1>}, {transform_indices = @transform_3, window_bounds = array<i64: 1, 1, 8>}, {transform_indices = @transform_4, window_bounds = array<i64: 1, 1, 256>}, {transform_indices = @transform_5, window_bounds = array<i64: 1, 3, 3>}, {transform_indices = @transform_6, window_bounds = array<i64: 1, 3, 3>}, {transform_indices = @transform_7, window_bounds = array<i64: 1, 8, 16>}, {pipeline_mode = #tpu.pipeline_mode<synchronous>, transform_indices = @transform_8, window_bounds = array<i64: 8, 16>}, {pipeline_mode = #tpu.pipeline_mode<synchronous>, transform_indices = @transform_9, window_bounds = array<i64: 1, 16>}, {pipeline_mode = #tpu.pipeline_mode<synchronous>, transform_indices = @transform_10, window_bounds = array<i64: 256, 32>}, {pipeline_mode = #tpu.pipeline_mode<synchronous>, transform_indices = @transform_11, window_bounds = array<i64: 1, 32>}, {pipeline_mode = #tpu.pipeline_mode<synchronous>, transform_indices = @transform_12, window_bounds = array<i64: 32, 32>}, {pipeline_mode = #tpu.pipeline_mode<synchronous>, transform_indices = @transform_13, window_bounds = array<i64: 1, 32>}, {pipeline_mode = #tpu.pipeline_mode<synchronous>, transform_indices = @transform_14, window_bounds = array<i64: 32, 192>}, {pipeline_mode = #tpu.pipeline_mode<synchronous>, transform_indices = @transform_15, window_bounds = array<i64: 1, 192>}, {pipeline_mode = #tpu.pipeline_mode<synchronous>, transform_indices = @transform_16, window_bounds = array<i64: 32, 96>}, {pipeline_mode = #tpu.pipeline_mode<synchronous>, transform_indices = @transform_17, window_bounds = array<i64: 1, 96>}, {pipeline_mode = #tpu.pipeline_mode<synchronous>, transform_indices = @transform_18, window_bounds = array<i64: 32, 32>}, {pipeline_mode = #tpu.pipeline_mode<synchronous>, transform_indices = @transform_19, window_bounds = array<i64: 1, 32>}, {pipeline_mode = #tpu.pipeline_mode<synchronous>, transform_indices = @transform_20, window_bounds = array<i64: 32, 64>}, {pipeline_mode = #tpu.pipeline_mode<synchronous>, transform_indices = @transform_21, window_bounds = array<i64: 1, 64>}, {pipeline_mode = #tpu.pipeline_mode<synchronous>, transform_indices = @transform_22, window_bounds = array<i64: 64, 32>}, {pipeline_mode = #tpu.pipeline_mode<synchronous>, transform_indices = @transform_23, window_bounds = array<i64: 1, 32>}, {pipeline_mode = #tpu.pipeline_mode<synchronous>, transform_indices = @transform_24, window_bounds = array<i64: 32, 192>}, {pipeline_mode = #tpu.pipeline_mode<synchronous>, transform_indices = @transform_25, window_bounds = array<i64: 1, 192>}, {pipeline_mode = #tpu.pipeline_mode<synchronous>, transform_indices = @transform_26, window_bounds = array<i64: 32, 96>}, {pipeline_mode = #tpu.pipeline_mode<synchronous>, transform_indices = @transform_27, window_bounds = array<i64: 1, 96>}, {pipeline_mode = #tpu.pipeline_mode<synchronous>, transform_indices = @transform_28, window_bounds = array<i64: 32, 32>}, {pipeline_mode = #tpu.pipeline_mode<synchronous>, transform_indices = @transform_29, window_bounds = array<i64: 1, 32>}, {pipeline_mode = #tpu.pipeline_mode<synchronous>, transform_indices = @transform_30, window_bounds = array<i64: 32, 64>}, {pipeline_mode = #tpu.pipeline_mode<synchronous>, transform_indices = @transform_31, window_bounds = array<i64: 1, 64>}, {pipeline_mode = #tpu.pipeline_mode<synchronous>, transform_indices = @transform_32, window_bounds = array<i64: 64, 32>}, {pipeline_mode = #tpu.pipeline_mode<synchronous>, transform_indices = @transform_33, window_bounds = array<i64: 1, 32>}, {pipeline_mode = #tpu.pipeline_mode<synchronous>, transform_indices = @transform_34, window_bounds = array<i64: 32, 64>}, {pipeline_mode = #tpu.pipeline_mode<synchronous>, transform_indices = @transform_35, window_bounds = array<i64: 1, 64>}, {pipeline_mode = #tpu.pipeline_mode<synchronous>, transform_indices = @transform_36, window_bounds = array<i64: 32, 8>}, {pipeline_mode = #tpu.pipeline_mode<synchronous>, transform_indices = @transform_37, window_bounds = array<i64: 1, 8>}, {transform_indices = @transform_38, window_bounds = array<i64: 1, 8, 8>}]} {
    %c0 = arith.constant 0 : index
    %c0_0 = arith.constant 0 : index
    %c0_1 = arith.constant 0 : index
    %0 = vector.load %arg1[%c0, %c0_0, %c0_1] : memref<1x8x3xf32, #tpu.memory_space<vmem>>, vector<1x8x3xf32>
    %1 = vector.shape_cast %0 : vector<1x8x3xf32> to vector<8x3xf32>
    %c0_2 = arith.constant 0 : index
    %c0_3 = arith.constant 0 : index
    %c0_4 = arith.constant 0 : index
    %2 = vector.load %arg2[%c0_2, %c0_3, %c0_4] : memref<1x8x5xf32, #tpu.memory_space<vmem>>, vector<1x8x5xf32>
    %3 = vector.shape_cast %2 : vector<1x8x5xf32> to vector<8x5xf32>
    %c0_5 = arith.constant 0 : index
    %c0_6 = arith.constant 0 : index
    %c0_7 = arith.constant 0 : index
    %4 = vector.load %arg3[%c0_5, %c0_6, %c0_7] : memref<1x8x1xf32, #tpu.memory_space<vmem>>, vector<1x8x1xf32>
    %5 = vector.shape_cast %4 : vector<1x8x1xf32> to vector<8x1xf32>
    %c0_8 = arith.constant 0 : index
    %c0_9 = arith.constant 0 : index
    %c0_10 = arith.constant 0 : index
    %6 = vector.load %arg4[%c0_8, %c0_9, %c0_10] : memref<1x1x8xf32, #tpu.memory_space<vmem>>, vector<1x1x8xf32>
    %7 = vector.shape_cast %6 : vector<1x1x8xf32> to vector<1x8xf32>
    %8 = vector.shape_cast %5 : vector<8x1xf32> to vector<1x8x1xf32>
    %cst = arith.constant dense<0.000000e+00> : vector<1xf32>
    %9 = vector.multi_reduction <add>, %8, %cst [1, 2] : vector<1x8x1xf32> to vector<1xf32>
    %10 = vector.shape_cast %9 : vector<1xf32> to vector<1x1x1xf32>
    %11 = vector.extract %10[0, 0, 0] : f32 from vector<1x1x1xf32>
    %12 = vector.broadcast %11 : f32 to vector<1x1xf32>
    %13 = tpu.reciprocal %12 {approx = true} : vector<1x1xf32> -> vector<1x1xf32>
    %c0_11 = arith.constant 0 : index
    %c0_12 = arith.constant 0 : index
    %c0_13 = arith.constant 0 : index
    %14 = vector.load %arg6[%c0_11, %c0_12, %c0_13] : memref<1x3x3xf32, #tpu.memory_space<vmem>>, vector<1x3x3xf32>
    %15 = vector.shape_cast %14 : vector<1x3x3xf32> to vector<3x3xf32>
    %c0_14 = arith.constant 0 : index
    %c0_15 = arith.constant 0 : index
    %c0_16 = arith.constant 0 : index
    %16 = vector.load %arg7[%c0_14, %c0_15, %c0_16] : memref<1x3x3xf32, #tpu.memory_space<vmem>>, vector<1x3x3xf32>
    %17 = vector.shape_cast %16 : vector<1x3x3xf32> to vector<3x3xf32>
    %18 = arith.truncf %15 : vector<3x3xf32> to vector<3x3xbf16>
    %19 = arith.truncf %17 : vector<3x3xf32> to vector<3x3xbf16>
    %cst_17 = arith.constant dense<0.000000e+00> : vector<3x3xf32>
    %20 = tpu.matmul %18, %19, %cst_17 {dimension_numbers = #tpu.dot_dimension_numbers<[1], [1], [0], [0], [0, 0, 1, 0], [], []>} : vector<3x3xbf16>, vector<3x3xbf16>, vector<3x3xf32> -> vector<3x3xf32>
    %21 = arith.truncf %1 : vector<8x3xf32> to vector<8x3xbf16>
    %22 = arith.truncf %20 : vector<3x3xf32> to vector<3x3xbf16>
    %cst_18 = arith.constant dense<0.000000e+00> : vector<8x3xf32>
    %23 = tpu.matmul %21, %22, %cst_18 {dimension_numbers = #tpu.dot_dimension_numbers<[1], [0], [0], [1], [0, 0, 1, 1], [], []>} : vector<8x3xbf16>, vector<3x3xbf16>, vector<8x3xf32> -> vector<8x3xf32>
    %c0_19 = arith.constant 0 : index
    %c0_20 = arith.constant 0 : index
    %24 = vector.load %arg9[%c0_19, %c0_20] : memref<8x16xf32, #tpu.memory_space<vmem>>, vector<8x16xf32>
    %25 = vector.extract_strided_slice %24 {offsets = [0, 0], sizes = [3, 16], strides = [1, 1]} : vector<8x16xf32> to vector<3x16xf32>
    %26 = arith.truncf %23 : vector<8x3xf32> to vector<8x3xbf16>
    %27 = arith.truncf %25 : vector<3x16xf32> to vector<3x16xbf16>
    %cst_21 = arith.constant dense<0.000000e+00> : vector<8x16xf32>
    %28 = tpu.matmul %26, %27, %cst_21 {dimension_numbers = #tpu.dot_dimension_numbers<[1], [0], [0], [1], [0, 0, 1, 1], [], []>} : vector<8x3xbf16>, vector<3x16xbf16>, vector<8x16xf32> -> vector<8x16xf32>
    %29 = vector.extract_strided_slice %24 {offsets = [3, 0], sizes = [5, 16], strides = [1, 1]} : vector<8x16xf32> to vector<5x16xf32>
    %30 = arith.truncf %3 : vector<8x5xf32> to vector<8x5xbf16>
    %31 = arith.truncf %29 : vector<5x16xf32> to vector<5x16xbf16>
    %cst_22 = arith.constant dense<0.000000e+00> : vector<8x16xf32>
    %32 = tpu.matmul %30, %31, %cst_22 {dimension_numbers = #tpu.dot_dimension_numbers<[1], [0], [0], [1], [0, 0, 1, 1], [], []>} : vector<8x5xbf16>, vector<5x16xbf16>, vector<8x16xf32> -> vector<8x16xf32>
    %33 = arith.addf %28, %32 : vector<8x16xf32>
    %c0_23 = arith.constant 0 : index
    %c0_24 = arith.constant 0 : index
    %34 = vector.load %arg10[%c0_23, %c0_24] : memref<1x16xf32, #tpu.memory_space<vmem>>, vector<1x16xf32>
    %35 = vector.broadcast %34 : vector<1x16xf32> to vector<8x16xf32>
    %36 = arith.addf %33, %35 : vector<8x16xf32>
    %37 = vector.broadcast %5 : vector<8x1xf32> to vector<8x16xf32>
    %38 = arith.mulf %36, %37 : vector<8x16xf32>
    %c0_25 = arith.constant 0 : index
    %c0_26 = arith.constant 0 : index
    %39 = vector.load %arg40[%c0_25, %c0_26] : memref<8x32xf32, #tpu.memory_space<vmem>>, vector<8x16xf32>
    tpu.vector_store %arg40[%c0_25, %c0_26], %38 {strides = array<i32>} : memref<8x32xf32, #tpu.memory_space<vmem>>, vector<8x16xf32>,
    %c0_27 = arith.constant 0 : index
    %c0_28 = arith.constant 0 : index
    %c0_29 = arith.constant 0 : index
    %40 = vector.load %arg8[%c0_27, %c0_28, %c0_29] : memref<1x8x16xf32, #tpu.memory_space<vmem>>, vector<1x8x16xf32>
    %41 = vector.shape_cast %40 : vector<1x8x16xf32> to vector<8x16xf32>
    %42 = vector.broadcast %5 : vector<8x1xf32> to vector<8x16xf32>
    %43 = arith.mulf %41, %42 : vector<8x16xf32>
    %c0_30 = arith.constant 0 : index
    %c16 = arith.constant 16 : index
    %44 = vector.load %arg40[%c0_30, %c16] : memref<8x32xf32, #tpu.memory_space<vmem>>, vector<8x16xf32>
    tpu.vector_store %arg40[%c0_30, %c16], %43 {strides = array<i32>} : memref<8x32xf32, #tpu.memory_space<vmem>>, vector<8x16xf32>,
    %c0_31 = arith.constant 0 : index
    %c0_32 = arith.constant 0 : index
    %45 = vector.load %arg40[%c0_31, %c0_32] : memref<8x32xf32, #tpu.memory_space<vmem>>, vector<8x32xf32>
    %c0_33 = arith.constant 0 : index
    %c0_34 = arith.constant 0 : index
    %c0_35 = arith.constant 0 : index
    %46 = vector.load %arg5[%c0_33, %c0_34, %c0_35] : memref<1x1x256xf32, #tpu.memory_space<vmem>>, vector<1x1x256xf32>
    %47 = vector.shape_cast %46 : vector<1x1x256xf32> to vector<1x256xf32>
    %c0_36 = arith.constant 0 : index
    %c0_37 = arith.constant 0 : index
    %48 = vector.load %arg11[%c0_36, %c0_37] : memref<256x32xbf16, #tpu.memory_space<vmem>>, vector<256x32xbf16>
    %49 = arith.truncf %47 : vector<1x256xf32> to vector<1x256xbf16>
    %cst_38 = arith.constant dense<0.000000e+00> : vector<1x32xf32>
    %50 = tpu.matmul %49, %48, %cst_38 {dimension_numbers = #tpu.dot_dimension_numbers<[1], [0], [0], [1], [0, 0, 1, 1], [], []>} : vector<1x256xbf16>, vector<256x32xbf16>, vector<1x32xf32> -> vector<1x32xf32>
    %c0_39 = arith.constant 0 : index
    %c0_40 = arith.constant 0 : index
    %51 = vector.load %arg12[%c0_39, %c0_40] : memref<1x32xf32, #tpu.memory_space<vmem>>, vector<1x32xf32>
    %52 = arith.addf %50, %51 : vector<1x32xf32>
    %53 = arith.negf %52 : vector<1x32xf32>
    %54 = math.exp %53 : vector<1x32xf32>
    %cst_41 = arith.constant 1.000000e+00 : f32
    %55 = vector.broadcast %cst_41 : f32 to vector<1x32xf32>
    %56 = arith.addf %55, %54 : vector<1x32xf32>
    %57 = arith.divf %55, %56 : vector<1x32xf32>
    %58 = arith.mulf %52, %57 : vector<1x32xf32>
    %c0_42 = arith.constant 0 : index
    %c0_43 = arith.constant 0 : index
    %59 = vector.load %arg13[%c0_42, %c0_43] : memref<32x32xbf16, #tpu.memory_space<vmem>>, vector<32x32xbf16>
    %60 = arith.truncf %58 : vector<1x32xf32> to vector<1x32xbf16>
    %cst_44 = arith.constant dense<0.000000e+00> : vector<1x32xf32>
    %61 = tpu.matmul %60, %59, %cst_44 {dimension_numbers = #tpu.dot_dimension_numbers<[1], [0], [0], [1], [0, 0, 1, 1], [], []>} : vector<1x32xbf16>, vector<32x32xbf16>, vector<1x32xf32> -> vector<1x32xf32>
    %c0_45 = arith.constant 0 : index
    %c0_46 = arith.constant 0 : index
    %62 = vector.load %arg14[%c0_45, %c0_46] : memref<1x32xf32, #tpu.memory_space<vmem>>, vector<1x32xf32>
    %63 = arith.addf %61, %62 : vector<1x32xf32>
    %64 = arith.negf %63 : vector<1x32xf32>
    %65 = math.exp %64 : vector<1x32xf32>
    %cst_47 = arith.constant 1.000000e+00 : f32
    %66 = vector.broadcast %cst_47 : f32 to vector<1x32xf32>
    %67 = arith.addf %66, %65 : vector<1x32xf32>
    %68 = arith.divf %66, %67 : vector<1x32xf32>
    %69 = arith.mulf %63, %68 : vector<1x32xf32>
    %cst_48 = arith.constant 1.000000e+00 : f32
    %70 = vector.broadcast %cst_48 : f32 to vector<1x8xf32>
    %71 = arith.subf %70, %7 : vector<1x8xf32>
    %cst_49 = arith.constant -1.000000e+09 : f32
    %72 = vector.broadcast %cst_49 : f32 to vector<1x8xf32>
    %73 = arith.mulf %71, %72 : vector<1x8xf32>
    %c0_50 = arith.constant 0 : index
    %c0_51 = arith.constant 0 : index
    %74 = vector.load %arg15[%c0_50, %c0_51] : memref<32x192xbf16, #tpu.memory_space<vmem>>, vector<32x192xbf16>
    %75 = arith.truncf %69 : vector<1x32xf32> to vector<1x32xbf16>
    %cst_52 = arith.constant dense<0.000000e+00> : vector<1x192xf32>
    %76 = tpu.matmul %75, %74, %cst_52 {dimension_numbers = #tpu.dot_dimension_numbers<[1], [0], [0], [1], [0, 0, 1, 1], [], []>} : vector<1x32xbf16>, vector<32x192xbf16>, vector<1x192xf32> -> vector<1x192xf32>
    %c0_53 = arith.constant 0 : index
    %c0_54 = arith.constant 0 : index
    %77 = vector.load %arg16[%c0_53, %c0_54] : memref<1x192xf32, #tpu.memory_space<vmem>>, vector<1x192xf32>
    %78 = arith.addf %76, %77 : vector<1x192xf32>
    %79 = vector.extract_strided_slice %78 {offsets = [0, 0], sizes = [1, 32], strides = [1, 1]} : vector<1x192xf32> to vector<1x32xf32>
    %80 = vector.extract_strided_slice %78 {offsets = [0, 32], sizes = [1, 32], strides = [1, 1]} : vector<1x192xf32> to vector<1x32xf32>
    %81 = vector.extract_strided_slice %78 {offsets = [0, 64], sizes = [1, 32], strides = [1, 1]} : vector<1x192xf32> to vector<1x32xf32>
    %82 = vector.extract_strided_slice %78 {offsets = [0, 96], sizes = [1, 32], strides = [1, 1]} : vector<1x192xf32> to vector<1x32xf32>
    %83 = vector.extract_strided_slice %78 {offsets = [0, 128], sizes = [1, 32], strides = [1, 1]} : vector<1x192xf32> to vector<1x32xf32>
    %84 = vector.extract_strided_slice %78 {offsets = [0, 160], sizes = [1, 32], strides = [1, 1]} : vector<1x192xf32> to vector<1x32xf32>
    %cst_55 = arith.constant dense<0.000000e+00> : vector<8xf32>
    %85 = vector.multi_reduction <add>, %45, %cst_55 [1] : vector<8x32xf32> to vector<8xf32>
    %86 = vector.shape_cast %85 : vector<8xf32> to vector<8x1xf32>
    %cst_56 = arith.constant 3.200000e+01 : f32
    %87 = vector.broadcast %cst_56 : f32 to vector<8x1xf32>
    %88 = arith.divf %86, %87 : vector<8x1xf32>
    %89 = vector.broadcast %88 : vector<8x1xf32> to vector<8x32xf32>
    %90 = arith.subf %45, %89 : vector<8x32xf32>
    %91 = arith.mulf %90, %90 : vector<8x32xf32>
    %cst_57 = arith.constant dense<0.000000e+00> : vector<8xf32>
    %92 = vector.multi_reduction <add>, %91, %cst_57 [1] : vector<8x32xf32> to vector<8xf32>
    %93 = vector.shape_cast %92 : vector<8xf32> to vector<8x1xf32>
    %cst_58 = arith.constant 3.200000e+01 : f32
    %94 = vector.broadcast %cst_58 : f32 to vector<8x1xf32>
    %95 = arith.divf %93, %94 : vector<8x1xf32>
    %96 = vector.broadcast %88 : vector<8x1xf32> to vector<8x32xf32>
    %97 = arith.subf %45, %96 : vector<8x32xf32>
    %cst_59 = arith.constant 9.99999997E-7 : f32
    %98 = vector.broadcast %cst_59 : f32 to vector<8x1xf32>
    %99 = arith.addf %95, %98 : vector<8x1xf32>
    %100 = math.rsqrt %99 : vector<8x1xf32>
    %101 = vector.broadcast %100 : vector<8x1xf32> to vector<8x32xf32>
    %102 = arith.mulf %97, %101 : vector<8x32xf32>
    %cst_60 = arith.constant 1.000000e+00 : f32
    %103 = vector.broadcast %cst_60 : f32 to vector<1x32xf32>
    %104 = arith.addf %103, %80 : vector<1x32xf32>
    %105 = vector.broadcast %104 : vector<1x32xf32> to vector<8x32xf32>
    %106 = arith.mulf %102, %105 : vector<8x32xf32>
    %107 = vector.broadcast %79 : vector<1x32xf32> to vector<8x32xf32>
    %108 = arith.addf %106, %107 : vector<8x32xf32>
    %c0_61 = arith.constant 0 : index
    %c0_62 = arith.constant 0 : index
    %109 = vector.load %arg17[%c0_61, %c0_62] : memref<32x96xbf16, #tpu.memory_space<vmem>>, vector<32x96xbf16>
    %110 = arith.truncf %108 : vector<8x32xf32> to vector<8x32xbf16>
    %cst_63 = arith.constant dense<0.000000e+00> : vector<8x96xf32>
    %111 = tpu.matmul %110, %109, %cst_63 {dimension_numbers = #tpu.dot_dimension_numbers<[1], [0], [0], [1], [0, 0, 1, 1], [], []>} : vector<8x32xbf16>, vector<32x96xbf16>, vector<8x96xf32> -> vector<8x96xf32>
    %c0_64 = arith.constant 0 : index
    %c0_65 = arith.constant 0 : index
    %112 = vector.load %arg18[%c0_64, %c0_65] : memref<1x96xf32, #tpu.memory_space<vmem>>, vector<1x96xf32>
    %113 = vector.broadcast %112 : vector<1x96xf32> to vector<8x96xf32>
    %114 = arith.addf %111, %113 : vector<8x96xf32>
    %c0_66 = arith.constant 0 : index
    %c0_67 = arith.constant 0 : index
    %115 = vector.load %arg19[%c0_66, %c0_67] : memref<32x32xf32, #tpu.memory_space<vmem>>, vector<32x32xf32>
    %116 = vector.extract_strided_slice %114 {offsets = [0, 0], sizes = [8, 8], strides = [1, 1]} : vector<8x96xf32> to vector<8x8xf32>
    %117 = vector.extract_strided_slice %114 {offsets = [0, 32], sizes = [8, 8], strides = [1, 1]} : vector<8x96xf32> to vector<8x8xf32>
    %118 = vector.extract_strided_slice %114 {offsets = [0, 64], sizes = [8, 8], strides = [1, 1]} : vector<8x96xf32> to vector<8x8xf32>
    %119 = arith.truncf %116 : vector<8x8xf32> to vector<8x8xbf16>
    %120 = arith.truncf %117 : vector<8x8xf32> to vector<8x8xbf16>
    %cst_68 = arith.constant dense<0.000000e+00> : vector<8x8xf32>
    %121 = tpu.matmul %119, %120, %cst_68 {dimension_numbers = #tpu.dot_dimension_numbers<[1], [1], [0], [0], [0, 0, 1, 0], [], []>} : vector<8x8xbf16>, vector<8x8xbf16>, vector<8x8xf32> -> vector<8x8xf32>
    %cst_69 = arith.constant 0.353553385 : f32
    %122 = vector.broadcast %cst_69 : f32 to vector<8x8xf32>
    %123 = arith.mulf %121, %122 : vector<8x8xf32>
    %124 = vector.broadcast %73 : vector<1x8xf32> to vector<8x8xf32>
    %125 = arith.addf %123, %124 : vector<8x8xf32>
    %cst_70 = arith.constant dense<0xFF800000> : vector<8xf32>
    %126 = vector.multi_reduction <maximumf>, %125, %cst_70 [1] : vector<8x8xf32> to vector<8xf32>
    %127 = vector.shape_cast %126 : vector<8xf32> to vector<8x1xf32>
    %128 = vector.broadcast %127 : vector<8x1xf32> to vector<8x8xf32>
    %129 = arith.subf %125, %128 : vector<8x8xf32>
    %130 = math.exp %129 : vector<8x8xf32>
    %cst_71 = arith.constant dense<0.000000e+00> : vector<8xf32>
    %131 = vector.multi_reduction <add>, %130, %cst_71 [1] : vector<8x8xf32> to vector<8xf32>
    %132 = vector.shape_cast %131 : vector<8xf32> to vector<8x1xf32>
    %133 = tpu.reciprocal %132 {approx = true} : vector<8x1xf32> -> vector<8x1xf32>
    %134 = vector.broadcast %133 : vector<8x1xf32> to vector<8x8xf32>
    %135 = arith.mulf %130, %134 : vector<8x8xf32>
    %136 = arith.truncf %135 : vector<8x8xf32> to vector<8x8xbf16>
    %137 = arith.truncf %118 : vector<8x8xf32> to vector<8x8xbf16>
    %cst_72 = arith.constant dense<0.000000e+00> : vector<8x8xf32>
    %138 = tpu.matmul %136, %137, %cst_72 {dimension_numbers = #tpu.dot_dimension_numbers<[1], [0], [0], [1], [0, 0, 1, 1], [], []>} : vector<8x8xbf16>, vector<8x8xbf16>, vector<8x8xf32> -> vector<8x8xf32>
    %139 = vector.extract_strided_slice %115 {offsets = [0, 0], sizes = [8, 32], strides = [1, 1]} : vector<32x32xf32> to vector<8x32xf32>
    %140 = arith.truncf %138 : vector<8x8xf32> to vector<8x8xbf16>
    %141 = arith.truncf %139 : vector<8x32xf32> to vector<8x32xbf16>
    %cst_73 = arith.constant dense<0.000000e+00> : vector<8x32xf32>
    %142 = tpu.matmul %140, %141, %cst_73 {dimension_numbers = #tpu.dot_dimension_numbers<[1], [0], [0], [1], [0, 0, 1, 1], [], []>} : vector<8x8xbf16>, vector<8x32xbf16>, vector<8x32xf32> -> vector<8x32xf32>
    %143 = vector.extract_strided_slice %114 {offsets = [0, 8], sizes = [8, 8], strides = [1, 1]} : vector<8x96xf32> to vector<8x8xf32>
    %144 = vector.extract_strided_slice %114 {offsets = [0, 40], sizes = [8, 8], strides = [1, 1]} : vector<8x96xf32> to vector<8x8xf32>
    %145 = vector.extract_strided_slice %114 {offsets = [0, 72], sizes = [8, 8], strides = [1, 1]} : vector<8x96xf32> to vector<8x8xf32>
    %146 = arith.truncf %143 : vector<8x8xf32> to vector<8x8xbf16>
    %147 = arith.truncf %144 : vector<8x8xf32> to vector<8x8xbf16>
    %cst_74 = arith.constant dense<0.000000e+00> : vector<8x8xf32>
    %148 = tpu.matmul %146, %147, %cst_74 {dimension_numbers = #tpu.dot_dimension_numbers<[1], [1], [0], [0], [0, 0, 1, 0], [], []>} : vector<8x8xbf16>, vector<8x8xbf16>, vector<8x8xf32> -> vector<8x8xf32>
    %cst_75 = arith.constant 0.353553385 : f32
    %149 = vector.broadcast %cst_75 : f32 to vector<8x8xf32>
    %150 = arith.mulf %148, %149 : vector<8x8xf32>
    %151 = vector.broadcast %73 : vector<1x8xf32> to vector<8x8xf32>
    %152 = arith.addf %150, %151 : vector<8x8xf32>
    %cst_76 = arith.constant dense<0xFF800000> : vector<8xf32>
    %153 = vector.multi_reduction <maximumf>, %152, %cst_76 [1] : vector<8x8xf32> to vector<8xf32>
    %154 = vector.shape_cast %153 : vector<8xf32> to vector<8x1xf32>
    %155 = vector.broadcast %154 : vector<8x1xf32> to vector<8x8xf32>
    %156 = arith.subf %152, %155 : vector<8x8xf32>
    %157 = math.exp %156 : vector<8x8xf32>
    %cst_77 = arith.constant dense<0.000000e+00> : vector<8xf32>
    %158 = vector.multi_reduction <add>, %157, %cst_77 [1] : vector<8x8xf32> to vector<8xf32>
    %159 = vector.shape_cast %158 : vector<8xf32> to vector<8x1xf32>
    %160 = tpu.reciprocal %159 {approx = true} : vector<8x1xf32> -> vector<8x1xf32>
    %161 = vector.broadcast %160 : vector<8x1xf32> to vector<8x8xf32>
    %162 = arith.mulf %157, %161 : vector<8x8xf32>
    %163 = arith.truncf %162 : vector<8x8xf32> to vector<8x8xbf16>
    %164 = arith.truncf %145 : vector<8x8xf32> to vector<8x8xbf16>
    %cst_78 = arith.constant dense<0.000000e+00> : vector<8x8xf32>
    %165 = tpu.matmul %163, %164, %cst_78 {dimension_numbers = #tpu.dot_dimension_numbers<[1], [0], [0], [1], [0, 0, 1, 1], [], []>} : vector<8x8xbf16>, vector<8x8xbf16>, vector<8x8xf32> -> vector<8x8xf32>
    %166 = vector.extract_strided_slice %115 {offsets = [8, 0], sizes = [8, 32], strides = [1, 1]} : vector<32x32xf32> to vector<8x32xf32>
    %167 = arith.truncf %165 : vector<8x8xf32> to vector<8x8xbf16>
    %168 = arith.truncf %166 : vector<8x32xf32> to vector<8x32xbf16>
    %cst_79 = arith.constant dense<0.000000e+00> : vector<8x32xf32>
    %169 = tpu.matmul %167, %168, %cst_79 {dimension_numbers = #tpu.dot_dimension_numbers<[1], [0], [0], [1], [0, 0, 1, 1], [], []>} : vector<8x8xbf16>, vector<8x32xbf16>, vector<8x32xf32> -> vector<8x32xf32>
    %170 = arith.addf %142, %169 : vector<8x32xf32>
    %171 = vector.extract_strided_slice %114 {offsets = [0, 16], sizes = [8, 8], strides = [1, 1]} : vector<8x96xf32> to vector<8x8xf32>
    %172 = vector.extract_strided_slice %114 {offsets = [0, 48], sizes = [8, 8], strides = [1, 1]} : vector<8x96xf32> to vector<8x8xf32>
    %173 = vector.extract_strided_slice %114 {offsets = [0, 80], sizes = [8, 8], strides = [1, 1]} : vector<8x96xf32> to vector<8x8xf32>
    %174 = arith.truncf %171 : vector<8x8xf32> to vector<8x8xbf16>
    %175 = arith.truncf %172 : vector<8x8xf32> to vector<8x8xbf16>
    %cst_80 = arith.constant dense<0.000000e+00> : vector<8x8xf32>
    %176 = tpu.matmul %174, %175, %cst_80 {dimension_numbers = #tpu.dot_dimension_numbers<[1], [1], [0], [0], [0, 0, 1, 0], [], []>} : vector<8x8xbf16>, vector<8x8xbf16>, vector<8x8xf32> -> vector<8x8xf32>
    %cst_81 = arith.constant 0.353553385 : f32
    %177 = vector.broadcast %cst_81 : f32 to vector<8x8xf32>
    %178 = arith.mulf %176, %177 : vector<8x8xf32>
    %179 = vector.broadcast %73 : vector<1x8xf32> to vector<8x8xf32>
    %180 = arith.addf %178, %179 : vector<8x8xf32>
    %cst_82 = arith.constant dense<0xFF800000> : vector<8xf32>
    %181 = vector.multi_reduction <maximumf>, %180, %cst_82 [1] : vector<8x8xf32> to vector<8xf32>
    %182 = vector.shape_cast %181 : vector<8xf32> to vector<8x1xf32>
    %183 = vector.broadcast %182 : vector<8x1xf32> to vector<8x8xf32>
    %184 = arith.subf %180, %183 : vector<8x8xf32>
    %185 = math.exp %184 : vector<8x8xf32>
    %cst_83 = arith.constant dense<0.000000e+00> : vector<8xf32>
    %186 = vector.multi_reduction <add>, %185, %cst_83 [1] : vector<8x8xf32> to vector<8xf32>
    %187 = vector.shape_cast %186 : vector<8xf32> to vector<8x1xf32>
    %188 = tpu.reciprocal %187 {approx = true} : vector<8x1xf32> -> vector<8x1xf32>
    %189 = vector.broadcast %188 : vector<8x1xf32> to vector<8x8xf32>
    %190 = arith.mulf %185, %189 : vector<8x8xf32>
    %191 = arith.truncf %190 : vector<8x8xf32> to vector<8x8xbf16>
    %192 = arith.truncf %173 : vector<8x8xf32> to vector<8x8xbf16>
    %cst_84 = arith.constant dense<0.000000e+00> : vector<8x8xf32>
    %193 = tpu.matmul %191, %192, %cst_84 {dimension_numbers = #tpu.dot_dimension_numbers<[1], [0], [0], [1], [0, 0, 1, 1], [], []>} : vector<8x8xbf16>, vector<8x8xbf16>, vector<8x8xf32> -> vector<8x8xf32>
    %194 = vector.extract_strided_slice %115 {offsets = [16, 0], sizes = [8, 32], strides = [1, 1]} : vector<32x32xf32> to vector<8x32xf32>
    %195 = arith.truncf %193 : vector<8x8xf32> to vector<8x8xbf16>
    %196 = arith.truncf %194 : vector<8x32xf32> to vector<8x32xbf16>
    %cst_85 = arith.constant dense<0.000000e+00> : vector<8x32xf32>
    %197 = tpu.matmul %195, %196, %cst_85 {dimension_numbers = #tpu.dot_dimension_numbers<[1], [0], [0], [1], [0, 0, 1, 1], [], []>} : vector<8x8xbf16>, vector<8x32xbf16>, vector<8x32xf32> -> vector<8x32xf32>
    %198 = arith.addf %170, %197 : vector<8x32xf32>
    %199 = vector.extract_strided_slice %114 {offsets = [0, 24], sizes = [8, 8], strides = [1, 1]} : vector<8x96xf32> to vector<8x8xf32>
    %200 = vector.extract_strided_slice %114 {offsets = [0, 56], sizes = [8, 8], strides = [1, 1]} : vector<8x96xf32> to vector<8x8xf32>
    %201 = vector.extract_strided_slice %114 {offsets = [0, 88], sizes = [8, 8], strides = [1, 1]} : vector<8x96xf32> to vector<8x8xf32>
    %202 = arith.truncf %199 : vector<8x8xf32> to vector<8x8xbf16>
    %203 = arith.truncf %200 : vector<8x8xf32> to vector<8x8xbf16>
    %cst_86 = arith.constant dense<0.000000e+00> : vector<8x8xf32>
    %204 = tpu.matmul %202, %203, %cst_86 {dimension_numbers = #tpu.dot_dimension_numbers<[1], [1], [0], [0], [0, 0, 1, 0], [], []>} : vector<8x8xbf16>, vector<8x8xbf16>, vector<8x8xf32> -> vector<8x8xf32>
    %cst_87 = arith.constant 0.353553385 : f32
    %205 = vector.broadcast %cst_87 : f32 to vector<8x8xf32>
    %206 = arith.mulf %204, %205 : vector<8x8xf32>
    %207 = vector.broadcast %73 : vector<1x8xf32> to vector<8x8xf32>
    %208 = arith.addf %206, %207 : vector<8x8xf32>
    %cst_88 = arith.constant dense<0xFF800000> : vector<8xf32>
    %209 = vector.multi_reduction <maximumf>, %208, %cst_88 [1] : vector<8x8xf32> to vector<8xf32>
    %210 = vector.shape_cast %209 : vector<8xf32> to vector<8x1xf32>
    %211 = vector.broadcast %210 : vector<8x1xf32> to vector<8x8xf32>
    %212 = arith.subf %208, %211 : vector<8x8xf32>
    %213 = math.exp %212 : vector<8x8xf32>
    %cst_89 = arith.constant dense<0.000000e+00> : vector<8xf32>
    %214 = vector.multi_reduction <add>, %213, %cst_89 [1] : vector<8x8xf32> to vector<8xf32>
    %215 = vector.shape_cast %214 : vector<8xf32> to vector<8x1xf32>
    %216 = tpu.reciprocal %215 {approx = true} : vector<8x1xf32> -> vector<8x1xf32>
    %217 = vector.broadcast %216 : vector<8x1xf32> to vector<8x8xf32>
    %218 = arith.mulf %213, %217 : vector<8x8xf32>
    %219 = arith.truncf %218 : vector<8x8xf32> to vector<8x8xbf16>
    %220 = arith.truncf %201 : vector<8x8xf32> to vector<8x8xbf16>
    %cst_90 = arith.constant dense<0.000000e+00> : vector<8x8xf32>
    %221 = tpu.matmul %219, %220, %cst_90 {dimension_numbers = #tpu.dot_dimension_numbers<[1], [0], [0], [1], [0, 0, 1, 1], [], []>} : vector<8x8xbf16>, vector<8x8xbf16>, vector<8x8xf32> -> vector<8x8xf32>
    %222 = vector.extract_strided_slice %115 {offsets = [24, 0], sizes = [8, 32], strides = [1, 1]} : vector<32x32xf32> to vector<8x32xf32>
    %223 = arith.truncf %221 : vector<8x8xf32> to vector<8x8xbf16>
    %224 = arith.truncf %222 : vector<8x32xf32> to vector<8x32xbf16>
    %cst_91 = arith.constant dense<0.000000e+00> : vector<8x32xf32>
    %225 = tpu.matmul %223, %224, %cst_91 {dimension_numbers = #tpu.dot_dimension_numbers<[1], [0], [0], [1], [0, 0, 1, 1], [], []>} : vector<8x8xbf16>, vector<8x32xbf16>, vector<8x32xf32> -> vector<8x32xf32>
    %226 = arith.addf %198, %225 : vector<8x32xf32>
    %c0_92 = arith.constant 0 : index
    %c0_93 = arith.constant 0 : index
    %227 = vector.load %arg20[%c0_92, %c0_93] : memref<1x32xf32, #tpu.memory_space<vmem>>, vector<1x32xf32>
    %228 = vector.broadcast %227 : vector<1x32xf32> to vector<8x32xf32>
    %229 = arith.addf %226, %228 : vector<8x32xf32>
    %230 = vector.broadcast %81 : vector<1x32xf32> to vector<8x32xf32>
    %231 = arith.mulf %230, %229 : vector<8x32xf32>
    %232 = arith.addf %45, %231 : vector<8x32xf32>
    %cst_94 = arith.constant dense<0.000000e+00> : vector<8xf32>
    %233 = vector.multi_reduction <add>, %232, %cst_94 [1] : vector<8x32xf32> to vector<8xf32>
    %234 = vector.shape_cast %233 : vector<8xf32> to vector<8x1xf32>
    %cst_95 = arith.constant 3.200000e+01 : f32
    %235 = vector.broadcast %cst_95 : f32 to vector<8x1xf32>
    %236 = arith.divf %234, %235 : vector<8x1xf32>
    %237 = vector.broadcast %236 : vector<8x1xf32> to vector<8x32xf32>
    %238 = arith.subf %232, %237 : vector<8x32xf32>
    %239 = arith.mulf %238, %238 : vector<8x32xf32>
    %cst_96 = arith.constant dense<0.000000e+00> : vector<8xf32>
    %240 = vector.multi_reduction <add>, %239, %cst_96 [1] : vector<8x32xf32> to vector<8xf32>
    %241 = vector.shape_cast %240 : vector<8xf32> to vector<8x1xf32>
    %cst_97 = arith.constant 3.200000e+01 : f32
    %242 = vector.broadcast %cst_97 : f32 to vector<8x1xf32>
    %243 = arith.divf %241, %242 : vector<8x1xf32>
    %244 = vector.broadcast %236 : vector<8x1xf32> to vector<8x32xf32>
    %245 = arith.subf %232, %244 : vector<8x32xf32>
    %cst_98 = arith.constant 9.99999997E-7 : f32
    %246 = vector.broadcast %cst_98 : f32 to vector<8x1xf32>
    %247 = arith.addf %243, %246 : vector<8x1xf32>
    %248 = math.rsqrt %247 : vector<8x1xf32>
    %249 = vector.broadcast %248 : vector<8x1xf32> to vector<8x32xf32>
    %250 = arith.mulf %245, %249 : vector<8x32xf32>
    %cst_99 = arith.constant 1.000000e+00 : f32
    %251 = vector.broadcast %cst_99 : f32 to vector<1x32xf32>
    %252 = arith.addf %251, %83 : vector<1x32xf32>
    %253 = vector.broadcast %252 : vector<1x32xf32> to vector<8x32xf32>
    %254 = arith.mulf %250, %253 : vector<8x32xf32>
    %255 = vector.broadcast %82 : vector<1x32xf32> to vector<8x32xf32>
    %256 = arith.addf %254, %255 : vector<8x32xf32>
    %c0_100 = arith.constant 0 : index
    %c0_101 = arith.constant 0 : index
    %257 = vector.load %arg21[%c0_100, %c0_101] : memref<32x64xbf16, #tpu.memory_space<vmem>>, vector<32x64xbf16>
    %258 = arith.truncf %256 : vector<8x32xf32> to vector<8x32xbf16>
    %cst_102 = arith.constant dense<0.000000e+00> : vector<8x64xf32>
    %259 = tpu.matmul %258, %257, %cst_102 {dimension_numbers = #tpu.dot_dimension_numbers<[1], [0], [0], [1], [0, 0, 1, 1], [], []>} : vector<8x32xbf16>, vector<32x64xbf16>, vector<8x64xf32> -> vector<8x64xf32>
    %c0_103 = arith.constant 0 : index
    %c0_104 = arith.constant 0 : index
    %260 = vector.load %arg22[%c0_103, %c0_104] : memref<1x64xf32, #tpu.memory_space<vmem>>, vector<1x64xf32>
    %261 = vector.broadcast %260 : vector<1x64xf32> to vector<8x64xf32>
    %262 = arith.addf %259, %261 : vector<8x64xf32>
    %263 = arith.mulf %262, %262 : vector<8x64xf32>
    %264 = arith.mulf %262, %263 : vector<8x64xf32>
    %cst_105 = arith.constant 4.471500e-02 : f32
    %265 = vector.broadcast %cst_105 : f32 to vector<8x64xf32>
    %266 = arith.mulf %265, %264 : vector<8x64xf32>
    %267 = arith.addf %262, %266 : vector<8x64xf32>
    %cst_106 = arith.constant 0.797884583 : f32
    %268 = vector.broadcast %cst_106 : f32 to vector<8x64xf32>
    %269 = arith.mulf %268, %267 : vector<8x64xf32>
    %270 = math.tanh %269 : vector<8x64xf32>
    %cst_107 = arith.constant 1.000000e+00 : f32
    %271 = vector.broadcast %cst_107 : f32 to vector<8x64xf32>
    %272 = arith.addf %271, %270 : vector<8x64xf32>
    %cst_108 = arith.constant 5.000000e-01 : f32
    %273 = vector.broadcast %cst_108 : f32 to vector<8x64xf32>
    %274 = arith.mulf %273, %272 : vector<8x64xf32>
    %275 = arith.mulf %262, %274 : vector<8x64xf32>
    %c0_109 = arith.constant 0 : index
    %c0_110 = arith.constant 0 : index
    %276 = vector.load %arg23[%c0_109, %c0_110] : memref<64x32xbf16, #tpu.memory_space<vmem>>, vector<64x32xbf16>
    %277 = arith.truncf %275 : vector<8x64xf32> to vector<8x64xbf16>
    %cst_111 = arith.constant dense<0.000000e+00> : vector<8x32xf32>
    %278 = tpu.matmul %277, %276, %cst_111 {dimension_numbers = #tpu.dot_dimension_numbers<[1], [0], [0], [1], [0, 0, 1, 1], [], []>} : vector<8x64xbf16>, vector<64x32xbf16>, vector<8x32xf32> -> vector<8x32xf32>
    %c0_112 = arith.constant 0 : index
    %c0_113 = arith.constant 0 : index
    %279 = vector.load %arg24[%c0_112, %c0_113] : memref<1x32xf32, #tpu.memory_space<vmem>>, vector<1x32xf32>
    %280 = vector.broadcast %279 : vector<1x32xf32> to vector<8x32xf32>
    %281 = arith.addf %278, %280 : vector<8x32xf32>
    %282 = vector.broadcast %84 : vector<1x32xf32> to vector<8x32xf32>
    %283 = arith.mulf %282, %281 : vector<8x32xf32>
    %284 = arith.addf %232, %283 : vector<8x32xf32>
    %c0_114 = arith.constant 0 : index
    %c0_115 = arith.constant 0 : index
    %285 = vector.load %arg25[%c0_114, %c0_115] : memref<32x192xbf16, #tpu.memory_space<vmem>>, vector<32x192xbf16>
    %286 = arith.truncf %69 : vector<1x32xf32> to vector<1x32xbf16>
    %cst_116 = arith.constant dense<0.000000e+00> : vector<1x192xf32>
    %287 = tpu.matmul %286, %285, %cst_116 {dimension_numbers = #tpu.dot_dimension_numbers<[1], [0], [0], [1], [0, 0, 1, 1], [], []>} : vector<1x32xbf16>, vector<32x192xbf16>, vector<1x192xf32> -> vector<1x192xf32>
    %c0_117 = arith.constant 0 : index
    %c0_118 = arith.constant 0 : index
    %288 = vector.load %arg26[%c0_117, %c0_118] : memref<1x192xf32, #tpu.memory_space<vmem>>, vector<1x192xf32>
    %289 = arith.addf %287, %288 : vector<1x192xf32>
    %290 = vector.extract_strided_slice %289 {offsets = [0, 0], sizes = [1, 32], strides = [1, 1]} : vector<1x192xf32> to vector<1x32xf32>
    %291 = vector.extract_strided_slice %289 {offsets = [0, 32], sizes = [1, 32], strides = [1, 1]} : vector<1x192xf32> to vector<1x32xf32>
    %292 = vector.extract_strided_slice %289 {offsets = [0, 64], sizes = [1, 32], strides = [1, 1]} : vector<1x192xf32> to vector<1x32xf32>
    %293 = vector.extract_strided_slice %289 {offsets = [0, 96], sizes = [1, 32], strides = [1, 1]} : vector<1x192xf32> to vector<1x32xf32>
    %294 = vector.extract_strided_slice %289 {offsets = [0, 128], sizes = [1, 32], strides = [1, 1]} : vector<1x192xf32> to vector<1x32xf32>
    %295 = vector.extract_strided_slice %289 {offsets = [0, 160], sizes = [1, 32], strides = [1, 1]} : vector<1x192xf32> to vector<1x32xf32>
    %cst_119 = arith.constant dense<0.000000e+00> : vector<8xf32>
    %296 = vector.multi_reduction <add>, %284, %cst_119 [1] : vector<8x32xf32> to vector<8xf32>
    %297 = vector.shape_cast %296 : vector<8xf32> to vector<8x1xf32>
    %cst_120 = arith.constant 3.200000e+01 : f32
    %298 = vector.broadcast %cst_120 : f32 to vector<8x1xf32>
    %299 = arith.divf %297, %298 : vector<8x1xf32>
    %300 = vector.broadcast %299 : vector<8x1xf32> to vector<8x32xf32>
    %301 = arith.subf %284, %300 : vector<8x32xf32>
    %302 = arith.mulf %301, %301 : vector<8x32xf32>
    %cst_121 = arith.constant dense<0.000000e+00> : vector<8xf32>
    %303 = vector.multi_reduction <add>, %302, %cst_121 [1] : vector<8x32xf32> to vector<8xf32>
    %304 = vector.shape_cast %303 : vector<8xf32> to vector<8x1xf32>
    %cst_122 = arith.constant 3.200000e+01 : f32
    %305 = vector.broadcast %cst_122 : f32 to vector<8x1xf32>
    %306 = arith.divf %304, %305 : vector<8x1xf32>
    %307 = vector.broadcast %299 : vector<8x1xf32> to vector<8x32xf32>
    %308 = arith.subf %284, %307 : vector<8x32xf32>
    %cst_123 = arith.constant 9.99999997E-7 : f32
    %309 = vector.broadcast %cst_123 : f32 to vector<8x1xf32>
    %310 = arith.addf %306, %309 : vector<8x1xf32>
    %311 = math.rsqrt %310 : vector<8x1xf32>
    %312 = vector.broadcast %311 : vector<8x1xf32> to vector<8x32xf32>
    %313 = arith.mulf %308, %312 : vector<8x32xf32>
    %cst_124 = arith.constant 1.000000e+00 : f32
    %314 = vector.broadcast %cst_124 : f32 to vector<1x32xf32>
    %315 = arith.addf %314, %291 : vector<1x32xf32>
    %316 = vector.broadcast %315 : vector<1x32xf32> to vector<8x32xf32>
    %317 = arith.mulf %313, %316 : vector<8x32xf32>
    %318 = vector.broadcast %290 : vector<1x32xf32> to vector<8x32xf32>
    %319 = arith.addf %317, %318 : vector<8x32xf32>
    %c0_125 = arith.constant 0 : index
    %c0_126 = arith.constant 0 : index
    %320 = vector.load %arg27[%c0_125, %c0_126] : memref<32x96xbf16, #tpu.memory_space<vmem>>, vector<32x96xbf16>
    %321 = arith.truncf %319 : vector<8x32xf32> to vector<8x32xbf16>
    %cst_127 = arith.constant dense<0.000000e+00> : vector<8x96xf32>
    %322 = tpu.matmul %321, %320, %cst_127 {dimension_numbers = #tpu.dot_dimension_numbers<[1], [0], [0], [1], [0, 0, 1, 1], [], []>} : vector<8x32xbf16>, vector<32x96xbf16>, vector<8x96xf32> -> vector<8x96xf32>
    %c0_128 = arith.constant 0 : index
    %c0_129 = arith.constant 0 : index
    %323 = vector.load %arg28[%c0_128, %c0_129] : memref<1x96xf32, #tpu.memory_space<vmem>>, vector<1x96xf32>
    %324 = vector.broadcast %323 : vector<1x96xf32> to vector<8x96xf32>
    %325 = arith.addf %322, %324 : vector<8x96xf32>
    %c0_130 = arith.constant 0 : index
    %c0_131 = arith.constant 0 : index
    %326 = vector.load %arg29[%c0_130, %c0_131] : memref<32x32xf32, #tpu.memory_space<vmem>>, vector<32x32xf32>
    %327 = vector.extract_strided_slice %325 {offsets = [0, 0], sizes = [8, 8], strides = [1, 1]} : vector<8x96xf32> to vector<8x8xf32>
    %328 = vector.extract_strided_slice %325 {offsets = [0, 32], sizes = [8, 8], strides = [1, 1]} : vector<8x96xf32> to vector<8x8xf32>
    %329 = vector.extract_strided_slice %325 {offsets = [0, 64], sizes = [8, 8], strides = [1, 1]} : vector<8x96xf32> to vector<8x8xf32>
    %330 = arith.truncf %327 : vector<8x8xf32> to vector<8x8xbf16>
    %331 = arith.truncf %328 : vector<8x8xf32> to vector<8x8xbf16>
    %cst_132 = arith.constant dense<0.000000e+00> : vector<8x8xf32>
    %332 = tpu.matmul %330, %331, %cst_132 {dimension_numbers = #tpu.dot_dimension_numbers<[1], [1], [0], [0], [0, 0, 1, 0], [], []>} : vector<8x8xbf16>, vector<8x8xbf16>, vector<8x8xf32> -> vector<8x8xf32>
    %cst_133 = arith.constant 0.353553385 : f32
    %333 = vector.broadcast %cst_133 : f32 to vector<8x8xf32>
    %334 = arith.mulf %332, %333 : vector<8x8xf32>
    %335 = vector.broadcast %73 : vector<1x8xf32> to vector<8x8xf32>
    %336 = arith.addf %334, %335 : vector<8x8xf32>
    %cst_134 = arith.constant dense<0xFF800000> : vector<8xf32>
    %337 = vector.multi_reduction <maximumf>, %336, %cst_134 [1] : vector<8x8xf32> to vector<8xf32>
    %338 = vector.shape_cast %337 : vector<8xf32> to vector<8x1xf32>
    %339 = vector.broadcast %338 : vector<8x1xf32> to vector<8x8xf32>
    %340 = arith.subf %336, %339 : vector<8x8xf32>
    %341 = math.exp %340 : vector<8x8xf32>
    %cst_135 = arith.constant dense<0.000000e+00> : vector<8xf32>
    %342 = vector.multi_reduction <add>, %341, %cst_135 [1] : vector<8x8xf32> to vector<8xf32>
    %343 = vector.shape_cast %342 : vector<8xf32> to vector<8x1xf32>
    %344 = tpu.reciprocal %343 {approx = true} : vector<8x1xf32> -> vector<8x1xf32>
    %345 = vector.broadcast %344 : vector<8x1xf32> to vector<8x8xf32>
    %346 = arith.mulf %341, %345 : vector<8x8xf32>
    %347 = arith.truncf %346 : vector<8x8xf32> to vector<8x8xbf16>
    %348 = arith.truncf %329 : vector<8x8xf32> to vector<8x8xbf16>
    %cst_136 = arith.constant dense<0.000000e+00> : vector<8x8xf32>
    %349 = tpu.matmul %347, %348, %cst_136 {dimension_numbers = #tpu.dot_dimension_numbers<[1], [0], [0], [1], [0, 0, 1, 1], [], []>} : vector<8x8xbf16>, vector<8x8xbf16>, vector<8x8xf32> -> vector<8x8xf32>
    %350 = vector.extract_strided_slice %326 {offsets = [0, 0], sizes = [8, 32], strides = [1, 1]} : vector<32x32xf32> to vector<8x32xf32>
    %351 = arith.truncf %349 : vector<8x8xf32> to vector<8x8xbf16>
    %352 = arith.truncf %350 : vector<8x32xf32> to vector<8x32xbf16>
    %cst_137 = arith.constant dense<0.000000e+00> : vector<8x32xf32>
    %353 = tpu.matmul %351, %352, %cst_137 {dimension_numbers = #tpu.dot_dimension_numbers<[1], [0], [0], [1], [0, 0, 1, 1], [], []>} : vector<8x8xbf16>, vector<8x32xbf16>, vector<8x32xf32> -> vector<8x32xf32>
    %354 = vector.extract_strided_slice %325 {offsets = [0, 8], sizes = [8, 8], strides = [1, 1]} : vector<8x96xf32> to vector<8x8xf32>
    %355 = vector.extract_strided_slice %325 {offsets = [0, 40], sizes = [8, 8], strides = [1, 1]} : vector<8x96xf32> to vector<8x8xf32>
    %356 = vector.extract_strided_slice %325 {offsets = [0, 72], sizes = [8, 8], strides = [1, 1]} : vector<8x96xf32> to vector<8x8xf32>
    %357 = arith.truncf %354 : vector<8x8xf32> to vector<8x8xbf16>
    %358 = arith.truncf %355 : vector<8x8xf32> to vector<8x8xbf16>
    %cst_138 = arith.constant dense<0.000000e+00> : vector<8x8xf32>
    %359 = tpu.matmul %357, %358, %cst_138 {dimension_numbers = #tpu.dot_dimension_numbers<[1], [1], [0], [0], [0, 0, 1, 0], [], []>} : vector<8x8xbf16>, vector<8x8xbf16>, vector<8x8xf32> -> vector<8x8xf32>
    %cst_139 = arith.constant 0.353553385 : f32
    %360 = vector.broadcast %cst_139 : f32 to vector<8x8xf32>
    %361 = arith.mulf %359, %360 : vector<8x8xf32>
    %362 = vector.broadcast %73 : vector<1x8xf32> to vector<8x8xf32>
    %363 = arith.addf %361, %362 : vector<8x8xf32>
    %cst_140 = arith.constant dense<0xFF800000> : vector<8xf32>
    %364 = vector.multi_reduction <maximumf>, %363, %cst_140 [1] : vector<8x8xf32> to vector<8xf32>
    %365 = vector.shape_cast %364 : vector<8xf32> to vector<8x1xf32>
    %366 = vector.broadcast %365 : vector<8x1xf32> to vector<8x8xf32>
    %367 = arith.subf %363, %366 : vector<8x8xf32>
    %368 = math.exp %367 : vector<8x8xf32>
    %cst_141 = arith.constant dense<0.000000e+00> : vector<8xf32>
    %369 = vector.multi_reduction <add>, %368, %cst_141 [1] : vector<8x8xf32> to vector<8xf32>
    %370 = vector.shape_cast %369 : vector<8xf32> to vector<8x1xf32>
    %371 = tpu.reciprocal %370 {approx = true} : vector<8x1xf32> -> vector<8x1xf32>
    %372 = vector.broadcast %371 : vector<8x1xf32> to vector<8x8xf32>
    %373 = arith.mulf %368, %372 : vector<8x8xf32>
    %374 = arith.truncf %373 : vector<8x8xf32> to vector<8x8xbf16>
    %375 = arith.truncf %356 : vector<8x8xf32> to vector<8x8xbf16>
    %cst_142 = arith.constant dense<0.000000e+00> : vector<8x8xf32>
    %376 = tpu.matmul %374, %375, %cst_142 {dimension_numbers = #tpu.dot_dimension_numbers<[1], [0], [0], [1], [0, 0, 1, 1], [], []>} : vector<8x8xbf16>, vector<8x8xbf16>, vector<8x8xf32> -> vector<8x8xf32>
    %377 = vector.extract_strided_slice %326 {offsets = [8, 0], sizes = [8, 32], strides = [1, 1]} : vector<32x32xf32> to vector<8x32xf32>
    %378 = arith.truncf %376 : vector<8x8xf32> to vector<8x8xbf16>
    %379 = arith.truncf %377 : vector<8x32xf32> to vector<8x32xbf16>
    %cst_143 = arith.constant dense<0.000000e+00> : vector<8x32xf32>
    %380 = tpu.matmul %378, %379, %cst_143 {dimension_numbers = #tpu.dot_dimension_numbers<[1], [0], [0], [1], [0, 0, 1, 1], [], []>} : vector<8x8xbf16>, vector<8x32xbf16>, vector<8x32xf32> -> vector<8x32xf32>
    %381 = arith.addf %353, %380 : vector<8x32xf32>
    %382 = vector.extract_strided_slice %325 {offsets = [0, 16], sizes = [8, 8], strides = [1, 1]} : vector<8x96xf32> to vector<8x8xf32>
    %383 = vector.extract_strided_slice %325 {offsets = [0, 48], sizes = [8, 8], strides = [1, 1]} : vector<8x96xf32> to vector<8x8xf32>
    %384 = vector.extract_strided_slice %325 {offsets = [0, 80], sizes = [8, 8], strides = [1, 1]} : vector<8x96xf32> to vector<8x8xf32>
    %385 = arith.truncf %382 : vector<8x8xf32> to vector<8x8xbf16>
    %386 = arith.truncf %383 : vector<8x8xf32> to vector<8x8xbf16>
    %cst_144 = arith.constant dense<0.000000e+00> : vector<8x8xf32>
    %387 = tpu.matmul %385, %386, %cst_144 {dimension_numbers = #tpu.dot_dimension_numbers<[1], [1], [0], [0], [0, 0, 1, 0], [], []>} : vector<8x8xbf16>, vector<8x8xbf16>, vector<8x8xf32> -> vector<8x8xf32>
    %cst_145 = arith.constant 0.353553385 : f32
    %388 = vector.broadcast %cst_145 : f32 to vector<8x8xf32>
    %389 = arith.mulf %387, %388 : vector<8x8xf32>
    %390 = vector.broadcast %73 : vector<1x8xf32> to vector<8x8xf32>
    %391 = arith.addf %389, %390 : vector<8x8xf32>
    %cst_146 = arith.constant dense<0xFF800000> : vector<8xf32>
    %392 = vector.multi_reduction <maximumf>, %391, %cst_146 [1] : vector<8x8xf32> to vector<8xf32>
    %393 = vector.shape_cast %392 : vector<8xf32> to vector<8x1xf32>
    %394 = vector.broadcast %393 : vector<8x1xf32> to vector<8x8xf32>
    %395 = arith.subf %391, %394 : vector<8x8xf32>
    %396 = math.exp %395 : vector<8x8xf32>
    %cst_147 = arith.constant dense<0.000000e+00> : vector<8xf32>
    %397 = vector.multi_reduction <add>, %396, %cst_147 [1] : vector<8x8xf32> to vector<8xf32>
    %398 = vector.shape_cast %397 : vector<8xf32> to vector<8x1xf32>
    %399 = tpu.reciprocal %398 {approx = true} : vector<8x1xf32> -> vector<8x1xf32>
    %400 = vector.broadcast %399 : vector<8x1xf32> to vector<8x8xf32>
    %401 = arith.mulf %396, %400 : vector<8x8xf32>
    %402 = arith.truncf %401 : vector<8x8xf32> to vector<8x8xbf16>
    %403 = arith.truncf %384 : vector<8x8xf32> to vector<8x8xbf16>
    %cst_148 = arith.constant dense<0.000000e+00> : vector<8x8xf32>
    %404 = tpu.matmul %402, %403, %cst_148 {dimension_numbers = #tpu.dot_dimension_numbers<[1], [0], [0], [1], [0, 0, 1, 1], [], []>} : vector<8x8xbf16>, vector<8x8xbf16>, vector<8x8xf32> -> vector<8x8xf32>
    %405 = vector.extract_strided_slice %326 {offsets = [16, 0], sizes = [8, 32], strides = [1, 1]} : vector<32x32xf32> to vector<8x32xf32>
    %406 = arith.truncf %404 : vector<8x8xf32> to vector<8x8xbf16>
    %407 = arith.truncf %405 : vector<8x32xf32> to vector<8x32xbf16>
    %cst_149 = arith.constant dense<0.000000e+00> : vector<8x32xf32>
    %408 = tpu.matmul %406, %407, %cst_149 {dimension_numbers = #tpu.dot_dimension_numbers<[1], [0], [0], [1], [0, 0, 1, 1], [], []>} : vector<8x8xbf16>, vector<8x32xbf16>, vector<8x32xf32> -> vector<8x32xf32>
    %409 = arith.addf %381, %408 : vector<8x32xf32>
    %410 = vector.extract_strided_slice %325 {offsets = [0, 24], sizes = [8, 8], strides = [1, 1]} : vector<8x96xf32> to vector<8x8xf32>
    %411 = vector.extract_strided_slice %325 {offsets = [0, 56], sizes = [8, 8], strides = [1, 1]} : vector<8x96xf32> to vector<8x8xf32>
    %412 = vector.extract_strided_slice %325 {offsets = [0, 88], sizes = [8, 8], strides = [1, 1]} : vector<8x96xf32> to vector<8x8xf32>
    %413 = arith.truncf %410 : vector<8x8xf32> to vector<8x8xbf16>
    %414 = arith.truncf %411 : vector<8x8xf32> to vector<8x8xbf16>
    %cst_150 = arith.constant dense<0.000000e+00> : vector<8x8xf32>
    %415 = tpu.matmul %413, %414, %cst_150 {dimension_numbers = #tpu.dot_dimension_numbers<[1], [1], [0], [0], [0, 0, 1, 0], [], []>} : vector<8x8xbf16>, vector<8x8xbf16>, vector<8x8xf32> -> vector<8x8xf32>
    %cst_151 = arith.constant 0.353553385 : f32
    %416 = vector.broadcast %cst_151 : f32 to vector<8x8xf32>
    %417 = arith.mulf %415, %416 : vector<8x8xf32>
    %418 = vector.broadcast %73 : vector<1x8xf32> to vector<8x8xf32>
    %419 = arith.addf %417, %418 : vector<8x8xf32>
    %cst_152 = arith.constant dense<0xFF800000> : vector<8xf32>
    %420 = vector.multi_reduction <maximumf>, %419, %cst_152 [1] : vector<8x8xf32> to vector<8xf32>
    %421 = vector.shape_cast %420 : vector<8xf32> to vector<8x1xf32>
    %422 = vector.broadcast %421 : vector<8x1xf32> to vector<8x8xf32>
    %423 = arith.subf %419, %422 : vector<8x8xf32>
    %424 = math.exp %423 : vector<8x8xf32>
    %cst_153 = arith.constant dense<0.000000e+00> : vector<8xf32>
    %425 = vector.multi_reduction <add>, %424, %cst_153 [1] : vector<8x8xf32> to vector<8xf32>
    %426 = vector.shape_cast %425 : vector<8xf32> to vector<8x1xf32>
    %427 = tpu.reciprocal %426 {approx = true} : vector<8x1xf32> -> vector<8x1xf32>
    %428 = vector.broadcast %427 : vector<8x1xf32> to vector<8x8xf32>
    %429 = arith.mulf %424, %428 : vector<8x8xf32>
    %430 = arith.truncf %429 : vector<8x8xf32> to vector<8x8xbf16>
    %431 = arith.truncf %412 : vector<8x8xf32> to vector<8x8xbf16>
    %cst_154 = arith.constant dense<0.000000e+00> : vector<8x8xf32>
    %432 = tpu.matmul %430, %431, %cst_154 {dimension_numbers = #tpu.dot_dimension_numbers<[1], [0], [0], [1], [0, 0, 1, 1], [], []>} : vector<8x8xbf16>, vector<8x8xbf16>, vector<8x8xf32> -> vector<8x8xf32>
    %433 = vector.extract_strided_slice %326 {offsets = [24, 0], sizes = [8, 32], strides = [1, 1]} : vector<32x32xf32> to vector<8x32xf32>
    %434 = arith.truncf %432 : vector<8x8xf32> to vector<8x8xbf16>
    %435 = arith.truncf %433 : vector<8x32xf32> to vector<8x32xbf16>
    %cst_155 = arith.constant dense<0.000000e+00> : vector<8x32xf32>
    %436 = tpu.matmul %434, %435, %cst_155 {dimension_numbers = #tpu.dot_dimension_numbers<[1], [0], [0], [1], [0, 0, 1, 1], [], []>} : vector<8x8xbf16>, vector<8x32xbf16>, vector<8x32xf32> -> vector<8x32xf32>
    %437 = arith.addf %409, %436 : vector<8x32xf32>
    %c0_156 = arith.constant 0 : index
    %c0_157 = arith.constant 0 : index
    %438 = vector.load %arg30[%c0_156, %c0_157] : memref<1x32xf32, #tpu.memory_space<vmem>>, vector<1x32xf32>
    %439 = vector.broadcast %438 : vector<1x32xf32> to vector<8x32xf32>
    %440 = arith.addf %437, %439 : vector<8x32xf32>
    %441 = vector.broadcast %292 : vector<1x32xf32> to vector<8x32xf32>
    %442 = arith.mulf %441, %440 : vector<8x32xf32>
    %443 = arith.addf %284, %442 : vector<8x32xf32>
    %cst_158 = arith.constant dense<0.000000e+00> : vector<8xf32>
    %444 = vector.multi_reduction <add>, %443, %cst_158 [1] : vector<8x32xf32> to vector<8xf32>
    %445 = vector.shape_cast %444 : vector<8xf32> to vector<8x1xf32>
    %cst_159 = arith.constant 3.200000e+01 : f32
    %446 = vector.broadcast %cst_159 : f32 to vector<8x1xf32>
    %447 = arith.divf %445, %446 : vector<8x1xf32>
    %448 = vector.broadcast %447 : vector<8x1xf32> to vector<8x32xf32>
    %449 = arith.subf %443, %448 : vector<8x32xf32>
    %450 = arith.mulf %449, %449 : vector<8x32xf32>
    %cst_160 = arith.constant dense<0.000000e+00> : vector<8xf32>
    %451 = vector.multi_reduction <add>, %450, %cst_160 [1] : vector<8x32xf32> to vector<8xf32>
    %452 = vector.shape_cast %451 : vector<8xf32> to vector<8x1xf32>
    %cst_161 = arith.constant 3.200000e+01 : f32
    %453 = vector.broadcast %cst_161 : f32 to vector<8x1xf32>
    %454 = arith.divf %452, %453 : vector<8x1xf32>
    %455 = vector.broadcast %447 : vector<8x1xf32> to vector<8x32xf32>
    %456 = arith.subf %443, %455 : vector<8x32xf32>
    %cst_162 = arith.constant 9.99999997E-7 : f32
    %457 = vector.broadcast %cst_162 : f32 to vector<8x1xf32>
    %458 = arith.addf %454, %457 : vector<8x1xf32>
    %459 = math.rsqrt %458 : vector<8x1xf32>
    %460 = vector.broadcast %459 : vector<8x1xf32> to vector<8x32xf32>
    %461 = arith.mulf %456, %460 : vector<8x32xf32>
    %cst_163 = arith.constant 1.000000e+00 : f32
    %462 = vector.broadcast %cst_163 : f32 to vector<1x32xf32>
    %463 = arith.addf %462, %294 : vector<1x32xf32>
    %464 = vector.broadcast %463 : vector<1x32xf32> to vector<8x32xf32>
    %465 = arith.mulf %461, %464 : vector<8x32xf32>
    %466 = vector.broadcast %293 : vector<1x32xf32> to vector<8x32xf32>
    %467 = arith.addf %465, %466 : vector<8x32xf32>
    %c0_164 = arith.constant 0 : index
    %c0_165 = arith.constant 0 : index
    %468 = vector.load %arg31[%c0_164, %c0_165] : memref<32x64xbf16, #tpu.memory_space<vmem>>, vector<32x64xbf16>
    %469 = arith.truncf %467 : vector<8x32xf32> to vector<8x32xbf16>
    %cst_166 = arith.constant dense<0.000000e+00> : vector<8x64xf32>
    %470 = tpu.matmul %469, %468, %cst_166 {dimension_numbers = #tpu.dot_dimension_numbers<[1], [0], [0], [1], [0, 0, 1, 1], [], []>} : vector<8x32xbf16>, vector<32x64xbf16>, vector<8x64xf32> -> vector<8x64xf32>
    %c0_167 = arith.constant 0 : index
    %c0_168 = arith.constant 0 : index
    %471 = vector.load %arg32[%c0_167, %c0_168] : memref<1x64xf32, #tpu.memory_space<vmem>>, vector<1x64xf32>
    %472 = vector.broadcast %471 : vector<1x64xf32> to vector<8x64xf32>
    %473 = arith.addf %470, %472 : vector<8x64xf32>
    %474 = arith.mulf %473, %473 : vector<8x64xf32>
    %475 = arith.mulf %473, %474 : vector<8x64xf32>
    %cst_169 = arith.constant 4.471500e-02 : f32
    %476 = vector.broadcast %cst_169 : f32 to vector<8x64xf32>
    %477 = arith.mulf %476, %475 : vector<8x64xf32>
    %478 = arith.addf %473, %477 : vector<8x64xf32>
    %cst_170 = arith.constant 0.797884583 : f32
    %479 = vector.broadcast %cst_170 : f32 to vector<8x64xf32>
    %480 = arith.mulf %479, %478 : vector<8x64xf32>
    %481 = math.tanh %480 : vector<8x64xf32>
    %cst_171 = arith.constant 1.000000e+00 : f32
    %482 = vector.broadcast %cst_171 : f32 to vector<8x64xf32>
    %483 = arith.addf %482, %481 : vector<8x64xf32>
    %cst_172 = arith.constant 5.000000e-01 : f32
    %484 = vector.broadcast %cst_172 : f32 to vector<8x64xf32>
    %485 = arith.mulf %484, %483 : vector<8x64xf32>
    %486 = arith.mulf %473, %485 : vector<8x64xf32>
    %c0_173 = arith.constant 0 : index
    %c0_174 = arith.constant 0 : index
    %487 = vector.load %arg33[%c0_173, %c0_174] : memref<64x32xbf16, #tpu.memory_space<vmem>>, vector<64x32xbf16>
    %488 = arith.truncf %486 : vector<8x64xf32> to vector<8x64xbf16>
    %cst_175 = arith.constant dense<0.000000e+00> : vector<8x32xf32>
    %489 = tpu.matmul %488, %487, %cst_175 {dimension_numbers = #tpu.dot_dimension_numbers<[1], [0], [0], [1], [0, 0, 1, 1], [], []>} : vector<8x64xbf16>, vector<64x32xbf16>, vector<8x32xf32> -> vector<8x32xf32>
    %c0_176 = arith.constant 0 : index
    %c0_177 = arith.constant 0 : index
    %490 = vector.load %arg34[%c0_176, %c0_177] : memref<1x32xf32, #tpu.memory_space<vmem>>, vector<1x32xf32>
    %491 = vector.broadcast %490 : vector<1x32xf32> to vector<8x32xf32>
    %492 = arith.addf %489, %491 : vector<8x32xf32>
    %493 = vector.broadcast %295 : vector<1x32xf32> to vector<8x32xf32>
    %494 = arith.mulf %493, %492 : vector<8x32xf32>
    %495 = arith.addf %443, %494 : vector<8x32xf32>
    %c0_178 = arith.constant 0 : index
    %c0_179 = arith.constant 0 : index
    %496 = vector.load %arg35[%c0_178, %c0_179] : memref<32x64xbf16, #tpu.memory_space<vmem>>, vector<32x64xbf16>
    %497 = arith.truncf %69 : vector<1x32xf32> to vector<1x32xbf16>
    %cst_180 = arith.constant dense<0.000000e+00> : vector<1x64xf32>
    %498 = tpu.matmul %497, %496, %cst_180 {dimension_numbers = #tpu.dot_dimension_numbers<[1], [0], [0], [1], [0, 0, 1, 1], [], []>} : vector<1x32xbf16>, vector<32x64xbf16>, vector<1x64xf32> -> vector<1x64xf32>
    %c0_181 = arith.constant 0 : index
    %c0_182 = arith.constant 0 : index
    %499 = vector.load %arg36[%c0_181, %c0_182] : memref<1x64xf32, #tpu.memory_space<vmem>>, vector<1x64xf32>
    %500 = arith.addf %498, %499 : vector<1x64xf32>
    %501 = vector.extract_strided_slice %500 {offsets = [0, 0], sizes = [1, 32], strides = [1, 1]} : vector<1x64xf32> to vector<1x32xf32>
    %502 = vector.extract_strided_slice %500 {offsets = [0, 32], sizes = [1, 32], strides = [1, 1]} : vector<1x64xf32> to vector<1x32xf32>
    %cst_183 = arith.constant dense<0.000000e+00> : vector<8xf32>
    %503 = vector.multi_reduction <add>, %495, %cst_183 [1] : vector<8x32xf32> to vector<8xf32>
    %504 = vector.shape_cast %503 : vector<8xf32> to vector<8x1xf32>
    %cst_184 = arith.constant 3.200000e+01 : f32
    %505 = vector.broadcast %cst_184 : f32 to vector<8x1xf32>
    %506 = arith.divf %504, %505 : vector<8x1xf32>
    %507 = vector.broadcast %506 : vector<8x1xf32> to vector<8x32xf32>
    %508 = arith.subf %495, %507 : vector<8x32xf32>
    %509 = arith.mulf %508, %508 : vector<8x32xf32>
    %cst_185 = arith.constant dense<0.000000e+00> : vector<8xf32>
    %510 = vector.multi_reduction <add>, %509, %cst_185 [1] : vector<8x32xf32> to vector<8xf32>
    %511 = vector.shape_cast %510 : vector<8xf32> to vector<8x1xf32>
    %cst_186 = arith.constant 3.200000e+01 : f32
    %512 = vector.broadcast %cst_186 : f32 to vector<8x1xf32>
    %513 = arith.divf %511, %512 : vector<8x1xf32>
    %514 = vector.broadcast %506 : vector<8x1xf32> to vector<8x32xf32>
    %515 = arith.subf %495, %514 : vector<8x32xf32>
    %cst_187 = arith.constant 9.99999997E-7 : f32
    %516 = vector.broadcast %cst_187 : f32 to vector<8x1xf32>
    %517 = arith.addf %513, %516 : vector<8x1xf32>
    %518 = math.rsqrt %517 : vector<8x1xf32>
    %519 = vector.broadcast %518 : vector<8x1xf32> to vector<8x32xf32>
    %520 = arith.mulf %515, %519 : vector<8x32xf32>
    %cst_188 = arith.constant 1.000000e+00 : f32
    %521 = vector.broadcast %cst_188 : f32 to vector<1x32xf32>
    %522 = arith.addf %521, %502 : vector<1x32xf32>
    %523 = vector.broadcast %522 : vector<1x32xf32> to vector<8x32xf32>
    %524 = arith.mulf %520, %523 : vector<8x32xf32>
    %525 = vector.broadcast %501 : vector<1x32xf32> to vector<8x32xf32>
    %526 = arith.addf %524, %525 : vector<8x32xf32>
    %c0_189 = arith.constant 0 : index
    %c0_190 = arith.constant 0 : index
    %527 = vector.load %arg37[%c0_189, %c0_190] : memref<32x8xbf16, #tpu.memory_space<vmem>>, vector<32x8xbf16>
    %528 = arith.truncf %526 : vector<8x32xf32> to vector<8x32xbf16>
    %cst_191 = arith.constant dense<0.000000e+00> : vector<8x8xf32>
    %529 = tpu.matmul %528, %527, %cst_191 {dimension_numbers = #tpu.dot_dimension_numbers<[1], [0], [0], [1], [0, 0, 1, 1], [], []>} : vector<8x32xbf16>, vector<32x8xbf16>, vector<8x8xf32> -> vector<8x8xf32>
    %c0_192 = arith.constant 0 : index
    %c0_193 = arith.constant 0 : index
    %530 = vector.load %arg38[%c0_192, %c0_193] : memref<1x8xf32, #tpu.memory_space<vmem>>, vector<1x8xf32>
    %531 = vector.broadcast %530 : vector<1x8xf32> to vector<8x8xf32>
    %532 = arith.addf %529, %531 : vector<8x8xf32>
    %533 = vector.broadcast %5 : vector<8x1xf32> to vector<8x8xf32>
    %534 = arith.mulf %532, %533 : vector<8x8xf32>
    %535 = vector.extract_strided_slice %534 {offsets = [0, 0], sizes = [8, 3], strides = [1, 1]} : vector<8x8xf32> to vector<8x3xf32>
    %cst_194 = arith.constant dense<0.000000e+00> : vector<3xf32>
    %536 = vector.multi_reduction <add>, %535, %cst_194 [0] : vector<8x3xf32> to vector<3xf32>
    %537 = vector.shape_cast %536 : vector<3xf32> to vector<1x3xf32>
    %538 = vector.broadcast %13 : vector<1x1xf32> to vector<1x3xf32>
    %539 = arith.mulf %537, %538 : vector<1x3xf32>
    %540 = vector.broadcast %539 : vector<1x3xf32> to vector<8x3xf32>
    %541 = vector.broadcast %5 : vector<8x1xf32> to vector<8x3xf32>
    %542 = arith.mulf %540, %541 : vector<8x3xf32>
    %543 = arith.subf %535, %542 : vector<8x3xf32>
    %544 = arith.truncf %543 : vector<8x3xf32> to vector<8x3xbf16>
    %545 = arith.truncf %20 : vector<3x3xf32> to vector<3x3xbf16>
    %cst_195 = arith.constant dense<0.000000e+00> : vector<8x3xf32>
    %546 = tpu.matmul %544, %545, %cst_195 {dimension_numbers = #tpu.dot_dimension_numbers<[1], [1], [0], [0], [0, 0, 1, 0], [], []>} : vector<8x3xbf16>, vector<3x3xbf16>, vector<8x3xf32> -> vector<8x3xf32>
    %c0_196 = arith.constant 0 : index
    %c0_197 = arith.constant 0 : index
    %c0_198 = arith.constant 0 : index
    %547 = vector.load %arg39[%c0_196, %c0_197, %c0_198] : memref<1x8x8xf32, #tpu.memory_space<vmem>>, vector<1x8x8xf32>
    %548 = vector.shape_cast %547 : vector<1x8x8xf32> to vector<8x8xf32>
    %549 = vector.shape_cast %534 : vector<8x8xf32> to vector<1x8x8xf32>
    tpu.vector_store %arg39[%c0_196, %c0_197, %c0_198], %549 {strides = array<i32>} : memref<1x8x8xf32, #tpu.memory_space<vmem>>, vector<1x8x8xf32>,
    %c0_199 = arith.constant 0 : index
    %c0_200 = arith.constant 0 : index
    %c0_201 = arith.constant 0 : index
    %550 = vector.load %arg39[%c0_199, %c0_200, %c0_201] : memref<1x8x8xf32, #tpu.memory_space<vmem>>, vector<1x8x3xf32>
    %551 = vector.shape_cast %550 : vector<1x8x3xf32> to vector<8x3xf32>
    %552 = vector.shape_cast %546 : vector<8x3xf32> to vector<1x8x3xf32>
    tpu.vector_store %arg39[%c0_199, %c0_200, %c0_201], %552 {strides = array<i32>} : memref<1x8x8xf32, #tpu.memory_space<vmem>>, vector<1x8x3xf32>,
    return
  }
  func.func @transform_0(%arg0: i32) -> (i32, i32, i32) {
    %c0_i32 = arith.constant 0 : i32
    %c0_i32_0 = arith.constant 0 : i32
    %c0_i32_1 = arith.constant 0 : i32
    return %arg0, %c0_i32, %c0_i32_0 : i32, i32, i32
  }
  func.func @transform_1(%arg0: i32) -> (i32, i32, i32) {
    %c0_i32 = arith.constant 0 : i32
    %c0_i32_0 = arith.constant 0 : i32
    %c0_i32_1 = arith.constant 0 : i32
    return %arg0, %c0_i32, %c0_i32_0 : i32, i32, i32
  }
  func.func @transform_2(%arg0: i32) -> (i32, i32, i32) {
    %c0_i32 = arith.constant 0 : i32
    %c0_i32_0 = arith.constant 0 : i32
    %c0_i32_1 = arith.constant 0 : i32
    return %arg0, %c0_i32, %c0_i32_0 : i32, i32, i32
  }
  func.func @transform_3(%arg0: i32) -> (i32, i32, i32) {
    %c0_i32 = arith.constant 0 : i32
    %c0_i32_0 = arith.constant 0 : i32
    %c0_i32_1 = arith.constant 0 : i32
    return %arg0, %c0_i32, %c0_i32_0 : i32, i32, i32
  }
  func.func @transform_4(%arg0: i32) -> (i32, i32, i32) {
    %c0_i32 = arith.constant 0 : i32
    %c0_i32_0 = arith.constant 0 : i32
    %c0_i32_1 = arith.constant 0 : i32
    return %arg0, %c0_i32, %c0_i32_0 : i32, i32, i32
  }
  func.func @transform_5(%arg0: i32) -> (i32, i32, i32) {
    %c0_i32 = arith.constant 0 : i32
    %c0_i32_0 = arith.constant 0 : i32
    %c0_i32_1 = arith.constant 0 : i32
    return %arg0, %c0_i32, %c0_i32_0 : i32, i32, i32
  }
  func.func @transform_6(%arg0: i32) -> (i32, i32, i32) {
    %c0_i32 = arith.constant 0 : i32
    %c0_i32_0 = arith.constant 0 : i32
    %c0_i32_1 = arith.constant 0 : i32
    return %arg0, %c0_i32, %c0_i32_0 : i32, i32, i32
  }
  func.func @transform_7(%arg0: i32) -> (i32, i32, i32) {
    %c0_i32 = arith.constant 0 : i32
    %c0_i32_0 = arith.constant 0 : i32
    %c0_i32_1 = arith.constant 0 : i32
    return %arg0, %c0_i32, %c0_i32_0 : i32, i32, i32
  }
  func.func @transform_8(%arg0: i32) -> (i32, i32) {
    %c0_i32 = arith.constant 0 : i32
    %c0_i32_0 = arith.constant 0 : i32
    %c0_i32_1 = arith.constant 0 : i32
    return %c0_i32, %c0_i32_0 : i32, i32
  }
  func.func @transform_9(%arg0: i32) -> (i32, i32) {
    %c0_i32 = arith.constant 0 : i32
    %c0_i32_0 = arith.constant 0 : i32
    %c0_i32_1 = arith.constant 0 : i32
    return %c0_i32, %c0_i32_0 : i32, i32
  }
  func.func @transform_10(%arg0: i32) -> (i32, i32) {
    %c0_i32 = arith.constant 0 : i32
    %c0_i32_0 = arith.constant 0 : i32
    %c0_i32_1 = arith.constant 0 : i32
    return %c0_i32, %c0_i32_0 : i32, i32
  }
  func.func @transform_11(%arg0: i32) -> (i32, i32) {
    %c0_i32 = arith.constant 0 : i32
    %c0_i32_0 = arith.constant 0 : i32
    %c0_i32_1 = arith.constant 0 : i32
    return %c0_i32, %c0_i32_0 : i32, i32
  }
  func.func @transform_12(%arg0: i32) -> (i32, i32) {
    %c0_i32 = arith.constant 0 : i32
    %c0_i32_0 = arith.constant 0 : i32
    %c0_i32_1 = arith.constant 0 : i32
    return %c0_i32, %c0_i32_0 : i32, i32
  }
  func.func @transform_13(%arg0: i32) -> (i32, i32) {
    %c0_i32 = arith.constant 0 : i32
    %c0_i32_0 = arith.constant 0 : i32
    %c0_i32_1 = arith.constant 0 : i32
    return %c0_i32, %c0_i32_0 : i32, i32
  }
  func.func @transform_14(%arg0: i32) -> (i32, i32) {
    %c0_i32 = arith.constant 0 : i32
    %c0_i32_0 = arith.constant 0 : i32
    %c0_i32_1 = arith.constant 0 : i32
    return %c0_i32, %c0_i32_0 : i32, i32
  }
  func.func @transform_15(%arg0: i32) -> (i32, i32) {
    %c0_i32 = arith.constant 0 : i32
    %c0_i32_0 = arith.constant 0 : i32
    %c0_i32_1 = arith.constant 0 : i32
    return %c0_i32, %c0_i32_0 : i32, i32
  }
  func.func @transform_16(%arg0: i32) -> (i32, i32) {
    %c0_i32 = arith.constant 0 : i32
    %c0_i32_0 = arith.constant 0 : i32
    %c0_i32_1 = arith.constant 0 : i32
    return %c0_i32, %c0_i32_0 : i32, i32
  }
  func.func @transform_17(%arg0: i32) -> (i32, i32) {
    %c0_i32 = arith.constant 0 : i32
    %c0_i32_0 = arith.constant 0 : i32
    %c0_i32_1 = arith.constant 0 : i32
    return %c0_i32, %c0_i32_0 : i32, i32
  }
  func.func @transform_18(%arg0: i32) -> (i32, i32) {
    %c0_i32 = arith.constant 0 : i32
    %c0_i32_0 = arith.constant 0 : i32
    %c0_i32_1 = arith.constant 0 : i32
    return %c0_i32, %c0_i32_0 : i32, i32
  }
  func.func @transform_19(%arg0: i32) -> (i32, i32) {
    %c0_i32 = arith.constant 0 : i32
    %c0_i32_0 = arith.constant 0 : i32
    %c0_i32_1 = arith.constant 0 : i32
    return %c0_i32, %c0_i32_0 : i32, i32
  }
  func.func @transform_20(%arg0: i32) -> (i32, i32) {
    %c0_i32 = arith.constant 0 : i32
    %c0_i32_0 = arith.constant 0 : i32
    %c0_i32_1 = arith.constant 0 : i32
    return %c0_i32, %c0_i32_0 : i32, i32
  }
  func.func @transform_21(%arg0: i32) -> (i32, i32) {
    %c0_i32 = arith.constant 0 : i32
    %c0_i32_0 = arith.constant 0 : i32
    %c0_i32_1 = arith.constant 0 : i32
    return %c0_i32, %c0_i32_0 : i32, i32
  }
  func.func @transform_22(%arg0: i32) -> (i32, i32) {
    %c0_i32 = arith.constant 0 : i32
    %c0_i32_0 = arith.constant 0 : i32
    %c0_i32_1 = arith.constant 0 : i32
    return %c0_i32, %c0_i32_0 : i32, i32
  }
  func.func @transform_23(%arg0: i32) -> (i32, i32) {
    %c0_i32 = arith.constant 0 : i32
    %c0_i32_0 = arith.constant 0 : i32
    %c0_i32_1 = arith.constant 0 : i32
    return %c0_i32, %c0_i32_0 : i32, i32
  }
  func.func @transform_24(%arg0: i32) -> (i32, i32) {
    %c0_i32 = arith.constant 0 : i32
    %c0_i32_0 = arith.constant 0 : i32
    %c0_i32_1 = arith.constant 0 : i32
    return %c0_i32, %c0_i32_0 : i32, i32
  }
  func.func @transform_25(%arg0: i32) -> (i32, i32) {
    %c0_i32 = arith.constant 0 : i32
    %c0_i32_0 = arith.constant 0 : i32
    %c0_i32_1 = arith.constant 0 : i32
    return %c0_i32, %c0_i32_0 : i32, i32
  }
  func.func @transform_26(%arg0: i32) -> (i32, i32) {
    %c0_i32 = arith.constant 0 : i32
    %c0_i32_0 = arith.constant 0 : i32
    %c0_i32_1 = arith.constant 0 : i32
    return %c0_i32, %c0_i32_0 : i32, i32
  }
  func.func @transform_27(%arg0: i32) -> (i32, i32) {
    %c0_i32 = arith.constant 0 : i32
    %c0_i32_0 = arith.constant 0 : i32
    %c0_i32_1 = arith.constant 0 : i32
    return %c0_i32, %c0_i32_0 : i32, i32
  }
  func.func @transform_28(%arg0: i32) -> (i32, i32) {
    %c0_i32 = arith.constant 0 : i32
    %c0_i32_0 = arith.constant 0 : i32
    %c0_i32_1 = arith.constant 0 : i32
    return %c0_i32, %c0_i32_0 : i32, i32
  }
  func.func @transform_29(%arg0: i32) -> (i32, i32) {
    %c0_i32 = arith.constant 0 : i32
    %c0_i32_0 = arith.constant 0 : i32
    %c0_i32_1 = arith.constant 0 : i32
    return %c0_i32, %c0_i32_0 : i32, i32
  }
  func.func @transform_30(%arg0: i32) -> (i32, i32) {
    %c0_i32 = arith.constant 0 : i32
    %c0_i32_0 = arith.constant 0 : i32
    %c0_i32_1 = arith.constant 0 : i32
    return %c0_i32, %c0_i32_0 : i32, i32
  }
  func.func @transform_31(%arg0: i32) -> (i32, i32) {
    %c0_i32 = arith.constant 0 : i32
    %c0_i32_0 = arith.constant 0 : i32
    %c0_i32_1 = arith.constant 0 : i32
    return %c0_i32, %c0_i32_0 : i32, i32
  }
  func.func @transform_32(%arg0: i32) -> (i32, i32) {
    %c0_i32 = arith.constant 0 : i32
    %c0_i32_0 = arith.constant 0 : i32
    %c0_i32_1 = arith.constant 0 : i32
    return %c0_i32, %c0_i32_0 : i32, i32
  }
  func.func @transform_33(%arg0: i32) -> (i32, i32) {
    %c0_i32 = arith.constant 0 : i32
    %c0_i32_0 = arith.constant 0 : i32
    %c0_i32_1 = arith.constant 0 : i32
    return %c0_i32, %c0_i32_0 : i32, i32
  }
  func.func @transform_34(%arg0: i32) -> (i32, i32) {
    %c0_i32 = arith.constant 0 : i32
    %c0_i32_0 = arith.constant 0 : i32
    %c0_i32_1 = arith.constant 0 : i32
    return %c0_i32, %c0_i32_0 : i32, i32
  }
  func.func @transform_35(%arg0: i32) -> (i32, i32) {
    %c0_i32 = arith.constant 0 : i32
    %c0_i32_0 = arith.constant 0 : i32
    %c0_i32_1 = arith.constant 0 : i32
    return %c0_i32, %c0_i32_0 : i32, i32
  }
  func.func @transform_36(%arg0: i32) -> (i32, i32) {
    %c0_i32 = arith.constant 0 : i32
    %c0_i32_0 = arith.constant 0 : i32
    %c0_i32_1 = arith.constant 0 : i32
    return %c0_i32, %c0_i32_0 : i32, i32
  }
  func.func @transform_37(%arg0: i32) -> (i32, i32) {
    %c0_i32 = arith.constant 0 : i32
    %c0_i32_0 = arith.constant 0 : i32
    %c0_i32_1 = arith.constant 0 : i32
    return %c0_i32, %c0_i32_0 : i32, i32
  }
  func.func @transform_38(%arg0: i32) -> (i32, i32, i32) {
    %c0_i32 = arith.constant 0 : i32
    %c0_i32_0 = arith.constant 0 : i32
    %c0_i32_1 = arith.constant 0 : i32
    return %arg0, %c0_i32, %c0_i32_0 : i32, i32, i32
  }
}

</mosaic_0001>

<llo_original>
// kernel: custom-call.7
$region0: #{custom-call.7}
  %s0 = inlined_call_operand.vmem [shape: f32[2,3,3], index: 0, kind: input, shape index: {}]
  %s1 = inlined_call_operand.vmem [shape: f32[2,3,3], index: 1, kind: output, shape index: {0}]
  %s2 = inlined_call_operand.vmem [shape: f32[2,3], index: 2, kind: output, shape index: {1}]
  %3 = xla_tuple %s1, %s2
  $region1: #{custom-call.7} parent=0
    #allocation0 [shape = 'u8[4096]{0}', space=vmem, size = 0x1000, scoped, tag = 'operand span for operand 0']
    #allocation1 [shape = 'u8[4096]{0}', space=vmem, size = 0x1000, scoped, tag = 'packed  for operand 0']
    #allocation2 [shape = 'u8[4096]{0}', space=vmem, size = 0x1000, scoped, tag = 'operand span for operand 1']
    #allocation3 [shape = 'u8[4096]{0}', space=vmem, size = 0x1000, scoped, tag = 'packed  for operand 1']
    #allocation4 [shape = 'u8[4096]{0}', space=vmem, size = 0x1000, scoped, tag = 'operand span for operand 2']
    #allocation5 [shape = 'u8[2048]{0}', space=vmem, size = 0x800, scoped, tag = 'packed  for operand 2']
    loop: start=0, step=1, limit=4
    $region2: #{custom-call.7} parent=1 // loop_pre_header
      _
    $region3: #{custom-call.7} parent=1 // loop_header
      %s5 = sphi 0, %s9
      %p6 = scmp.ge.s32.totalorder %s5, 4
      %s12 = sphi 0, %s31
      %s13 = sphi 0, %s27
      %s14 = sphi 0, %s23
      %s15 = sphi 0, %s12
      %s16 = sphi 0, %s13
      %s17 = sphi 0, %s14
      %s18 = sphi 0, %s15
      %s19 = sphi 0, %s16
      %s20 = sphi 0, %s17
      %s46 = sphi 0, %s48
      %s49 = sphi 0, %s46
      %s50 = sphi 0, %s49
      %s66 = sphi 0, %s50
    $region4: #{custom-call.7} parent=1 // loop_header_branch
      %8 = sbr.rel (%p6) target = $region8
    $region5: #{custom-call.7} parent=1 // loop_body
      %s10 = ssub.s32 %s5, 1
      %s11 = ssub.s32 %s5, 2
      %s21 = sadd.s32 1, %s14
      %p22 = scmp.ge.s32.totalorder %s21, 1
      %s23 = scalar_select %p22, 0, %s21
      %s24 = sadd.s32 1, %s13
      %s25 = scalar_select %p22, %s24, %s13
      %p26 = scmp.ge.s32.totalorder %s25, 1
      %s27 = scalar_select %p26, 0, %s25
      %s28 = sadd.s32 1, %s12
      %s29 = scalar_select %p26, %s28, %s12
      %p30 = scmp.ge.s32.totalorder %s29, 2
      %s31 = scalar_select %p30, 0, %s29
      %p32 = scmp.lt.s32.totalorder %s12, 0
      %s33 = ssub.s32 0, %s12
      %s34 = scalar_select %p32, %s33, %s12
      %s35 = sshrl.u32 %s34, 3
      %s36 = ssub.s32 0, %s35
      %s37 = scalar_select %p32, %s36, %s35
      %p38 = scmp.lt.s32.totalorder %s31, 0
      %s39 = ssub.s32 0, %s31
      %s40 = scalar_select %p38, %s39, %s31
      %s41 = sshrl.u32 %s40, 3
      %s42 = ssub.s32 0, %s41
      %s43 = scalar_select %p38, %s42, %s41
      %s44 = ssub.s32 %s37, %s43
      %p45 = scmp.eq.s32.totalorder %s44, 0
      %s47 = sadd.s32 %s46, 1
      %s48 = scalar_select %p45, %s46, %s47
      %p51 = pneg %p45
      %p52 = scmp.eq.s32.totalorder %s5, 1
      %p53 = por %p51, %p52
      %p54 = scmp.ne.s32.totalorder %s46, %s49
      %p55 = scmp.eq.s32.totalorder %s5, 0
      %p56 = por %p54, %p55
      %p57 = scmp.ne.s32.totalorder %s46, %s49
      %p58 = scmp.eq.s32.totalorder %s10, 1
      %p59 = por %p57, %p58
      %p60 = scmp.ne.s32.totalorder %s49, %s50
      %p61 = scmp.eq.s32.totalorder %s10, 0
      %p62 = por %p60, %p61
      %p63 = scmp.ne.s32.totalorder %s49, %s50
      %p64 = scmp.eq.s32.totalorder %s11, 1
      %p65 = por %p63, %p64
      %p67 = scmp.ne.s32.totalorder %s50, %s66
      %p68 = scmp.eq.s32.totalorder %s11, 0
      %p69 = por %p67, %p68
      %p70 = scmp.le.s32.totalorder 1, %s5
      %p71 = scmp.lt.s32.totalorder %s5, 3
      %p72 = pnand %p70, %p71
      %p73 = pneg %p72
      // Predicated region
      $region9: #{custom-call.7} parent=5 // pred_check
        _
      $region10: #{custom-call.7} parent=5 // pred_check_branch
        %75 = sbr.rel (%p72) target = $region12
      $region11: #{custom-call.7} parent=5 // pred_region
        %s76 = ssub.s32 %s5, 1
      $region12: #{custom-call.7} parent=5 // pred_fallthru
        _
      %p77 = scmp.lt.s32.totalorder %s5, 2
      // Predicated region
      $region13: #{custom-call.7} parent=5 // pred_check
        %p78 = pneg %p77
      $region14: #{custom-call.7} parent=5 // pred_check_branch
        %80 = sbr.rel (%p78) target = $region16
      $region15: #{custom-call.7} parent=5 // pred_region
        %s81 = sand.u32 %s5, 1
        %s82 = sand.u32 %s5, 1
        %s83 = smul.addr %s82, 4
        %s84 = scalar_lea.vmem [#allocation1], %s83
        %s85 = sadd.s32 %s14, %s13
        %s86 = sadd.s32 %s85, %s12
        %s87 = smul.addr %s86, 4
        %s88 = scalar_lea.vmem %s0, %s87
        // Predicated region
        $region17: #{custom-call.7} parent=15 // pred_check
          _
        $region18: #{custom-call.7} parent=15 // pred_check_branch
          %90 = sbr.rel (0) target = $region20
        $region19: #{custom-call.7} parent=15 // pred_region
          // Predicated region
          $region21: #{custom-call.7} parent=19 // pred_check
            _
          $region22: #{custom-call.7} parent=19 // pred_check_branch
            %92 = sbr.rel target = $region24
          $region23: #{custom-call.7} parent=19 // pred_region
            // Predicated region
            $region36: #{custom-call.7} parent=23 // pred_check
              _
            $region37: #{custom-call.7} parent=23 // pred_check_branch
              %108 = sbr.rel (0) target = $region39
            $region38: #{custom-call.7} parent=23 // pred_region
              %s110 = ssub.s32 16, 1
              loop: start=0, step=1, limit=1
              $region40: #{custom-call.7} parent=38 // loop_pre_header
                _
              $region41: #{custom-call.7} parent=38 // loop_header
                %s112 = sphi 0, %s116
                %p113 = scmp.ge.s32.totalorder %s112, 1
                %s117 = sphi %s88, %s88
                %s118 = sphi %s84, %s84
              $region42: #{custom-call.7} parent=38 // loop_header_branch
                %115 = sbr.rel (%p113) target = $region46
              $region43: #{custom-call.7} parent=38 // loop_body
                %v119 = vld [vmem:[%s117] sm:%s110]
                %120 = vst [vmem:[%s118] sm:%s110] %v119
              $region44: #{custom-call.7} parent=38 // loop_footer
                %s116 = sadd.s32 1, %s112
              $region45: #{custom-call.7} parent=38 // loop_footer_branch
                %111 = sbr.rel target = $region41
              $region46: #{custom-call.7} parent=38 // loop_exit
                _
            $region39: #{custom-call.7} parent=23 // pred_fallthru
              _
          $region24: #{custom-call.7} parent=19 // pred_fallthru
            _
          // Predicated region
          $region25: #{custom-call.7} parent=19 // pred_check
            _
          $region26: #{custom-call.7} parent=19 // pred_check_branch
            %94 = sbr.rel (0) target = $region28
          $region27: #{custom-call.7} parent=19 // pred_region
            %s96 = ssub.s32 16, 1
            loop: start=0, step=1, limit=1
            $region29: #{custom-call.7} parent=27 // loop_pre_header
              _
            $region30: #{custom-call.7} parent=27 // loop_header
              %s98 = sphi 0, %s102
              %p99 = scmp.ge.s32.totalorder %s98, 1
              %s103 = sphi %s88, %s88
              %s104 = sphi %s84, %s84
            $region31: #{custom-call.7} parent=27 // loop_header_branch
              %101 = sbr.rel (%p99) target = $region35
            $region32: #{custom-call.7} parent=27 // loop_body
              %v105 = vld [vmem:[%s103] sm:%s96]
              %106 = vst [vmem:[%s104] sm:%s96] %v105
            $region33: #{custom-call.7} parent=27 // loop_footer
              %s102 = sadd.s32 1, %s98
            $region34: #{custom-call.7} parent=27 // loop_footer_branch
              %97 = sbr.rel target = $region30
            $region35: #{custom-call.7} parent=27 // loop_exit
              _
          $region28: #{custom-call.7} parent=19 // pred_fallthru
            _
        $region20: #{custom-call.7} parent=15 // pred_fallthru
          _
        %121 = vnop
      $region16: #{custom-call.7} parent=5 // pred_fallthru
        _
      %p122 = scmp.le.s32.totalorder 1, %s5
      %p123 = scmp.lt.s32.totalorder %s5, 3
      %p124 = pnand %p122, %p123
      %p125 = pneg %p124
      // Predicated region
      $region47: #{custom-call.7} parent=5 // pred_check
        _
      $region48: #{custom-call.7} parent=5 // pred_check_branch
        %127 = sbr.rel (%p124) target = $region50
      $region49: #{custom-call.7} parent=5 // pred_region
        #allocation6 [shape = 'f32[3,128]{1,0}', space=vmem, size = 0x1000, scoped, tag = 'scratch for Householder reflectors']
        %s128 = ssub.s32 %s5, 1
        %s129 = sand.u32 %s10, 1
        %s130 = sand.u32 %s10, 1
        %s131 = smul.addr %s130, 4
        %s132 = scalar_lea.vmem [#allocation1], %s131
        %s133 = sand.u32 %s10, 1
        %s134 = sand.u32 %s10, 1
        %s135 = smul.addr %s134, 4
        %s136 = scalar_lea.vmem [#allocation1], %s135
        %s137 = sand.u32 %s10, 1
        %s138 = sand.u32 %s10, 1
        %s139 = smul.addr %s138, 4
        %s140 = scalar_lea.vmem [#allocation3], %s139
        %p141 = pneg %p62
        %p142 = pneg %p59
        %s143 = sand.u32 %s49, 1
        %s144 = sand.u32 %s49, 1
        %s145 = smul.addr %s144, 2
        %s146 = scalar_lea.vmem [#allocation5], %s145
        %s148 = ssub.s32 16, 1
        %v149 = vld [vmem:[%s136] sm:%s148]
        %150 = vst [vmem:[#allocation0] sm:%s148] %v149
        %p151 = scmp.lt.s32.totalorder %s15, 0
        %s152 = ssub.s32 0, %s15
        %s153 = scalar_select %p151, %s152, %s15
        %s154 = sshrl.u32 %s153, 3
        %s155 = ssub.s32 0, %s154
        %s156 = scalar_select %p151, %s155, %s154
        %s157 = sand.u32 %s15, 7
        %s158 = scalar_lea.vmem [#allocation4], %s157
        %v159 = vld [vmem:[#allocation0] sm:$0xff]
        %160 = vst [vmem:[#allocation2] sm:$0xff] %v159
        %161 = vst [vmem:[%s158] sm:$0x1] 0.0
        loop: start=0, step=1, limit=3
        $region51: #{custom-call.7} parent=49 // loop_pre_header
          _
        $region52: #{custom-call.7} parent=49 // loop_header
          %s163 = sphi 0, %s167
          %p164 = scmp.ge.s32.totalorder %s163, 3
        $region53: #{custom-call.7} parent=49 // loop_header_branch
          %166 = sbr.rel (%p164) target = $region57
        $region54: #{custom-call.7} parent=49 // loop_body
          %v168 = vld [vmem:[#allocation2] sm:$0xff]
          %v169 = vlaneseq
          %v170 = vshrl.u32 %v169, 7
          %v172 = vstv %s163
          %vm173 = vcmp.gt.s32.totalorder %v170, %v172
          %vm174 = vcmp.lt.s32.totalorder %v170, 3
          %vm175 = vmand %vm173, %vm174
          %v176 = vsel %vm175, %v168, 0.0
          %v177 = vmul.f32 %v176, %v176
          %v178 = vrot.slane %v177, 4
          %v179 = vadd.f32 %v177, %v178
          %v180 = vrot.slane %v179, 2
          %v181 = vadd.f32 %v179, %v180
          %v182 = vrot.slane %v181, 1
          %v183 = vadd.f32 %v181, %v182
          %v184 = vrsqrt.pop %v183
          %v185 = vmul.f32 %v184, %v183
          %v186 = vmul.f32 %v185, %v184
          %v187 = vmul.f32 0.5, %v186
          %v188 = vsub.f32 1.5, %v187
          %v189 = vmul.f32 %v184, %v188
          %v190 = vmul.f32 %v183, %v189
          %vm191 = vcmp.eq.f32.partialorder %v183, inf
          %v192 = vsel %vm191, %v183, %v190
          %vm193 = vcmp.eq.f32.partialorder %v183, 0.0
          %v194 = vand.u32 %v183, 2147483648
          %v195 = vsel %vm193, %v194, %v192
          %vm196 = vcmp.eq.f32.partialorder %v183, 0.0
          %s197 = sshrl.u32 %s163, 3
          %s198 = sand.u32 %s163, 7
          %s199 = smul.addr %s197, 8
          %s200 = sadd.s32 %s198, %s199
          %s201 = scalar_lea.vmem [#allocation2], %s200
          %v202 = vld [vmem:[%s201] ss:$0 sm:$0xff]
          %v203 = vand.u32 2147483647, %v202
          %v204 = vmax.f32 %v203, 0.0
          %v205 = vand.u32 2147483647, %v195
          %v206 = vmax.f32 %v204, %v205
          %v207 = vrcp.pop %v206
          %v208 = vmul.f32 %v206, %v207
          %v209 = vsub.f32 1.0, %v208
          %v210 = vmul.f32 %v207, %v209
          %v211 = vadd.f32 %v207, %v210
          %vm212 = vweird.f32 %v206
          %vm213 = vweird.f32 %v207
          %vm214 = vmor %vm212, %vm213
          %v215 = vsel %vm214, %v207, %v211
          %v216 = vand.u32 2147483647, %v206
          %vm217 = vcmp.eq.f32.partialorder %v216, 8.507059e+37
          %v218 = vand.u32 %v206, 2147483648
          %v219 = vor.u32 1.1754944e-38, %v218
          %v220 = vsel %vm217, %v219, %v215
          %v221 = vmul.f32 %v203, %v220
          %v222 = vmul.f32 %v221, %v221
          %v223 = vrcp.pop %v206
          %v224 = vmul.f32 %v206, %v223
          %v225 = vsub.f32 1.0, %v224
          %v226 = vmul.f32 %v223, %v225
          %v227 = vadd.f32 %v223, %v226
          %vm228 = vweird.f32 %v206
          %vm229 = vweird.f32 %v223
          %vm230 = vmor %vm228, %vm229
          %v231 = vsel %vm230, %v223, %v227
          %v232 = vand.u32 2147483647, %v206
          %vm233 = vcmp.eq.f32.partialorder %v232, 8.507059e+37
          %v234 = vand.u32 %v206, 2147483648
          %v235 = vor.u32 1.1754944e-38, %v234
          %v236 = vsel %vm233, %v235, %v231
          %v237 = vmul.f32 0.0, %v236
          %v238 = vmul.f32 %v237, %v237
          %v239 = vadd.f32 %v222, %v238
          %v240 = vrcp.pop %v206
          %v241 = vmul.f32 %v206, %v240
          %v242 = vsub.f32 1.0, %v241
          %v243 = vmul.f32 %v240, %v242
          %v244 = vadd.f32 %v240, %v243
          %vm245 = vweird.f32 %v206
          %vm246 = vweird.f32 %v240
          %vm247 = vmor %vm245, %vm246
          %v248 = vsel %vm247, %v240, %v244
          %v249 = vand.u32 2147483647, %v206
          %vm250 = vcmp.eq.f32.partialorder %v249, 8.507059e+37
          %v251 = vand.u32 %v206, 2147483648
          %v252 = vor.u32 1.1754944e-38, %v251
          %v253 = vsel %vm250, %v252, %v248
          %v254 = vmul.f32 %v205, %v253
          %v255 = vmul.f32 %v254, %v254
          %v256 = vadd.f32 %v239, %v255
          %vm257 = vcmp.eq.f32.partialorder %v206, 0.0
          %v258 = vrsqrt.pop %v256
          %v259 = vmul.f32 %v258, %v256
          %v260 = vmul.f32 %v259, %v258
          %v261 = vmul.f32 0.5, %v260
          %v262 = vsub.f32 1.5, %v261
          %v263 = vmul.f32 %v258, %v262
          %v264 = vmul.f32 %v256, %v263
          %vm265 = vcmp.eq.f32.partialorder %v256, inf
          %v266 = vsel %vm265, %v256, %v264
          %vm267 = vcmp.eq.f32.partialorder %v256, 0.0
          %v268 = vand.u32 %v256, 2147483648
          %v269 = vsel %vm267, %v268, %v266
          %v270 = vmul.f32 %v206, %v269
          %v271 = vsel %vm257, 0.0, %v270
          %vm272 = vcmp.lt.f32.partialorder %v202, 0.0
          %v273 = vxor.u32 %v271, 2147483648
          %v274 = vsel %vm272, %v271, %v273
          %v275 = vsub.f32 %v274, %v202
          %v276 = vrcp.pop %v274
          %v277 = vmul.f32 %v274, %v276
          %v278 = vsub.f32 1.0, %v277
          %v279 = vmul.f32 %v276, %v278
          %v280 = vadd.f32 %v276, %v279
          %vm281 = vweird.f32 %v274
          %vm282 = vweird.f32 %v276
          %vm283 = vmor %vm281, %vm282
          %v284 = vsel %vm283, %v276, %v280
          %v285 = vand.u32 2147483647, %v274
          %vm286 = vcmp.eq.f32.partialorder %v285, 8.507059e+37
          %v287 = vand.u32 %v274, 2147483648
          %v288 = vor.u32 1.1754944e-38, %v287
          %v289 = vsel %vm286, %v288, %v284
          %v290 = vmul.f32 %v275, %v289
          %v291 = vsel %vm196, %v202, %v274
          %v292 = vsel %vm196, 0.0, %v290
          %v293 = vsub.f32 %v202, %v291
          %s294 = smov [#allocation2]
          %v295 = vlaneseq
          %v296 = vshrl.u32 %v295, 7
          %v297 = vmov %v296
          %v298 = vld [vmem:[%s294] sm:$0xff]
          %v300 = vstv %s163
          %vm301 = vcmp.gt.s32.totalorder %v297, %v300
          %vm302 = vcmp.lt.s32.totalorder %v297, 3
          %vm303 = vmand %vm301, %vm302
          %v304 = vsel %vm303, %v298, 0.0
          %v305 = vrcp.pop %v293
          %v306 = vmul.f32 %v293, %v305
          %v307 = vsub.f32 1.0, %v306
          %v308 = vmul.f32 %v305, %v307
          %v309 = vadd.f32 %v305, %v308
          %vm310 = vweird.f32 %v293
          %vm311 = vweird.f32 %v305
          %vm312 = vmor %vm310, %vm311
          %v313 = vsel %vm312, %v305, %v309
          %v314 = vand.u32 2147483647, %v293
          %vm315 = vcmp.eq.f32.partialorder %v314, 8.507059e+37
          %v316 = vand.u32 %v293, 2147483648
          %v317 = vor.u32 1.1754944e-38, %v316
          %v318 = vsel %vm315, %v317, %v313
          %v319 = vmul.f32 %v304, %v318
          %v320 = vsel %vm196, 0.0, %v319
          %v321 = vstv %s163
          %v322 = vlaneseq
          %v323 = vand.u32 %v322, 127
          %vm324 = vcmp.eq.s32.totalorder %v323, %v321
          %v325 = vsel %vm324, %v320, 0.0
          %326 = vadd.xlane.f32.xlu0 %v325
          %v327 = vpop.xlane.xlu0 %326
          %328 = vst [vmem:[#allocation6] sm:$0xff] %v327
          %s329 = scalar_lea.vmem [#allocation6], %s163
          %330 = vst [vmem:[%s329] sm:$0x1] 1.0
          %v331 = vstv %s163
          %v332 = vlaneseq
          %v333 = vand.u32 %v332, 127
          %vm334 = vcmp.eq.s32.totalorder %v333, %v331
          %v335 = vsel %vm334, %v292, 0.0
          %336 = vadd.xlane.f32.xlu0 %v335
          %v337 = vpop.xlane.xlu0 %336
          %v338 = vstv %s163
          %v339 = vlaneseq
          %v340 = vand.u32 %v339, 127
          %vm341 = vcmp.eq.s32.totalorder %v340, %v338
          %v342 = vld [vmem:[%s158] ss:$0 sm:$0xff]
          %v343 = vsel %vm341, %v337, %v342
          %344 = vst [vmem:[%s158] sm:$0x1] %v343
          %s345 = smov [#allocation2]
          %s346 = smov [#allocation6]
          %v347 = vlaneseq
          %v348 = vshrl.u32 %v347, 7
          %v349 = vmov %v348
          %v351 = vld [vmem:[%s346] sm:$0xff]
          %v352 = vld [vmem:[%s345] sm:$0xff]
          %v353 = vmul.f32 %v351, %v352
          %vm354 = vcmp.lt.s32.totalorder %v349, 3
          %v355 = vsel %vm354, %v353, 0.0
          %v356 = vrot.slane %v355, 4
          %v357 = vadd.f32 %v355, %v356
          %v358 = vrot.slane %v357, 2
          %v359 = vadd.f32 %v357, %v358
          %v360 = vrot.slane %v359, 1
          %v361 = vadd.f32 %v359, %v360
          %s362 = smov %s345
          %s363 = smov %s346
          %v364 = vlaneseq
          %v365 = vshrl.u32 %v364, 7
          %v366 = vmov %v365
          %v367 = vmul.f32 %v361, %v337
          %v369 = vlaneseq
          %v370 = vand.u32 %v369, 127
          %v371 = vld [vmem:[%s363] sm:$0xff]
          %v372 = vmul.f32 %v371, %v367
          %v373 = vld [vmem:[%s362] sm:$0xff]
          %v374 = vstv %s163
          %vm375 = vcmp.gt.s32.totalorder %v370, %v374
          %v376 = vsub.f32 %v373, %v372
          %v377 = vsel %vm375, %v376, %v373
          %v378 = vstv %s163
          %v379 = vlaneseq
          %v380 = vand.u32 %v379, 127
          %vm381 = vcmp.eq.s32.totalorder %v380, %v378
          %v382 = vstv %s163
          %vm383 = vcmp.ge.s32.totalorder %v366, %v382
          %vm384 = vmand %vm381, %vm383
          %v385 = vsel %vm384, %v371, %v377
          %386 = vst [vmem:[%s362] sm:$0xff] %v385
          %s387 = scalar_lea.vmem %s362, %s163
          %v388 = vld [vmem:[%s387] ss:$0 sm:$0xff]
          %v389 = vstv %s163
          %v390 = vlaneseq
          %v391 = vand.u32 %v390, 127
          %vm392 = vcmp.eq.s32.totalorder %v391, %v389
          %v393 = vsel %vm392, %v291, %v388
          %394 = vst [vmem:[%s387] sm:$0x1] %v393
        $region55: #{custom-call.7} parent=49 // loop_footer
          %s167 = sadd.s32 1, %s163
        $region56: #{custom-call.7} parent=49 // loop_footer_branch
          %162 = sbr.rel target = $region52
        $region57: #{custom-call.7} parent=49 // loop_exit
          _
        %s396 = ssub.s32 16, 1
        %v397 = vld [vmem:[#allocation2] sm:%s396]
        %s399 = ssub.s32 16, 1
        %400 = vst [vmem:[%s140] sm:%s399] %v397
        %s402 = ssub.s32 4, 1
        %v403 = vld [vmem:[#allocation4] sm:%s402]
        %s405 = ssub.s32 4, 1
        %406 = vst [vmem:[%s146] sm:%s405] %v403
        %s407 = sand.u32 %s10, 1
        %s408 = sand.u32 %s10, 1
        %s409 = smul.addr %s408, 4
        %s410 = scalar_lea.vmem [#allocation3], %s409
        %s411 = sand.u32 %s49, 1
        %s412 = sand.u32 %s49, 1
        %s413 = smul.addr %s412, 2
        %s414 = scalar_lea.vmem [#allocation5], %s413
        %s415 = sadd.s32 %s17, %s16
        %s416 = sadd.s32 %s415, %s15
        %s417 = smul.addr %s416, 4
        %s418 = scalar_lea.vmem %s1, %s417
        // Predicated region
        $region58: #{custom-call.7} parent=49 // pred_check
          _
        $region59: #{custom-call.7} parent=49 // pred_check_branch
          %420 = sbr.rel (0) target = $region61
        $region60: #{custom-call.7} parent=49 // pred_region
          // Predicated region
          $region62: #{custom-call.7} parent=60 // pred_check
            _
          $region63: #{custom-call.7} parent=60 // pred_check_branch
            %422 = sbr.rel target = $region65
          $region64: #{custom-call.7} parent=60 // pred_region
            // Predicated region
            $region77: #{custom-call.7} parent=64 // pred_check
              _
            $region78: #{custom-call.7} parent=64 // pred_check_branch
              %438 = sbr.rel (0) target = $region80
            $region79: #{custom-call.7} parent=64 // pred_region
              %s440 = ssub.s32 16, 1
              loop: start=0, step=1, limit=1
              $region81: #{custom-call.7} parent=79 // loop_pre_header
                _
              $region82: #{custom-call.7} parent=79 // loop_header
                %s442 = sphi 0, %s446
                %p443 = scmp.ge.s32.totalorder %s442, 1
                %s447 = sphi %s410, %s410
                %s448 = sphi %s418, %s418
              $region83: #{custom-call.7} parent=79 // loop_header_branch
                %445 = sbr.rel (%p443) target = $region87
              $region84: #{custom-call.7} parent=79 // loop_body
                %v449 = vld [vmem:[%s447] sm:%s440]
                %450 = vst [vmem:[%s448] sm:%s440] %v449
              $region85: #{custom-call.7} parent=79 // loop_footer
                %s446 = sadd.s32 1, %s442
              $region86: #{custom-call.7} parent=79 // loop_footer_branch
                %441 = sbr.rel target = $region82
              $region87: #{custom-call.7} parent=79 // loop_exit
                _
            $region80: #{custom-call.7} parent=64 // pred_fallthru
              _
          $region65: #{custom-call.7} parent=60 // pred_fallthru
            _
          // Predicated region
          $region66: #{custom-call.7} parent=60 // pred_check
            _
          $region67: #{custom-call.7} parent=60 // pred_check_branch
            %424 = sbr.rel (0) target = $region69
          $region68: #{custom-call.7} parent=60 // pred_region
            %s426 = ssub.s32 16, 1
            loop: start=0, step=1, limit=1
            $region70: #{custom-call.7} parent=68 // loop_pre_header
              _
            $region71: #{custom-call.7} parent=68 // loop_header
              %s428 = sphi 0, %s432
              %p429 = scmp.ge.s32.totalorder %s428, 1
              %s433 = sphi %s410, %s410
              %s434 = sphi %s418, %s418
            $region72: #{custom-call.7} parent=68 // loop_header_branch
              %431 = sbr.rel (%p429) target = $region76
            $region73: #{custom-call.7} parent=68 // loop_body
              %v435 = vld [vmem:[%s433] sm:%s426]
              %436 = vst [vmem:[%s434] sm:%s426] %v435
            $region74: #{custom-call.7} parent=68 // loop_footer
              %s432 = sadd.s32 1, %s428
            $region75: #{custom-call.7} parent=68 // loop_footer_branch
              %427 = sbr.rel target = $region71
            $region76: #{custom-call.7} parent=68 // loop_exit
              _
          $region69: #{custom-call.7} parent=60 // pred_fallthru
            _
        $region61: #{custom-call.7} parent=49 // pred_fallthru
          _
        %451 = vnop
        // Predicated region
        $region88: #{custom-call.7} parent=49 // pred_check
          %p452 = pneg %p59
        $region89: #{custom-call.7} parent=49 // pred_check_branch
          %454 = sbr.rel (%p452) target = $region91
        $region90: #{custom-call.7} parent=49 // pred_region
          %p455 = scmp.lt.s32.totalorder %s15, 0
          %s456 = ssub.s32 0, %s15
          %s457 = scalar_select %p455, %s456, %s15
          %s458 = sshrl.u32 %s457, 3
          %s459 = ssub.s32 0, %s458
          %s460 = scalar_select %p455, %s459, %s458
          %s461 = smul.addr %s460, 2
          %s462 = scalar_lea.vmem %s2, %s461
          // Predicated region
          $region92: #{custom-call.7} parent=90 // pred_check
            _
          $region93: #{custom-call.7} parent=90 // pred_check_branch
            %464 = sbr.rel (0) target = $region95
          $region94: #{custom-call.7} parent=90 // pred_region
            // Predicated region
            $region96: #{custom-call.7} parent=94 // pred_check
              _
            $region97: #{custom-call.7} parent=94 // pred_check_branch
              %466 = sbr.rel target = $region99
            $region98: #{custom-call.7} parent=94 // pred_region
              // Predicated region
              $region111: #{custom-call.7} parent=98 // pred_check
                _
              $region112: #{custom-call.7} parent=98 // pred_check_branch
                %482 = sbr.rel (0) target = $region114
              $region113: #{custom-call.7} parent=98 // pred_region
                %s484 = ssub.s32 4, 1
                loop: start=0, step=1, limit=1
                $region115: #{custom-call.7} parent=113 // loop_pre_header
                  _
                $region116: #{custom-call.7} parent=113 // loop_header
                  %s486 = sphi 0, %s490
                  %p487 = scmp.ge.s32.totalorder %s486, 1
                  %s491 = sphi %s414, %s414
                  %s492 = sphi %s462, %s462
                $region117: #{custom-call.7} parent=113 // loop_header_branch
                  %489 = sbr.rel (%p487) target = $region121
                $region118: #{custom-call.7} parent=113 // loop_body
                  %v493 = vld [vmem:[%s491] sm:%s484]
                  %494 = vst [vmem:[%s492] sm:%s484] %v493
                $region119: #{custom-call.7} parent=113 // loop_footer
                  %s490 = sadd.s32 1, %s486
                $region120: #{custom-call.7} parent=113 // loop_footer_branch
                  %485 = sbr.rel target = $region116
                $region121: #{custom-call.7} parent=113 // loop_exit
                  _
              $region114: #{custom-call.7} parent=98 // pred_fallthru
                _
            $region99: #{custom-call.7} parent=94 // pred_fallthru
              _
            // Predicated region
            $region100: #{custom-call.7} parent=94 // pred_check
              _
            $region101: #{custom-call.7} parent=94 // pred_check_branch
              %468 = sbr.rel (0) target = $region103
            $region102: #{custom-call.7} parent=94 // pred_region
              %s470 = ssub.s32 4, 1
              loop: start=0, step=1, limit=1
              $region104: #{custom-call.7} parent=102 // loop_pre_header
                _
              $region105: #{custom-call.7} parent=102 // loop_header
                %s472 = sphi 0, %s476
                %p473 = scmp.ge.s32.totalorder %s472, 1
                %s477 = sphi %s414, %s414
                %s478 = sphi %s462, %s462
              $region106: #{custom-call.7} parent=102 // loop_header_branch
                %475 = sbr.rel (%p473) target = $region110
              $region107: #{custom-call.7} parent=102 // loop_body
                %v479 = vld [vmem:[%s477] sm:%s470]
                %480 = vst [vmem:[%s478] sm:%s470] %v479
              $region108: #{custom-call.7} parent=102 // loop_footer
                %s476 = sadd.s32 1, %s472
              $region109: #{custom-call.7} parent=102 // loop_footer_branch
                %471 = sbr.rel target = $region105
              $region110: #{custom-call.7} parent=102 // loop_exit
                _
            $region103: #{custom-call.7} parent=94 // pred_fallthru
              _
          $region95: #{custom-call.7} parent=90 // pred_fallthru
            _
          %495 = vnop
        $region91: #{custom-call.7} parent=49 // pred_fallthru
          _
      $region50: #{custom-call.7} parent=5 // pred_fallthru
        _
      %p496 = scmp.le.s32.totalorder 2, %s5
      // Predicated region
      $region122: #{custom-call.7} parent=5 // pred_check
        %p497 = pneg %p496
      $region123: #{custom-call.7} parent=5 // pred_check_branch
        %499 = sbr.rel (%p497) target = $region125
      $region124: #{custom-call.7} parent=5 // pred_region
        %s500 = ssub.s32 %s5, 2
        %s501 = sand.u32 %s11, 1
        %s502 = sand.u32 %s11, 1
        %s503 = smul.addr %s502, 4
        %s504 = scalar_lea.vmem [#allocation3], %s503
        // Predicated region
        $region126: #{custom-call.7} parent=124 // pred_check
          %p505 = pneg %p65
        $region127: #{custom-call.7} parent=124 // pred_check_branch
          %507 = sbr.rel (%p505) target = $region129
        $region128: #{custom-call.7} parent=124 // pred_region
          %s508 = sand.u32 %s50, 1
          %s509 = sand.u32 %s50, 1
          %s510 = smul.addr %s509, 2
          %s511 = scalar_lea.vmem [#allocation5], %s510
        $region129: #{custom-call.7} parent=124 // pred_fallthru
          _
      $region125: #{custom-call.7} parent=5 // pred_fallthru
        _
    $region6: #{custom-call.7} parent=1 // loop_footer
      %s9 = sadd.s32 1, %s5
    $region7: #{custom-call.7} parent=1 // loop_footer_branch
      %4 = sbr.rel target = $region3
    $region8: #{custom-call.7} parent=1 // loop_exit
      _

// kernel: custom-call.8
$region0: #{custom-call.8}
  %s0 = inlined_call_operand.vmem [shape: f32[2,3,3], index: 0, kind: input, shape index: {}]
  %s1 = inlined_call_operand.vmem [shape: f32[2,3,3], index: 1, kind: output, shape index: {}]
  $region1: #{custom-call.8} parent=0
    #allocation0 [shape = 'u8[4096]{0}', space=vmem, size = 0x1000, scoped, tag = 'operand span for operand 0']
    #allocation1 [shape = 'u8[4096]{0}', space=vmem, size = 0x1000, scoped, tag = 'packed  for operand 0']
    #allocation2 [shape = 'u8[4096]{0}', space=vmem, size = 0x1000, scoped, tag = 'operand span for operand 1']
    #allocation3 [shape = 'u8[4096]{0}', space=vmem, size = 0x1000, scoped, tag = 'packed  for operand 1']
    loop: start=0, step=1, limit=4
    $region2: #{custom-call.8} parent=1 // loop_pre_header
      _
    $region3: #{custom-call.8} parent=1 // loop_header
      %s3 = sphi 0, %s7
      %p4 = scmp.ge.s32.totalorder %s3, 4
    $region4: #{custom-call.8} parent=1 // loop_header_branch
      %6 = sbr.rel (%p4) target = $region8
    $region5: #{custom-call.8} parent=1 // loop_body
      %s8 = ssub.s32 %s3, 1
      %s9 = ssub.s32 %s3, 2
      %s10 = sadd.s32 %s3, 1
      %p11 = scmp.le.s32.totalorder 1, %s3
      %p12 = scmp.lt.s32.totalorder %s3, 3
      %p13 = pnand %p11, %p12
      %p14 = pneg %p13
      // Predicated region
      $region9: #{custom-call.8} parent=5 // pred_check
        _
      $region10: #{custom-call.8} parent=5 // pred_check_branch
        %16 = sbr.rel (%p13) target = $region12
      $region11: #{custom-call.8} parent=5 // pred_region
        %s17 = ssub.s32 %s3, 1
      $region12: #{custom-call.8} parent=5 // pred_fallthru
        _
      %p18 = scmp.lt.s32.totalorder %s3, 2
      // Predicated region
      $region13: #{custom-call.8} parent=5 // pred_check
        %p19 = pneg %p18
      $region14: #{custom-call.8} parent=5 // pred_check_branch
        %21 = sbr.rel (%p19) target = $region16
      $region15: #{custom-call.8} parent=5 // pred_region
        %s22 = sand.u32 %s3, 1
        %s23 = sand.u32 %s3, 1
        %s24 = smul.addr %s23, 4
        %s25 = scalar_lea.vmem [#allocation1], %s24
        %s26 = smul.addr %s3, 4
        %s27 = scalar_lea.vmem %s0, %s26
        // Predicated region
        $region17: #{custom-call.8} parent=15 // pred_check
          _
        $region18: #{custom-call.8} parent=15 // pred_check_branch
          %29 = sbr.rel (0) target = $region20
        $region19: #{custom-call.8} parent=15 // pred_region
          // Predicated region
          $region21: #{custom-call.8} parent=19 // pred_check
            _
          $region22: #{custom-call.8} parent=19 // pred_check_branch
            %31 = sbr.rel target = $region24
          $region23: #{custom-call.8} parent=19 // pred_region
            // Predicated region
            $region36: #{custom-call.8} parent=23 // pred_check
              _
            $region37: #{custom-call.8} parent=23 // pred_check_branch
              %47 = sbr.rel (0) target = $region39
            $region38: #{custom-call.8} parent=23 // pred_region
              %s49 = ssub.s32 16, 1
              loop: start=0, step=1, limit=1
              $region40: #{custom-call.8} parent=38 // loop_pre_header
                _
              $region41: #{custom-call.8} parent=38 // loop_header
                %s51 = sphi 0, %s55
                %p52 = scmp.ge.s32.totalorder %s51, 1
                %s56 = sphi %s27, %s27
                %s57 = sphi %s25, %s25
              $region42: #{custom-call.8} parent=38 // loop_header_branch
                %54 = sbr.rel (%p52) target = $region46
              $region43: #{custom-call.8} parent=38 // loop_body
                %v58 = vld [vmem:[%s56] sm:%s49]
                %59 = vst [vmem:[%s57] sm:%s49] %v58
              $region44: #{custom-call.8} parent=38 // loop_footer
                %s55 = sadd.s32 1, %s51
              $region45: #{custom-call.8} parent=38 // loop_footer_branch
                %50 = sbr.rel target = $region41
              $region46: #{custom-call.8} parent=38 // loop_exit
                _
            $region39: #{custom-call.8} parent=23 // pred_fallthru
              _
          $region24: #{custom-call.8} parent=19 // pred_fallthru
            _
          // Predicated region
          $region25: #{custom-call.8} parent=19 // pred_check
            _
          $region26: #{custom-call.8} parent=19 // pred_check_branch
            %33 = sbr.rel (0) target = $region28
          $region27: #{custom-call.8} parent=19 // pred_region
            %s35 = ssub.s32 16, 1
            loop: start=0, step=1, limit=1
            $region29: #{custom-call.8} parent=27 // loop_pre_header
              _
            $region30: #{custom-call.8} parent=27 // loop_header
              %s37 = sphi 0, %s41
              %p38 = scmp.ge.s32.totalorder %s37, 1
              %s42 = sphi %s27, %s27
              %s43 = sphi %s25, %s25
            $region31: #{custom-call.8} parent=27 // loop_header_branch
              %40 = sbr.rel (%p38) target = $region35
            $region32: #{custom-call.8} parent=27 // loop_body
              %v44 = vld [vmem:[%s42] sm:%s35]
              %45 = vst [vmem:[%s43] sm:%s35] %v44
            $region33: #{custom-call.8} parent=27 // loop_footer
              %s41 = sadd.s32 1, %s37
            $region34: #{custom-call.8} parent=27 // loop_footer_branch
              %36 = sbr.rel target = $region30
            $region35: #{custom-call.8} parent=27 // loop_exit
              _
          $region28: #{custom-call.8} parent=19 // pred_fallthru
            _
        $region20: #{custom-call.8} parent=15 // pred_fallthru
          _
        %60 = vnop
      $region16: #{custom-call.8} parent=5 // pred_fallthru
        _
      %p61 = scmp.le.s32.totalorder 1, %s3
      %p62 = scmp.lt.s32.totalorder %s3, 3
      %p63 = pnand %p61, %p62
      %p64 = pneg %p63
      // Predicated region
      $region47: #{custom-call.8} parent=5 // pred_check
        _
      $region48: #{custom-call.8} parent=5 // pred_check_branch
        %66 = sbr.rel (%p63) target = $region50
      $region49: #{custom-call.8} parent=5 // pred_region
        %s67 = ssub.s32 %s3, 1
        %s68 = sand.u32 %s8, 1
        %s69 = sand.u32 %s8, 1
        %s70 = smul.addr %s69, 4
        %s71 = scalar_lea.vmem [#allocation1], %s70
        %s72 = sand.u32 %s8, 1
        %s73 = sand.u32 %s8, 1
        %s74 = smul.addr %s73, 4
        %s75 = scalar_lea.vmem [#allocation1], %s74
        %s76 = sand.u32 %s8, 1
        %s77 = sand.u32 %s8, 1
        %s78 = smul.addr %s77, 4
        %s79 = scalar_lea.vmem [#allocation3], %s78
        %s81 = ssub.s32 16, 1
        %v82 = vld [vmem:[%s75] sm:%s81]
        %83 = vst [vmem:[#allocation0] sm:%s81] %v82
        %v84 = vlaneseq
        %v85 = vand.u32 %v84, 127
        %v86 = vlaneseq
        %v87 = vshrl.u32 %v86, 7
        %vm89 = vcmp.eq.s32.totalorder %v85, %v87
        %v90 = vld [vmem:[#allocation0] sm:$0xff]
        %v91 = vlaneseq
        %v92 = vand.u32 %v91, 127
        %vm93 = vcmp.eq.s32.totalorder %v92, 0
        %v94 = vsel %vm93, %v90, 1.0
        %v95 = vsel %vm89, %v94, 0.0
        %s96 = scalar_lea.vmem [#allocation0], 1
        %v97 = vld [vmem:[%s96] ss:$0 sm:$0xff]
        %vm98 = vcmask 23552
        %v99 = vsel %vm98, %v97, 0.0
        %v100 = vlaneseq
        %v101 = vand.u32 %v100, 127
        %vm102 = vcmp.eq.s32.totalorder %v101, 1
        %v103 = vmul.f32 %v99, %v95
        %104 = vadd.xlane.f32.xlu0 %v103
        %v105 = vpop.xlane.xlu0 %104
        %v106 = vsel %vm102, %v105, %v95
        %s107 = scalar_lea.vmem [#allocation0], 2
        %v108 = vld [vmem:[%s107] ss:$0 sm:$0xff]
        %vm109 = vcmask 23552
        %v110 = vsel %vm109, %v108, 0.0
        %v111 = vlaneseq
        %v112 = vand.u32 %v111, 127
        %vm113 = vcmp.eq.s32.totalorder %v112, 2
        %v114 = vmul.f32 %v110, %v106
        %115 = vadd.xlane.f32.xlu0 %v114
        %v116 = vpop.xlane.xlu0 %115
        %v117 = vsel %vm113, %v116, %v106
        %118 = vst [vmem:[#allocation2] sm:$0xff] %v117
        %s120 = ssub.s32 16, 1
        %v121 = vld [vmem:[#allocation2] sm:%s120]
        %s123 = ssub.s32 16, 1
        %124 = vst [vmem:[%s79] sm:%s123] %v121
        %s125 = sand.u32 %s8, 1
        %s126 = sand.u32 %s8, 1
        %s127 = smul.addr %s126, 4
        %s128 = scalar_lea.vmem [#allocation3], %s127
        %s129 = smul.addr %s8, 4
        %s130 = scalar_lea.vmem %s1, %s129
        // Predicated region
        $region51: #{custom-call.8} parent=49 // pred_check
          _
        $region52: #{custom-call.8} parent=49 // pred_check_branch
          %132 = sbr.rel (0) target = $region54
        $region53: #{custom-call.8} parent=49 // pred_region
          // Predicated region
          $region55: #{custom-call.8} parent=53 // pred_check
            _
          $region56: #{custom-call.8} parent=53 // pred_check_branch
            %134 = sbr.rel target = $region58
          $region57: #{custom-call.8} parent=53 // pred_region
            // Predicated region
            $region70: #{custom-call.8} parent=57 // pred_check
              _
            $region71: #{custom-call.8} parent=57 // pred_check_branch
              %150 = sbr.rel (0) target = $region73
            $region72: #{custom-call.8} parent=57 // pred_region
              %s152 = ssub.s32 16, 1
              loop: start=0, step=1, limit=1
              $region74: #{custom-call.8} parent=72 // loop_pre_header
                _
              $region75: #{custom-call.8} parent=72 // loop_header
                %s154 = sphi 0, %s158
                %p155 = scmp.ge.s32.totalorder %s154, 1
                %s159 = sphi %s128, %s128
                %s160 = sphi %s130, %s130
              $region76: #{custom-call.8} parent=72 // loop_header_branch
                %157 = sbr.rel (%p155) target = $region80
              $region77: #{custom-call.8} parent=72 // loop_body
                %v161 = vld [vmem:[%s159] sm:%s152]
                %162 = vst [vmem:[%s160] sm:%s152] %v161
              $region78: #{custom-call.8} parent=72 // loop_footer
                %s158 = sadd.s32 1, %s154
              $region79: #{custom-call.8} parent=72 // loop_footer_branch
                %153 = sbr.rel target = $region75
              $region80: #{custom-call.8} parent=72 // loop_exit
                _
            $region73: #{custom-call.8} parent=57 // pred_fallthru
              _
          $region58: #{custom-call.8} parent=53 // pred_fallthru
            _
          // Predicated region
          $region59: #{custom-call.8} parent=53 // pred_check
            _
          $region60: #{custom-call.8} parent=53 // pred_check_branch
            %136 = sbr.rel (0) target = $region62
          $region61: #{custom-call.8} parent=53 // pred_region
            %s138 = ssub.s32 16, 1
            loop: start=0, step=1, limit=1
            $region63: #{custom-call.8} parent=61 // loop_pre_header
              _
            $region64: #{custom-call.8} parent=61 // loop_header
              %s140 = sphi 0, %s144
              %p141 = scmp.ge.s32.totalorder %s140, 1
              %s145 = sphi %s128, %s128
              %s146 = sphi %s130, %s130
            $region65: #{custom-call.8} parent=61 // loop_header_branch
              %143 = sbr.rel (%p141) target = $region69
            $region66: #{custom-call.8} parent=61 // loop_body
              %v147 = vld [vmem:[%s145] sm:%s138]
              %148 = vst [vmem:[%s146] sm:%s138] %v147
            $region67: #{custom-call.8} parent=61 // loop_footer
              %s144 = sadd.s32 1, %s140
            $region68: #{custom-call.8} parent=61 // loop_footer_branch
              %139 = sbr.rel target = $region64
            $region69: #{custom-call.8} parent=61 // loop_exit
              _
          $region62: #{custom-call.8} parent=53 // pred_fallthru
            _
        $region54: #{custom-call.8} parent=49 // pred_fallthru
          _
        %163 = vnop
      $region50: #{custom-call.8} parent=5 // pred_fallthru
        _
      %p164 = scmp.le.s32.totalorder 2, %s3
      // Predicated region
      $region81: #{custom-call.8} parent=5 // pred_check
        %p165 = pneg %p164
      $region82: #{custom-call.8} parent=5 // pred_check_branch
        %167 = sbr.rel (%p165) target = $region84
      $region83: #{custom-call.8} parent=5 // pred_region
        %s168 = ssub.s32 %s3, 2
        %s169 = sand.u32 %s9, 1
        %s170 = sand.u32 %s9, 1
        %s171 = smul.addr %s170, 4
        %s172 = scalar_lea.vmem [#allocation3], %s171
      $region84: #{custom-call.8} parent=5 // pred_fallthru
        _
    $region6: #{custom-call.8} parent=1 // loop_footer
      %s7 = sadd.s32 1, %s3
    $region7: #{custom-call.8} parent=1 // loop_footer_branch
      %2 = sbr.rel target = $region3
    $region8: #{custom-call.8} parent=1 // loop_exit
      _

// kernel: forward.2
$region0: #{forward.2}
  #allocation0 [shape = 'u32[]', space=smem, size = 0x4, offset = 0x4, fixed_abs, tag = 'smem constant byte address 0x4 - core index']
  #allocation1 [shape = 'u32[72,128]{1,0:T(1,128)}', space=vmem, size = 0x9000, scoped, tag = 'internal scratch']
  %s0 = inlined_call_operand.vmem [shape: f32[2,8,3], index: 0, kind: input, shape index: {}]
  %s1 = inlined_call_operand.vmem [shape: f32[2,8,1], index: 1, kind: input, shape index: {}]
  %s2 = inlined_call_operand.vmem [shape: f32[2,1,8], index: 2, kind: input, shape index: {}]
  %s3 = inlined_call_operand.vmem [shape: f32[2,1,256], index: 3, kind: input, shape index: {}]
  %s4 = inlined_call_operand.vmem [shape: f32[2,3,3], index: 4, kind: input, shape index: {}]
  %s5 = inlined_call_operand.vmem [shape: f32[1,16], index: 5, kind: input, shape index: {}]
  %s6 = inlined_call_operand.vmem [shape: f32[1,16], index: 6, kind: input, shape index: {}]
  %s7 = inlined_call_operand.vmem [shape: bf16[16,8], index: 7, kind: input, shape index: {}]
  %s8 = inlined_call_operand.vmem [shape: f32[1,8], index: 8, kind: input, shape index: {}]
  %s9 = inlined_call_operand.vmem [shape: bf16[16,16], index: 9, kind: input, shape index: {}]
  %s10 = inlined_call_operand.vmem [shape: f32[1,16], index: 10, kind: input, shape index: {}]
  %s11 = inlined_call_operand.vmem [shape: bf16[256,16], index: 11, kind: input, shape index: {}]
  %s12 = inlined_call_operand.vmem [shape: f32[1,16], index: 12, kind: input, shape index: {}]
  %s13 = inlined_call_operand.vmem [shape: bf16[16,16], index: 13, kind: input, shape index: {}]
  %s14 = inlined_call_operand.vmem [shape: f32[1,16], index: 14, kind: input, shape index: {}]
  %s15 = inlined_call_operand.vmem [shape: f32[27,32], index: 15, kind: input, shape index: {}]
  %s16 = inlined_call_operand.vmem [shape: f32[1,32], index: 16, kind: input, shape index: {}]
  %s17 = inlined_call_operand.vmem [shape: bf16[32,32], index: 17, kind: input, shape index: {}]
  %s18 = inlined_call_operand.vmem [shape: f32[1,32], index: 18, kind: input, shape index: {}]
  %s19 = inlined_call_operand.vmem [shape: bf16[32,32], index: 19, kind: input, shape index: {}]
  %s20 = inlined_call_operand.vmem [shape: f32[1,32], index: 20, kind: input, shape index: {}]
  %s21 = inlined_call_operand.vmem [shape: f32[32,9], index: 21, kind: input, shape index: {}]
  %s22 = inlined_call_operand.vmem [shape: f32[1,9], index: 22, kind: input, shape index: {}]
  %s23 = inlined_call_operand.vmem [shape: f32[2,1,9], index: 23, kind: output, shape index: {0}]
  %s24 = inlined_call_operand.vmem [shape: f32[2,8,16], index: 24, kind: output, shape index: {1}]
  %25 = xla_tuple %s23, %s24
  %s26 = sld [smem:[#allocation0]]
  $region133: #{forward.2} parent=0
    _
  %s28 = ssub.s32 1, %s26
  %s29 = scalar_select 0, %s28, %s26
  loop: start=0, step=1, limit=4
  $region2: #{forward.2} parent=0 // loop_pre_header
    _
  $region3: #{forward.2} parent=0 // loop_header
    %s31 = sphi 0, %s35
    %p32 = scmp.ge.s32.totalorder %s31, 4
    %s41 = sphi 0, %s43
    %s44 = sphi 0, %s41
    %s45 = sphi 0, %s44
    %s61 = sphi 0, %s45
    %s67 = sphi 0, %s69
    %s70 = sphi 0, %s67
    %s71 = sphi 0, %s70
    %s87 = sphi 0, %s71
    %s93 = sphi 0, %s95
    %s96 = sphi 0, %s93
    %s97 = sphi 0, %s96
    %s113 = sphi 0, %s97
    %s119 = sphi 0, %s121
    %s122 = sphi 0, %s119
    %s123 = sphi 0, %s122
    %s139 = sphi 0, %s123
    %s145 = sphi 0, %s147
    %s148 = sphi 0, %s145
    %s149 = sphi 0, %s148
    %s165 = sphi 0, %s149
    %s169 = sphi 0, %s169
    %s171 = sphi 0, %s169
    %s172 = sphi 0, %s171
    %s186 = sphi 0, %s172
    %s190 = sphi 0, %s190
    %s192 = sphi 0, %s190
    %s193 = sphi 0, %s192
    %s207 = sphi 0, %s193
    %s211 = sphi 0, %s211
    %s213 = sphi 0, %s211
    %s214 = sphi 0, %s213
    %s228 = sphi 0, %s214
    %s232 = sphi 0, %s232
    %s234 = sphi 0, %s232
    %s235 = sphi 0, %s234
    %s249 = sphi 0, %s235
    %s253 = sphi 0, %s253
    %s255 = sphi 0, %s253
    %s256 = sphi 0, %s255
    %s270 = sphi 0, %s256
    %s274 = sphi 0, %s274
    %s276 = sphi 0, %s274
    %s277 = sphi 0, %s276
    %s291 = sphi 0, %s277
    %s295 = sphi 0, %s295
    %s297 = sphi 0, %s295
    %s298 = sphi 0, %s297
    %s312 = sphi 0, %s298
    %s316 = sphi 0, %s316
    %s318 = sphi 0, %s316
    %s319 = sphi 0, %s318
    %s333 = sphi 0, %s319
    %s337 = sphi 0, %s337
    %s339 = sphi 0, %s337
    %s340 = sphi 0, %s339
    %s354 = sphi 0, %s340
    %s358 = sphi 0, %s358
    %s360 = sphi 0, %s358
    %s361 = sphi 0, %s360
    %s375 = sphi 0, %s361
    %s379 = sphi 0, %s379
    %s381 = sphi 0, %s379
    %s382 = sphi 0, %s381
    %s396 = sphi 0, %s382
    %s400 = sphi 0, %s400
    %s402 = sphi 0, %s400
    %s403 = sphi 0, %s402
    %s417 = sphi 0, %s403
    %s421 = sphi 0, %s421
    %s423 = sphi 0, %s421
    %s424 = sphi 0, %s423
    %s438 = sphi 0, %s424
    %s442 = sphi 0, %s442
    %s444 = sphi 0, %s442
    %s445 = sphi 0, %s444
    %s459 = sphi 0, %s445
    %s463 = sphi 0, %s463
    %s465 = sphi 0, %s463
    %s466 = sphi 0, %s465
    %s480 = sphi 0, %s466
    %s484 = sphi 0, %s484
    %s486 = sphi 0, %s484
    %s487 = sphi 0, %s486
    %s501 = sphi 0, %s487
    %s505 = sphi 0, %s505
    %s507 = sphi 0, %s505
    %s508 = sphi 0, %s507
    %s522 = sphi 0, %s508
    %s526 = sphi 0, %s526
    %s528 = sphi 0, %s526
    %s529 = sphi 0, %s528
    %s543 = sphi 0, %s529
    %s549 = sphi 0, %s551
    %s552 = sphi 0, %s549
    %s553 = sphi 0, %s552
    %s569 = sphi 0, %s553
    %s575 = sphi 0, %s577
    %s578 = sphi 0, %s575
    %s579 = sphi 0, %s578
    %s595 = sphi 0, %s579
  $region4: #{forward.2} parent=0 // loop_header_branch
    %34 = sbr.rel (%p32) target = $region8
  $region5: #{forward.2} parent=0 // loop_body
    %s36 = ssub.s32 %s31, 1
    %s37 = ssub.s32 %s31, 2
    %s38 = sadd.s32 %s31, 1
    %s39 = ssub.s32 %s31, %s38
    %p40 = scmp.eq.s32.totalorder %s39, 0
    %s42 = sadd.s32 %s41, 1
    %s43 = scalar_select %p40, %s41, %s42
    %p46 = pneg %p40
    %p47 = scmp.eq.s32.totalorder %s31, 1
    %p48 = por %p46, %p47
    %p49 = scmp.ne.s32.totalorder %s41, %s44
    %p50 = scmp.eq.s32.totalorder %s31, 0
    %p51 = por %p49, %p50
    %p52 = scmp.ne.s32.totalorder %s41, %s44
    %p53 = scmp.eq.s32.totalorder %s36, 1
    %p54 = por %p52, %p53
    %p55 = scmp.ne.s32.totalorder %s44, %s45
    %p56 = scmp.eq.s32.totalorder %s36, 0
    %p57 = por %p55, %p56
    %p58 = scmp.ne.s32.totalorder %s44, %s45
    %p59 = scmp.eq.s32.totalorder %s37, 1
    %p60 = por %p58, %p59
    %p62 = scmp.ne.s32.totalorder %s45, %s61
    %p63 = scmp.eq.s32.totalorder %s37, 0
    %p64 = por %p62, %p63
    %s65 = ssub.s32 %s31, %s38
    %p66 = scmp.eq.s32.totalorder %s65, 0
    %s68 = sadd.s32 %s67, 1
    %s69 = scalar_select %p66, %s67, %s68
    %p72 = pneg %p66
    %p73 = scmp.eq.s32.totalorder %s31, 1
    %p74 = por %p72, %p73
    %p75 = scmp.ne.s32.totalorder %s67, %s70
    %p76 = scmp.eq.s32.totalorder %s31, 0
    %p77 = por %p75, %p76
    %p78 = scmp.ne.s32.totalorder %s67, %s70
    %p79 = scmp.eq.s32.totalorder %s36, 1
    %p80 = por %p78, %p79
    %p81 = scmp.ne.s32.totalorder %s70, %s71
    %p82 = scmp.eq.s32.totalorder %s36, 0
    %p83 = por %p81, %p82
    %p84 = scmp.ne.s32.totalorder %s70, %s71
    %p85 = scmp.eq.s32.totalorder %s37, 1
    %p86 = por %p84, %p85
    %p88 = scmp.ne.s32.totalorder %s71, %s87
    %p89 = scmp.eq.s32.totalorder %s37, 0
    %p90 = por %p88, %p89
    %s91 = ssub.s32 %s31, %s38
    %p92 = scmp.eq.s32.totalorder %s91, 0
    %s94 = sadd.s32 %s93, 1
    %s95 = scalar_select %p92, %s93, %s94
    %p98 = pneg %p92
    %p99 = scmp.eq.s32.totalorder %s31, 1
    %p100 = por %p98, %p99
    %p101 = scmp.ne.s32.totalorder %s93, %s96
    %p102 = scmp.eq.s32.totalorder %s31, 0
    %p103 = por %p101, %p102
    %p104 = scmp.ne.s32.totalorder %s93, %s96
    %p105 = scmp.eq.s32.totalorder %s36, 1
    %p106 = por %p104, %p105
    %p107 = scmp.ne.s32.totalorder %s96, %s97
    %p108 = scmp.eq.s32.totalorder %s36, 0
    %p109 = por %p107, %p108
    %p110 = scmp.ne.s32.totalorder %s96, %s97
    %p111 = scmp.eq.s32.totalorder %s37, 1
    %p112 = por %p110, %p111
    %p114 = scmp.ne.s32.totalorder %s97, %s113
    %p115 = scmp.eq.s32.totalorder %s37, 0
    %p116 = por %p114, %p115
    %s117 = ssub.s32 %s31, %s38
    %p118 = scmp.eq.s32.totalorder %s117, 0
    %s120 = sadd.s32 %s119, 1
    %s121 = scalar_select %p118, %s119, %s120
    %p124 = pneg %p118
    %p125 = scmp.eq.s32.totalorder %s31, 1
    %p126 = por %p124, %p125
    %p127 = scmp.ne.s32.totalorder %s119, %s122
    %p128 = scmp.eq.s32.totalorder %s31, 0
    %p129 = por %p127, %p128
    %p130 = scmp.ne.s32.totalorder %s119, %s122
    %p131 = scmp.eq.s32.totalorder %s36, 1
    %p132 = por %p130, %p131
    %p133 = scmp.ne.s32.totalorder %s122, %s123
    %p134 = scmp.eq.s32.totalorder %s36, 0
    %p135 = por %p133, %p134
    %p136 = scmp.ne.s32.totalorder %s122, %s123
    %p137 = scmp.eq.s32.totalorder %s37, 1
    %p138 = por %p136, %p137
    %p140 = scmp.ne.s32.totalorder %s123, %s139
    %p141 = scmp.eq.s32.totalorder %s37, 0
    %p142 = por %p140, %p141
    %s143 = ssub.s32 %s31, %s38
    %p144 = scmp.eq.s32.totalorder %s143, 0
    %s146 = sadd.s32 %s145, 1
    %s147 = scalar_select %p144, %s145, %s146
    %p150 = pneg %p144
    %p151 = scmp.eq.s32.totalorder %s31, 1
    %p152 = por %p150, %p151
    %p153 = scmp.ne.s32.totalorder %s145, %s148
    %p154 = scmp.eq.s32.totalorder %s31, 0
    %p155 = por %p153, %p154
    %p156 = scmp.ne.s32.totalorder %s145, %s148
    %p157 = scmp.eq.s32.totalorder %s36, 1
    %p158 = por %p156, %p157
    %p159 = scmp.ne.s32.totalorder %s148, %s149
    %p160 = scmp.eq.s32.totalorder %s36, 0
    %p161 = por %p159, %p160
    %p162 = scmp.ne.s32.totalorder %s148, %s149
    %p163 = scmp.eq.s32.totalorder %s37, 1
    %p164 = por %p162, %p163
    %p166 = scmp.ne.s32.totalorder %s149, %s165
    %p167 = scmp.eq.s32.totalorder %s37, 0
    %p168 = por %p166, %p167
    %s170 = sadd.s32 %s169, 1
    %p173 = scmp.eq.s32.totalorder %s31, 1
    %p174 = scmp.ne.s32.totalorder %s169, %s171
    %p175 = scmp.eq.s32.totalorder %s31, 0
    %p176 = por %p174, %p175
    %p177 = scmp.ne.s32.totalorder %s169, %s171
    %p178 = scmp.eq.s32.totalorder %s36, 1
    %p179 = por %p177, %p178
    %p180 = scmp.ne.s32.totalorder %s171, %s172
    %p181 = scmp.eq.s32.totalorder %s36, 0
    %p182 = por %p180, %p181
    %p183 = scmp.ne.s32.totalorder %s171, %s172
    %p184 = scmp.eq.s32.totalorder %s37, 1
    %p185 = por %p183, %p184
    %p187 = scmp.ne.s32.totalorder %s172, %s186
    %p188 = scmp.eq.s32.totalorder %s37, 0
    %p189 = por %p187, %p188
    %s191 = sadd.s32 %s190, 1
    %p194 = scmp.eq.s32.totalorder %s31, 1
    %p195 = scmp.ne.s32.totalorder %s190, %s192
    %p196 = scmp.eq.s32.totalorder %s31, 0
    %p197 = por %p195, %p196
    %p198 = scmp.ne.s32.totalorder %s190, %s192
    %p199 = scmp.eq.s32.totalorder %s36, 1
    %p200 = por %p198, %p199
    %p201 = scmp.ne.s32.totalorder %s192, %s193
    %p202 = scmp.eq.s32.totalorder %s36, 0
    %p203 = por %p201, %p202
    %p204 = scmp.ne.s32.totalorder %s192, %s193
    %p205 = scmp.eq.s32.totalorder %s37, 1
    %p206 = por %p204, %p205
    %p208 = scmp.ne.s32.totalorder %s193, %s207
    %p209 = scmp.eq.s32.totalorder %s37, 0
    %p210 = por %p208, %p209
    %s212 = sadd.s32 %s211, 1
    %p215 = scmp.eq.s32.totalorder %s31, 1
    %p216 = scmp.ne.s32.totalorder %s211, %s213
    %p217 = scmp.eq.s32.totalorder %s31, 0
    %p218 = por %p216, %p217
    %p219 = scmp.ne.s32.totalorder %s211, %s213
    %p220 = scmp.eq.s32.totalorder %s36, 1
    %p221 = por %p219, %p220
    %p222 = scmp.ne.s32.totalorder %s213, %s214
    %p223 = scmp.eq.s32.totalorder %s36, 0
    %p224 = por %p222, %p223
    %p225 = scmp.ne.s32.totalorder %s213, %s214
    %p226 = scmp.eq.s32.totalorder %s37, 1
    %p227 = por %p225, %p226
    %p229 = scmp.ne.s32.totalorder %s214, %s228
    %p230 = scmp.eq.s32.totalorder %s37, 0
    %p231 = por %p229, %p230
    %s233 = sadd.s32 %s232, 1
    %p236 = scmp.eq.s32.totalorder %s31, 1
    %p237 = scmp.ne.s32.totalorder %s232, %s234
    %p238 = scmp.eq.s32.totalorder %s31, 0
    %p239 = por %p237, %p238
    %p240 = scmp.ne.s32.totalorder %s232, %s234
    %p241 = scmp.eq.s32.totalorder %s36, 1
    %p242 = por %p240, %p241
    %p243 = scmp.ne.s32.totalorder %s234, %s235
    %p244 = scmp.eq.s32.totalorder %s36, 0
    %p245 = por %p243, %p244
    %p246 = scmp.ne.s32.totalorder %s234, %s235
    %p247 = scmp.eq.s32.totalorder %s37, 1
    %p248 = por %p246, %p247
    %p250 = scmp.ne.s32.totalorder %s235, %s249
    %p251 = scmp.eq.s32.totalorder %s37, 0
    %p252 = por %p250, %p251
    %s254 = sadd.s32 %s253, 1
    %p257 = scmp.eq.s32.totalorder %s31, 1
    %p258 = scmp.ne.s32.totalorder %s253, %s255
    %p259 = scmp.eq.s32.totalorder %s31, 0
    %p260 = por %p258, %p259
    %p261 = scmp.ne.s32.totalorder %s253, %s255
    %p262 = scmp.eq.s32.totalorder %s36, 1
    %p263 = por %p261, %p262
    %p264 = scmp.ne.s32.totalorder %s255, %s256
    %p265 = scmp.eq.s32.totalorder %s36, 0
    %p266 = por %p264, %p265
    %p267 = scmp.ne.s32.totalorder %s255, %s256
    %p268 = scmp.eq.s32.totalorder %s37, 1
    %p269 = por %p267, %p268
    %p271 = scmp.ne.s32.totalorder %s256, %s270
    %p272 = scmp.eq.s32.totalorder %s37, 0
    %p273 = por %p271, %p272
    %s275 = sadd.s32 %s274, 1
    %p278 = scmp.eq.s32.totalorder %s31, 1
    %p279 = scmp.ne.s32.totalorder %s274, %s276
    %p280 = scmp.eq.s32.totalorder %s31, 0
    %p281 = por %p279, %p280
    %p282 = scmp.ne.s32.totalorder %s274, %s276
    %p283 = scmp.eq.s32.totalorder %s36, 1
    %p284 = por %p282, %p283
    %p285 = scmp.ne.s32.totalorder %s276, %s277
    %p286 = scmp.eq.s32.totalorder %s36, 0
    %p287 = por %p285, %p286
    %p288 = scmp.ne.s32.totalorder %s276, %s277
    %p289 = scmp.eq.s32.totalorder %s37, 1
    %p290 = por %p288, %p289
    %p292 = scmp.ne.s32.totalorder %s277, %s291
    %p293 = scmp.eq.s32.totalorder %s37, 0
    %p294 = por %p292, %p293
    %s296 = sadd.s32 %s295, 1
    %p299 = scmp.eq.s32.totalorder %s31, 1
    %p300 = scmp.ne.s32.totalorder %s295, %s297
    %p301 = scmp.eq.s32.totalorder %s31, 0
    %p302 = por %p300, %p301
    %p303 = scmp.ne.s32.totalorder %s295, %s297
    %p304 = scmp.eq.s32.totalorder %s36, 1
    %p305 = por %p303, %p304
    %p306 = scmp.ne.s32.totalorder %s297, %s298
    %p307 = scmp.eq.s32.totalorder %s36, 0
    %p308 = por %p306, %p307
    %p309 = scmp.ne.s32.totalorder %s297, %s298
    %p310 = scmp.eq.s32.totalorder %s37, 1
    %p311 = por %p309, %p310
    %p313 = scmp.ne.s32.totalorder %s298, %s312
    %p314 = scmp.eq.s32.totalorder %s37, 0
    %p315 = por %p313, %p314
    %s317 = sadd.s32 %s316, 1
    %p320 = scmp.eq.s32.totalorder %s31, 1
    %p321 = scmp.ne.s32.totalorder %s316, %s318
    %p322 = scmp.eq.s32.totalorder %s31, 0
    %p323 = por %p321, %p322
    %p324 = scmp.ne.s32.totalorder %s316, %s318
    %p325 = scmp.eq.s32.totalorder %s36, 1
    %p326 = por %p324, %p325
    %p327 = scmp.ne.s32.totalorder %s318, %s319
    %p328 = scmp.eq.s32.totalorder %s36, 0
    %p329 = por %p327, %p328
    %p330 = scmp.ne.s32.totalorder %s318, %s319
    %p331 = scmp.eq.s32.totalorder %s37, 1
    %p332 = por %p330, %p331
    %p334 = scmp.ne.s32.totalorder %s319, %s333
    %p335 = scmp.eq.s32.totalorder %s37, 0
    %p336 = por %p334, %p335
    %s338 = sadd.s32 %s337, 1
    %p341 = scmp.eq.s32.totalorder %s31, 1
    %p342 = scmp.ne.s32.totalorder %s337, %s339
    %p343 = scmp.eq.s32.totalorder %s31, 0
    %p344 = por %p342, %p343
    %p345 = scmp.ne.s32.totalorder %s337, %s339
    %p346 = scmp.eq.s32.totalorder %s36, 1
    %p347 = por %p345, %p346
    %p348 = scmp.ne.s32.totalorder %s339, %s340
    %p349 = scmp.eq.s32.totalorder %s36, 0
    %p350 = por %p348, %p349
    %p351 = scmp.ne.s32.totalorder %s339, %s340
    %p352 = scmp.eq.s32.totalorder %s37, 1
    %p353 = por %p351, %p352
    %p355 = scmp.ne.s32.totalorder %s340, %s354
    %p356 = scmp.eq.s32.totalorder %s37, 0
    %p357 = por %p355, %p356
    %s359 = sadd.s32 %s358, 1
    %p362 = scmp.eq.s32.totalorder %s31, 1
    %p363 = scmp.ne.s32.totalorder %s358, %s360
    %p364 = scmp.eq.s32.totalorder %s31, 0
    %p365 = por %p363, %p364
    %p366 = scmp.ne.s32.totalorder %s358, %s360
    %p367 = scmp.eq.s32.totalorder %s36, 1
    %p368 = por %p366, %p367
    %p369 = scmp.ne.s32.totalorder %s360, %s361
    %p370 = scmp.eq.s32.totalorder %s36, 0
    %p371 = por %p369, %p370
    %p372 = scmp.ne.s32.totalorder %s360, %s361
    %p373 = scmp.eq.s32.totalorder %s37, 1
    %p374 = por %p372, %p373
    %p376 = scmp.ne.s32.totalorder %s361, %s375
    %p377 = scmp.eq.s32.totalorder %s37, 0
    %p378 = por %p376, %p377
    %s380 = sadd.s32 %s379, 1
    %p383 = scmp.eq.s32.totalorder %s31, 1
    %p384 = scmp.ne.s32.totalorder %s379, %s381
    %p385 = scmp.eq.s32.totalorder %s31, 0
    %p386 = por %p384, %p385
    %p387 = scmp.ne.s32.totalorder %s379, %s381
    %p388 = scmp.eq.s32.totalorder %s36, 1
    %p389 = por %p387, %p388
    %p390 = scmp.ne.s32.totalorder %s381, %s382
    %p391 = scmp.eq.s32.totalorder %s36, 0
    %p392 = por %p390, %p391
    %p393 = scmp.ne.s32.totalorder %s381, %s382
    %p394 = scmp.eq.s32.totalorder %s37, 1
    %p395 = por %p393, %p394
    %p397 = scmp.ne.s32.totalorder %s382, %s396
    %p398 = scmp.eq.s32.totalorder %s37, 0
    %p399 = por %p397, %p398
    %s401 = sadd.s32 %s400, 1
    %p404 = scmp.eq.s32.totalorder %s31, 1
    %p405 = scmp.ne.s32.totalorder %s400, %s402
    %p406 = scmp.eq.s32.totalorder %s31, 0
    %p407 = por %p405, %p406
    %p408 = scmp.ne.s32.totalorder %s400, %s402
    %p409 = scmp.eq.s32.totalorder %s36, 1
    %p410 = por %p408, %p409
    %p411 = scmp.ne.s32.totalorder %s402, %s403
    %p412 = scmp.eq.s32.totalorder %s36, 0
    %p413 = por %p411, %p412
    %p414 = scmp.ne.s32.totalorder %s402, %s403
    %p415 = scmp.eq.s32.totalorder %s37, 1
    %p416 = por %p414, %p415
    %p418 = scmp.ne.s32.totalorder %s403, %s417
    %p419 = scmp.eq.s32.totalorder %s37, 0
    %p420 = por %p418, %p419
    %s422 = sadd.s32 %s421, 1
    %p425 = scmp.eq.s32.totalorder %s31, 1
    %p426 = scmp.ne.s32.totalorder %s421, %s423
    %p427 = scmp.eq.s32.totalorder %s31, 0
    %p428 = por %p426, %p427
    %p429 = scmp.ne.s32.totalorder %s421, %s423
    %p430 = scmp.eq.s32.totalorder %s36, 1
    %p431 = por %p429, %p430
    %p432 = scmp.ne.s32.totalorder %s423, %s424
    %p433 = scmp.eq.s32.totalorder %s36, 0
    %p434 = por %p432, %p433
    %p435 = scmp.ne.s32.totalorder %s423, %s424
    %p436 = scmp.eq.s32.totalorder %s37, 1
    %p437 = por %p435, %p436
    %p439 = scmp.ne.s32.totalorder %s424, %s438
    %p440 = scmp.eq.s32.totalorder %s37, 0
    %p441 = por %p439, %p440
    %s443 = sadd.s32 %s442, 1
    %p446 = scmp.eq.s32.totalorder %s31, 1
    %p447 = scmp.ne.s32.totalorder %s442, %s444
    %p448 = scmp.eq.s32.totalorder %s31, 0
    %p449 = por %p447, %p448
    %p450 = scmp.ne.s32.totalorder %s442, %s444
    %p451 = scmp.eq.s32.totalorder %s36, 1
    %p452 = por %p450, %p451
    %p453 = scmp.ne.s32.totalorder %s444, %s445
    %p454 = scmp.eq.s32.totalorder %s36, 0
    %p455 = por %p453, %p454
    %p456 = scmp.ne.s32.totalorder %s444, %s445
    %p457 = scmp.eq.s32.totalorder %s37, 1
    %p458 = por %p456, %p457
    %p460 = scmp.ne.s32.totalorder %s445, %s459
    %p461 = scmp.eq.s32.totalorder %s37, 0
    %p462 = por %p460, %p461
    %s464 = sadd.s32 %s463, 1
    %p467 = scmp.eq.s32.totalorder %s31, 1
    %p468 = scmp.ne.s32.totalorder %s463, %s465
    %p469 = scmp.eq.s32.totalorder %s31, 0
    %p470 = por %p468, %p469
    %p471 = scmp.ne.s32.totalorder %s463, %s465
    %p472 = scmp.eq.s32.totalorder %s36, 1
    %p473 = por %p471, %p472
    %p474 = scmp.ne.s32.totalorder %s465, %s466
    %p475 = scmp.eq.s32.totalorder %s36, 0
    %p476 = por %p474, %p475
    %p477 = scmp.ne.s32.totalorder %s465, %s466
    %p478 = scmp.eq.s32.totalorder %s37, 1
    %p479 = por %p477, %p478
    %p481 = scmp.ne.s32.totalorder %s466, %s480
    %p482 = scmp.eq.s32.totalorder %s37, 0
    %p483 = por %p481, %p482
    %s485 = sadd.s32 %s484, 1
    %p488 = scmp.eq.s32.totalorder %s31, 1
    %p489 = scmp.ne.s32.totalorder %s484, %s486
    %p490 = scmp.eq.s32.totalorder %s31, 0
    %p491 = por %p489, %p490
    %p492 = scmp.ne.s32.totalorder %s484, %s486
    %p493 = scmp.eq.s32.totalorder %s36, 1
    %p494 = por %p492, %p493
    %p495 = scmp.ne.s32.totalorder %s486, %s487
    %p496 = scmp.eq.s32.totalorder %s36, 0
    %p497 = por %p495, %p496
    %p498 = scmp.ne.s32.totalorder %s486, %s487
    %p499 = scmp.eq.s32.totalorder %s37, 1
    %p500 = por %p498, %p499
    %p502 = scmp.ne.s32.totalorder %s487, %s501
    %p503 = scmp.eq.s32.totalorder %s37, 0
    %p504 = por %p502, %p503
    %s506 = sadd.s32 %s505, 1
    %p509 = scmp.eq.s32.totalorder %s31, 1
    %p510 = scmp.ne.s32.totalorder %s505, %s507
    %p511 = scmp.eq.s32.totalorder %s31, 0
    %p512 = por %p510, %p511
    %p513 = scmp.ne.s32.totalorder %s505, %s507
    %p514 = scmp.eq.s32.totalorder %s36, 1
    %p515 = por %p513, %p514
    %p516 = scmp.ne.s32.totalorder %s507, %s508
    %p517 = scmp.eq.s32.totalorder %s36, 0
    %p518 = por %p516, %p517
    %p519 = scmp.ne.s32.totalorder %s507, %s508
    %p520 = scmp.eq.s32.totalorder %s37, 1
    %p521 = por %p519, %p520
    %p523 = scmp.ne.s32.totalorder %s508, %s522
    %p524 = scmp.eq.s32.totalorder %s37, 0
    %p525 = por %p523, %p524
    %s527 = sadd.s32 %s526, 1
    %p530 = scmp.eq.s32.totalorder %s31, 1
    %p531 = scmp.ne.s32.totalorder %s526, %s528
    %p532 = scmp.eq.s32.totalorder %s31, 0
    %p533 = por %p531, %p532
    %p534 = scmp.ne.s32.totalorder %s526, %s528
    %p535 = scmp.eq.s32.totalorder %s36, 1
    %p536 = por %p534, %p535
    %p537 = scmp.ne.s32.totalorder %s528, %s529
    %p538 = scmp.eq.s32.totalorder %s36, 0
    %p539 = por %p537, %p538
    %p540 = scmp.ne.s32.totalorder %s528, %s529
    %p541 = scmp.eq.s32.totalorder %s37, 1
    %p542 = por %p540, %p541
    %p544 = scmp.ne.s32.totalorder %s529, %s543
    %p545 = scmp.eq.s32.totalorder %s37, 0
    %p546 = por %p544, %p545
    %s547 = ssub.s32 %s31, %s38
    %p548 = scmp.eq.s32.totalorder %s547, 0
    %s550 = sadd.s32 %s549, 1
    %s551 = scalar_select %p548, %s549, %s550
    %p554 = pneg %p548
    %p555 = scmp.eq.s32.totalorder %s31, 1
    %p556 = por %p554, %p555
    %p557 = scmp.ne.s32.totalorder %s549, %s552
    %p558 = scmp.eq.s32.totalorder %s31, 0
    %p559 = por %p557, %p558
    %p560 = scmp.ne.s32.totalorder %s549, %s552
    %p561 = scmp.eq.s32.totalorder %s36, 1
    %p562 = por %p560, %p561
    %p563 = scmp.ne.s32.totalorder %s552, %s553
    %p564 = scmp.eq.s32.totalorder %s36, 0
    %p565 = por %p563, %p564
    %p566 = scmp.ne.s32.totalorder %s552, %s553
    %p567 = scmp.eq.s32.totalorder %s37, 1
    %p568 = por %p566, %p567
    %p570 = scmp.ne.s32.totalorder %s553, %s569
    %p571 = scmp.eq.s32.totalorder %s37, 0
    %p572 = por %p570, %p571
    %s573 = ssub.s32 %s31, %s38
    %p574 = scmp.eq.s32.totalorder %s573, 0
    %s576 = sadd.s32 %s575, 1
    %s577 = scalar_select %p574, %s575, %s576
    %p580 = pneg %p574
    %p581 = scmp.eq.s32.totalorder %s31, 1
    %p582 = por %p580, %p581
    %p583 = scmp.ne.s32.totalorder %s575, %s578
    %p584 = scmp.eq.s32.totalorder %s31, 0
    %p585 = por %p583, %p584
    %p586 = scmp.ne.s32.totalorder %s575, %s578
    %p587 = scmp.eq.s32.totalorder %s36, 1
    %p588 = por %p586, %p587
    %p589 = scmp.ne.s32.totalorder %s578, %s579
    %p590 = scmp.eq.s32.totalorder %s36, 0
    %p591 = por %p589, %p590
    %p592 = scmp.ne.s32.totalorder %s578, %s579
    %p593 = scmp.eq.s32.totalorder %s37, 1
    %p594 = por %p592, %p593
    %p596 = scmp.ne.s32.totalorder %s579, %s595
    %p597 = scmp.eq.s32.totalorder %s37, 0
    %p598 = por %p596, %p597
    %p599 = scmp.le.s32.totalorder 1, %s31
    %p600 = scmp.lt.s32.totalorder %s31, 3
    %p601 = pnand %p599, %p600
    %p602 = pneg %p601
    // Predicated region
    $region9: #{forward.2} parent=5 // pred_check
      _
    $region10: #{forward.2} parent=5 // pred_check_branch
      %604 = sbr.rel (%p601) target = $region12
    $region11: #{forward.2} parent=5 // pred_region
      %s605 = ssub.s32 %s31, 1
      // Predicated region
      $region13: #{forward.2} parent=11 // pred_check
        %p606 = pneg %p182
      $region14: #{forward.2} parent=11 // pred_check_branch
        %608 = sbr.rel (%p606) target = $region16
      $region15: #{forward.2} parent=11 // pred_region
        _
      $region16: #{forward.2} parent=11 // pred_fallthru
        _
      // Predicated region
      $region17: #{forward.2} parent=11 // pred_check
        %p609 = pneg %p203
      $region18: #{forward.2} parent=11 // pred_check_branch
        %611 = sbr.rel (%p609) target = $region20
      $region19: #{forward.2} parent=11 // pred_region
        _
      $region20: #{forward.2} parent=11 // pred_fallthru
        _
      // Predicated region
      $region21: #{forward.2} parent=11 // pred_check
        %p612 = pneg %p224
      $region22: #{forward.2} parent=11 // pred_check_branch
        %614 = sbr.rel (%p612) target = $region24
      $region23: #{forward.2} parent=11 // pred_region
        _
      $region24: #{forward.2} parent=11 // pred_fallthru
        _
      // Predicated region
      $region25: #{forward.2} parent=11 // pred_check
        %p615 = pneg %p245
      $region26: #{forward.2} parent=11 // pred_check_branch
        %617 = sbr.rel (%p615) target = $region28
      $region27: #{forward.2} parent=11 // pred_region
        _
      $region28: #{forward.2} parent=11 // pred_fallthru
        _
      // Predicated region
      $region29: #{forward.2} parent=11 // pred_check
        %p618 = pneg %p266
      $region30: #{forward.2} parent=11 // pred_check_branch
        %620 = sbr.rel (%p618) target = $region32
      $region31: #{forward.2} parent=11 // pred_region
        _
      $region32: #{forward.2} parent=11 // pred_fallthru
        _
      // Predicated region
      $region33: #{forward.2} parent=11 // pred_check
        %p621 = pneg %p287
      $region34: #{forward.2} parent=11 // pred_check_branch
        %623 = sbr.rel (%p621) target = $region36
      $region35: #{forward.2} parent=11 // pred_region
        _
      $region36: #{forward.2} parent=11 // pred_fallthru
        _
      // Predicated region
      $region37: #{forward.2} parent=11 // pred_check
        %p624 = pneg %p308
      $region38: #{forward.2} parent=11 // pred_check_branch
        %626 = sbr.rel (%p624) target = $region40
      $region39: #{forward.2} parent=11 // pred_region
        _
      $region40: #{forward.2} parent=11 // pred_fallthru
        _
      // Predicated region
      $region41: #{forward.2} parent=11 // pred_check
        %p627 = pneg %p329
      $region42: #{forward.2} parent=11 // pred_check_branch
        %629 = sbr.rel (%p627) target = $region44
      $region43: #{forward.2} parent=11 // pred_region
        _
      $region44: #{forward.2} parent=11 // pred_fallthru
        _
      // Predicated region
      $region45: #{forward.2} parent=11 // pred_check
        %p630 = pneg %p350
      $region46: #{forward.2} parent=11 // pred_check_branch
        %632 = sbr.rel (%p630) target = $region48
      $region47: #{forward.2} parent=11 // pred_region
        _
      $region48: #{forward.2} parent=11 // pred_fallthru
        _
      // Predicated region
      $region49: #{forward.2} parent=11 // pred_check
        %p633 = pneg %p371
      $region50: #{forward.2} parent=11 // pred_check_branch
        %635 = sbr.rel (%p633) target = $region52
      $region51: #{forward.2} parent=11 // pred_region
        _
      $region52: #{forward.2} parent=11 // pred_fallthru
        _
      // Predicated region
      $region53: #{forward.2} parent=11 // pred_check
        %p636 = pneg %p392
      $region54: #{forward.2} parent=11 // pred_check_branch
        %638 = sbr.rel (%p636) target = $region56
      $region55: #{forward.2} parent=11 // pred_region
        _
      $region56: #{forward.2} parent=11 // pred_fallthru
        _
      // Predicated region
      $region57: #{forward.2} parent=11 // pred_check
        %p639 = pneg %p413
      $region58: #{forward.2} parent=11 // pred_check_branch
        %641 = sbr.rel (%p639) target = $region60
      $region59: #{forward.2} parent=11 // pred_region
        _
      $region60: #{forward.2} parent=11 // pred_fallthru
        _
      // Predicated region
      $region61: #{forward.2} parent=11 // pred_check
        %p642 = pneg %p434
      $region62: #{forward.2} parent=11 // pred_check_branch
        %644 = sbr.rel (%p642) target = $region64
      $region63: #{forward.2} parent=11 // pred_region
        _
      $region64: #{forward.2} parent=11 // pred_fallthru
        _
      // Predicated region
      $region65: #{forward.2} parent=11 // pred_check
        %p645 = pneg %p455
      $region66: #{forward.2} parent=11 // pred_check_branch
        %647 = sbr.rel (%p645) target = $region68
      $region67: #{forward.2} parent=11 // pred_region
        _
      $region68: #{forward.2} parent=11 // pred_fallthru
        _
      // Predicated region
      $region69: #{forward.2} parent=11 // pred_check
        %p648 = pneg %p476
      $region70: #{forward.2} parent=11 // pred_check_branch
        %650 = sbr.rel (%p648) target = $region72
      $region71: #{forward.2} parent=11 // pred_region
        _
      $region72: #{forward.2} parent=11 // pred_fallthru
        _
      // Predicated region
      $region73: #{forward.2} parent=11 // pred_check
        %p651 = pneg %p497
      $region74: #{forward.2} parent=11 // pred_check_branch
        %653 = sbr.rel (%p651) target = $region76
      $region75: #{forward.2} parent=11 // pred_region
        _
      $region76: #{forward.2} parent=11 // pred_fallthru
        _
      // Predicated region
      $region77: #{forward.2} parent=11 // pred_check
        %p654 = pneg %p518
      $region78: #{forward.2} parent=11 // pred_check_branch
        %656 = sbr.rel (%p654) target = $region80
      $region79: #{forward.2} parent=11 // pred_region
        _
      $region80: #{forward.2} parent=11 // pred_fallthru
        _
      // Predicated region
      $region81: #{forward.2} parent=11 // pred_check
        %p657 = pneg %p539
      $region82: #{forward.2} parent=11 // pred_check_branch
        %659 = sbr.rel (%p657) target = $region84
      $region83: #{forward.2} parent=11 // pred_region
        _
      $region84: #{forward.2} parent=11 // pred_fallthru
        _
    $region12: #{forward.2} parent=5 // pred_fallthru
      _
    %p660 = scmp.lt.s32.totalorder %s31, 2
    // Predicated region
    $region85: #{forward.2} parent=5 // pred_check
      %p661 = pneg %p660
    $region86: #{forward.2} parent=5 // pred_check_branch
      %663 = sbr.rel (%p661) target = $region88
    $region87: #{forward.2} parent=5 // pred_region
      // Predicated region
      $region89: #{forward.2} parent=87 // pred_check
        %p664 = pneg %p51
      $region90: #{forward.2} parent=87 // pred_check_branch
        %666 = sbr.rel (%p664) target = $region92
      $region91: #{forward.2} parent=87 // pred_region
        %p667 = scmp.lt.s32.totalorder %s31, 1
        %s668 = scalar_select %p667, %s31, 1
        %s669 = smul.addr %s668, 8
        %s670 = scalar_lea.vmem %s0, %s669
      $region92: #{forward.2} parent=87 // pred_fallthru
        _
      // Predicated region
      $region93: #{forward.2} parent=87 // pred_check
        %p671 = pneg %p77
      $region94: #{forward.2} parent=87 // pred_check_branch
        %673 = sbr.rel (%p671) target = $region96
      $region95: #{forward.2} parent=87 // pred_region
        %p674 = scmp.lt.s32.totalorder %s31, 1
        %s675 = scalar_select %p674, %s31, 1
        %s676 = smul.addr %s675, 8
        %s677 = scalar_lea.vmem %s1, %s676
      $region96: #{forward.2} parent=87 // pred_fallthru
        _
      // Predicated region
      $region97: #{forward.2} parent=87 // pred_check
        %p678 = pneg %p103
      $region98: #{forward.2} parent=87 // pred_check_branch
        %680 = sbr.rel (%p678) target = $region100
      $region99: #{forward.2} parent=87 // pred_region
        %p681 = scmp.lt.s32.totalorder %s31, 1
        %s682 = scalar_select %p681, %s31, 1
        %s683 = scalar_lea.vmem %s2, %s682
      $region100: #{forward.2} parent=87 // pred_fallthru
        _
      // Predicated region
      $region101: #{forward.2} parent=87 // pred_check
        %p684 = pneg %p129
      $region102: #{forward.2} parent=87 // pred_check_branch
        %686 = sbr.rel (%p684) target = $region104
      $region103: #{forward.2} parent=87 // pred_region
        %p687 = scmp.lt.s32.totalorder %s31, 1
        %s688 = scalar_select %p687, %s31, 1
        %s689 = smul.addr %s688, 2
        %s690 = scalar_lea.vmem %s3, %s689
      $region104: #{forward.2} parent=87 // pred_fallthru
        _
      // Predicated region
      $region105: #{forward.2} parent=87 // pred_check
        %p691 = pneg %p155
      $region106: #{forward.2} parent=87 // pred_check_branch
        %693 = sbr.rel (%p691) target = $region108
      $region107: #{forward.2} parent=87 // pred_region
        %p694 = scmp.lt.s32.totalorder %s31, 1
        %s695 = scalar_select %p694, %s31, 1
        %s696 = smul.addr %s695, 4
        %s697 = scalar_lea.vmem %s4, %s696
      $region108: #{forward.2} parent=87 // pred_fallthru
        _
    $region88: #{forward.2} parent=5 // pred_fallthru
      _
    %p698 = scmp.le.s32.totalorder 1, %s31
    %p699 = scmp.lt.s32.totalorder %s31, 3
    %p700 = pnand %p698, %p699
    %p701 = pneg %p700
    // Predicated region
    $region109: #{forward.2} parent=5 // pred_check
      _
    $region110: #{forward.2} parent=5 // pred_check_branch
      %703 = sbr.rel (%p700) target = $region112
    $region111: #{forward.2} parent=5 // pred_region
      %s704 = ssub.s32 %s31, 1
      %p705 = scmp.lt.s32.totalorder %s36, 1
      %s706 = scalar_select %p705, %s36, 1
      %s707 = smul.addr %s706, 8
      %s708 = scalar_lea.vmem %s0, %s707
      %p709 = pneg %p57
      %p710 = pneg %p54
      %p711 = scmp.lt.s32.totalorder %s36, 1
      %s712 = scalar_select %p711, %s36, 1
      %s713 = smul.addr %s712, 8
      %s714 = scalar_lea.vmem %s1, %s713
      %p715 = pneg %p83
      %p716 = pneg %p80
      %p717 = scmp.lt.s32.totalorder %s36, 1
      %s718 = scalar_select %p717, %s36, 1
      %s719 = scalar_lea.vmem %s2, %s718
      %p720 = pneg %p109
      %p721 = pneg %p106
      %p722 = scmp.lt.s32.totalorder %s36, 1
      %s723 = scalar_select %p722, %s36, 1
      %s724 = smul.addr %s723, 2
      %s725 = scalar_lea.vmem %s3, %s724
      %p726 = pneg %p135
      %p727 = pneg %p132
      %p728 = scmp.lt.s32.totalorder %s36, 1
      %s729 = scalar_select %p728, %s36, 1
      %s730 = smul.addr %s729, 4
      %s731 = scalar_lea.vmem %s4, %s730
      %p732 = pneg %p161
      %p733 = pneg %p158
      %p734 = pneg %p182
      %p735 = pneg %p179
      %p736 = pneg %p203
      %p737 = pneg %p200
      %p738 = pneg %p224
      %p739 = pneg %p221
      %p740 = pneg %p245
      %p741 = pneg %p242
      %p742 = pneg %p266
      %p743 = pneg %p263
      %p744 = pneg %p287
      %p745 = pneg %p284
      %p746 = pneg %p308
      %p747 = pneg %p305
      %p748 = pneg %p329
      %p749 = pneg %p326
      %p750 = pneg %p350
      %p751 = pneg %p347
      %p752 = pneg %p371
      %p753 = pneg %p368
      %p754 = pneg %p392
      %p755 = pneg %p389
      %p756 = pneg %p413
      %p757 = pneg %p410
      %p758 = pneg %p434
      %p759 = pneg %p431
      %p760 = pneg %p455
      %p761 = pneg %p452
      %p762 = pneg %p476
      %p763 = pneg %p473
      %p764 = pneg %p497
      %p765 = pneg %p494
      %p766 = pneg %p518
      %p767 = pneg %p515
      %p768 = pneg %p539
      %p769 = pneg %p536
      %p770 = pneg %p565
      %p771 = pneg %p562
      %p772 = scmp.lt.s32.totalorder %s36, 1
      %s773 = scalar_select %p772, %s36, 1
      %s774 = scalar_lea.vmem %s23, %s773
      %p775 = pneg %p591
      %p776 = pneg %p588
      %p777 = scmp.lt.s32.totalorder %s36, 1
      %s778 = scalar_select %p777, %s36, 1
      %s779 = smul.addr %s778, 8
      %s780 = scalar_lea.vmem %s24, %s779
      %p781 = scmp.lt.s32.totalorder %s36, 1
      %s782 = scalar_select %p781, %s36, 1
      %s783 = smul.addr %s782, 8
      %s784 = scalar_lea.vmem %s0, %s783
      %p785 = scmp.lt.s32.totalorder %s36, 1
      %s786 = scalar_select %p785, %s36, 1
      %s787 = smul.addr %s786, 8
      %s788 = scalar_lea.vmem %s1, %s787
      %p789 = scmp.lt.s32.totalorder %s36, 1
      %s790 = scalar_select %p789, %s36, 1
      %s791 = scalar_lea.vmem %s2, %s790
      %p792 = scmp.lt.s32.totalorder %s36, 1
      %s793 = scalar_select %p792, %s36, 1
      %s794 = smul.addr %s793, 2
      %s795 = scalar_lea.vmem %s3, %s794
      %p796 = scmp.lt.s32.totalorder %s36, 1
      %s797 = scalar_select %p796, %s36, 1
      %s798 = smul.addr %s797, 4
      %s799 = scalar_lea.vmem %s4, %s798
      %p800 = scmp.lt.s32.totalorder %s36, 1
      %s801 = scalar_select %p800, %s36, 1
      %s802 = scalar_lea.vmem %s23, %s801
      %p803 = scmp.lt.s32.totalorder %s36, 1
      %s804 = scalar_select %p803, %s36, 1
      %s805 = smul.addr %s804, 8
      %s806 = scalar_lea.vmem %s24, %s805
      %v808 = vld [vmem:[%s784] sm:$0xff]
      %v809 = vld [vmem:[%s788] sm:$0xff]
      %v810 = vld [vmem:[%s791] sm:$0x1]
      %vm811 = vcmask 7168
      %v812 = vsel %vm811, %v809, 0.0
      %813 = vadd.xlane.f32.xlu0 %v812
      %v814 = vpop.xlane.xlu0 %813
      %v815 = vrot.slane %v814, 4
      %v816 = vadd.f32 %v814, %v815
      %v817 = vrot.slane %v816, 2
      %v818 = vadd.f32 %v816, %v817
      %v819 = vrot.slane %v818, 1
      %v820 = vadd.f32 %v818, %v819
      %s821 = vtos %v820
      %v822 = vstv %s821
      %v823 = vrcp.pop %v822
      %v825 = vrot.slane %v808, 1
      %v826 = vrot.slane %v808, 2
      %v827 = vrot.slane %v808, 3
      %v828 = vrot.slane %v808, 4
      %v829 = vrot.slane %v808, 5
      %v830 = vrot.slane %v808, 6
      %v831 = vrot.slane %v808, 7
      %v832 = vperm.slane %v808, 0
      %v833 = vperm.slane %v825, 0
      %v834 = vperm.slane %v826, 0
      %v835 = vperm.slane %v827, 0
      %v836 = vperm.slane %v828, 0
      %v837 = vperm.slane %v829, 0
      %v838 = vperm.slane %v830, 0
      %v839 = vperm.slane %v831, 0
      %v848 = vsub.f32 %v832, %v808
      %v849 = vsub.f32 %v833, %v808
      %v850 = vsub.f32 %v834, %v808
      %v851 = vsub.f32 %v835, %v808
      %v852 = vsub.f32 %v836, %v808
      %v853 = vsub.f32 %v837, %v808
      %v854 = vsub.f32 %v838, %v808
      %v855 = vsub.f32 %v839, %v808
      %v856 = vmul.f32 %v848, %v848
      %v857 = vmul.f32 %v849, %v849
      %v858 = vmul.f32 %v850, %v850
      %v859 = vmul.f32 %v851, %v851
      %v860 = vmul.f32 %v852, %v852
      %v861 = vmul.f32 %v853, %v853
      %v862 = vmul.f32 %v854, %v854
      %v863 = vmul.f32 %v855, %v855
      %vm864 = vcmask 23552
      %v865 = vsel %vm864, %v856, 0.0
      %866 = vadd.xlane.f32.xlu0 %v865
      %v867 = vpop.xlane.xlu0 %866
      %v868 = vsel %vm864, %v857, 0.0
      %869 = vadd.xlane.f32.xlu0 %v868
      %v870 = vpop.xlane.xlu0 %869
      %v871 = vsel %vm864, %v858, 0.0
      %872 = vadd.xlane.f32.xlu0 %v871
      %v873 = vpop.xlane.xlu0 %872
      %v874 = vsel %vm864, %v859, 0.0
      %875 = vadd.xlane.f32.xlu0 %v874
      %v876 = vpop.xlane.xlu0 %875
      %v877 = vsel %vm864, %v860, 0.0
      %878 = vadd.xlane.f32.xlu0 %v877
      %v879 = vpop.xlane.xlu0 %878
      %v880 = vsel %vm864, %v861, 0.0
      %881 = vadd.xlane.f32.xlu0 %v880
      %v882 = vpop.xlane.xlu0 %881
      %v883 = vsel %vm864, %v862, 0.0
      %884 = vadd.xlane.f32.xlu0 %v883
      %v885 = vpop.xlane.xlu0 %884
      %v886 = vsel %vm864, %v863, 0.0
      %887 = vadd.xlane.f32.xlu0 %v886
      %v888 = vpop.xlane.xlu0 %887
      %v889 = vrsqrt.pop %v867
      %v890 = vmul.f32 %v889, %v867
      %v891 = vmul.f32 %v890, %v889
      %v892 = vmul.f32 0.5, %v891
      %v893 = vsub.f32 1.5, %v892
      %v894 = vmul.f32 %v889, %v893
      %v895 = vmul.f32 %v867, %v894
      %vm896 = vcmp.eq.f32.partialorder %v867, inf
      %v897 = vsel %vm896, %v867, %v895
      %vm898 = vcmp.eq.f32.partialorder %v867, 0.0
      %v899 = vand.u32 %v867, 2147483648
      %v900 = vsel %vm898, %v899, %v897
      %v901 = vrsqrt.pop %v870
      %v902 = vmul.f32 %v901, %v870
      %v903 = vmul.f32 %v902, %v901
      %v904 = vmul.f32 0.5, %v903
      %v905 = vsub.f32 1.5, %v904
      %v906 = vmul.f32 %v901, %v905
      %v907 = vmul.f32 %v870, %v906
      %vm908 = vcmp.eq.f32.partialorder %v870, inf
      %v909 = vsel %vm908, %v870, %v907
      %vm910 = vcmp.eq.f32.partialorder %v870, 0.0
      %v911 = vand.u32 %v870, 2147483648
      %v912 = vsel %vm910, %v911, %v909
      %v913 = vrsqrt.pop %v873
      %v914 = vmul.f32 %v913, %v873
      %v915 = vmul.f32 %v914, %v913
      %v916 = vmul.f32 0.5, %v915
      %v917 = vsub.f32 1.5, %v916
      %v918 = vmul.f32 %v913, %v917
      %v919 = vmul.f32 %v873, %v918
      %vm920 = vcmp.eq.f32.partialorder %v873, inf
      %v921 = vsel %vm920, %v873, %v919
      %vm922 = vcmp.eq.f32.partialorder %v873, 0.0
      %v923 = vand.u32 %v873, 2147483648
      %v924 = vsel %vm922, %v923, %v921
      %v925 = vrsqrt.pop %v876
      %v926 = vmul.f32 %v925, %v876
      %v927 = vmul.f32 %v926, %v925
      %v928 = vmul.f32 0.5, %v927
      %v929 = vsub.f32 1.5, %v928
      %v930 = vmul.f32 %v925, %v929
      %v931 = vmul.f32 %v876, %v930
      %vm932 = vcmp.eq.f32.partialorder %v876, inf
      %v933 = vsel %vm932, %v876, %v931
      %vm934 = vcmp.eq.f32.partialorder %v876, 0.0
      %v935 = vand.u32 %v876, 2147483648
      %v936 = vsel %vm934, %v935, %v933
      %v937 = vrsqrt.pop %v879
      %v938 = vmul.f32 %v937, %v879
      %v939 = vmul.f32 %v938, %v937
      %v940 = vmul.f32 0.5, %v939
      %v941 = vsub.f32 1.5, %v940
      %v942 = vmul.f32 %v937, %v941
      %v943 = vmul.f32 %v879, %v942
      %vm944 = vcmp.eq.f32.partialorder %v879, inf
      %v945 = vsel %vm944, %v879, %v943
      %vm946 = vcmp.eq.f32.partialorder %v879, 0.0
      %v947 = vand.u32 %v879, 2147483648
      %v948 = vsel %vm946, %v947, %v945
      %v949 = vrsqrt.pop %v882
      %v950 = vmul.f32 %v949, %v882
      %v951 = vmul.f32 %v950, %v949
      %v952 = vmul.f32 0.5, %v951
      %v953 = vsub.f32 1.5, %v952
      %v954 = vmul.f32 %v949, %v953
      %v955 = vmul.f32 %v882, %v954
      %vm956 = vcmp.eq.f32.partialorder %v882, inf
      %v957 = vsel %vm956, %v882, %v955
      %vm958 = vcmp.eq.f32.partialorder %v882, 0.0
      %v959 = vand.u32 %v882, 2147483648
      %v960 = vsel %vm958, %v959, %v957
      %v961 = vrsqrt.pop %v885
      %v962 = vmul.f32 %v961, %v885
      %v963 = vmul.f32 %v962, %v961
      %v964 = vmul.f32 0.5, %v963
      %v965 = vsub.f32 1.5, %v964
      %v966 = vmul.f32 %v961, %v965
      %v967 = vmul.f32 %v885, %v966
      %vm968 = vcmp.eq.f32.partialorder %v885, inf
      %v969 = vsel %vm968, %v885, %v967
      %vm970 = vcmp.eq.f32.partialorder %v885, 0.0
      %v971 = vand.u32 %v885, 2147483648
      %v972 = vsel %vm970, %v971, %v969
      %v973 = vrsqrt.pop %v888
      %v974 = vmul.f32 %v973, %v888
      %v975 = vmul.f32 %v974, %v973
      %v976 = vmul.f32 0.5, %v975
      %v977 = vsub.f32 1.5, %v976
      %v978 = vmul.f32 %v973, %v977
      %v979 = vmul.f32 %v888, %v978
      %vm980 = vcmp.eq.f32.partialorder %v888, inf
      %v981 = vsel %vm980, %v888, %v979
      %vm982 = vcmp.eq.f32.partialorder %v888, 0.0
      %v983 = vand.u32 %v888, 2147483648
      %v984 = vsel %vm982, %v983, %v981
      %v985 = vld [vmem:[%s5] sm:$0x1]
      %v986 = vld [vmem:[%s6] sm:$0x1]
      %v987 = vand.u32 2147483647, %v986
      %v988 = vadd.f32 %v987, 1e-05
      %v989 = vrcp.pop %v988
      %v991 = vperm.slane %v985, 0
      %v993 = vsub.f32 %v900, %v991
      %v994 = vsub.f32 %v912, %v991
      %v995 = vsub.f32 %v924, %v991
      %v996 = vsub.f32 %v936, %v991
      %v997 = vsub.f32 %v948, %v991
      %v998 = vsub.f32 %v960, %v991
      %v999 = vsub.f32 %v972, %v991
      %v1000 = vsub.f32 %v984, %v991
      %v1002 = vperm.slane %v989, 0
      %v1004 = vmul.f32 %v993, %v1002
      %v1005 = vmul.f32 %v994, %v1002
      %v1006 = vmul.f32 %v995, %v1002
      %v1007 = vmul.f32 %v996, %v1002
      %v1008 = vmul.f32 %v997, %v1002
      %v1009 = vmul.f32 %v998, %v1002
      %v1010 = vmul.f32 %v999, %v1002
      %v1011 = vmul.f32 %v1000, %v1002
      %v1012 = vmul.f32 %v1004, -0.5
      %v1013 = vmul.f32 %v1005, -0.5
      %v1014 = vmul.f32 %v1006, -0.5
      %v1015 = vmul.f32 %v1007, -0.5
      %v1016 = vmul.f32 %v1008, -0.5
      %v1017 = vmul.f32 %v1009, -0.5
      %v1018 = vmul.f32 %v1010, -0.5
      %v1019 = vmul.f32 %v1011, -0.5
      %v1020 = vmul.f32 %v1012, %v1004
      %v1021 = vmul.f32 %v1013, %v1005
      %v1022 = vmul.f32 %v1014, %v1006
      %v1023 = vmul.f32 %v1015, %v1007
      %v1024 = vmul.f32 %v1016, %v1008
      %v1025 = vmul.f32 %v1017, %v1009
      %v1026 = vmul.f32 %v1018, %v1010
      %v1027 = vmul.f32 %v1019, %v1011
      %v1028 = vmul.f32 %v1020, 1.442695
      %v1029 = vpow.pop %v1028
      %v1030 = vmul.f32 %v1021, 1.442695
      %v1031 = vpow.pop %v1030
      %v1032 = vmul.f32 %v1022, 1.442695
      %v1033 = vpow.pop %v1032
      %v1034 = vmul.f32 %v1023, 1.442695
      %v1035 = vpow.pop %v1034
      %v1036 = vmul.f32 %v1024, 1.442695
      %v1037 = vpow.pop %v1036
      %v1038 = vmul.f32 %v1025, 1.442695
      %v1039 = vpow.pop %v1038
      %v1040 = vmul.f32 %v1026, 1.442695
      %v1041 = vpow.pop %v1040
      %v1042 = vmul.f32 %v1027, 1.442695
      %v1043 = vpow.pop %v1042
      %v1044 = vmul.f32 %v989, 0.3989423
      %v1046 = vperm.slane %v1044, 0
      %v1048 = vmul.f32 %v1029, %v1046
      %v1049 = vmul.f32 %v1031, %v1046
      %v1050 = vmul.f32 %v1033, %v1046
      %v1051 = vmul.f32 %v1035, %v1046
      %v1052 = vmul.f32 %v1037, %v1046
      %v1053 = vmul.f32 %v1039, %v1046
      %v1054 = vmul.f32 %v1041, %v1046
      %v1055 = vmul.f32 %v1043, %v1046
      %1057 = vset.pattern.permute.xlu0 0
      %1058 = vperm.xlu0 %1057, %v809
      %v1059 = vpop.permute.xlu0 %1058
      %v1062 = vperm.slane %v810, 0
      %v1064 = vmul.f32 %v1059, %v1062
      %v1065 = vperm.slane %v1064, 0
      %v1066 = vlaneseq
      %v1067 = vshrl.u32 %v1066, 7
      %1069 = vset.pattern.permute.xlu0 %v1067
      %1070 = vperm.xlu0 %1069, %v1065
      %v1071 = vpop.permute.xlu0 %1070
      %v1072 = vperm.slane %v1064, 1
      %v1073 = vlaneseq
      %v1074 = vshrl.u32 %v1073, 7
      %1076 = vset.pattern.permute.xlu0 %v1074
      %1077 = vperm.xlu0 %1076, %v1072
      %v1078 = vpop.permute.xlu0 %1077
      %v1079 = vperm.slane %v1064, 2
      %v1080 = vlaneseq
      %v1081 = vshrl.u32 %v1080, 7
      %1083 = vset.pattern.permute.xlu0 %v1081
      %1084 = vperm.xlu0 %1083, %v1079
      %v1085 = vpop.permute.xlu0 %1084
      %v1086 = vperm.slane %v1064, 3
      %v1087 = vlaneseq
      %v1088 = vshrl.u32 %v1087, 7
      %1090 = vset.pattern.permute.xlu0 %v1088
      %1091 = vperm.xlu0 %1090, %v1086
      %v1092 = vpop.permute.xlu0 %1091
      %v1093 = vperm.slane %v1064, 4
      %v1094 = vlaneseq
      %v1095 = vshrl.u32 %v1094, 7
      %1097 = vset.pattern.permute.xlu0 %v1095
      %1098 = vperm.xlu0 %1097, %v1093
      %v1099 = vpop.permute.xlu0 %1098
      %v1100 = vperm.slane %v1064, 5
      %v1101 = vlaneseq
      %v1102 = vshrl.u32 %v1101, 7
      %1104 = vset.pattern.permute.xlu0 %v1102
      %1105 = vperm.xlu0 %1104, %v1100
      %v1106 = vpop.permute.xlu0 %1105
      %v1107 = vperm.slane %v1064, 6
      %v1108 = vlaneseq
      %v1109 = vshrl.u32 %v1108, 7
      %1111 = vset.pattern.permute.xlu0 %v1109
      %1112 = vperm.xlu0 %1111, %v1107
      %v1113 = vpop.permute.xlu0 %1112
      %v1114 = vperm.slane %v1064, 7
      %v1115 = vlaneseq
      %v1116 = vshrl.u32 %v1115, 7
      %1118 = vset.pattern.permute.xlu0 %v1116
      %1119 = vperm.xlu0 %1118, %v1114
      %v1120 = vpop.permute.xlu0 %1119
      %v1121 = vmul.f32 %v1048, %v1071
      %v1122 = vmul.f32 %v1049, %v1078
      %v1123 = vmul.f32 %v1050, %v1085
      %v1124 = vmul.f32 %v1051, %v1092
      %v1125 = vmul.f32 %v1052, %v1099
      %v1126 = vmul.f32 %v1053, %v1106
      %v1127 = vmul.f32 %v1054, %v1113
      %v1128 = vmul.f32 %v1055, %v1120
      %vm1129 = vcmask 130048
      %v1130 = vsel %vm1129, %v1121, 0.0
      %v1131 = vrot.slane %v1130, 4
      %v1132 = vadd.f32 %v1130, %v1131
      %v1133 = vrot.slane %v1132, 2
      %v1134 = vadd.f32 %v1132, %v1133
      %v1135 = vrot.slane %v1134, 1
      %v1136 = vadd.f32 %v1134, %v1135
      %v1137 = vsel %vm1129, %v1122, 0.0
      %v1138 = vrot.slane %v1137, 4
      %v1139 = vadd.f32 %v1137, %v1138
      %v1140 = vrot.slane %v1139, 2
      %v1141 = vadd.f32 %v1139, %v1140
      %v1142 = vrot.slane %v1141, 1
      %v1143 = vadd.f32 %v1141, %v1142
      %v1144 = vsel %vm1129, %v1123, 0.0
      %v1145 = vrot.slane %v1144, 4
      %v1146 = vadd.f32 %v1144, %v1145
      %v1147 = vrot.slane %v1146, 2
      %v1148 = vadd.f32 %v1146, %v1147
      %v1149 = vrot.slane %v1148, 1
      %v1150 = vadd.f32 %v1148, %v1149
      %v1151 = vsel %vm1129, %v1124, 0.0
      %v1152 = vrot.slane %v1151, 4
      %v1153 = vadd.f32 %v1151, %v1152
      %v1154 = vrot.slane %v1153, 2
      %v1155 = vadd.f32 %v1153, %v1154
      %v1156 = vrot.slane %v1155, 1
      %v1157 = vadd.f32 %v1155, %v1156
      %v1158 = vsel %vm1129, %v1125, 0.0
      %v1159 = vrot.slane %v1158, 4
      %v1160 = vadd.f32 %v1158, %v1159
      %v1161 = vrot.slane %v1160, 2
      %v1162 = vadd.f32 %v1160, %v1161
      %v1163 = vrot.slane %v1162, 1
      %v1164 = vadd.f32 %v1162, %v1163
      %v1165 = vsel %vm1129, %v1126, 0.0
      %v1166 = vrot.slane %v1165, 4
      %v1167 = vadd.f32 %v1165, %v1166
      %v1168 = vrot.slane %v1167, 2
      %v1169 = vadd.f32 %v1167, %v1168
      %v1170 = vrot.slane %v1169, 1
      %v1171 = vadd.f32 %v1169, %v1170
      %v1172 = vsel %vm1129, %v1127, 0.0
      %v1173 = vrot.slane %v1172, 4
      %v1174 = vadd.f32 %v1172, %v1173
      %v1175 = vrot.slane %v1174, 2
      %v1176 = vadd.f32 %v1174, %v1175
      %v1177 = vrot.slane %v1176, 1
      %v1178 = vadd.f32 %v1176, %v1177
      %v1179 = vsel %vm1129, %v1128, 0.0
      %v1180 = vrot.slane %v1179, 4
      %v1181 = vadd.f32 %v1179, %v1180
      %v1182 = vrot.slane %v1181, 2
      %v1183 = vadd.f32 %v1181, %v1182
      %v1184 = vrot.slane %v1183, 1
      %v1185 = vadd.f32 %v1183, %v1184
      %v1186 = vld [vmem:[%s7] sm:$0xf]
      %v1187 = vld [vmem:[%s7 + $0x4] sm:$0xf]
      %v1188 = vpack.c.bf16 %v1136, %v1136
      %v1189 = vpack.c.bf16 %v1143, %v1143
      %v1190 = vpack.c.bf16 %v1150, %v1150
      %v1191 = vpack.c.bf16 %v1157, %v1157
      %v1192 = vpack.c.bf16 %v1164, %v1164
      %v1193 = vpack.c.bf16 %v1171, %v1171
      %v1194 = vpack.c.bf16 %v1178, %v1178
      %v1195 = vpack.c.bf16 %v1185, %v1185
      %v1196 = vld [vmem:[%s8] sm:$0x1]
      %v1197 = vmul.f32 %v1196, 8.0
      %v1199 = vperm.slane %v1197, 0
      %v1209 = vunpack.c.l.b16 %v1188
      %v1210 = vunpack.c.l.b16 %v1189
      %v1211 = vunpack.c.l.b16 %v1190
      %v1212 = vunpack.c.l.b16 %v1191
      %v1213 = vunpack.c.l.b16 %v1192
      %v1214 = vunpack.c.l.b16 %v1193
      %v1215 = vunpack.c.l.b16 %v1194
      %v1216 = vunpack.c.l.b16 %v1195
      %vm1217 = vcmask 1041409
      %v1218 = vsel %vm1217, %v1210, %v1209
      %vm1219 = vcmask 1042434
      %v1220 = vsel %vm1219, %v1211, %v1218
      %vm1221 = vcmask 1043459
      %v1222 = vsel %vm1221, %v1212, %v1220
      %vm1223 = vcmask 1044484
      %v1224 = vsel %vm1223, %v1213, %v1222
      %vm1225 = vcmask 1045509
      %v1226 = vsel %vm1225, %v1214, %v1224
      %vm1227 = vcmask 1046534
      %v1228 = vsel %vm1227, %v1215, %v1226
      %vm1229 = vcmask 1047559
      %v1230 = vsel %vm1229, %v1216, %v1228
      %v1231 = vpack.c.b16 %v1230, %v1230
      %v1234 = vunpack.c.l.b16 %v1186
      %v1235 = vunpack.c.l.b16 %v1187
      %v1236 = vpack.c.b16 %v1235, %v1234
      %v1239 = vsel %vm1129, %v1231, 0
      %1241 = vmatpush.bf16.msra.mxu0 0
      %1242 = vmatpush.bf16.msra.mxu0 0
      %1243 = vmatpush.bf16.msra.mxu0 0
      %1244 = vmatpush.bf16.msra.mxu0 0
      %1245 = vmatpush.bf16.msra.mxu0 0
      %1246 = vmatpush.bf16.msra.mxu0 0
      %1247 = vmatpush.bf16.msra.mxu0 0
      %1248 = vmatpush.bf16.msra.mxu0 %v1236
      %1249 = vmatmul.bf16.gmra.mxu0 %v1239
      %v1250 = vpop.f32.mrf.mxu0
      %v1251 = vadd.f32 %v1199, %v1250
      %v1252 = vpop.f32.mrf.mxu0
      %1253 = vdwg.mxu0
      %v1254 = vmul.f32 %v1251, %v823
      %v1255 = vld [vmem:[%s9] sm:$0xf]
      %v1256 = vld [vmem:[%s9 + $0x4] sm:$0xf]
      %v1257 = vld [vmem:[%s10] sm:$0x1]
      %v1258 = vmul.f32 %v1257, 8.0
      %v1260 = vperm.slane %v1258, 0
      %v1264 = vunpack.c.l.b16 %v1255
      %v1265 = vunpack.c.l.b16 %v1256
      %v1266 = vpack.c.b16 %v1265, %v1264
      %1268 = vmatpush.bf16.msra.mxu0 0
      %1269 = vmatpush.bf16.msra.mxu0 0
      %1270 = vmatpush.bf16.msra.mxu0 0
      %1271 = vmatpush.bf16.msra.mxu0 0
      %1272 = vmatpush.bf16.msra.mxu0 0
      %1273 = vmatpush.bf16.msra.mxu0 0
      %1274 = vmatpush.bf16.msra.mxu0 0
      %1275 = vmatpush.bf16.msra.mxu0 %v1266
      %1276 = vmatmul.bf16.gmra.mxu0 %v1239
      %v1277 = vpop.f32.mrf.mxu0
      %v1278 = vadd.f32 %v1260, %v1277
      %v1279 = vpop.f32.mrf.mxu0
      %1280 = vdwg.mxu0
      %v1281 = vmul.f32 %v1278, %v823
      %1282 = vst.msk [vmem:[%s806] sm:$0xff] %vm1129, %v1281
      %v1283 = vld [vmem:[%s795] sm:$0x3]
      %v1284 = vld [vmem:[%s11] sm:$0xf]
      %v1285 = vld [vmem:[%s11 + $0x4] sm:$0xf]
      %v1286 = vld [vmem:[%s11 + $0x8] sm:$0xf]
      %v1287 = vld [vmem:[%s11 + $0xc] sm:$0xf]
      %v1288 = vld [vmem:[%s11 + $0x10] sm:$0xf]
      %v1289 = vld [vmem:[%s11 + $0x14] sm:$0xf]
      %v1290 = vld [vmem:[%s11 + $0x18] sm:$0xf]
      %v1291 = vld [vmem:[%s11 + $0x1c] sm:$0xf]
      %v1292 = vld [vmem:[%s11 + $0x20] sm:$0xf]
      %v1293 = vld [vmem:[%s11 + $0x24] sm:$0xf]
      %v1294 = vld [vmem:[%s11 + $0x28] sm:$0xf]
      %v1295 = vld [vmem:[%s11 + $0x2c] sm:$0xf]
      %v1296 = vld [vmem:[%s11 + $0x30] sm:$0xf]
      %v1297 = vld [vmem:[%s11 + $0x34] sm:$0xf]
      %v1298 = vld [vmem:[%s11 + $0x38] sm:$0xf]
      %v1299 = vld [vmem:[%s11 + $0x3c] sm:$0xf]
      %v1300 = vld [vmem:[%s11 + $0x40] sm:$0xf]
      %v1301 = vld [vmem:[%s11 + $0x44] sm:$0xf]
      %v1302 = vld [vmem:[%s11 + $0x48] sm:$0xf]
      %v1303 = vld [vmem:[%s11 + $0x4c] sm:$0xf]
      %v1304 = vld [vmem:[%s11 + $0x50] sm:$0xf]
      %v1305 = vld [vmem:[%s11 + $0x54] sm:$0xf]
      %v1306 = vld [vmem:[%s11 + $0x58] sm:$0xf]
      %v1307 = vld [vmem:[%s11 + $0x5c] sm:$0xf]
      %v1308 = vld [vmem:[%s11 + $0x60] sm:$0xf]
      %v1309 = vld [vmem:[%s11 + $0x64] sm:$0xf]
      %v1310 = vld [vmem:[%s11 + $0x68] sm:$0xf]
      %v1311 = vld [vmem:[%s11 + $0x6c] sm:$0xf]
      %v1312 = vld [vmem:[%s11 + $0x70] sm:$0xf]
      %v1313 = vld [vmem:[%s11 + $0x74] sm:$0xf]
      %v1314 = vld [vmem:[%s11 + $0x78] sm:$0xf]
      %v1315 = vld [vmem:[%s11 + $0x7c] sm:$0xf]
      %v1317 = vperm.slane %v1283, 0
      %v1318 = vperm.slane %v1283, 1
      %v1321 = vpack.c.bf16 %v1317, %v1317
      %v1322 = vpack.c.bf16 %v1318, %v1318
      %v1323 = vld [vmem:[%s12] sm:$0x1]
      %v1356 = vunpack.c.l.b16 %v1284
      %v1357 = vunpack.c.l.b16 %v1285
      %v1358 = vunpack.c.l.b16 %v1286
      %v1359 = vunpack.c.l.b16 %v1287
      %v1360 = vunpack.c.l.b16 %v1288
      %v1361 = vunpack.c.l.b16 %v1289
      %v1362 = vunpack.c.l.b16 %v1290
      %v1363 = vunpack.c.l.b16 %v1291
      %v1364 = vunpack.c.l.b16 %v1292
      %v1365 = vunpack.c.l.b16 %v1293
      %v1366 = vunpack.c.l.b16 %v1294
      %v1367 = vunpack.c.l.b16 %v1295
      %v1368 = vunpack.c.l.b16 %v1296
      %v1369 = vunpack.c.l.b16 %v1297
      %v1370 = vunpack.c.l.b16 %v1298
      %v1371 = vunpack.c.l.b16 %v1299
      %v1372 = vunpack.c.l.b16 %v1300
      %v1373 = vunpack.c.l.b16 %v1301
      %v1374 = vunpack.c.l.b16 %v1302
      %v1375 = vunpack.c.l.b16 %v1303
      %v1376 = vunpack.c.l.b16 %v1304
      %v1377 = vunpack.c.l.b16 %v1305
      %v1378 = vunpack.c.l.b16 %v1306
      %v1379 = vunpack.c.l.b16 %v1307
      %v1380 = vunpack.c.l.b16 %v1308
      %v1381 = vunpack.c.l.b16 %v1309
      %v1382 = vunpack.c.l.b16 %v1310
      %v1383 = vunpack.c.l.b16 %v1311
      %v1384 = vunpack.c.l.b16 %v1312
      %v1385 = vunpack.c.l.b16 %v1313
      %v1386 = vunpack.c.l.b16 %v1314
      %v1387 = vunpack.c.l.b16 %v1315
      %v1388 = vpack.c.b16 %v1357, %v1356
      %v1389 = vpack.c.b16 %v1359, %v1358
      %v1390 = vpack.c.b16 %v1361, %v1360
      %v1391 = vpack.c.b16 %v1363, %v1362
      %v1392 = vpack.c.b16 %v1365, %v1364
      %v1393 = vpack.c.b16 %v1367, %v1366
      %v1394 = vpack.c.b16 %v1369, %v1368
      %v1395 = vpack.c.b16 %v1371, %v1370
      %v1396 = vpack.c.b16 %v1373, %v1372
      %v1397 = vpack.c.b16 %v1375, %v1374
      %v1398 = vpack.c.b16 %v1377, %v1376
      %v1399 = vpack.c.b16 %v1379, %v1378
      %v1400 = vpack.c.b16 %v1381, %v1380
      %v1401 = vpack.c.b16 %v1383, %v1382
      %v1402 = vpack.c.b16 %v1385, %v1384
      %v1403 = vpack.c.b16 %v1387, %v1386
      %1420 = vmatpush.bf16.msra.mxu0 %v1395
      %1421 = vmatpush.bf16.msra.mxu0 %v1394
      %1422 = vmatpush.bf16.msra.mxu0 %v1393
      %1423 = vmatpush.bf16.msra.mxu0 %v1392
      %1424 = vmatpush.bf16.msra.mxu0 %v1391
      %1425 = vmatpush.bf16.msra.mxu0 %v1390
      %1426 = vmatpush.bf16.msra.mxu0 %v1389
      %1427 = vmatpush.bf16.msra.mxu0 %v1388
      %1428 = vmatmul.bf16.gmra.mxu0 %v1321
      %v1429 = vpop.f32.mrf.mxu0
      %v1430 = vadd.f32 %v1323, %v1429
      %v1431 = vpop.f32.mrf.mxu0
      %1432 = vdwg.mxu0
      %1433 = vmatpush.bf16.msra.mxu0 %v1403
      %1434 = vmatpush.bf16.msra.mxu0 %v1402
      %1435 = vmatpush.bf16.msra.mxu0 %v1401
      %1436 = vmatpush.bf16.msra.mxu0 %v1400
      %1437 = vmatpush.bf16.msra.mxu0 %v1399
      %1438 = vmatpush.bf16.msra.mxu0 %v1398
      %1439 = vmatpush.bf16.msra.mxu0 %v1397
      %1440 = vmatpush.bf16.msra.mxu0 %v1396
      %1441 = vmatmul.bf16.gmra.mxu0 %v1322
      %v1442 = vpop.f32.mrf.mxu0
      %v1443 = vadd.f32 %v1430, %v1442
      %v1444 = vpop.f32.mrf.mxu0
      %1445 = vdwg.mxu0
      %v1446 = vxor.u32 %v1443, 2147483648
      %v1447 = vmul.f32 %v1446, 1.442695
      %v1448 = vpow.pop %v1447
      %v1449 = vadd.f32 %v1448, 1.0
      %v1450 = vrcp.pop %v1449
      %v1451 = vmul.f32 %v1449, %v1450
      %v1452 = vsub.f32 1.0, %v1451
      %v1453 = vmul.f32 %v1450, %v1452
      %v1454 = vadd.f32 %v1450, %v1453
      %vm1455 = vweird.f32 %v1449
      %vm1456 = vweird.f32 %v1450
      %vm1457 = vmor %vm1455, %vm1456
      %v1458 = vsel %vm1457, %v1450, %v1454
      %v1459 = vand.u32 2147483647, %v1449
      %vm1460 = vcmp.eq.f32.partialorder %v1459, 8.507059e+37
      %v1461 = vand.u32 %v1449, 2147483648
      %v1462 = vor.u32 1.1754944e-38, %v1461
      %v1463 = vsel %vm1460, %v1462, %v1458
      %v1464 = vmul.f32 1.0, %v1463
      %v1465 = vmul.f32 %v1443, %v1464
      %v1466 = vld [vmem:[%s13] sm:$0xf]
      %v1467 = vld [vmem:[%s13 + $0x4] sm:$0xf]
      %v1468 = vpack.c.bf16 %v1465, %v1465
      %v1469 = vld [vmem:[%s14] sm:$0x1]
      %v1472 = vunpack.c.l.b16 %v1466
      %v1473 = vunpack.c.l.b16 %v1467
      %v1474 = vpack.c.b16 %v1473, %v1472
      %v1477 = vsel %vm1129, %v1468, 0
      %1479 = vmatpush.bf16.msra.mxu0 0
      %1480 = vmatpush.bf16.msra.mxu0 0
      %1481 = vmatpush.bf16.msra.mxu0 0
      %1482 = vmatpush.bf16.msra.mxu0 0
      %1483 = vmatpush.bf16.msra.mxu0 0
      %1484 = vmatpush.bf16.msra.mxu0 0
      %1485 = vmatpush.bf16.msra.mxu0 0
      %1486 = vmatpush.bf16.msra.mxu0 %v1474
      %1487 = vmatmul.bf16.gmra.mxu0 %v1477
      %v1488 = vpop.f32.mrf.mxu0
      %v1489 = vadd.f32 %v1469, %v1488
      %v1490 = vpop.f32.mrf.mxu0
      %1491 = vdwg.mxu0
      %v1492 = vperm.slane %v1489, 0
      %v1493 = vmul.f32 %v1059, %v1492
      %v1494 = vld [vmem:[%s799] sm:$0x7]
      %v1495 = vpack.c.bf16 %v808, %v808
      %v1496 = vpack.c.bf16 %v1494, %v1494
      %v1498 = vsel %vm864, %v1495, 0
      %vm1500 = vcmask 1040384
      %vm1501 = vcmask 1041408
      %v1502 = vsel %vm1500, 4294967295, 65535
      %v1503 = vsel %vm1501, %v1502, 0
      %v1505 = vand.u32 %v1496, %v1503
      %1507 = vmatpush.bf16.msra.mxu0 0
      %1508 = vmatpush.bf16.msra.mxu0 0
      %1509 = vmatpush.bf16.msra.mxu0 0
      %1510 = vmatpush.bf16.msra.mxu0 0
      %1511 = vmatpush.bf16.msra.mxu0 0
      %1512 = vmatpush.bf16.msra.mxu0 0
      %1513 = vmatpush.bf16.msra.mxu0 0
      %1514 = vmatpush.bf16.msra.mxu0 %v1505
      %1515 = vmatmul.bf16.gmra.mxu0 %v1498
      %v1516 = vpop.f32.mrf.mxu0
      %v1517 = vadd.f32 0.0, %v1516
      %v1518 = vpop.f32.mrf.mxu0
      %1519 = vdwg.mxu0
      %v1520 = vld [vmem:[%s15] sm:$0xff]
      %v1521 = vld [vmem:[%s15 + $0x8] sm:$0xff]
      %v1522 = vld [vmem:[%s15 + $0x10] sm:$0xff]
      %v1523 = vld [vmem:[%s15 + $0x18] sm:$0x7]
      %v1524 = vpack.c.bf16 %v1517, %v1517
      %v1525 = vpack.c.bf16 %v1520, %v1520
      %v1526 = vpack.c.bf16 %v1254, %v1254
      %v1527 = vpack.c.bf16 %v1521, %v1520
      %v1529 = vshrl.u32 %v1527, 16
      %v1531 = vrot.slane %v1529, 1
      %v1532 = vshll.u32 %v1527, 16
      %v1534 = vrot.slane %v1532, 2
      %v1535 = vor.u32 %v1531, %v1534
      %vm1536 = vcmask 64512
      %v1538 = vsel %vm1536, %v1526, 0
      %vm1540 = vcmask 1043456
      %v1542 = vsel %vm1540, %v1535, 0
      %1544 = vmatpush.bf16.msra.mxu0 0
      %1545 = vmatpush.bf16.msra.mxu0 0
      %1546 = vmatpush.bf16.msra.mxu0 0
      %1547 = vmatpush.bf16.msra.mxu0 0
      %1548 = vmatpush.bf16.msra.mxu0 0
      %1549 = vmatpush.bf16.msra.mxu0 0
      %1550 = vmatpush.bf16.msra.mxu0 0
      %1551 = vmatpush.bf16.msra.mxu0 %v1542
      %1552 = vmatmul.bf16.gmra.mxu0 %v1538
      %v1553 = vpop.f32.mrf.mxu0
      %v1554 = vadd.f32 0.0, %v1553
      %v1555 = vpop.f32.mrf.mxu0
      %1556 = vdwg.mxu0
      %v1558 = vsel %vm864, %v1524, 0
      %v1561 = vand.u32 %v1525, %v1503
      %1563 = vmatpush.bf16.msra.mxu0 0
      %1564 = vmatpush.bf16.msra.mxu0 0
      %1565 = vmatpush.bf16.msra.mxu0 0
      %1566 = vmatpush.bf16.msra.mxu0 0
      %1567 = vmatpush.bf16.msra.mxu0 0
      %1568 = vmatpush.bf16.msra.mxu0 0
      %1569 = vmatpush.bf16.msra.mxu0 0
      %1570 = vmatpush.bf16.msra.mxu0 %v1561
      %1571 = vmatmul.bf16.gmra.mxu0 %v1558
      %v1572 = vpop.f32.mrf.mxu0
      %v1573 = vadd.f32 %v1554, %v1572
      %v1574 = vpop.f32.mrf.mxu0
      %1575 = vdwg.mxu0
      %v1576 = vpack.c.bf16 %v1493, %v1493
      %v1577 = vpack.c.bf16 %v1522, %v1521
      %v1578 = vpack.c.bf16 %v1523, %v1523
      %vm1579 = vsmask.f32 6400
      %v1581 = vshrl.u32 %v1577, 16
      %v1583 = vrot.slane %v1581, 1
      %v1584 = vshll.u32 %v1577, 16
      %v1586 = vrot.slane %v1584, 2
      %v1587 = vor.u32 %v1583, %v1586
      %v1589 = vshrl.u32 %v1578, 16
      %v1591 = vrot.slane %v1589, 1
      %v1592 = vshll.u32 %v1578, 16
      %v1594 = vrot.slane %v1592, 2
      %v1595 = vor.u32 %v1591, %v1594
      %v1596 = vsel %vm1579, %v1587, %v1595
      %v1599 = vsel %vm1129, %v1576, 0
      %1601 = vmatpush.bf16.msra.mxu0 0
      %1602 = vmatpush.bf16.msra.mxu0 0
      %1603 = vmatpush.bf16.msra.mxu0 0
      %1604 = vmatpush.bf16.msra.mxu0 0
      %1605 = vmatpush.bf16.msra.mxu0 0
      %1606 = vmatpush.bf16.msra.mxu0 0
      %1607 = vmatpush.bf16.msra.mxu0 0
      %1608 = vmatpush.bf16.msra.mxu0 %v1596
      %1609 = vmatmul.bf16.gmra.mxu0 %v1599
      %v1610 = vpop.f32.mrf.mxu0
      %v1611 = vadd.f32 0.0, %v1610
      %v1612 = vpop.f32.mrf.mxu0
      %1613 = vdwg.mxu0
      %v1614 = vadd.f32 %v1573, %v1611
      %v1615 = vld [vmem:[%s16] sm:$0x1]
      %v1617 = vperm.slane %v1615, 0
      %v1619 = vadd.f32 %v1614, %v1617
      %v1620 = vmul.f32 %v1619, %v1619
      %v1621 = vmul.f32 %v1619, %v1620
      %v1622 = vmul.f32 %v1621, 0.044715
      %v1623 = vadd.f32 %v1619, %v1622
      %v1624 = vmul.f32 %v1623, 0.7978846
      %v1625 = vtanh.pop %v1624
      %v1626 = vadd.f32 %v1625, 1.0
      %v1627 = vmul.f32 %v1626, 0.5
      %v1628 = vmul.f32 %v1619, %v1627
      %v1629 = vld [vmem:[%s17] sm:$0xf]
      %v1630 = vld [vmem:[%s17 + $0x4] sm:$0xf]
      %v1631 = vld [vmem:[%s17 + $0x8] sm:$0xf]
      %v1632 = vld [vmem:[%s17 + $0xc] sm:$0xf]
      %v1633 = vpack.c.bf16 %v1628, %v1628
      %v1634 = vld [vmem:[%s18] sm:$0x1]
      %v1636 = vperm.slane %v1634, 0
      %v1642 = vunpack.c.l.b16 %v1629
      %v1643 = vunpack.c.l.b16 %v1630
      %v1644 = vunpack.c.l.b16 %v1631
      %v1645 = vunpack.c.l.b16 %v1632
      %v1646 = vpack.c.b16 %v1643, %v1642
      %v1647 = vpack.c.b16 %v1645, %v1644
      %vm1650 = vcmask 261120
      %v1652 = vsel %vm1650, %v1633, 0
      %1654 = vmatpush.bf16.msra.mxu0 0
      %1655 = vmatpush.bf16.msra.mxu0 0
      %1656 = vmatpush.bf16.msra.mxu0 0
      %1657 = vmatpush.bf16.msra.mxu0 0
      %1658 = vmatpush.bf16.msra.mxu0 0
      %1659 = vmatpush.bf16.msra.mxu0 0
      %1660 = vmatpush.bf16.msra.mxu0 %v1647
      %1661 = vmatpush.bf16.msra.mxu0 %v1646
      %1662 = vmatmul.bf16.gmra.mxu0 %v1652
      %v1663 = vpop.f32.mrf.mxu0
      %v1664 = vadd.f32 %v1636, %v1663
      %v1665 = vpop.f32.mrf.mxu0
      %1666 = vdwg.mxu0
      %v1667 = vmul.f32 %v1059, %v1664
      %v1668 = vsel %vm1650, %v1667, 0.0
      %v1669 = vrot.slane %v1668, 4
      %v1670 = vadd.f32 %v1668, %v1669
      %v1671 = vrot.slane %v1670, 2
      %v1672 = vadd.f32 %v1670, %v1671
      %v1673 = vrot.slane %v1672, 1
      %v1674 = vadd.f32 %v1672, %v1673
      %v1675 = vmul.f32 %v1674, %v823
      %v1676 = vld [vmem:[%s19] sm:$0xf]
      %v1677 = vld [vmem:[%s19 + $0x4] sm:$0xf]
      %v1678 = vld [vmem:[%s19 + $0x8] sm:$0xf]
      %v1679 = vld [vmem:[%s19 + $0xc] sm:$0xf]
      %v1680 = vpack.c.bf16 %v1675, %v1675
      %v1681 = vld [vmem:[%s20] sm:$0x1]
      %v1686 = vunpack.c.l.b16 %v1676
      %v1687 = vunpack.c.l.b16 %v1677
      %v1688 = vunpack.c.l.b16 %v1678
      %v1689 = vunpack.c.l.b16 %v1679
      %v1690 = vpack.c.b16 %v1687, %v1686
      %v1691 = vpack.c.b16 %v1689, %v1688
      %v1695 = vsel %vm1650, %v1680, 0
      %1697 = vmatpush.bf16.msra.mxu0 0
      %1698 = vmatpush.bf16.msra.mxu0 0
      %1699 = vmatpush.bf16.msra.mxu0 0
      %1700 = vmatpush.bf16.msra.mxu0 0
      %1701 = vmatpush.bf16.msra.mxu0 0
      %1702 = vmatpush.bf16.msra.mxu0 0
      %1703 = vmatpush.bf16.msra.mxu0 %v1691
      %1704 = vmatpush.bf16.msra.mxu0 %v1690
      %1705 = vmatmul.bf16.gmra.mxu0 %v1695
      %v1706 = vpop.f32.mrf.mxu0
      %v1707 = vadd.f32 %v1681, %v1706
      %v1708 = vpop.f32.mrf.mxu0
      %1709 = vdwg.mxu0
      %v1710 = vmul.f32 %v1707, %v1707
      %v1711 = vmul.f32 %v1707, %v1710
      %v1712 = vmul.f32 %v1711, 0.044715
      %v1713 = vadd.f32 %v1707, %v1712
      %v1714 = vmul.f32 %v1713, 0.7978846
      %v1715 = vtanh.pop %v1714
      %v1716 = vadd.f32 %v1715, 1.0
      %v1717 = vmul.f32 %v1716, 0.5
      %v1718 = vmul.f32 %v1707, %v1717
      %v1719 = vld [vmem:[%s21] sm:$0xff]
      %v1720 = vld [vmem:[%s21 + $0x8] sm:$0xff]
      %v1721 = vld [vmem:[%s21 + $0x10] sm:$0xff]
      %v1722 = vld [vmem:[%s21 + $0x18] sm:$0xff]
      %v1723 = vpack.c.bf16 %v1718, %v1718
      %v1724 = vpack.c.bf16 %v1720, %v1719
      %v1725 = vpack.c.bf16 %v1722, %v1721
      %v1726 = vld [vmem:[%s22] sm:$0x1]
      %v1728 = vsel %vm1650, %v1723, 0
      %1730 = vmatpush.bf16.msra.mxu0 0
      %1731 = vmatpush.bf16.msra.mxu0 0
      %1732 = vmatpush.bf16.msra.mxu0 0
      %1733 = vmatpush.bf16.msra.mxu0 0
      %1734 = vmatpush.bf16.msra.mxu0 0
      %1735 = vmatpush.bf16.msra.mxu0 0
      %1736 = vmatpush.bf16.msra.mxu0 %v1725
      %1737 = vmatpush.bf16.msra.mxu0 %v1724
      %1738 = vmatmul.bf16.gmra.mxu0 %v1728
      %v1739 = vpop.f32.mrf.mxu0
      %v1740 = vadd.f32 %v1726, %v1739
      %v1741 = vpop.f32.mrf.mxu0
      %1742 = vdwg.mxu0
      %vm1743 = vcmask 65536
      %1744 = vst.msk [vmem:[%s802] sm:$0x1] %vm1743, %v1740
      %p1745 = scmp.lt.s32.totalorder %s36, 1
      %s1746 = scalar_select %p1745, %s36, 1
      %s1747 = scalar_lea.vmem %s23, %s1746
      %p1748 = scmp.lt.s32.totalorder %s36, 1
      %s1749 = scalar_select %p1748, %s36, 1
      %s1750 = smul.addr %s1749, 8
      %s1751 = scalar_lea.vmem %s24, %s1750
      // Predicated region
      $region113: #{forward.2} parent=111 // pred_check
        %p1752 = pneg %p562
      $region114: #{forward.2} parent=111 // pred_check_branch
        %1754 = sbr.rel (%p1752) target = $region116
      $region115: #{forward.2} parent=111 // pred_region
        _
      $region116: #{forward.2} parent=111 // pred_fallthru
        _
      // Predicated region
      $region117: #{forward.2} parent=111 // pred_check
        %p1755 = pneg %p588
      $region118: #{forward.2} parent=111 // pred_check_branch
        %1757 = sbr.rel (%p1755) target = $region120
      $region119: #{forward.2} parent=111 // pred_region
        _
      $region120: #{forward.2} parent=111 // pred_fallthru
        _
    $region112: #{forward.2} parent=5 // pred_fallthru
      _
    %p1758 = scmp.le.s32.totalorder 2, %s31
    // Predicated region
    $region121: #{forward.2} parent=5 // pred_check
      %p1759 = pneg %p1758
    $region122: #{forward.2} parent=5 // pred_check_branch
      %1761 = sbr.rel (%p1759) target = $region124
    $region123: #{forward.2} parent=5 // pred_region
      %s1762 = ssub.s32 %s31, 2
      // Predicated region
      $region125: #{forward.2} parent=123 // pred_check
        %p1763 = pneg %p568
      $region126: #{forward.2} parent=123 // pred_check_branch
        %1765 = sbr.rel (%p1763) target = $region128
      $region127: #{forward.2} parent=123 // pred_region
        %p1766 = scmp.lt.s32.totalorder %s37, 1
        %s1767 = scalar_select %p1766, %s37, 1
        %s1768 = scalar_lea.vmem %s23, %s1767
      $region128: #{forward.2} parent=123 // pred_fallthru
        _
      // Predicated region
      $region129: #{forward.2} parent=123 // pred_check
        %p1769 = pneg %p594
      $region130: #{forward.2} parent=123 // pred_check_branch
        %1771 = sbr.rel (%p1769) target = $region132
      $region131: #{forward.2} parent=123 // pred_region
        %p1772 = scmp.lt.s32.totalorder %s37, 1
        %s1773 = scalar_select %p1772, %s37, 1
        %s1774 = smul.addr %s1773, 8
        %s1775 = scalar_lea.vmem %s24, %s1774
      $region132: #{forward.2} parent=123 // pred_fallthru
        _
    $region124: #{forward.2} parent=5 // pred_fallthru
      _
  $region6: #{forward.2} parent=0 // loop_footer
    %s35 = sadd.s32 1, %s31
  $region7: #{forward.2} parent=0 // loop_footer_branch
    %30 = sbr.rel target = $region3
  $region8: #{forward.2} parent=0 // loop_exit
    _

// kernel: forward.3
$region0: #{forward.3}
  #allocation0 [shape = 'u32[]', space=smem, size = 0x4, offset = 0x4, fixed_abs, tag = 'smem constant byte address 0x4 - core index']
  #allocation1 [shape = 'u32[72,128]{1,0:T(1,128)}', space=vmem, size = 0x9000, scoped, tag = 'internal scratch']
  #allocation2 [shape = 'f32[8,32]{1,0:T(8,128)}', space=vmem, size = 0x1000, scoped, tag = 'scratch operand']
  %s0 = inlined_call_operand.smem [shape: u32[39], index: -1, kind: input, shape index: {}]
  %s1 = sld [smem:[%s0]]
  %s2 = scalar_lea.smem %s0, 1
  %s3 = sld [smem:[%s2]]
  %s4 = scalar_lea.smem %s0, 2
  %s5 = sld [smem:[%s4]]
  %s6 = scalar_lea.smem %s0, 3
  %s7 = sld [smem:[%s6]]
  %s8 = scalar_lea.smem %s0, 4
  %s9 = sld [smem:[%s8]]
  %s10 = scalar_lea.smem %s0, 5
  %s11 = sld [smem:[%s10]]
  %s12 = scalar_lea.smem %s0, 6
  %s13 = sld [smem:[%s12]]
  %s14 = scalar_lea.smem %s0, 7
  %s15 = sld [smem:[%s14]]
  %s16 = scalar_lea.smem %s0, 8
  %s17 = sld [smem:[%s16]]
  %s18 = scalar_lea.smem %s0, 9
  %s19 = sld [smem:[%s18]]
  %s20 = scalar_lea.smem %s0, 10
  %s21 = sld [smem:[%s20]]
  %s22 = scalar_lea.smem %s0, 11
  %s23 = sld [smem:[%s22]]
  %s24 = scalar_lea.smem %s0, 12
  %s25 = sld [smem:[%s24]]
  %s26 = scalar_lea.smem %s0, 13
  %s27 = sld [smem:[%s26]]
  %s28 = scalar_lea.smem %s0, 14
  %s29 = sld [smem:[%s28]]
  %s30 = scalar_lea.smem %s0, 15
  %s31 = sld [smem:[%s30]]
  %s32 = scalar_lea.smem %s0, 16
  %s33 = sld [smem:[%s32]]
  %s34 = scalar_lea.smem %s0, 17
  %s35 = sld [smem:[%s34]]
  %s36 = scalar_lea.smem %s0, 18
  %s37 = sld [smem:[%s36]]
  %s38 = scalar_lea.smem %s0, 19
  %s39 = sld [smem:[%s38]]
  %s40 = scalar_lea.smem %s0, 20
  %s41 = sld [smem:[%s40]]
  %s42 = scalar_lea.smem %s0, 21
  %s43 = sld [smem:[%s42]]
  %s44 = scalar_lea.smem %s0, 22
  %s45 = sld [smem:[%s44]]
  %s46 = scalar_lea.smem %s0, 23
  %s47 = sld [smem:[%s46]]
  %s48 = scalar_lea.smem %s0, 24
  %s49 = sld [smem:[%s48]]
  %s50 = scalar_lea.smem %s0, 25
  %s51 = sld [smem:[%s50]]
  %s52 = scalar_lea.smem %s0, 26
  %s53 = sld [smem:[%s52]]
  %s54 = scalar_lea.smem %s0, 27
  %s55 = sld [smem:[%s54]]
  %s56 = scalar_lea.smem %s0, 28
  %s57 = sld [smem:[%s56]]
  %s58 = scalar_lea.smem %s0, 29
  %s59 = sld [smem:[%s58]]
  %s60 = scalar_lea.smem %s0, 30
  %s61 = sld [smem:[%s60]]
  %s62 = scalar_lea.smem %s0, 31
  %s63 = sld [smem:[%s62]]
  %s64 = scalar_lea.smem %s0, 32
  %s65 = sld [smem:[%s64]]
  %s66 = scalar_lea.smem %s0, 33
  %s67 = sld [smem:[%s66]]
  %s68 = scalar_lea.smem %s0, 34
  %s69 = sld [smem:[%s68]]
  %s70 = scalar_lea.smem %s0, 35
  %s71 = sld [smem:[%s70]]
  %s72 = scalar_lea.smem %s0, 36
  %s73 = sld [smem:[%s72]]
  %s74 = scalar_lea.smem %s0, 37
  %s75 = sld [smem:[%s74]]
  %s76 = scalar_lea.smem %s0, 38
  %s77 = sld [smem:[%s76]]
  %s78 = sld [smem:[#allocation0]]
  $region185: #{forward.3} parent=0
    _
  %s80 = ssub.s32 1, %s78
  %s81 = scalar_select 0, %s80, %s78
  $region1: #{forward.3} parent=0
    #allocation3 [shape = 'u8[8192]{0}', space=vmem, size = 0x2000, scoped, tag = 'output window, operand 0']
    #allocation4 [shape = 's32[2]{0}', space=sflag, size = 0x8, scoped, tag = 'scoped memory for forward.3']
    %82 = vsyncpa [#allocation4], 0
    %s83 = scalar_lea.sflag [#allocation4], 1
    %84 = vsyncpa %s83, 0
    loop: start=0, step=1, limit=4
    $region2: #{forward.3} parent=1 // loop_pre_header
      _
    $region3: #{forward.3} parent=1 // loop_header
      %s86 = sphi 0, %s90
      %p87 = scmp.ge.s32.totalorder %s86, 4
      %s96 = sphi 0, %s98
      %s99 = sphi 0, %s96
      %s100 = sphi 0, %s99
      %s116 = sphi 0, %s100
      %s122 = sphi 0, %s124
      %s125 = sphi 0, %s122
      %s126 = sphi 0, %s125
      %s142 = sphi 0, %s126
      %s148 = sphi 0, %s150
      %s151 = sphi 0, %s148
      %s152 = sphi 0, %s151
      %s168 = sphi 0, %s152
      %s174 = sphi 0, %s176
      %s177 = sphi 0, %s174
      %s178 = sphi 0, %s177
      %s194 = sphi 0, %s178
      %s200 = sphi 0, %s202
      %s203 = sphi 0, %s200
      %s204 = sphi 0, %s203
      %s220 = sphi 0, %s204
      %s226 = sphi 0, %s228
      %s229 = sphi 0, %s226
      %s230 = sphi 0, %s229
      %s246 = sphi 0, %s230
      %s252 = sphi 0, %s254
      %s255 = sphi 0, %s252
      %s256 = sphi 0, %s255
      %s272 = sphi 0, %s256
      %s278 = sphi 0, %s280
      %s281 = sphi 0, %s278
      %s282 = sphi 0, %s281
      %s298 = sphi 0, %s282
      %s302 = sphi 0, %s302
      %s304 = sphi 0, %s302
      %s305 = sphi 0, %s304
      %s319 = sphi 0, %s305
      %s323 = sphi 0, %s323
      %s325 = sphi 0, %s323
      %s326 = sphi 0, %s325
      %s340 = sphi 0, %s326
      %s344 = sphi 0, %s344
      %s346 = sphi 0, %s344
      %s347 = sphi 0, %s346
      %s361 = sphi 0, %s347
      %s365 = sphi 0, %s365
      %s367 = sphi 0, %s365
      %s368 = sphi 0, %s367
      %s382 = sphi 0, %s368
      %s386 = sphi 0, %s386
      %s388 = sphi 0, %s386
      %s389 = sphi 0, %s388
      %s403 = sphi 0, %s389
      %s407 = sphi 0, %s407
      %s409 = sphi 0, %s407
      %s410 = sphi 0, %s409
      %s424 = sphi 0, %s410
      %s428 = sphi 0, %s428
      %s430 = sphi 0, %s428
      %s431 = sphi 0, %s430
      %s445 = sphi 0, %s431
      %s449 = sphi 0, %s449
      %s451 = sphi 0, %s449
      %s452 = sphi 0, %s451
      %s466 = sphi 0, %s452
      %s470 = sphi 0, %s470
      %s472 = sphi 0, %s470
      %s473 = sphi 0, %s472
      %s487 = sphi 0, %s473
      %s491 = sphi 0, %s491
      %s493 = sphi 0, %s491
      %s494 = sphi 0, %s493
      %s508 = sphi 0, %s494
      %s512 = sphi 0, %s512
      %s514 = sphi 0, %s512
      %s515 = sphi 0, %s514
      %s529 = sphi 0, %s515
      %s533 = sphi 0, %s533
      %s535 = sphi 0, %s533
      %s536 = sphi 0, %s535
      %s550 = sphi 0, %s536
      %s554 = sphi 0, %s554
      %s556 = sphi 0, %s554
      %s557 = sphi 0, %s556
      %s571 = sphi 0, %s557
      %s575 = sphi 0, %s575
      %s577 = sphi 0, %s575
      %s578 = sphi 0, %s577
      %s592 = sphi 0, %s578
      %s596 = sphi 0, %s596
      %s598 = sphi 0, %s596
      %s599 = sphi 0, %s598
      %s613 = sphi 0, %s599
      %s617 = sphi 0, %s617
      %s619 = sphi 0, %s617
      %s620 = sphi 0, %s619
      %s634 = sphi 0, %s620
      %s638 = sphi 0, %s638
      %s640 = sphi 0, %s638
      %s641 = sphi 0, %s640
      %s655 = sphi 0, %s641
      %s659 = sphi 0, %s659
      %s661 = sphi 0, %s659
      %s662 = sphi 0, %s661
      %s676 = sphi 0, %s662
      %s680 = sphi 0, %s680
      %s682 = sphi 0, %s680
      %s683 = sphi 0, %s682
      %s697 = sphi 0, %s683
      %s701 = sphi 0, %s701
      %s703 = sphi 0, %s701
      %s704 = sphi 0, %s703
      %s718 = sphi 0, %s704
      %s722 = sphi 0, %s722
      %s724 = sphi 0, %s722
      %s725 = sphi 0, %s724
      %s739 = sphi 0, %s725
      %s743 = sphi 0, %s743
      %s745 = sphi 0, %s743
      %s746 = sphi 0, %s745
      %s760 = sphi 0, %s746
      %s764 = sphi 0, %s764
      %s766 = sphi 0, %s764
      %s767 = sphi 0, %s766
      %s781 = sphi 0, %s767
      %s785 = sphi 0, %s785
      %s787 = sphi 0, %s785
      %s788 = sphi 0, %s787
      %s802 = sphi 0, %s788
      %s806 = sphi 0, %s806
      %s808 = sphi 0, %s806
      %s809 = sphi 0, %s808
      %s823 = sphi 0, %s809
      %s827 = sphi 0, %s827
      %s829 = sphi 0, %s827
      %s830 = sphi 0, %s829
      %s844 = sphi 0, %s830
      %s848 = sphi 0, %s848
      %s850 = sphi 0, %s848
      %s851 = sphi 0, %s850
      %s865 = sphi 0, %s851
      %s869 = sphi 0, %s869
      %s871 = sphi 0, %s869
      %s872 = sphi 0, %s871
      %s886 = sphi 0, %s872
      %s890 = sphi 0, %s890
      %s892 = sphi 0, %s890
      %s893 = sphi 0, %s892
      %s907 = sphi 0, %s893
      %s911 = sphi 0, %s911
      %s913 = sphi 0, %s911
      %s914 = sphi 0, %s913
      %s928 = sphi 0, %s914
      %s934 = sphi 0, %s936
      %s937 = sphi 0, %s934
      %s938 = sphi 0, %s937
      %s954 = sphi 0, %s938
    $region4: #{forward.3} parent=1 // loop_header_branch
      %89 = sbr.rel (%p87) target = $region8
    $region5: #{forward.3} parent=1 // loop_body
      %s91 = ssub.s32 %s86, 1
      %s92 = ssub.s32 %s86, 2
      %s93 = sadd.s32 %s86, 1
      %s94 = ssub.s32 %s86, %s93
      %p95 = scmp.eq.s32.totalorder %s94, 0
      %s97 = sadd.s32 %s96, 1
      %s98 = scalar_select %p95, %s96, %s97
      %p101 = pneg %p95
      %p102 = scmp.eq.s32.totalorder %s86, 1
      %p103 = por %p101, %p102
      %p104 = scmp.ne.s32.totalorder %s96, %s99
      %p105 = scmp.eq.s32.totalorder %s86, 0
      %p106 = por %p104, %p105
      %p107 = scmp.ne.s32.totalorder %s96, %s99
      %p108 = scmp.eq.s32.totalorder %s91, 1
      %p109 = por %p107, %p108
      %p110 = scmp.ne.s32.totalorder %s99, %s100
      %p111 = scmp.eq.s32.totalorder %s91, 0
      %p112 = por %p110, %p111
      %p113 = scmp.ne.s32.totalorder %s99, %s100
      %p114 = scmp.eq.s32.totalorder %s92, 1
      %p115 = por %p113, %p114
      %p117 = scmp.ne.s32.totalorder %s100, %s116
      %p118 = scmp.eq.s32.totalorder %s92, 0
      %p119 = por %p117, %p118
      %s120 = ssub.s32 %s86, %s93
      %p121 = scmp.eq.s32.totalorder %s120, 0
      %s123 = sadd.s32 %s122, 1
      %s124 = scalar_select %p121, %s122, %s123
      %p127 = pneg %p121
      %p128 = scmp.eq.s32.totalorder %s86, 1
      %p129 = por %p127, %p128
      %p130 = scmp.ne.s32.totalorder %s122, %s125
      %p131 = scmp.eq.s32.totalorder %s86, 0
      %p132 = por %p130, %p131
      %p133 = scmp.ne.s32.totalorder %s122, %s125
      %p134 = scmp.eq.s32.totalorder %s91, 1
      %p135 = por %p133, %p134
      %p136 = scmp.ne.s32.totalorder %s125, %s126
      %p137 = scmp.eq.s32.totalorder %s91, 0
      %p138 = por %p136, %p137
      %p139 = scmp.ne.s32.totalorder %s125, %s126
      %p140 = scmp.eq.s32.totalorder %s92, 1
      %p141 = por %p139, %p140
      %p143 = scmp.ne.s32.totalorder %s126, %s142
      %p144 = scmp.eq.s32.totalorder %s92, 0
      %p145 = por %p143, %p144
      %s146 = ssub.s32 %s86, %s93
      %p147 = scmp.eq.s32.totalorder %s146, 0
      %s149 = sadd.s32 %s148, 1
      %s150 = scalar_select %p147, %s148, %s149
      %p153 = pneg %p147
      %p154 = scmp.eq.s32.totalorder %s86, 1
      %p155 = por %p153, %p154
      %p156 = scmp.ne.s32.totalorder %s148, %s151
      %p157 = scmp.eq.s32.totalorder %s86, 0
      %p158 = por %p156, %p157
      %p159 = scmp.ne.s32.totalorder %s148, %s151
      %p160 = scmp.eq.s32.totalorder %s91, 1
      %p161 = por %p159, %p160
      %p162 = scmp.ne.s32.totalorder %s151, %s152
      %p163 = scmp.eq.s32.totalorder %s91, 0
      %p164 = por %p162, %p163
      %p165 = scmp.ne.s32.totalorder %s151, %s152
      %p166 = scmp.eq.s32.totalorder %s92, 1
      %p167 = por %p165, %p166
      %p169 = scmp.ne.s32.totalorder %s152, %s168
      %p170 = scmp.eq.s32.totalorder %s92, 0
      %p171 = por %p169, %p170
      %s172 = ssub.s32 %s86, %s93
      %p173 = scmp.eq.s32.totalorder %s172, 0
      %s175 = sadd.s32 %s174, 1
      %s176 = scalar_select %p173, %s174, %s175
      %p179 = pneg %p173
      %p180 = scmp.eq.s32.totalorder %s86, 1
      %p181 = por %p179, %p180
      %p182 = scmp.ne.s32.totalorder %s174, %s177
      %p183 = scmp.eq.s32.totalorder %s86, 0
      %p184 = por %p182, %p183
      %p185 = scmp.ne.s32.totalorder %s174, %s177
      %p186 = scmp.eq.s32.totalorder %s91, 1
      %p187 = por %p185, %p186
      %p188 = scmp.ne.s32.totalorder %s177, %s178
      %p189 = scmp.eq.s32.totalorder %s91, 0
      %p190 = por %p188, %p189
      %p191 = scmp.ne.s32.totalorder %s177, %s178
      %p192 = scmp.eq.s32.totalorder %s92, 1
      %p193 = por %p191, %p192
      %p195 = scmp.ne.s32.totalorder %s178, %s194
      %p196 = scmp.eq.s32.totalorder %s92, 0
      %p197 = por %p195, %p196
      %s198 = ssub.s32 %s86, %s93
      %p199 = scmp.eq.s32.totalorder %s198, 0
      %s201 = sadd.s32 %s200, 1
      %s202 = scalar_select %p199, %s200, %s201
      %p205 = pneg %p199
      %p206 = scmp.eq.s32.totalorder %s86, 1
      %p207 = por %p205, %p206
      %p208 = scmp.ne.s32.totalorder %s200, %s203
      %p209 = scmp.eq.s32.totalorder %s86, 0
      %p210 = por %p208, %p209
      %p211 = scmp.ne.s32.totalorder %s200, %s203
      %p212 = scmp.eq.s32.totalorder %s91, 1
      %p213 = por %p211, %p212
      %p214 = scmp.ne.s32.totalorder %s203, %s204
      %p215 = scmp.eq.s32.totalorder %s91, 0
      %p216 = por %p214, %p215
      %p217 = scmp.ne.s32.totalorder %s203, %s204
      %p218 = scmp.eq.s32.totalorder %s92, 1
      %p219 = por %p217, %p218
      %p221 = scmp.ne.s32.totalorder %s204, %s220
      %p222 = scmp.eq.s32.totalorder %s92, 0
      %p223 = por %p221, %p222
      %s224 = ssub.s32 %s86, %s93
      %p225 = scmp.eq.s32.totalorder %s224, 0
      %s227 = sadd.s32 %s226, 1
      %s228 = scalar_select %p225, %s226, %s227
      %p231 = pneg %p225
      %p232 = scmp.eq.s32.totalorder %s86, 1
      %p233 = por %p231, %p232
      %p234 = scmp.ne.s32.totalorder %s226, %s229
      %p235 = scmp.eq.s32.totalorder %s86, 0
      %p236 = por %p234, %p235
      %p237 = scmp.ne.s32.totalorder %s226, %s229
      %p238 = scmp.eq.s32.totalorder %s91, 1
      %p239 = por %p237, %p238
      %p240 = scmp.ne.s32.totalorder %s229, %s230
      %p241 = scmp.eq.s32.totalorder %s91, 0
      %p242 = por %p240, %p241
      %p243 = scmp.ne.s32.totalorder %s229, %s230
      %p244 = scmp.eq.s32.totalorder %s92, 1
      %p245 = por %p243, %p244
      %p247 = scmp.ne.s32.totalorder %s230, %s246
      %p248 = scmp.eq.s32.totalorder %s92, 0
      %p249 = por %p247, %p248
      %s250 = ssub.s32 %s86, %s93
      %p251 = scmp.eq.s32.totalorder %s250, 0
      %s253 = sadd.s32 %s252, 1
      %s254 = scalar_select %p251, %s252, %s253
      %p257 = pneg %p251
      %p258 = scmp.eq.s32.totalorder %s86, 1
      %p259 = por %p257, %p258
      %p260 = scmp.ne.s32.totalorder %s252, %s255
      %p261 = scmp.eq.s32.totalorder %s86, 0
      %p262 = por %p260, %p261
      %p263 = scmp.ne.s32.totalorder %s252, %s255
      %p264 = scmp.eq.s32.totalorder %s91, 1
      %p265 = por %p263, %p264
      %p266 = scmp.ne.s32.totalorder %s255, %s256
      %p267 = scmp.eq.s32.totalorder %s91, 0
      %p268 = por %p266, %p267
      %p269 = scmp.ne.s32.totalorder %s255, %s256
      %p270 = scmp.eq.s32.totalorder %s92, 1
      %p271 = por %p269, %p270
      %p273 = scmp.ne.s32.totalorder %s256, %s272
      %p274 = scmp.eq.s32.totalorder %s92, 0
      %p275 = por %p273, %p274
      %s276 = ssub.s32 %s86, %s93
      %p277 = scmp.eq.s32.totalorder %s276, 0
      %s279 = sadd.s32 %s278, 1
      %s280 = scalar_select %p277, %s278, %s279
      %p283 = pneg %p277
      %p284 = scmp.eq.s32.totalorder %s86, 1
      %p285 = por %p283, %p284
      %p286 = scmp.ne.s32.totalorder %s278, %s281
      %p287 = scmp.eq.s32.totalorder %s86, 0
      %p288 = por %p286, %p287
      %p289 = scmp.ne.s32.totalorder %s278, %s281
      %p290 = scmp.eq.s32.totalorder %s91, 1
      %p291 = por %p289, %p290
      %p292 = scmp.ne.s32.totalorder %s281, %s282
      %p293 = scmp.eq.s32.totalorder %s91, 0
      %p294 = por %p292, %p293
      %p295 = scmp.ne.s32.totalorder %s281, %s282
      %p296 = scmp.eq.s32.totalorder %s92, 1
      %p297 = por %p295, %p296
      %p299 = scmp.ne.s32.totalorder %s282, %s298
      %p300 = scmp.eq.s32.totalorder %s92, 0
      %p301 = por %p299, %p300
      %s303 = sadd.s32 %s302, 1
      %p306 = scmp.eq.s32.totalorder %s86, 1
      %p307 = scmp.ne.s32.totalorder %s302, %s304
      %p308 = scmp.eq.s32.totalorder %s86, 0
      %p309 = por %p307, %p308
      %p310 = scmp.ne.s32.totalorder %s302, %s304
      %p311 = scmp.eq.s32.totalorder %s91, 1
      %p312 = por %p310, %p311
      %p313 = scmp.ne.s32.totalorder %s304, %s305
      %p314 = scmp.eq.s32.totalorder %s91, 0
      %p315 = por %p313, %p314
      %p316 = scmp.ne.s32.totalorder %s304, %s305
      %p317 = scmp.eq.s32.totalorder %s92, 1
      %p318 = por %p316, %p317
      %p320 = scmp.ne.s32.totalorder %s305, %s319
      %p321 = scmp.eq.s32.totalorder %s92, 0
      %p322 = por %p320, %p321
      %s324 = sadd.s32 %s323, 1
      %p327 = scmp.eq.s32.totalorder %s86, 1
      %p328 = scmp.ne.s32.totalorder %s323, %s325
      %p329 = scmp.eq.s32.totalorder %s86, 0
      %p330 = por %p328, %p329
      %p331 = scmp.ne.s32.totalorder %s323, %s325
      %p332 = scmp.eq.s32.totalorder %s91, 1
      %p333 = por %p331, %p332
      %p334 = scmp.ne.s32.totalorder %s325, %s326
      %p335 = scmp.eq.s32.totalorder %s91, 0
      %p336 = por %p334, %p335
      %p337 = scmp.ne.s32.totalorder %s325, %s326
      %p338 = scmp.eq.s32.totalorder %s92, 1
      %p339 = por %p337, %p338
      %p341 = scmp.ne.s32.totalorder %s326, %s340
      %p342 = scmp.eq.s32.totalorder %s92, 0
      %p343 = por %p341, %p342
      %s345 = sadd.s32 %s344, 1
      %p348 = scmp.eq.s32.totalorder %s86, 1
      %p349 = scmp.ne.s32.totalorder %s344, %s346
      %p350 = scmp.eq.s32.totalorder %s86, 0
      %p351 = por %p349, %p350
      %p352 = scmp.ne.s32.totalorder %s344, %s346
      %p353 = scmp.eq.s32.totalorder %s91, 1
      %p354 = por %p352, %p353
      %p355 = scmp.ne.s32.totalorder %s346, %s347
      %p356 = scmp.eq.s32.totalorder %s91, 0
      %p357 = por %p355, %p356
      %p358 = scmp.ne.s32.totalorder %s346, %s347
      %p359 = scmp.eq.s32.totalorder %s92, 1
      %p360 = por %p358, %p359
      %p362 = scmp.ne.s32.totalorder %s347, %s361
      %p363 = scmp.eq.s32.totalorder %s92, 0
      %p364 = por %p362, %p363
      %s366 = sadd.s32 %s365, 1
      %p369 = scmp.eq.s32.totalorder %s86, 1
      %p370 = scmp.ne.s32.totalorder %s365, %s367
      %p371 = scmp.eq.s32.totalorder %s86, 0
      %p372 = por %p370, %p371
      %p373 = scmp.ne.s32.totalorder %s365, %s367
      %p374 = scmp.eq.s32.totalorder %s91, 1
      %p375 = por %p373, %p374
      %p376 = scmp.ne.s32.totalorder %s367, %s368
      %p377 = scmp.eq.s32.totalorder %s91, 0
      %p378 = por %p376, %p377
      %p379 = scmp.ne.s32.totalorder %s367, %s368
      %p380 = scmp.eq.s32.totalorder %s92, 1
      %p381 = por %p379, %p380
      %p383 = scmp.ne.s32.totalorder %s368, %s382
      %p384 = scmp.eq.s32.totalorder %s92, 0
      %p385 = por %p383, %p384
      %s387 = sadd.s32 %s386, 1
      %p390 = scmp.eq.s32.totalorder %s86, 1
      %p391 = scmp.ne.s32.totalorder %s386, %s388
      %p392 = scmp.eq.s32.totalorder %s86, 0
      %p393 = por %p391, %p392
      %p394 = scmp.ne.s32.totalorder %s386, %s388
      %p395 = scmp.eq.s32.totalorder %s91, 1
      %p396 = por %p394, %p395
      %p397 = scmp.ne.s32.totalorder %s388, %s389
      %p398 = scmp.eq.s32.totalorder %s91, 0
      %p399 = por %p397, %p398
      %p400 = scmp.ne.s32.totalorder %s388, %s389
      %p401 = scmp.eq.s32.totalorder %s92, 1
      %p402 = por %p400, %p401
      %p404 = scmp.ne.s32.totalorder %s389, %s403
      %p405 = scmp.eq.s32.totalorder %s92, 0
      %p406 = por %p404, %p405
      %s408 = sadd.s32 %s407, 1
      %p411 = scmp.eq.s32.totalorder %s86, 1
      %p412 = scmp.ne.s32.totalorder %s407, %s409
      %p413 = scmp.eq.s32.totalorder %s86, 0
      %p414 = por %p412, %p413
      %p415 = scmp.ne.s32.totalorder %s407, %s409
      %p416 = scmp.eq.s32.totalorder %s91, 1
      %p417 = por %p415, %p416
      %p418 = scmp.ne.s32.totalorder %s409, %s410
      %p419 = scmp.eq.s32.totalorder %s91, 0
      %p420 = por %p418, %p419
      %p421 = scmp.ne.s32.totalorder %s409, %s410
      %p422 = scmp.eq.s32.totalorder %s92, 1
      %p423 = por %p421, %p422
      %p425 = scmp.ne.s32.totalorder %s410, %s424
      %p426 = scmp.eq.s32.totalorder %s92, 0
      %p427 = por %p425, %p426
      %s429 = sadd.s32 %s428, 1
      %p432 = scmp.eq.s32.totalorder %s86, 1
      %p433 = scmp.ne.s32.totalorder %s428, %s430
      %p434 = scmp.eq.s32.totalorder %s86, 0
      %p435 = por %p433, %p434
      %p436 = scmp.ne.s32.totalorder %s428, %s430
      %p437 = scmp.eq.s32.totalorder %s91, 1
      %p438 = por %p436, %p437
      %p439 = scmp.ne.s32.totalorder %s430, %s431
      %p440 = scmp.eq.s32.totalorder %s91, 0
      %p441 = por %p439, %p440
      %p442 = scmp.ne.s32.totalorder %s430, %s431
      %p443 = scmp.eq.s32.totalorder %s92, 1
      %p444 = por %p442, %p443
      %p446 = scmp.ne.s32.totalorder %s431, %s445
      %p447 = scmp.eq.s32.totalorder %s92, 0
      %p448 = por %p446, %p447
      %s450 = sadd.s32 %s449, 1
      %p453 = scmp.eq.s32.totalorder %s86, 1
      %p454 = scmp.ne.s32.totalorder %s449, %s451
      %p455 = scmp.eq.s32.totalorder %s86, 0
      %p456 = por %p454, %p455
      %p457 = scmp.ne.s32.totalorder %s449, %s451
      %p458 = scmp.eq.s32.totalorder %s91, 1
      %p459 = por %p457, %p458
      %p460 = scmp.ne.s32.totalorder %s451, %s452
      %p461 = scmp.eq.s32.totalorder %s91, 0
      %p462 = por %p460, %p461
      %p463 = scmp.ne.s32.totalorder %s451, %s452
      %p464 = scmp.eq.s32.totalorder %s92, 1
      %p465 = por %p463, %p464
      %p467 = scmp.ne.s32.totalorder %s452, %s466
      %p468 = scmp.eq.s32.totalorder %s92, 0
      %p469 = por %p467, %p468
      %s471 = sadd.s32 %s470, 1
      %p474 = scmp.eq.s32.totalorder %s86, 1
      %p475 = scmp.ne.s32.totalorder %s470, %s472
      %p476 = scmp.eq.s32.totalorder %s86, 0
      %p477 = por %p475, %p476
      %p478 = scmp.ne.s32.totalorder %s470, %s472
      %p479 = scmp.eq.s32.totalorder %s91, 1
      %p480 = por %p478, %p479
      %p481 = scmp.ne.s32.totalorder %s472, %s473
      %p482 = scmp.eq.s32.totalorder %s91, 0
      %p483 = por %p481, %p482
      %p484 = scmp.ne.s32.totalorder %s472, %s473
      %p485 = scmp.eq.s32.totalorder %s92, 1
      %p486 = por %p484, %p485
      %p488 = scmp.ne.s32.totalorder %s473, %s487
      %p489 = scmp.eq.s32.totalorder %s92, 0
      %p490 = por %p488, %p489
      %s492 = sadd.s32 %s491, 1
      %p495 = scmp.eq.s32.totalorder %s86, 1
      %p496 = scmp.ne.s32.totalorder %s491, %s493
      %p497 = scmp.eq.s32.totalorder %s86, 0
      %p498 = por %p496, %p497
      %p499 = scmp.ne.s32.totalorder %s491, %s493
      %p500 = scmp.eq.s32.totalorder %s91, 1
      %p501 = por %p499, %p500
      %p502 = scmp.ne.s32.totalorder %s493, %s494
      %p503 = scmp.eq.s32.totalorder %s91, 0
      %p504 = por %p502, %p503
      %p505 = scmp.ne.s32.totalorder %s493, %s494
      %p506 = scmp.eq.s32.totalorder %s92, 1
      %p507 = por %p505, %p506
      %p509 = scmp.ne.s32.totalorder %s494, %s508
      %p510 = scmp.eq.s32.totalorder %s92, 0
      %p511 = por %p509, %p510
      %s513 = sadd.s32 %s512, 1
      %p516 = scmp.eq.s32.totalorder %s86, 1
      %p517 = scmp.ne.s32.totalorder %s512, %s514
      %p518 = scmp.eq.s32.totalorder %s86, 0
      %p519 = por %p517, %p518
      %p520 = scmp.ne.s32.totalorder %s512, %s514
      %p521 = scmp.eq.s32.totalorder %s91, 1
      %p522 = por %p520, %p521
      %p523 = scmp.ne.s32.totalorder %s514, %s515
      %p524 = scmp.eq.s32.totalorder %s91, 0
      %p525 = por %p523, %p524
      %p526 = scmp.ne.s32.totalorder %s514, %s515
      %p527 = scmp.eq.s32.totalorder %s92, 1
      %p528 = por %p526, %p527
      %p530 = scmp.ne.s32.totalorder %s515, %s529
      %p531 = scmp.eq.s32.totalorder %s92, 0
      %p532 = por %p530, %p531
      %s534 = sadd.s32 %s533, 1
      %p537 = scmp.eq.s32.totalorder %s86, 1
      %p538 = scmp.ne.s32.totalorder %s533, %s535
      %p539 = scmp.eq.s32.totalorder %s86, 0
      %p540 = por %p538, %p539
      %p541 = scmp.ne.s32.totalorder %s533, %s535
      %p542 = scmp.eq.s32.totalorder %s91, 1
      %p543 = por %p541, %p542
      %p544 = scmp.ne.s32.totalorder %s535, %s536
      %p545 = scmp.eq.s32.totalorder %s91, 0
      %p546 = por %p544, %p545
      %p547 = scmp.ne.s32.totalorder %s535, %s536
      %p548 = scmp.eq.s32.totalorder %s92, 1
      %p549 = por %p547, %p548
      %p551 = scmp.ne.s32.totalorder %s536, %s550
      %p552 = scmp.eq.s32.totalorder %s92, 0
      %p553 = por %p551, %p552
      %s555 = sadd.s32 %s554, 1
      %p558 = scmp.eq.s32.totalorder %s86, 1
      %p559 = scmp.ne.s32.totalorder %s554, %s556
      %p560 = scmp.eq.s32.totalorder %s86, 0
      %p561 = por %p559, %p560
      %p562 = scmp.ne.s32.totalorder %s554, %s556
      %p563 = scmp.eq.s32.totalorder %s91, 1
      %p564 = por %p562, %p563
      %p565 = scmp.ne.s32.totalorder %s556, %s557
      %p566 = scmp.eq.s32.totalorder %s91, 0
      %p567 = por %p565, %p566
      %p568 = scmp.ne.s32.totalorder %s556, %s557
      %p569 = scmp.eq.s32.totalorder %s92, 1
      %p570 = por %p568, %p569
      %p572 = scmp.ne.s32.totalorder %s557, %s571
      %p573 = scmp.eq.s32.totalorder %s92, 0
      %p574 = por %p572, %p573
      %s576 = sadd.s32 %s575, 1
      %p579 = scmp.eq.s32.totalorder %s86, 1
      %p580 = scmp.ne.s32.totalorder %s575, %s577
      %p581 = scmp.eq.s32.totalorder %s86, 0
      %p582 = por %p580, %p581
      %p583 = scmp.ne.s32.totalorder %s575, %s577
      %p584 = scmp.eq.s32.totalorder %s91, 1
      %p585 = por %p583, %p584
      %p586 = scmp.ne.s32.totalorder %s577, %s578
      %p587 = scmp.eq.s32.totalorder %s91, 0
      %p588 = por %p586, %p587
      %p589 = scmp.ne.s32.totalorder %s577, %s578
      %p590 = scmp.eq.s32.totalorder %s92, 1
      %p591 = por %p589, %p590
      %p593 = scmp.ne.s32.totalorder %s578, %s592
      %p594 = scmp.eq.s32.totalorder %s92, 0
      %p595 = por %p593, %p594
      %s597 = sadd.s32 %s596, 1
      %p600 = scmp.eq.s32.totalorder %s86, 1
      %p601 = scmp.ne.s32.totalorder %s596, %s598
      %p602 = scmp.eq.s32.totalorder %s86, 0
      %p603 = por %p601, %p602
      %p604 = scmp.ne.s32.totalorder %s596, %s598
      %p605 = scmp.eq.s32.totalorder %s91, 1
      %p606 = por %p604, %p605
      %p607 = scmp.ne.s32.totalorder %s598, %s599
      %p608 = scmp.eq.s32.totalorder %s91, 0
      %p609 = por %p607, %p608
      %p610 = scmp.ne.s32.totalorder %s598, %s599
      %p611 = scmp.eq.s32.totalorder %s92, 1
      %p612 = por %p610, %p611
      %p614 = scmp.ne.s32.totalorder %s599, %s613
      %p615 = scmp.eq.s32.totalorder %s92, 0
      %p616 = por %p614, %p615
      %s618 = sadd.s32 %s617, 1
      %p621 = scmp.eq.s32.totalorder %s86, 1
      %p622 = scmp.ne.s32.totalorder %s617, %s619
      %p623 = scmp.eq.s32.totalorder %s86, 0
      %p624 = por %p622, %p623
      %p625 = scmp.ne.s32.totalorder %s617, %s619
      %p626 = scmp.eq.s32.totalorder %s91, 1
      %p627 = por %p625, %p626
      %p628 = scmp.ne.s32.totalorder %s619, %s620
      %p629 = scmp.eq.s32.totalorder %s91, 0
      %p630 = por %p628, %p629
      %p631 = scmp.ne.s32.totalorder %s619, %s620
      %p632 = scmp.eq.s32.totalorder %s92, 1
      %p633 = por %p631, %p632
      %p635 = scmp.ne.s32.totalorder %s620, %s634
      %p636 = scmp.eq.s32.totalorder %s92, 0
      %p637 = por %p635, %p636
      %s639 = sadd.s32 %s638, 1
      %p642 = scmp.eq.s32.totalorder %s86, 1
      %p643 = scmp.ne.s32.totalorder %s638, %s640
      %p644 = scmp.eq.s32.totalorder %s86, 0
      %p645 = por %p643, %p644
      %p646 = scmp.ne.s32.totalorder %s638, %s640
      %p647 = scmp.eq.s32.totalorder %s91, 1
      %p648 = por %p646, %p647
      %p649 = scmp.ne.s32.totalorder %s640, %s641
      %p650 = scmp.eq.s32.totalorder %s91, 0
      %p651 = por %p649, %p650
      %p652 = scmp.ne.s32.totalorder %s640, %s641
      %p653 = scmp.eq.s32.totalorder %s92, 1
      %p654 = por %p652, %p653
      %p656 = scmp.ne.s32.totalorder %s641, %s655
      %p657 = scmp.eq.s32.totalorder %s92, 0
      %p658 = por %p656, %p657
      %s660 = sadd.s32 %s659, 1
      %p663 = scmp.eq.s32.totalorder %s86, 1
      %p664 = scmp.ne.s32.totalorder %s659, %s661
      %p665 = scmp.eq.s32.totalorder %s86, 0
      %p666 = por %p664, %p665
      %p667 = scmp.ne.s32.totalorder %s659, %s661
      %p668 = scmp.eq.s32.totalorder %s91, 1
      %p669 = por %p667, %p668
      %p670 = scmp.ne.s32.totalorder %s661, %s662
      %p671 = scmp.eq.s32.totalorder %s91, 0
      %p672 = por %p670, %p671
      %p673 = scmp.ne.s32.totalorder %s661, %s662
      %p674 = scmp.eq.s32.totalorder %s92, 1
      %p675 = por %p673, %p674
      %p677 = scmp.ne.s32.totalorder %s662, %s676
      %p678 = scmp.eq.s32.totalorder %s92, 0
      %p679 = por %p677, %p678
      %s681 = sadd.s32 %s680, 1
      %p684 = scmp.eq.s32.totalorder %s86, 1
      %p685 = scmp.ne.s32.totalorder %s680, %s682
      %p686 = scmp.eq.s32.totalorder %s86, 0
      %p687 = por %p685, %p686
      %p688 = scmp.ne.s32.totalorder %s680, %s682
      %p689 = scmp.eq.s32.totalorder %s91, 1
      %p690 = por %p688, %p689
      %p691 = scmp.ne.s32.totalorder %s682, %s683
      %p692 = scmp.eq.s32.totalorder %s91, 0
      %p693 = por %p691, %p692
      %p694 = scmp.ne.s32.totalorder %s682, %s683
      %p695 = scmp.eq.s32.totalorder %s92, 1
      %p696 = por %p694, %p695
      %p698 = scmp.ne.s32.totalorder %s683, %s697
      %p699 = scmp.eq.s32.totalorder %s92, 0
      %p700 = por %p698, %p699
      %s702 = sadd.s32 %s701, 1
      %p705 = scmp.eq.s32.totalorder %s86, 1
      %p706 = scmp.ne.s32.totalorder %s701, %s703
      %p707 = scmp.eq.s32.totalorder %s86, 0
      %p708 = por %p706, %p707
      %p709 = scmp.ne.s32.totalorder %s701, %s703
      %p710 = scmp.eq.s32.totalorder %s91, 1
      %p711 = por %p709, %p710
      %p712 = scmp.ne.s32.totalorder %s703, %s704
      %p713 = scmp.eq.s32.totalorder %s91, 0
      %p714 = por %p712, %p713
      %p715 = scmp.ne.s32.totalorder %s703, %s704
      %p716 = scmp.eq.s32.totalorder %s92, 1
      %p717 = por %p715, %p716
      %p719 = scmp.ne.s32.totalorder %s704, %s718
      %p720 = scmp.eq.s32.totalorder %s92, 0
      %p721 = por %p719, %p720
      %s723 = sadd.s32 %s722, 1
      %p726 = scmp.eq.s32.totalorder %s86, 1
      %p727 = scmp.ne.s32.totalorder %s722, %s724
      %p728 = scmp.eq.s32.totalorder %s86, 0
      %p729 = por %p727, %p728
      %p730 = scmp.ne.s32.totalorder %s722, %s724
      %p731 = scmp.eq.s32.totalorder %s91, 1
      %p732 = por %p730, %p731
      %p733 = scmp.ne.s32.totalorder %s724, %s725
      %p734 = scmp.eq.s32.totalorder %s91, 0
      %p735 = por %p733, %p734
      %p736 = scmp.ne.s32.totalorder %s724, %s725
      %p737 = scmp.eq.s32.totalorder %s92, 1
      %p738 = por %p736, %p737
      %p740 = scmp.ne.s32.totalorder %s725, %s739
      %p741 = scmp.eq.s32.totalorder %s92, 0
      %p742 = por %p740, %p741
      %s744 = sadd.s32 %s743, 1
      %p747 = scmp.eq.s32.totalorder %s86, 1
      %p748 = scmp.ne.s32.totalorder %s743, %s745
      %p749 = scmp.eq.s32.totalorder %s86, 0
      %p750 = por %p748, %p749
      %p751 = scmp.ne.s32.totalorder %s743, %s745
      %p752 = scmp.eq.s32.totalorder %s91, 1
      %p753 = por %p751, %p752
      %p754 = scmp.ne.s32.totalorder %s745, %s746
      %p755 = scmp.eq.s32.totalorder %s91, 0
      %p756 = por %p754, %p755
      %p757 = scmp.ne.s32.totalorder %s745, %s746
      %p758 = scmp.eq.s32.totalorder %s92, 1
      %p759 = por %p757, %p758
      %p761 = scmp.ne.s32.totalorder %s746, %s760
      %p762 = scmp.eq.s32.totalorder %s92, 0
      %p763 = por %p761, %p762
      %s765 = sadd.s32 %s764, 1
      %p768 = scmp.eq.s32.totalorder %s86, 1
      %p769 = scmp.ne.s32.totalorder %s764, %s766
      %p770 = scmp.eq.s32.totalorder %s86, 0
      %p771 = por %p769, %p770
      %p772 = scmp.ne.s32.totalorder %s764, %s766
      %p773 = scmp.eq.s32.totalorder %s91, 1
      %p774 = por %p772, %p773
      %p775 = scmp.ne.s32.totalorder %s766, %s767
      %p776 = scmp.eq.s32.totalorder %s91, 0
      %p777 = por %p775, %p776
      %p778 = scmp.ne.s32.totalorder %s766, %s767
      %p779 = scmp.eq.s32.totalorder %s92, 1
      %p780 = por %p778, %p779
      %p782 = scmp.ne.s32.totalorder %s767, %s781
      %p783 = scmp.eq.s32.totalorder %s92, 0
      %p784 = por %p782, %p783
      %s786 = sadd.s32 %s785, 1
      %p789 = scmp.eq.s32.totalorder %s86, 1
      %p790 = scmp.ne.s32.totalorder %s785, %s787
      %p791 = scmp.eq.s32.totalorder %s86, 0
      %p792 = por %p790, %p791
      %p793 = scmp.ne.s32.totalorder %s785, %s787
      %p794 = scmp.eq.s32.totalorder %s91, 1
      %p795 = por %p793, %p794
      %p796 = scmp.ne.s32.totalorder %s787, %s788
      %p797 = scmp.eq.s32.totalorder %s91, 0
      %p798 = por %p796, %p797
      %p799 = scmp.ne.s32.totalorder %s787, %s788
      %p800 = scmp.eq.s32.totalorder %s92, 1
      %p801 = por %p799, %p800
      %p803 = scmp.ne.s32.totalorder %s788, %s802
      %p804 = scmp.eq.s32.totalorder %s92, 0
      %p805 = por %p803, %p804
      %s807 = sadd.s32 %s806, 1
      %p810 = scmp.eq.s32.totalorder %s86, 1
      %p811 = scmp.ne.s32.totalorder %s806, %s808
      %p812 = scmp.eq.s32.totalorder %s86, 0
      %p813 = por %p811, %p812
      %p814 = scmp.ne.s32.totalorder %s806, %s808
      %p815 = scmp.eq.s32.totalorder %s91, 1
      %p816 = por %p814, %p815
      %p817 = scmp.ne.s32.totalorder %s808, %s809
      %p818 = scmp.eq.s32.totalorder %s91, 0
      %p819 = por %p817, %p818
      %p820 = scmp.ne.s32.totalorder %s808, %s809
      %p821 = scmp.eq.s32.totalorder %s92, 1
      %p822 = por %p820, %p821
      %p824 = scmp.ne.s32.totalorder %s809, %s823
      %p825 = scmp.eq.s32.totalorder %s92, 0
      %p826 = por %p824, %p825
      %s828 = sadd.s32 %s827, 1
      %p831 = scmp.eq.s32.totalorder %s86, 1
      %p832 = scmp.ne.s32.totalorder %s827, %s829
      %p833 = scmp.eq.s32.totalorder %s86, 0
      %p834 = por %p832, %p833
      %p835 = scmp.ne.s32.totalorder %s827, %s829
      %p836 = scmp.eq.s32.totalorder %s91, 1
      %p837 = por %p835, %p836
      %p838 = scmp.ne.s32.totalorder %s829, %s830
      %p839 = scmp.eq.s32.totalorder %s91, 0
      %p840 = por %p838, %p839
      %p841 = scmp.ne.s32.totalorder %s829, %s830
      %p842 = scmp.eq.s32.totalorder %s92, 1
      %p843 = por %p841, %p842
      %p845 = scmp.ne.s32.totalorder %s830, %s844
      %p846 = scmp.eq.s32.totalorder %s92, 0
      %p847 = por %p845, %p846
      %s849 = sadd.s32 %s848, 1
      %p852 = scmp.eq.s32.totalorder %s86, 1
      %p853 = scmp.ne.s32.totalorder %s848, %s850
      %p854 = scmp.eq.s32.totalorder %s86, 0
      %p855 = por %p853, %p854
      %p856 = scmp.ne.s32.totalorder %s848, %s850
      %p857 = scmp.eq.s32.totalorder %s91, 1
      %p858 = por %p856, %p857
      %p859 = scmp.ne.s32.totalorder %s850, %s851
      %p860 = scmp.eq.s32.totalorder %s91, 0
      %p861 = por %p859, %p860
      %p862 = scmp.ne.s32.totalorder %s850, %s851
      %p863 = scmp.eq.s32.totalorder %s92, 1
      %p864 = por %p862, %p863
      %p866 = scmp.ne.s32.totalorder %s851, %s865
      %p867 = scmp.eq.s32.totalorder %s92, 0
      %p868 = por %p866, %p867
      %s870 = sadd.s32 %s869, 1
      %p873 = scmp.eq.s32.totalorder %s86, 1
      %p874 = scmp.ne.s32.totalorder %s869, %s871
      %p875 = scmp.eq.s32.totalorder %s86, 0
      %p876 = por %p874, %p875
      %p877 = scmp.ne.s32.totalorder %s869, %s871
      %p878 = scmp.eq.s32.totalorder %s91, 1
      %p879 = por %p877, %p878
      %p880 = scmp.ne.s32.totalorder %s871, %s872
      %p881 = scmp.eq.s32.totalorder %s91, 0
      %p882 = por %p880, %p881
      %p883 = scmp.ne.s32.totalorder %s871, %s872
      %p884 = scmp.eq.s32.totalorder %s92, 1
      %p885 = por %p883, %p884
      %p887 = scmp.ne.s32.totalorder %s872, %s886
      %p888 = scmp.eq.s32.totalorder %s92, 0
      %p889 = por %p887, %p888
      %s891 = sadd.s32 %s890, 1
      %p894 = scmp.eq.s32.totalorder %s86, 1
      %p895 = scmp.ne.s32.totalorder %s890, %s892
      %p896 = scmp.eq.s32.totalorder %s86, 0
      %p897 = por %p895, %p896
      %p898 = scmp.ne.s32.totalorder %s890, %s892
      %p899 = scmp.eq.s32.totalorder %s91, 1
      %p900 = por %p898, %p899
      %p901 = scmp.ne.s32.totalorder %s892, %s893
      %p902 = scmp.eq.s32.totalorder %s91, 0
      %p903 = por %p901, %p902
      %p904 = scmp.ne.s32.totalorder %s892, %s893
      %p905 = scmp.eq.s32.totalorder %s92, 1
      %p906 = por %p904, %p905
      %p908 = scmp.ne.s32.totalorder %s893, %s907
      %p909 = scmp.eq.s32.totalorder %s92, 0
      %p910 = por %p908, %p909
      %s912 = sadd.s32 %s911, 1
      %p915 = scmp.eq.s32.totalorder %s86, 1
      %p916 = scmp.ne.s32.totalorder %s911, %s913
      %p917 = scmp.eq.s32.totalorder %s86, 0
      %p918 = por %p916, %p917
      %p919 = scmp.ne.s32.totalorder %s911, %s913
      %p920 = scmp.eq.s32.totalorder %s91, 1
      %p921 = por %p919, %p920
      %p922 = scmp.ne.s32.totalorder %s913, %s914
      %p923 = scmp.eq.s32.totalorder %s91, 0
      %p924 = por %p922, %p923
      %p925 = scmp.ne.s32.totalorder %s913, %s914
      %p926 = scmp.eq.s32.totalorder %s92, 1
      %p927 = por %p925, %p926
      %p929 = scmp.ne.s32.totalorder %s914, %s928
      %p930 = scmp.eq.s32.totalorder %s92, 0
      %p931 = por %p929, %p930
      %s932 = ssub.s32 %s86, %s93
      %p933 = scmp.eq.s32.totalorder %s932, 0
      %s935 = sadd.s32 %s934, 1
      %s936 = scalar_select %p933, %s934, %s935
      %p939 = pneg %p933
      %p940 = scmp.eq.s32.totalorder %s86, 1
      %p941 = por %p939, %p940
      %p942 = scmp.ne.s32.totalorder %s934, %s937
      %p943 = scmp.eq.s32.totalorder %s86, 0
      %p944 = por %p942, %p943
      %p945 = scmp.ne.s32.totalorder %s934, %s937
      %p946 = scmp.eq.s32.totalorder %s91, 1
      %p947 = por %p945, %p946
      %p948 = scmp.ne.s32.totalorder %s937, %s938
      %p949 = scmp.eq.s32.totalorder %s91, 0
      %p950 = por %p948, %p949
      %p951 = scmp.ne.s32.totalorder %s937, %s938
      %p952 = scmp.eq.s32.totalorder %s92, 1
      %p953 = por %p951, %p952
      %p955 = scmp.ne.s32.totalorder %s938, %s954
      %p956 = scmp.eq.s32.totalorder %s92, 0
      %p957 = por %p955, %p956
      %p958 = scmp.le.s32.totalorder 1, %s86
      %p959 = scmp.lt.s32.totalorder %s86, 3
      %p960 = pnand %p958, %p959
      %p961 = pneg %p960
      // Predicated region
      $region9: #{forward.3} parent=5 // pred_check
        _
      $region10: #{forward.3} parent=5 // pred_check_branch
        %963 = sbr.rel (%p960) target = $region12
      $region11: #{forward.3} parent=5 // pred_region
        %s964 = ssub.s32 %s86, 1
        // Predicated region
        $region13: #{forward.3} parent=11 // pred_check
          %p965 = pneg %p315
        $region14: #{forward.3} parent=11 // pred_check_branch
          %967 = sbr.rel (%p965) target = $region16
        $region15: #{forward.3} parent=11 // pred_region
          _
        $region16: #{forward.3} parent=11 // pred_fallthru
          _
        // Predicated region
        $region17: #{forward.3} parent=11 // pred_check
          %p968 = pneg %p336
        $region18: #{forward.3} parent=11 // pred_check_branch
          %970 = sbr.rel (%p968) target = $region20
        $region19: #{forward.3} parent=11 // pred_region
          _
        $region20: #{forward.3} parent=11 // pred_fallthru
          _
        // Predicated region
        $region21: #{forward.3} parent=11 // pred_check
          %p971 = pneg %p357
        $region22: #{forward.3} parent=11 // pred_check_branch
          %973 = sbr.rel (%p971) target = $region24
        $region23: #{forward.3} parent=11 // pred_region
          _
        $region24: #{forward.3} parent=11 // pred_fallthru
          _
        // Predicated region
        $region25: #{forward.3} parent=11 // pred_check
          %p974 = pneg %p378
        $region26: #{forward.3} parent=11 // pred_check_branch
          %976 = sbr.rel (%p974) target = $region28
        $region27: #{forward.3} parent=11 // pred_region
          _
        $region28: #{forward.3} parent=11 // pred_fallthru
          _
        // Predicated region
        $region29: #{forward.3} parent=11 // pred_check
          %p977 = pneg %p399
        $region30: #{forward.3} parent=11 // pred_check_branch
          %979 = sbr.rel (%p977) target = $region32
        $region31: #{forward.3} parent=11 // pred_region
          _
        $region32: #{forward.3} parent=11 // pred_fallthru
          _
        // Predicated region
        $region33: #{forward.3} parent=11 // pred_check
          %p980 = pneg %p420
        $region34: #{forward.3} parent=11 // pred_check_branch
          %982 = sbr.rel (%p980) target = $region36
        $region35: #{forward.3} parent=11 // pred_region
          _
        $region36: #{forward.3} parent=11 // pred_fallthru
          _
        // Predicated region
        $region37: #{forward.3} parent=11 // pred_check
          %p983 = pneg %p441
        $region38: #{forward.3} parent=11 // pred_check_branch
          %985 = sbr.rel (%p983) target = $region40
        $region39: #{forward.3} parent=11 // pred_region
          _
        $region40: #{forward.3} parent=11 // pred_fallthru
          _
        // Predicated region
        $region41: #{forward.3} parent=11 // pred_check
          %p986 = pneg %p462
        $region42: #{forward.3} parent=11 // pred_check_branch
          %988 = sbr.rel (%p986) target = $region44
        $region43: #{forward.3} parent=11 // pred_region
          _
        $region44: #{forward.3} parent=11 // pred_fallthru
          _
        // Predicated region
        $region45: #{forward.3} parent=11 // pred_check
          %p989 = pneg %p483
        $region46: #{forward.3} parent=11 // pred_check_branch
          %991 = sbr.rel (%p989) target = $region48
        $region47: #{forward.3} parent=11 // pred_region
          _
        $region48: #{forward.3} parent=11 // pred_fallthru
          _
        // Predicated region
        $region49: #{forward.3} parent=11 // pred_check
          %p992 = pneg %p504
        $region50: #{forward.3} parent=11 // pred_check_branch
          %994 = sbr.rel (%p992) target = $region52
        $region51: #{forward.3} parent=11 // pred_region
          _
        $region52: #{forward.3} parent=11 // pred_fallthru
          _
        // Predicated region
        $region53: #{forward.3} parent=11 // pred_check
          %p995 = pneg %p525
        $region54: #{forward.3} parent=11 // pred_check_branch
          %997 = sbr.rel (%p995) target = $region56
        $region55: #{forward.3} parent=11 // pred_region
          _
        $region56: #{forward.3} parent=11 // pred_fallthru
          _
        // Predicated region
        $region57: #{forward.3} parent=11 // pred_check
          %p998 = pneg %p546
        $region58: #{forward.3} parent=11 // pred_check_branch
          %1000 = sbr.rel (%p998) target = $region60
        $region59: #{forward.3} parent=11 // pred_region
          _
        $region60: #{forward.3} parent=11 // pred_fallthru
          _
        // Predicated region
        $region61: #{forward.3} parent=11 // pred_check
          %p1001 = pneg %p567
        $region62: #{forward.3} parent=11 // pred_check_branch
          %1003 = sbr.rel (%p1001) target = $region64
        $region63: #{forward.3} parent=11 // pred_region
          _
        $region64: #{forward.3} parent=11 // pred_fallthru
          _
        // Predicated region
        $region65: #{forward.3} parent=11 // pred_check
          %p1004 = pneg %p588
        $region66: #{forward.3} parent=11 // pred_check_branch
          %1006 = sbr.rel (%p1004) target = $region68
        $region67: #{forward.3} parent=11 // pred_region
          _
        $region68: #{forward.3} parent=11 // pred_fallthru
          _
        // Predicated region
        $region69: #{forward.3} parent=11 // pred_check
          %p1007 = pneg %p609
        $region70: #{forward.3} parent=11 // pred_check_branch
          %1009 = sbr.rel (%p1007) target = $region72
        $region71: #{forward.3} parent=11 // pred_region
          _
        $region72: #{forward.3} parent=11 // pred_fallthru
          _
        // Predicated region
        $region73: #{forward.3} parent=11 // pred_check
          %p1010 = pneg %p630
        $region74: #{forward.3} parent=11 // pred_check_branch
          %1012 = sbr.rel (%p1010) target = $region76
        $region75: #{forward.3} parent=11 // pred_region
          _
        $region76: #{forward.3} parent=11 // pred_fallthru
          _
        // Predicated region
        $region77: #{forward.3} parent=11 // pred_check
          %p1013 = pneg %p651
        $region78: #{forward.3} parent=11 // pred_check_branch
          %1015 = sbr.rel (%p1013) target = $region80
        $region79: #{forward.3} parent=11 // pred_region
          _
        $region80: #{forward.3} parent=11 // pred_fallthru
          _
        // Predicated region
        $region81: #{forward.3} parent=11 // pred_check
          %p1016 = pneg %p672
        $region82: #{forward.3} parent=11 // pred_check_branch
          %1018 = sbr.rel (%p1016) target = $region84
        $region83: #{forward.3} parent=11 // pred_region
          _
        $region84: #{forward.3} parent=11 // pred_fallthru
          _
        // Predicated region
        $region85: #{forward.3} parent=11 // pred_check
          %p1019 = pneg %p693
        $region86: #{forward.3} parent=11 // pred_check_branch
          %1021 = sbr.rel (%p1019) target = $region88
        $region87: #{forward.3} parent=11 // pred_region
          _
        $region88: #{forward.3} parent=11 // pred_fallthru
          _
        // Predicated region
        $region89: #{forward.3} parent=11 // pred_check
          %p1022 = pneg %p714
        $region90: #{forward.3} parent=11 // pred_check_branch
          %1024 = sbr.rel (%p1022) target = $region92
        $region91: #{forward.3} parent=11 // pred_region
          _
        $region92: #{forward.3} parent=11 // pred_fallthru
          _
        // Predicated region
        $region93: #{forward.3} parent=11 // pred_check
          %p1025 = pneg %p735
        $region94: #{forward.3} parent=11 // pred_check_branch
          %1027 = sbr.rel (%p1025) target = $region96
        $region95: #{forward.3} parent=11 // pred_region
          _
        $region96: #{forward.3} parent=11 // pred_fallthru
          _
        // Predicated region
        $region97: #{forward.3} parent=11 // pred_check
          %p1028 = pneg %p756
        $region98: #{forward.3} parent=11 // pred_check_branch
          %1030 = sbr.rel (%p1028) target = $region100
        $region99: #{forward.3} parent=11 // pred_region
          _
        $region100: #{forward.3} parent=11 // pred_fallthru
          _
        // Predicated region
        $region101: #{forward.3} parent=11 // pred_check
          %p1031 = pneg %p777
        $region102: #{forward.3} parent=11 // pred_check_branch
          %1033 = sbr.rel (%p1031) target = $region104
        $region103: #{forward.3} parent=11 // pred_region
          _
        $region104: #{forward.3} parent=11 // pred_fallthru
          _
        // Predicated region
        $region105: #{forward.3} parent=11 // pred_check
          %p1034 = pneg %p798
        $region106: #{forward.3} parent=11 // pred_check_branch
          %1036 = sbr.rel (%p1034) target = $region108
        $region107: #{forward.3} parent=11 // pred_region
          _
        $region108: #{forward.3} parent=11 // pred_fallthru
          _
        // Predicated region
        $region109: #{forward.3} parent=11 // pred_check
          %p1037 = pneg %p819
        $region110: #{forward.3} parent=11 // pred_check_branch
          %1039 = sbr.rel (%p1037) target = $region112
        $region111: #{forward.3} parent=11 // pred_region
          _
        $region112: #{forward.3} parent=11 // pred_fallthru
          _
        // Predicated region
        $region113: #{forward.3} parent=11 // pred_check
          %p1040 = pneg %p840
        $region114: #{forward.3} parent=11 // pred_check_branch
          %1042 = sbr.rel (%p1040) target = $region116
        $region115: #{forward.3} parent=11 // pred_region
          _
        $region116: #{forward.3} parent=11 // pred_fallthru
          _
        // Predicated region
        $region117: #{forward.3} parent=11 // pred_check
          %p1043 = pneg %p861
        $region118: #{forward.3} parent=11 // pred_check_branch
          %1045 = sbr.rel (%p1043) target = $region120
        $region119: #{forward.3} parent=11 // pred_region
          _
        $region120: #{forward.3} parent=11 // pred_fallthru
          _
        // Predicated region
        $region121: #{forward.3} parent=11 // pred_check
          %p1046 = pneg %p882
        $region122: #{forward.3} parent=11 // pred_check_branch
          %1048 = sbr.rel (%p1046) target = $region124
        $region123: #{forward.3} parent=11 // pred_region
          _
        $region124: #{forward.3} parent=11 // pred_fallthru
          _
        // Predicated region
        $region125: #{forward.3} parent=11 // pred_check
          %p1049 = pneg %p903
        $region126: #{forward.3} parent=11 // pred_check_branch
          %1051 = sbr.rel (%p1049) target = $region128
        $region127: #{forward.3} parent=11 // pred_region
          _
        $region128: #{forward.3} parent=11 // pred_fallthru
          _
        // Predicated region
        $region129: #{forward.3} parent=11 // pred_check
          %p1052 = pneg %p924
        $region130: #{forward.3} parent=11 // pred_check_branch
          %1054 = sbr.rel (%p1052) target = $region132
        $region131: #{forward.3} parent=11 // pred_region
          _
        $region132: #{forward.3} parent=11 // pred_fallthru
          _
      $region12: #{forward.3} parent=5 // pred_fallthru
        _
      %p1055 = scmp.lt.s32.totalorder %s86, 2
      // Predicated region
      $region133: #{forward.3} parent=5 // pred_check
        %p1056 = pneg %p1055
      $region134: #{forward.3} parent=5 // pred_check_branch
        %1058 = sbr.rel (%p1056) target = $region136
      $region135: #{forward.3} parent=5 // pred_region
        // Predicated region
        $region137: #{forward.3} parent=135 // pred_check
          %p1059 = pneg %p106
        $region138: #{forward.3} parent=135 // pred_check_branch
          %1061 = sbr.rel (%p1059) target = $region140
        $region139: #{forward.3} parent=135 // pred_region
          %p1062 = scmp.lt.s32.totalorder %s86, 1
          %s1063 = scalar_select %p1062, %s86, 1
          %s1064 = smul.addr %s1063, 8
          %s1065 = scalar_lea.vmem %s1, %s1064
        $region140: #{forward.3} parent=135 // pred_fallthru
          _
        // Predicated region
        $region141: #{forward.3} parent=135 // pred_check
          %p1066 = pneg %p132
        $region142: #{forward.3} parent=135 // pred_check_branch
          %1068 = sbr.rel (%p1066) target = $region144
        $region143: #{forward.3} parent=135 // pred_region
          %p1069 = scmp.lt.s32.totalorder %s86, 1
          %s1070 = scalar_select %p1069, %s86, 1
          %s1071 = smul.addr %s1070, 8
          %s1072 = scalar_lea.vmem %s3, %s1071
        $region144: #{forward.3} parent=135 // pred_fallthru
          _
        // Predicated region
        $region145: #{forward.3} parent=135 // pred_check
          %p1073 = pneg %p158
        $region146: #{forward.3} parent=135 // pred_check_branch
          %1075 = sbr.rel (%p1073) target = $region148
        $region147: #{forward.3} parent=135 // pred_region
          %p1076 = scmp.lt.s32.totalorder %s86, 1
          %s1077 = scalar_select %p1076, %s86, 1
          %s1078 = smul.addr %s1077, 8
          %s1079 = scalar_lea.vmem %s5, %s1078
        $region148: #{forward.3} parent=135 // pred_fallthru
          _
        // Predicated region
        $region149: #{forward.3} parent=135 // pred_check
          %p1080 = pneg %p184
        $region150: #{forward.3} parent=135 // pred_check_branch
          %1082 = sbr.rel (%p1080) target = $region152
        $region151: #{forward.3} parent=135 // pred_region
          %p1083 = scmp.lt.s32.totalorder %s86, 1
          %s1084 = scalar_select %p1083, %s86, 1
          %s1085 = scalar_lea.vmem %s7, %s1084
        $region152: #{forward.3} parent=135 // pred_fallthru
          _
        // Predicated region
        $region153: #{forward.3} parent=135 // pred_check
          %p1086 = pneg %p210
        $region154: #{forward.3} parent=135 // pred_check_branch
          %1088 = sbr.rel (%p1086) target = $region156
        $region155: #{forward.3} parent=135 // pred_region
          %p1089 = scmp.lt.s32.totalorder %s86, 1
          %s1090 = scalar_select %p1089, %s86, 1
          %s1091 = smul.addr %s1090, 2
          %s1092 = scalar_lea.vmem %s9, %s1091
        $region156: #{forward.3} parent=135 // pred_fallthru
          _
        // Predicated region
        $region157: #{forward.3} parent=135 // pred_check
          %p1093 = pneg %p236
        $region158: #{forward.3} parent=135 // pred_check_branch
          %1095 = sbr.rel (%p1093) target = $region160
        $region159: #{forward.3} parent=135 // pred_region
          %p1096 = scmp.lt.s32.totalorder %s86, 1
          %s1097 = scalar_select %p1096, %s86, 1
          %s1098 = smul.addr %s1097, 4
          %s1099 = scalar_lea.vmem %s11, %s1098
        $region160: #{forward.3} parent=135 // pred_fallthru
          _
        // Predicated region
        $region161: #{forward.3} parent=135 // pred_check
          %p1100 = pneg %p262
        $region162: #{forward.3} parent=135 // pred_check_branch
          %1102 = sbr.rel (%p1100) target = $region164
        $region163: #{forward.3} parent=135 // pred_region
          %p1103 = scmp.lt.s32.totalorder %s86, 1
          %s1104 = scalar_select %p1103, %s86, 1
          %s1105 = smul.addr %s1104, 4
          %s1106 = scalar_lea.vmem %s13, %s1105
        $region164: #{forward.3} parent=135 // pred_fallthru
          _
        // Predicated region
        $region165: #{forward.3} parent=135 // pred_check
          %p1107 = pneg %p288
        $region166: #{forward.3} parent=135 // pred_check_branch
          %1109 = sbr.rel (%p1107) target = $region168
        $region167: #{forward.3} parent=135 // pred_region
          %p1110 = scmp.lt.s32.totalorder %s86, 1
          %s1111 = scalar_select %p1110, %s86, 1
          %s1112 = smul.addr %s1111, 8
          %s1113 = scalar_lea.vmem %s15, %s1112
        $region168: #{forward.3} parent=135 // pred_fallthru
          _
      $region136: #{forward.3} parent=5 // pred_fallthru
        _
      %p1114 = scmp.le.s32.totalorder 1, %s86
      %p1115 = scmp.lt.s32.totalorder %s86, 3
      %p1116 = pnand %p1114, %p1115
      %p1117 = pneg %p1116
      // Predicated region
      $region169: #{forward.3} parent=5 // pred_check
        _
      $region170: #{forward.3} parent=5 // pred_check_branch
        %1119 = sbr.rel (%p1116) target = $region172
      $region171: #{forward.3} parent=5 // pred_region
        %s1120 = ssub.s32 %s86, 1
        %p1121 = scmp.lt.s32.totalorder %s91, 1
        %s1122 = scalar_select %p1121, %s91, 1
        %s1123 = smul.addr %s1122, 8
        %s1124 = scalar_lea.vmem %s1, %s1123
        %p1125 = pneg %p112
        %p1126 = pneg %p109
        %p1127 = scmp.lt.s32.totalorder %s91, 1
        %s1128 = scalar_select %p1127, %s91, 1
        %s1129 = smul.addr %s1128, 8
        %s1130 = scalar_lea.vmem %s3, %s1129
        %p1131 = pneg %p138
        %p1132 = pneg %p135
        %p1133 = scmp.lt.s32.totalorder %s91, 1
        %s1134 = scalar_select %p1133, %s91, 1
        %s1135 = smul.addr %s1134, 8
        %s1136 = scalar_lea.vmem %s5, %s1135
        %p1137 = pneg %p164
        %p1138 = pneg %p161
        %p1139 = scmp.lt.s32.totalorder %s91, 1
        %s1140 = scalar_select %p1139, %s91, 1
        %s1141 = scalar_lea.vmem %s7, %s1140
        %p1142 = pneg %p190
        %p1143 = pneg %p187
        %p1144 = scmp.lt.s32.totalorder %s91, 1
        %s1145 = scalar_select %p1144, %s91, 1
        %s1146 = smul.addr %s1145, 2
        %s1147 = scalar_lea.vmem %s9, %s1146
        %p1148 = pneg %p216
        %p1149 = pneg %p213
        %p1150 = scmp.lt.s32.totalorder %s91, 1
        %s1151 = scalar_select %p1150, %s91, 1
        %s1152 = smul.addr %s1151, 4
        %s1153 = scalar_lea.vmem %s11, %s1152
        %p1154 = pneg %p242
        %p1155 = pneg %p239
        %p1156 = scmp.lt.s32.totalorder %s91, 1
        %s1157 = scalar_select %p1156, %s91, 1
        %s1158 = smul.addr %s1157, 4
        %s1159 = scalar_lea.vmem %s13, %s1158
        %p1160 = pneg %p268
        %p1161 = pneg %p265
        %p1162 = scmp.lt.s32.totalorder %s91, 1
        %s1163 = scalar_select %p1162, %s91, 1
        %s1164 = smul.addr %s1163, 8
        %s1165 = scalar_lea.vmem %s15, %s1164
        %p1166 = pneg %p294
        %p1167 = pneg %p291
        %p1168 = pneg %p315
        %p1169 = pneg %p312
        %p1170 = pneg %p336
        %p1171 = pneg %p333
        %p1172 = pneg %p357
        %p1173 = pneg %p354
        %p1174 = pneg %p378
        %p1175 = pneg %p375
        %p1176 = pneg %p399
        %p1177 = pneg %p396
        %p1178 = pneg %p420
        %p1179 = pneg %p417
        %p1180 = pneg %p441
        %p1181 = pneg %p438
        %p1182 = pneg %p462
        %p1183 = pneg %p459
        %p1184 = pneg %p483
        %p1185 = pneg %p480
        %p1186 = pneg %p504
        %p1187 = pneg %p501
        %p1188 = pneg %p525
        %p1189 = pneg %p522
        %p1190 = pneg %p546
        %p1191 = pneg %p543
        %p1192 = pneg %p567
        %p1193 = pneg %p564
        %p1194 = pneg %p588
        %p1195 = pneg %p585
        %p1196 = pneg %p609
        %p1197 = pneg %p606
        %p1198 = pneg %p630
        %p1199 = pneg %p627
        %p1200 = pneg %p651
        %p1201 = pneg %p648
        %p1202 = pneg %p672
        %p1203 = pneg %p669
        %p1204 = pneg %p693
        %p1205 = pneg %p690
        %p1206 = pneg %p714
        %p1207 = pneg %p711
        %p1208 = pneg %p735
        %p1209 = pneg %p732
        %p1210 = pneg %p756
        %p1211 = pneg %p753
        %p1212 = pneg %p777
        %p1213 = pneg %p774
        %p1214 = pneg %p798
        %p1215 = pneg %p795
        %p1216 = pneg %p819
        %p1217 = pneg %p816
        %p1218 = pneg %p840
        %p1219 = pneg %p837
        %p1220 = pneg %p861
        %p1221 = pneg %p858
        %p1222 = pneg %p882
        %p1223 = pneg %p879
        %p1224 = pneg %p903
        %p1225 = pneg %p900
        %p1226 = pneg %p924
        %p1227 = pneg %p921
        %p1228 = pneg %p950
        %p1229 = pneg %p947
        %s1230 = sand.u32 %s937, 1
        %s1231 = scalar_lea.sflag [#allocation4], %s1230
        %s1232 = sand.u32 %s937, 1
        %s1233 = smul.addr %s1232, 8
        %s1234 = scalar_lea.vmem [#allocation3], %s1233
        %p1235 = scmp.lt.s32.totalorder %s91, 1
        %s1236 = scalar_select %p1235, %s91, 1
        %s1237 = smul.addr %s1236, 8
        %s1238 = scalar_lea.vmem %s1, %s1237
        %p1239 = scmp.lt.s32.totalorder %s91, 1
        %s1240 = scalar_select %p1239, %s91, 1
        %s1241 = smul.addr %s1240, 8
        %s1242 = scalar_lea.vmem %s3, %s1241
        %p1243 = scmp.lt.s32.totalorder %s91, 1
        %s1244 = scalar_select %p1243, %s91, 1
        %s1245 = smul.addr %s1244, 8
        %s1246 = scalar_lea.vmem %s5, %s1245
        %p1247 = scmp.lt.s32.totalorder %s91, 1
        %s1248 = scalar_select %p1247, %s91, 1
        %s1249 = scalar_lea.vmem %s7, %s1248
        %p1250 = scmp.lt.s32.totalorder %s91, 1
        %s1251 = scalar_select %p1250, %s91, 1
        %s1252 = smul.addr %s1251, 2
        %s1253 = scalar_lea.vmem %s9, %s1252
        %p1254 = scmp.lt.s32.totalorder %s91, 1
        %s1255 = scalar_select %p1254, %s91, 1
        %s1256 = smul.addr %s1255, 4
        %s1257 = scalar_lea.vmem %s11, %s1256
        %p1258 = scmp.lt.s32.totalorder %s91, 1
        %s1259 = scalar_select %p1258, %s91, 1
        %s1260 = smul.addr %s1259, 4
        %s1261 = scalar_lea.vmem %s13, %s1260
        %p1262 = scmp.lt.s32.totalorder %s91, 1
        %s1263 = scalar_select %p1262, %s91, 1
        %s1264 = smul.addr %s1263, 8
        %s1265 = scalar_lea.vmem %s15, %s1264
        %v1267 = vld [vmem:[%s1238] sm:$0xff]
        %v1268 = vld [vmem:[%s1242] sm:$0xff]
        %v1269 = vld [vmem:[%s1246] sm:$0xff]
        %v1270 = vld [vmem:[%s1249] sm:$0x1]
        %vm1271 = vcmask 7168
        %v1272 = vsel %vm1271, %v1269, 0.0
        %1273 = vadd.xlane.f32.xlu0 %v1272
        %v1274 = vpop.xlane.xlu0 %1273
        %v1275 = vrot.slane %v1274, 4
        %v1276 = vadd.f32 %v1274, %v1275
        %v1277 = vrot.slane %v1276, 2
        %v1278 = vadd.f32 %v1276, %v1277
        %v1279 = vrot.slane %v1278, 1
        %v1280 = vadd.f32 %v1278, %v1279
        %s1281 = vtos %v1280
        %v1282 = vstv %s1281
        %v1283 = vrcp.pop %v1282
        %v1284 = vld [vmem:[%s1257] sm:$0x7]
        %v1285 = vld [vmem:[%s1261] sm:$0x7]
        %v1286 = vpack.c.bf16 %v1284, %v1284
        %v1287 = vpack.c.bf16 %v1285, %v1285
        %vm1288 = vcmask 23552
        %v1290 = vsel %vm1288, %v1286, 0
        %v1293 = vsel %vm1288, %v1287, 0
        %1295 = vmatpush.bf16.xpose.msra.mxu0 0
        %1296 = vmatpush.bf16.xpose.msra.mxu0 0
        %1297 = vmatpush.bf16.xpose.msra.mxu0 0
        %1298 = vmatpush.bf16.xpose.msra.mxu0 0
        %1299 = vmatpush.bf16.xpose.msra.mxu0 0
        %1300 = vmatpush.bf16.xpose.msra.mxu0 0
        %1301 = vmatpush.bf16.xpose.msra.mxu0 0
        %1302 = vmatpush.bf16.xpose.msra.mxu0 %v1293
        %1303 = vmatmul.bf16.gmra.mxu0 %v1290
        %v1304 = vpop.f32.mrf.mxu0
        %v1305 = vadd.f32 0.0, %v1304
        %v1306 = vpop.f32.mrf.mxu0
        %1307 = vdwg.mxu0
        %v1308 = vpack.c.bf16 %v1267, %v1267
        %v1309 = vpack.c.bf16 %v1305, %v1305
        %v1311 = vsel %vm1288, %v1308, 0
        %vm1313 = vcmask 1040384
        %vm1314 = vcmask 1041408
        %v1315 = vsel %vm1313, 4294967295, 65535
        %v1316 = vsel %vm1314, %v1315, 0
        %v1318 = vand.u32 %v1309, %v1316
        %1320 = vmatpush.bf16.msra.mxu0 0
        %1321 = vmatpush.bf16.msra.mxu0 0
        %1322 = vmatpush.bf16.msra.mxu0 0
        %1323 = vmatpush.bf16.msra.mxu0 0
        %1324 = vmatpush.bf16.msra.mxu0 0
        %1325 = vmatpush.bf16.msra.mxu0 0
        %1326 = vmatpush.bf16.msra.mxu0 0
        %1327 = vmatpush.bf16.msra.mxu0 %v1318
        %1328 = vmatmul.bf16.gmra.mxu0 %v1311
        %v1329 = vpop.f32.mrf.mxu0
        %v1330 = vadd.f32 0.0, %v1329
        %v1331 = vpop.f32.mrf.mxu0
        %1332 = vdwg.mxu0
        %v1333 = vld [vmem:[%s17] sm:$0xff]
        %v1334 = vpack.c.bf16 %v1330, %v1330
        %v1335 = vpack.c.bf16 %v1333, %v1333
        %v1336 = vpack.c.bf16 %v1268, %v1268
        %v1338 = vshrl.u32 %v1335, 16
        %v1340 = vrot.slane %v1338, 1
        %v1341 = vshll.u32 %v1335, 16
        %v1343 = vrot.slane %v1341, 2
        %v1344 = vor.u32 %v1340, %v1343
        %vm1345 = vcmask 39936
        %v1347 = vsel %vm1345, %v1336, 0
        %vm1349 = vcmask 1042432
        %v1350 = vsel %vm1314, 4294967295, 65535
        %v1351 = vsel %vm1349, %v1350, 0
        %v1353 = vand.u32 %v1344, %v1351
        %1355 = vmatpush.bf16.msra.mxu0 0
        %1356 = vmatpush.bf16.msra.mxu0 0
        %1357 = vmatpush.bf16.msra.mxu0 0
        %1358 = vmatpush.bf16.msra.mxu0 0
        %1359 = vmatpush.bf16.msra.mxu0 0
        %1360 = vmatpush.bf16.msra.mxu0 0
        %1361 = vmatpush.bf16.msra.mxu0 0
        %1362 = vmatpush.bf16.msra.mxu0 %v1353
        %1363 = vmatmul.bf16.gmra.mxu0 %v1347
        %v1364 = vpop.f32.mrf.mxu0
        %v1365 = vadd.f32 0.0, %v1364
        %v1366 = vpop.f32.mrf.mxu0
        %1367 = vdwg.mxu0
        %v1369 = vsel %vm1288, %v1334, 0
        %v1371 = vand.u32 %v1335, %v1316
        %1373 = vmatpush.bf16.msra.mxu0 0
        %1374 = vmatpush.bf16.msra.mxu0 0
        %1375 = vmatpush.bf16.msra.mxu0 0
        %1376 = vmatpush.bf16.msra.mxu0 0
        %1377 = vmatpush.bf16.msra.mxu0 0
        %1378 = vmatpush.bf16.msra.mxu0 0
        %1379 = vmatpush.bf16.msra.mxu0 0
        %1380 = vmatpush.bf16.msra.mxu0 %v1371
        %1381 = vmatmul.bf16.gmra.mxu0 %v1369
        %v1382 = vpop.f32.mrf.mxu0
        %v1383 = vadd.f32 %v1365, %v1382
        %v1384 = vpop.f32.mrf.mxu0
        %1385 = vdwg.mxu0
        %v1386 = vld [vmem:[%s19] sm:$0x1]
        %v1388 = vperm.slane %v1386, 0
        %v1390 = vadd.f32 %v1383, %v1388
        %1392 = vset.pattern.permute.xlu0 0
        %1393 = vperm.xlu0 %1392, %v1269
        %v1394 = vpop.permute.xlu0 %1393
        %v1396 = vmul.f32 %v1390, %v1394
        %vm1397 = vcmask 130048
        %1398 = vst.msk [vmem:[#allocation2] sm:$0xff] %vm1397, %v1396
        %v1399 = vld [vmem:[%s1265] sm:$0xff]
        %v1400 = vmul.f32 %v1399, %v1394
        %1402 = vrot.lane.b32.xlu0 %v1400, 16
        %v1403 = vpop.permute.xlu0 %1402
        %vm1405 = vcmask 261248
        %1406 = vst.msk [vmem:[#allocation2] sm:$0xff] %vm1405, %v1403
        %v1407 = vld [vmem:[#allocation2] sm:$0xff]
        %v1408 = vld [vmem:[%s1253] sm:$0x3]
        %v1409 = vld [vmem:[%s21] sm:$0xf]
        %v1410 = vld [vmem:[%s21 + $0x4] sm:$0xf]
        %v1411 = vld [vmem:[%s21 + $0x8] sm:$0xf]
        %v1412 = vld [vmem:[%s21 + $0xc] sm:$0xf]
        %v1413 = vld [vmem:[%s21 + $0x10] sm:$0xf]
        %v1414 = vld [vmem:[%s21 + $0x14] sm:$0xf]
        %v1415 = vld [vmem:[%s21 + $0x18] sm:$0xf]
        %v1416 = vld [vmem:[%s21 + $0x1c] sm:$0xf]
        %v1417 = vld [vmem:[%s21 + $0x20] sm:$0xf]
        %v1418 = vld [vmem:[%s21 + $0x24] sm:$0xf]
        %v1419 = vld [vmem:[%s21 + $0x28] sm:$0xf]
        %v1420 = vld [vmem:[%s21 + $0x2c] sm:$0xf]
        %v1421 = vld [vmem:[%s21 + $0x30] sm:$0xf]
        %v1422 = vld [vmem:[%s21 + $0x34] sm:$0xf]
        %v1423 = vld [vmem:[%s21 + $0x38] sm:$0xf]
        %v1424 = vld [vmem:[%s21 + $0x3c] sm:$0xf]
        %v1425 = vld [vmem:[%s21 + $0x40] sm:$0xf]
        %v1426 = vld [vmem:[%s21 + $0x44] sm:$0xf]
        %v1427 = vld [vmem:[%s21 + $0x48] sm:$0xf]
        %v1428 = vld [vmem:[%s21 + $0x4c] sm:$0xf]
        %v1429 = vld [vmem:[%s21 + $0x50] sm:$0xf]
        %v1430 = vld [vmem:[%s21 + $0x54] sm:$0xf]
        %v1431 = vld [vmem:[%s21 + $0x58] sm:$0xf]
        %v1432 = vld [vmem:[%s21 + $0x5c] sm:$0xf]
        %v1433 = vld [vmem:[%s21 + $0x60] sm:$0xf]
        %v1434 = vld [vmem:[%s21 + $0x64] sm:$0xf]
        %v1435 = vld [vmem:[%s21 + $0x68] sm:$0xf]
        %v1436 = vld [vmem:[%s21 + $0x6c] sm:$0xf]
        %v1437 = vld [vmem:[%s21 + $0x70] sm:$0xf]
        %v1438 = vld [vmem:[%s21 + $0x74] sm:$0xf]
        %v1439 = vld [vmem:[%s21 + $0x78] sm:$0xf]
        %v1440 = vld [vmem:[%s21 + $0x7c] sm:$0xf]
        %v1442 = vperm.slane %v1408, 0
        %v1443 = vperm.slane %v1408, 1
        %v1446 = vpack.c.bf16 %v1442, %v1442
        %v1447 = vpack.c.bf16 %v1443, %v1443
        %v1448 = vld [vmem:[%s23] sm:$0x1]
        %v1481 = vunpack.c.l.b16 %v1409
        %v1482 = vunpack.c.l.b16 %v1410
        %v1483 = vunpack.c.l.b16 %v1411
        %v1484 = vunpack.c.l.b16 %v1412
        %v1485 = vunpack.c.l.b16 %v1413
        %v1486 = vunpack.c.l.b16 %v1414
        %v1487 = vunpack.c.l.b16 %v1415
        %v1488 = vunpack.c.l.b16 %v1416
        %v1489 = vunpack.c.l.b16 %v1417
        %v1490 = vunpack.c.l.b16 %v1418
        %v1491 = vunpack.c.l.b16 %v1419
        %v1492 = vunpack.c.l.b16 %v1420
        %v1493 = vunpack.c.l.b16 %v1421
        %v1494 = vunpack.c.l.b16 %v1422
        %v1495 = vunpack.c.l.b16 %v1423
        %v1496 = vunpack.c.l.b16 %v1424
        %v1497 = vunpack.c.l.b16 %v1425
        %v1498 = vunpack.c.l.b16 %v1426
        %v1499 = vunpack.c.l.b16 %v1427
        %v1500 = vunpack.c.l.b16 %v1428
        %v1501 = vunpack.c.l.b16 %v1429
        %v1502 = vunpack.c.l.b16 %v1430
        %v1503 = vunpack.c.l.b16 %v1431
        %v1504 = vunpack.c.l.b16 %v1432
        %v1505 = vunpack.c.l.b16 %v1433
        %v1506 = vunpack.c.l.b16 %v1434
        %v1507 = vunpack.c.l.b16 %v1435
        %v1508 = vunpack.c.l.b16 %v1436
        %v1509 = vunpack.c.l.b16 %v1437
        %v1510 = vunpack.c.l.b16 %v1438
        %v1511 = vunpack.c.l.b16 %v1439
        %v1512 = vunpack.c.l.b16 %v1440
        %v1513 = vpack.c.b16 %v1482, %v1481
        %v1514 = vpack.c.b16 %v1484, %v1483
        %v1515 = vpack.c.b16 %v1486, %v1485
        %v1516 = vpack.c.b16 %v1488, %v1487
        %v1517 = vpack.c.b16 %v1490, %v1489
        %v1518 = vpack.c.b16 %v1492, %v1491
        %v1519 = vpack.c.b16 %v1494, %v1493
        %v1520 = vpack.c.b16 %v1496, %v1495
        %v1521 = vpack.c.b16 %v1498, %v1497
        %v1522 = vpack.c.b16 %v1500, %v1499
        %v1523 = vpack.c.b16 %v1502, %v1501
        %v1524 = vpack.c.b16 %v1504, %v1503
        %v1525 = vpack.c.b16 %v1506, %v1505
        %v1526 = vpack.c.b16 %v1508, %v1507
        %v1527 = vpack.c.b16 %v1510, %v1509
        %v1528 = vpack.c.b16 %v1512, %v1511
        %1545 = vmatpush.bf16.msra.mxu0 %v1520
        %1546 = vmatpush.bf16.msra.mxu0 %v1519
        %1547 = vmatpush.bf16.msra.mxu0 %v1518
        %1548 = vmatpush.bf16.msra.mxu0 %v1517
        %1549 = vmatpush.bf16.msra.mxu0 %v1516
        %1550 = vmatpush.bf16.msra.mxu0 %v1515
        %1551 = vmatpush.bf16.msra.mxu0 %v1514
        %1552 = vmatpush.bf16.msra.mxu0 %v1513
        %1553 = vmatmul.bf16.gmra.mxu0 %v1446
        %v1554 = vpop.f32.mrf.mxu0
        %v1555 = vadd.f32 %v1448, %v1554
        %v1556 = vpop.f32.mrf.mxu0
        %1557 = vdwg.mxu0
        %1558 = vmatpush.bf16.msra.mxu0 %v1528
        %1559 = vmatpush.bf16.msra.mxu0 %v1527
        %1560 = vmatpush.bf16.msra.mxu0 %v1526
        %1561 = vmatpush.bf16.msra.mxu0 %v1525
        %1562 = vmatpush.bf16.msra.mxu0 %v1524
        %1563 = vmatpush.bf16.msra.mxu0 %v1523
        %1564 = vmatpush.bf16.msra.mxu0 %v1522
        %1565 = vmatpush.bf16.msra.mxu0 %v1521
        %1566 = vmatmul.bf16.gmra.mxu0 %v1447
        %v1567 = vpop.f32.mrf.mxu0
        %v1568 = vadd.f32 %v1555, %v1567
        %v1569 = vpop.f32.mrf.mxu0
        %1570 = vdwg.mxu0
        %v1571 = vxor.u32 %v1568, 2147483648
        %v1572 = vmul.f32 %v1571, 1.442695
        %v1573 = vpow.pop %v1572
        %v1574 = vadd.f32 %v1573, 1.0
        %v1575 = vrcp.pop %v1574
        %v1576 = vmul.f32 %v1574, %v1575
        %v1577 = vsub.f32 1.0, %v1576
        %v1578 = vmul.f32 %v1575, %v1577
        %v1579 = vadd.f32 %v1575, %v1578
        %vm1580 = vweird.f32 %v1574
        %vm1581 = vweird.f32 %v1575
        %vm1582 = vmor %vm1580, %vm1581
        %v1583 = vsel %vm1582, %v1575, %v1579
        %v1584 = vand.u32 2147483647, %v1574
        %vm1585 = vcmp.eq.f32.partialorder %v1584, 8.507059e+37
        %v1586 = vand.u32 %v1574, 2147483648
        %v1587 = vor.u32 1.1754944e-38, %v1586
        %v1588 = vsel %vm1585, %v1587, %v1583
        %v1589 = vmul.f32 1.0, %v1588
        %v1590 = vmul.f32 %v1568, %v1589
        %v1591 = vld [vmem:[%s25] sm:$0xf]
        %v1592 = vld [vmem:[%s25 + $0x4] sm:$0xf]
        %v1593 = vld [vmem:[%s25 + $0x8] sm:$0xf]
        %v1594 = vld [vmem:[%s25 + $0xc] sm:$0xf]
        %v1595 = vpack.c.bf16 %v1590, %v1590
        %v1596 = vld [vmem:[%s27] sm:$0x1]
        %v1601 = vunpack.c.l.b16 %v1591
        %v1602 = vunpack.c.l.b16 %v1592
        %v1603 = vunpack.c.l.b16 %v1593
        %v1604 = vunpack.c.l.b16 %v1594
        %v1605 = vpack.c.b16 %v1602, %v1601
        %v1606 = vpack.c.b16 %v1604, %v1603
        %vm1609 = vcmask 261120
        %v1611 = vsel %vm1609, %v1595, 0
        %1613 = vmatpush.bf16.msra.mxu0 0
        %1614 = vmatpush.bf16.msra.mxu0 0
        %1615 = vmatpush.bf16.msra.mxu0 0
        %1616 = vmatpush.bf16.msra.mxu0 0
        %1617 = vmatpush.bf16.msra.mxu0 0
        %1618 = vmatpush.bf16.msra.mxu0 0
        %1619 = vmatpush.bf16.msra.mxu0 %v1606
        %1620 = vmatpush.bf16.msra.mxu0 %v1605
        %1621 = vmatmul.bf16.gmra.mxu0 %v1611
        %v1622 = vpop.f32.mrf.mxu0
        %v1623 = vadd.f32 %v1596, %v1622
        %v1624 = vpop.f32.mrf.mxu0
        %1625 = vdwg.mxu0
        %v1626 = vxor.u32 %v1623, 2147483648
        %v1627 = vmul.f32 %v1626, 1.442695
        %v1628 = vpow.pop %v1627
        %v1629 = vadd.f32 %v1628, 1.0
        %v1630 = vrcp.pop %v1629
        %v1631 = vmul.f32 %v1629, %v1630
        %v1632 = vsub.f32 1.0, %v1631
        %v1633 = vmul.f32 %v1630, %v1632
        %v1634 = vadd.f32 %v1630, %v1633
        %vm1635 = vweird.f32 %v1629
        %vm1636 = vweird.f32 %v1630
        %vm1637 = vmor %vm1635, %vm1636
        %v1638 = vsel %vm1637, %v1630, %v1634
        %v1639 = vand.u32 2147483647, %v1629
        %vm1640 = vcmp.eq.f32.partialorder %v1639, 8.507059e+37
        %v1641 = vand.u32 %v1629, 2147483648
        %v1642 = vor.u32 1.1754944e-38, %v1641
        %v1643 = vsel %vm1640, %v1642, %v1638
        %v1644 = vmul.f32 1.0, %v1643
        %v1645 = vmul.f32 %v1623, %v1644
        %v1646 = vsub.f32 1.0, %v1270
        %v1647 = vmul.f32 %v1646, -1e+09
        %v1648 = vld [vmem:[%s29] sm:$0xff]
        %v1649 = vld [vmem:[%s29 + $0x8] sm:$0xff]
        %v1650 = vld [vmem:[%s29 + $0x10] sm:$0xff]
        %v1651 = vld [vmem:[%s29 + $0x18] sm:$0xff]
        %v1652 = vpack.c.bf16 %v1645, %v1645
        %v1653 = vld [vmem:[%s31] sm:$0x3]
        %v1658 = vunpack.c.l.b16 %v1648
        %v1659 = vunpack.c.h.b16 %v1648
        %v1660 = vunpack.c.l.b16 %v1649
        %v1661 = vunpack.c.h.b16 %v1649
        %v1662 = vunpack.c.l.b16 %v1650
        %v1663 = vunpack.c.h.b16 %v1650
        %v1664 = vunpack.c.l.b16 %v1651
        %v1665 = vunpack.c.h.b16 %v1651
        %v1666 = vpack.c.b16 %v1660, %v1658
        %v1667 = vpack.c.b16 %v1661, %v1659
        %v1668 = vpack.c.b16 %v1664, %v1662
        %v1669 = vpack.c.b16 %v1665, %v1663
        %v1675 = vperm.slane %v1653, 0
        %v1676 = vperm.slane %v1653, 1
        %v1680 = vsel %vm1609, %v1652, 0
        %1682 = vmatpush.bf16.msra.mxu0 0
        %1683 = vmatpush.bf16.msra.mxu0 0
        %1684 = vmatpush.bf16.msra.mxu0 0
        %1685 = vmatpush.bf16.msra.mxu0 0
        %1686 = vmatpush.bf16.msra.mxu0 0
        %1687 = vmatpush.bf16.msra.mxu0 0
        %1688 = vmatpush.bf16.msra.mxu0 %v1668
        %1689 = vmatpush.bf16.msra.mxu0 %v1666
        %1690 = vmatmul.bf16.gmra.mxu0 %v1680
        %v1691 = vpop.f32.mrf.mxu0
        %v1692 = vadd.f32 %v1675, %v1691
        %v1693 = vpop.f32.mrf.mxu0
        %1694 = vdwg.mxu0
        %1695 = vmatpush.bf16.msra.mxu0 0
        %1696 = vmatpush.bf16.msra.mxu0 0
        %1697 = vmatpush.bf16.msra.mxu0 0
        %1698 = vmatpush.bf16.msra.mxu0 0
        %1699 = vmatpush.bf16.msra.mxu0 0
        %1700 = vmatpush.bf16.msra.mxu0 0
        %1701 = vmatpush.bf16.msra.mxu0 %v1669
        %1702 = vmatpush.bf16.msra.mxu0 %v1667
        %1703 = vmatmul.bf16.gmra.mxu0 %v1680
        %v1704 = vpop.f32.mrf.mxu0
        %v1705 = vadd.f32 %v1676, %v1704
        %v1706 = vpop.f32.mrf.mxu0
        %1707 = vdwg.mxu0
        %v1708 = vsel %vm1609, %v1407, 0.0
        %1709 = vadd.xlane.f32.xlu0 %v1708
        %v1710 = vpop.xlane.xlu0 %1709
        %v1711 = vrcp.pop 32.0
        %v1712 = vmul.f32 32.0, %v1711
        %v1713 = vsub.f32 1.0, %v1712
        %v1714 = vmul.f32 %v1711, %v1713
        %v1715 = vadd.f32 %v1711, %v1714
        %vm1716 = vweird.f32 %v1711
        %v1717 = vsel %vm1716, %v1711, %v1715
        %v1718 = vmul.f32 %v1710, %v1717
        %v1719 = vsub.f32 %v1407, %v1718
        %v1720 = vmul.f32 %v1719, %v1719
        %v1721 = vsel %vm1609, %v1720, 0.0
        %1722 = vadd.xlane.f32.xlu0 %v1721
        %v1723 = vpop.xlane.xlu0 %1722
        %v1724 = vmul.f32 %v1723, %v1717
        %v1725 = vadd.f32 %v1724, 1e-06
        %v1726 = vrsqrt.pop %v1725
        %v1727 = vmul.f32 %v1726, %v1725
        %v1728 = vmul.f32 %v1727, %v1726
        %v1729 = vmul.f32 0.5, %v1728
        %v1730 = vsub.f32 1.5, %v1729
        %v1731 = vmul.f32 %v1726, %v1730
        %vm1732 = vweird.f32 %v1725
        %vm1733 = vweird.f32 %v1726
        %vm1734 = vmor %vm1732, %vm1733
        %v1735 = vsel %vm1734, %v1726, %v1731
        %v1736 = vmul.f32 %v1719, %v1735
        %v1737 = vadd.f32 %v1692, 1.0
        %v1738 = vperm.slane %v1737, 0
        %1740 = vrot.lane.b32.xlu0 %v1738, 96
        %v1741 = vpop.permute.xlu0 %1740
        %v1743 = vmul.f32 %v1736, %v1741
        %v1744 = vperm.slane %v1692, 0
        %v1745 = vadd.f32 %v1743, %v1744
        %v1746 = vld [vmem:[%s33] sm:$0xf]
        %v1747 = vld [vmem:[%s33 + $0x4] sm:$0xf]
        %v1748 = vld [vmem:[%s33 + $0x8] sm:$0xf]
        %v1749 = vld [vmem:[%s33 + $0xc] sm:$0xf]
        %v1750 = vpack.c.bf16 %v1745, %v1745
        %v1751 = vld [vmem:[%s35] sm:$0x1]
        %v1753 = vperm.slane %v1751, 0
        %v1759 = vunpack.c.l.b16 %v1746
        %v1760 = vunpack.c.l.b16 %v1747
        %v1761 = vunpack.c.l.b16 %v1748
        %v1762 = vunpack.c.l.b16 %v1749
        %v1763 = vpack.c.b16 %v1760, %v1759
        %v1764 = vpack.c.b16 %v1762, %v1761
        %v1768 = vsel %vm1609, %v1750, 0
        %1770 = vmatpush.bf16.msra.mxu0 0
        %1771 = vmatpush.bf16.msra.mxu0 0
        %1772 = vmatpush.bf16.msra.mxu0 0
        %1773 = vmatpush.bf16.msra.mxu0 0
        %1774 = vmatpush.bf16.msra.mxu0 0
        %1775 = vmatpush.bf16.msra.mxu0 0
        %1776 = vmatpush.bf16.msra.mxu0 %v1764
        %1777 = vmatpush.bf16.msra.mxu0 %v1763
        %1778 = vmatmul.bf16.gmra.mxu0 %v1768
        %v1779 = vpop.f32.mrf.mxu0
        %v1780 = vadd.f32 %v1753, %v1779
        %v1781 = vpop.f32.mrf.mxu0
        %1782 = vdwg.mxu0
        %v1783 = vld [vmem:[%s37] sm:$0xff]
        %v1784 = vld [vmem:[%s37 + $0x8] sm:$0xff]
        %v1785 = vld [vmem:[%s37 + $0x10] sm:$0xff]
        %v1786 = vld [vmem:[%s37 + $0x18] sm:$0xff]
        %v1787 = vpack.c.bf16 %v1780, %v1780
        %1789 = vrot.lane.b32.xlu0 %v1787, 96
        %v1790 = vpop.permute.xlu0 %1789
        %vm1791 = vcmask 64512
        %v1793 = vsel %vm1791, %v1787, 0
        %v1796 = vsel %vm1791, %v1790, 0
        %1798 = vmatpush.bf16.xpose.msra.mxu0 0
        %1799 = vmatpush.bf16.xpose.msra.mxu0 0
        %1800 = vmatpush.bf16.xpose.msra.mxu0 0
        %1801 = vmatpush.bf16.xpose.msra.mxu0 0
        %1802 = vmatpush.bf16.xpose.msra.mxu0 0
        %1803 = vmatpush.bf16.xpose.msra.mxu0 0
        %1804 = vmatpush.bf16.xpose.msra.mxu0 0
        %1805 = vmatpush.bf16.xpose.msra.mxu0 %v1796
        %1806 = vmatmul.bf16.gmra.mxu0 %v1793
        %v1807 = vpop.f32.mrf.mxu0
        %v1808 = vadd.f32 0.0, %v1807
        %v1809 = vpop.f32.mrf.mxu0
        %1810 = vdwg.mxu0
        %v1811 = vmul.f32 %v1808, 0.35355338
        %v1813 = vperm.slane %v1647, 0
        %v1815 = vadd.f32 %v1811, %v1813
        %v1816 = vsel %vm1791, %v1815, -inf
        %1817 = vmax.xlane.f32.xlu0 %v1816
        %v1818 = vpop.xlane.xlu0 %1817
        %v1819 = vsub.f32 %v1815, %v1818
        %v1820 = vmul.f32 %v1819, 1.442695
        %v1821 = vpow.pop %v1820
        %v1822 = vsel %vm1791, %v1821, 0.0
        %1823 = vadd.xlane.f32.xlu0 %v1822
        %v1824 = vpop.xlane.xlu0 %1823
        %v1825 = vrcp.pop %v1824
        %v1826 = vmul.f32 %v1821, %v1825
        %v1827 = vpack.c.bf16 %v1826, %v1826
        %1828 = vrot.lane.b32.xlu0 %v1787, 64
        %v1829 = vpop.permute.xlu0 %1828
        %v1831 = vsel %vm1791, %v1827, 0
        %vm1833 = vcmask 1043456
        %v1835 = vsel %vm1833, %v1829, 0
        %1837 = vmatpush.bf16.msra.mxu0 0
        %1838 = vmatpush.bf16.msra.mxu0 0
        %1839 = vmatpush.bf16.msra.mxu0 0
        %1840 = vmatpush.bf16.msra.mxu0 0
        %1841 = vmatpush.bf16.msra.mxu0 0
        %1842 = vmatpush.bf16.msra.mxu0 0
        %1843 = vmatpush.bf16.msra.mxu0 0
        %1844 = vmatpush.bf16.msra.mxu0 %v1835
        %1845 = vmatmul.bf16.gmra.mxu0 %v1831
        %v1846 = vpop.f32.mrf.mxu0
        %v1847 = vadd.f32 0.0, %v1846
        %v1848 = vpop.f32.mrf.mxu0
        %1849 = vdwg.mxu0
        %v1850 = vpack.c.bf16 %v1847, %v1847
        %v1851 = vpack.c.bf16 %v1783, %v1783
        %1852 = vrot.lane.b32.xlu0 %v1787, 120
        %v1853 = vpop.permute.xlu0 %1852
        %1854 = vrot.lane.b32.xlu0 %v1787, 88
        %v1855 = vpop.permute.xlu0 %1854
        %v1857 = vsel %vm1791, %v1853, 0
        %v1860 = vsel %vm1791, %v1855, 0
        %1862 = vmatpush.bf16.xpose.msra.mxu0 0
        %1863 = vmatpush.bf16.xpose.msra.mxu0 0
        %1864 = vmatpush.bf16.xpose.msra.mxu0 0
        %1865 = vmatpush.bf16.xpose.msra.mxu0 0
        %1866 = vmatpush.bf16.xpose.msra.mxu0 0
        %1867 = vmatpush.bf16.xpose.msra.mxu0 0
        %1868 = vmatpush.bf16.xpose.msra.mxu0 0
        %1869 = vmatpush.bf16.xpose.msra.mxu0 %v1860
        %1870 = vmatmul.bf16.gmra.mxu0 %v1857
        %v1871 = vpop.f32.mrf.mxu0
        %v1872 = vadd.f32 0.0, %v1871
        %v1873 = vpop.f32.mrf.mxu0
        %1874 = vdwg.mxu0
        %v1875 = vmul.f32 %v1872, 0.35355338
        %v1876 = vadd.f32 %v1875, %v1813
        %v1877 = vsel %vm1791, %v1876, -inf
        %1878 = vmax.xlane.f32.xlu0 %v1877
        %v1879 = vpop.xlane.xlu0 %1878
        %v1880 = vsub.f32 %v1876, %v1879
        %v1881 = vmul.f32 %v1880, 1.442695
        %v1882 = vpow.pop %v1881
        %v1883 = vsel %vm1791, %v1882, 0.0
        %1884 = vadd.xlane.f32.xlu0 %v1883
        %v1885 = vpop.xlane.xlu0 %1884
        %v1886 = vrcp.pop %v1885
        %v1887 = vmul.f32 %v1882, %v1886
        %v1888 = vpack.c.bf16 %v1887, %v1887
        %1889 = vrot.lane.b32.xlu0 %v1787, 56
        %v1890 = vpop.permute.xlu0 %1889
        %v1892 = vsel %vm1791, %v1888, 0
        %v1895 = vsel %vm1833, %v1890, 0
        %1897 = vmatpush.bf16.msra.mxu0 0
        %1898 = vmatpush.bf16.msra.mxu0 0
        %1899 = vmatpush.bf16.msra.mxu0 0
        %1900 = vmatpush.bf16.msra.mxu0 0
        %1901 = vmatpush.bf16.msra.mxu0 0
        %1902 = vmatpush.bf16.msra.mxu0 0
        %1903 = vmatpush.bf16.msra.mxu0 0
        %1904 = vmatpush.bf16.msra.mxu0 %v1895
        %1905 = vmatmul.bf16.gmra.mxu0 %v1892
        %v1906 = vpop.f32.mrf.mxu0
        %v1907 = vadd.f32 0.0, %v1906
        %v1908 = vpop.f32.mrf.mxu0
        %1909 = vdwg.mxu0
        %v1910 = vpack.c.bf16 %v1907, %v1907
        %v1911 = vpack.c.bf16 %v1784, %v1784
        %v1913 = vsel %vm1791, %v1910, 0
        %v1916 = vsel %vm1833, %v1911, 0
        %1918 = vmatpush.bf16.msra.mxu0 0
        %1919 = vmatpush.bf16.msra.mxu0 0
        %1920 = vmatpush.bf16.msra.mxu0 0
        %1921 = vmatpush.bf16.msra.mxu0 0
        %1922 = vmatpush.bf16.msra.mxu0 0
        %1923 = vmatpush.bf16.msra.mxu0 0
        %1924 = vmatpush.bf16.msra.mxu0 0
        %1925 = vmatpush.bf16.msra.mxu0 %v1916
        %1926 = vmatmul.bf16.gmra.mxu0 %v1913
        %v1927 = vpop.f32.mrf.mxu0
        %v1928 = vadd.f32 0.0, %v1927
        %v1929 = vpop.f32.mrf.mxu0
        %1930 = vdwg.mxu0
        %v1932 = vsel %vm1791, %v1850, 0
        %v1935 = vsel %vm1833, %v1851, 0
        %1937 = vmatpush.bf16.msra.mxu0 0
        %1938 = vmatpush.bf16.msra.mxu0 0
        %1939 = vmatpush.bf16.msra.mxu0 0
        %1940 = vmatpush.bf16.msra.mxu0 0
        %1941 = vmatpush.bf16.msra.mxu0 0
        %1942 = vmatpush.bf16.msra.mxu0 0
        %1943 = vmatpush.bf16.msra.mxu0 0
        %1944 = vmatpush.bf16.msra.mxu0 %v1935
        %1945 = vmatmul.bf16.gmra.mxu0 %v1932
        %v1946 = vpop.f32.mrf.mxu0
        %v1947 = vadd.f32 %v1928, %v1946
        %v1948 = vpop.f32.mrf.mxu0
        %1949 = vdwg.mxu0
        %1950 = vrot.lane.b32.xlu0 %v1787, 112
        %v1951 = vpop.permute.xlu0 %1950
        %1952 = vrot.lane.b32.xlu0 %v1787, 80
        %v1953 = vpop.permute.xlu0 %1952
        %v1955 = vsel %vm1791, %v1951, 0
        %v1958 = vsel %vm1791, %v1953, 0
        %1960 = vmatpush.bf16.xpose.msra.mxu0 0
        %1961 = vmatpush.bf16.xpose.msra.mxu0 0
        %1962 = vmatpush.bf16.xpose.msra.mxu0 0
        %1963 = vmatpush.bf16.xpose.msra.mxu0 0
        %1964 = vmatpush.bf16.xpose.msra.mxu0 0
        %1965 = vmatpush.bf16.xpose.msra.mxu0 0
        %1966 = vmatpush.bf16.xpose.msra.mxu0 0
        %1967 = vmatpush.bf16.xpose.msra.mxu0 %v1958
        %1968 = vmatmul.bf16.gmra.mxu0 %v1955
        %v1969 = vpop.f32.mrf.mxu0
        %v1970 = vadd.f32 0.0, %v1969
        %v1971 = vpop.f32.mrf.mxu0
        %1972 = vdwg.mxu0
        %v1973 = vmul.f32 %v1970, 0.35355338
        %v1974 = vadd.f32 %v1973, %v1813
        %v1975 = vsel %vm1791, %v1974, -inf
        %1976 = vmax.xlane.f32.xlu0 %v1975
        %v1977 = vpop.xlane.xlu0 %1976
        %v1978 = vsub.f32 %v1974, %v1977
        %v1979 = vmul.f32 %v1978, 1.442695
        %v1980 = vpow.pop %v1979
        %v1981 = vsel %vm1791, %v1980, 0.0
        %1982 = vadd.xlane.f32.xlu0 %v1981
        %v1983 = vpop.xlane.xlu0 %1982
        %v1984 = vrcp.pop %v1983
        %v1985 = vmul.f32 %v1980, %v1984
        %v1986 = vpack.c.bf16 %v1985, %v1985
        %1987 = vrot.lane.b32.xlu0 %v1787, 48
        %v1988 = vpop.permute.xlu0 %1987
        %v1990 = vsel %vm1791, %v1986, 0
        %v1993 = vsel %vm1833, %v1988, 0
        %1995 = vmatpush.bf16.msra.mxu0 0
        %1996 = vmatpush.bf16.msra.mxu0 0
        %1997 = vmatpush.bf16.msra.mxu0 0
        %1998 = vmatpush.bf16.msra.mxu0 0
        %1999 = vmatpush.bf16.msra.mxu0 0
        %2000 = vmatpush.bf16.msra.mxu0 0
        %2001 = vmatpush.bf16.msra.mxu0 0
        %2002 = vmatpush.bf16.msra.mxu0 %v1993
        %2003 = vmatmul.bf16.gmra.mxu0 %v1990
        %v2004 = vpop.f32.mrf.mxu0
        %v2005 = vadd.f32 0.0, %v2004
        %v2006 = vpop.f32.mrf.mxu0
        %2007 = vdwg.mxu0
        %v2008 = vpack.c.bf16 %v2005, %v2005
        %v2009 = vpack.c.bf16 %v1785, %v1785
        %v2011 = vsel %vm1791, %v2008, 0
        %v2014 = vsel %vm1833, %v2009, 0
        %2016 = vmatpush.bf16.msra.mxu0 0
        %2017 = vmatpush.bf16.msra.mxu0 0
        %2018 = vmatpush.bf16.msra.mxu0 0
        %2019 = vmatpush.bf16.msra.mxu0 0
        %2020 = vmatpush.bf16.msra.mxu0 0
        %2021 = vmatpush.bf16.msra.mxu0 0
        %2022 = vmatpush.bf16.msra.mxu0 0
        %2023 = vmatpush.bf16.msra.mxu0 %v2014
        %2024 = vmatmul.bf16.gmra.mxu0 %v2011
        %v2025 = vpop.f32.mrf.mxu0
        %v2026 = vadd.f32 0.0, %v2025
        %v2027 = vpop.f32.mrf.mxu0
        %2028 = vdwg.mxu0
        %v2029 = vadd.f32 %v1947, %v2026
        %2030 = vrot.lane.b32.xlu0 %v1787, 104
        %v2031 = vpop.permute.xlu0 %2030
        %2032 = vrot.lane.b32.xlu0 %v1787, 72
        %v2033 = vpop.permute.xlu0 %2032
        %v2035 = vsel %vm1791, %v2031, 0
        %v2038 = vsel %vm1791, %v2033, 0
        %2040 = vmatpush.bf16.xpose.msra.mxu0 0
        %2041 = vmatpush.bf16.xpose.msra.mxu0 0
        %2042 = vmatpush.bf16.xpose.msra.mxu0 0
        %2043 = vmatpush.bf16.xpose.msra.mxu0 0
        %2044 = vmatpush.bf16.xpose.msra.mxu0 0
        %2045 = vmatpush.bf16.xpose.msra.mxu0 0
        %2046 = vmatpush.bf16.xpose.msra.mxu0 0
        %2047 = vmatpush.bf16.xpose.msra.mxu0 %v2038
        %2048 = vmatmul.bf16.gmra.mxu0 %v2035
        %v2049 = vpop.f32.mrf.mxu0
        %v2050 = vadd.f32 0.0, %v2049
        %v2051 = vpop.f32.mrf.mxu0
        %2052 = vdwg.mxu0
        %v2053 = vmul.f32 %v2050, 0.35355338
        %v2054 = vadd.f32 %v2053, %v1813
        %v2055 = vsel %vm1791, %v2054, -inf
        %2056 = vmax.xlane.f32.xlu0 %v2055
        %v2057 = vpop.xlane.xlu0 %2056
        %v2058 = vsub.f32 %v2054, %v2057
        %v2059 = vmul.f32 %v2058, 1.442695
        %v2060 = vpow.pop %v2059
        %v2061 = vsel %vm1791, %v2060, 0.0
        %2062 = vadd.xlane.f32.xlu0 %v2061
        %v2063 = vpop.xlane.xlu0 %2062
        %v2064 = vrcp.pop %v2063
        %v2065 = vmul.f32 %v2060, %v2064
        %v2066 = vpack.c.bf16 %v2065, %v2065
        %2067 = vrot.lane.b32.xlu0 %v1787, 40
        %v2068 = vpop.permute.xlu0 %2067
        %v2070 = vsel %vm1791, %v2066, 0
        %v2073 = vsel %vm1833, %v2068, 0
        %2075 = vmatpush.bf16.msra.mxu0 0
        %2076 = vmatpush.bf16.msra.mxu0 0
        %2077 = vmatpush.bf16.msra.mxu0 0
        %2078 = vmatpush.bf16.msra.mxu0 0
        %2079 = vmatpush.bf16.msra.mxu0 0
        %2080 = vmatpush.bf16.msra.mxu0 0
        %2081 = vmatpush.bf16.msra.mxu0 0
        %2082 = vmatpush.bf16.msra.mxu0 %v2073
        %2083 = vmatmul.bf16.gmra.mxu0 %v2070
        %v2084 = vpop.f32.mrf.mxu0
        %v2085 = vadd.f32 0.0, %v2084
        %v2086 = vpop.f32.mrf.mxu0
        %2087 = vdwg.mxu0
        %v2088 = vpack.c.bf16 %v2085, %v2085
        %v2089 = vpack.c.bf16 %v1786, %v1786
        %v2091 = vsel %vm1791, %v2088, 0
        %v2094 = vsel %vm1833, %v2089, 0
        %2096 = vmatpush.bf16.msra.mxu0 0
        %2097 = vmatpush.bf16.msra.mxu0 0
        %2098 = vmatpush.bf16.msra.mxu0 0
        %2099 = vmatpush.bf16.msra.mxu0 0
        %2100 = vmatpush.bf16.msra.mxu0 0
        %2101 = vmatpush.bf16.msra.mxu0 0
        %2102 = vmatpush.bf16.msra.mxu0 0
        %2103 = vmatpush.bf16.msra.mxu0 %v2094
        %2104 = vmatmul.bf16.gmra.mxu0 %v2091
        %v2105 = vpop.f32.mrf.mxu0
        %v2106 = vadd.f32 0.0, %v2105
        %v2107 = vpop.f32.mrf.mxu0
        %2108 = vdwg.mxu0
        %v2109 = vadd.f32 %v2029, %v2106
        %v2110 = vld [vmem:[%s39] sm:$0x1]
        %v2112 = vperm.slane %v2110, 0
        %v2114 = vadd.f32 %v2109, %v2112
        %2116 = vrot.lane.b32.xlu0 %v2114, 64
        %v2117 = vpop.permute.xlu0 %2116
        %v2119 = vmul.f32 %v1744, %v2117
        %2121 = vrot.lane.b32.xlu0 %v2119, 64
        %v2122 = vpop.permute.xlu0 %2121
        %v2124 = vadd.f32 %v1407, %v2122
        %v2125 = vsel %vm1609, %v2124, 0.0
        %2126 = vadd.xlane.f32.xlu0 %v2125
        %v2127 = vpop.xlane.xlu0 %2126
        %v2128 = vmul.f32 %v2127, %v1717
        %v2129 = vsub.f32 %v2124, %v2128
        %v2130 = vmul.f32 %v2129, %v2129
        %v2131 = vsel %vm1609, %v2130, 0.0
        %2132 = vadd.xlane.f32.xlu0 %v2131
        %v2133 = vpop.xlane.xlu0 %2132
        %v2134 = vmul.f32 %v2133, %v1717
        %v2135 = vadd.f32 %v2134, 1e-06
        %v2136 = vrsqrt.pop %v2135
        %v2137 = vmul.f32 %v2136, %v2135
        %v2138 = vmul.f32 %v2137, %v2136
        %v2139 = vmul.f32 0.5, %v2138
        %v2140 = vsub.f32 1.5, %v2139
        %v2141 = vmul.f32 %v2136, %v2140
        %vm2142 = vweird.f32 %v2135
        %vm2143 = vweird.f32 %v2136
        %vm2144 = vmor %vm2142, %vm2143
        %v2145 = vsel %vm2144, %v2136, %v2141
        %v2146 = vmul.f32 %v2129, %v2145
        %v2147 = vadd.f32 %v1705, 1.0
        %v2148 = vperm.slane %v2147, 0
        %v2149 = vmul.f32 %v2146, %v2148
        %2151 = vrot.lane.b32.xlu0 %v1744, 32
        %v2152 = vpop.permute.xlu0 %2151
        %v2154 = vadd.f32 %v2149, %v2152
        %v2155 = vld [vmem:[%s41] sm:$0xf]
        %v2156 = vld [vmem:[%s41 + $0x4] sm:$0xf]
        %v2157 = vld [vmem:[%s41 + $0x8] sm:$0xf]
        %v2158 = vld [vmem:[%s41 + $0xc] sm:$0xf]
        %v2159 = vpack.c.bf16 %v2154, %v2154
        %v2160 = vld [vmem:[%s43] sm:$0x1]
        %v2162 = vperm.slane %v2160, 0
        %v2168 = vunpack.c.l.b16 %v2155
        %v2169 = vunpack.c.l.b16 %v2156
        %v2170 = vunpack.c.l.b16 %v2157
        %v2171 = vunpack.c.l.b16 %v2158
        %v2172 = vpack.c.b16 %v2169, %v2168
        %v2173 = vpack.c.b16 %v2171, %v2170
        %v2177 = vsel %vm1609, %v2159, 0
        %2179 = vmatpush.bf16.msra.mxu0 0
        %2180 = vmatpush.bf16.msra.mxu0 0
        %2181 = vmatpush.bf16.msra.mxu0 0
        %2182 = vmatpush.bf16.msra.mxu0 0
        %2183 = vmatpush.bf16.msra.mxu0 0
        %2184 = vmatpush.bf16.msra.mxu0 0
        %2185 = vmatpush.bf16.msra.mxu0 %v2173
        %2186 = vmatpush.bf16.msra.mxu0 %v2172
        %2187 = vmatmul.bf16.gmra.mxu0 %v2177
        %v2188 = vpop.f32.mrf.mxu0
        %v2189 = vadd.f32 %v2162, %v2188
        %v2190 = vpop.f32.mrf.mxu0
        %2191 = vdwg.mxu0
        %v2192 = vmul.f32 %v2189, %v2189
        %v2193 = vmul.f32 %v2189, %v2192
        %v2194 = vmul.f32 %v2193, 0.044715
        %v2195 = vadd.f32 %v2189, %v2194
        %v2196 = vmul.f32 %v2195, 0.7978846
        %v2197 = vtanh.pop %v2196
        %v2198 = vadd.f32 %v2197, 1.0
        %v2199 = vmul.f32 %v2198, 0.5
        %v2200 = vmul.f32 %v2189, %v2199
        %v2201 = vld [vmem:[%s45] sm:$0xf]
        %v2202 = vld [vmem:[%s45 + $0x4] sm:$0xf]
        %v2203 = vld [vmem:[%s45 + $0x8] sm:$0xf]
        %v2204 = vld [vmem:[%s45 + $0xc] sm:$0xf]
        %v2205 = vld [vmem:[%s45 + $0x10] sm:$0xf]
        %v2206 = vld [vmem:[%s45 + $0x14] sm:$0xf]
        %v2207 = vld [vmem:[%s45 + $0x18] sm:$0xf]
        %v2208 = vld [vmem:[%s45 + $0x1c] sm:$0xf]
        %v2209 = vpack.c.bf16 %v2200, %v2200
        %v2210 = vld [vmem:[%s47] sm:$0x1]
        %v2212 = vperm.slane %v2210, 0
        %v2222 = vunpack.c.l.b16 %v2201
        %v2223 = vunpack.c.l.b16 %v2202
        %v2224 = vunpack.c.l.b16 %v2203
        %v2225 = vunpack.c.l.b16 %v2204
        %v2226 = vunpack.c.l.b16 %v2205
        %v2227 = vunpack.c.l.b16 %v2206
        %v2228 = vunpack.c.l.b16 %v2207
        %v2229 = vunpack.c.l.b16 %v2208
        %v2230 = vpack.c.b16 %v2223, %v2222
        %v2231 = vpack.c.b16 %v2225, %v2224
        %v2232 = vpack.c.b16 %v2227, %v2226
        %v2233 = vpack.c.b16 %v2229, %v2228
        %vm2238 = vcmask 523264
        %v2240 = vsel %vm2238, %v2209, 0
        %2242 = vmatpush.bf16.msra.mxu0 0
        %2243 = vmatpush.bf16.msra.mxu0 0
        %2244 = vmatpush.bf16.msra.mxu0 0
        %2245 = vmatpush.bf16.msra.mxu0 0
        %2246 = vmatpush.bf16.msra.mxu0 %v2233
        %2247 = vmatpush.bf16.msra.mxu0 %v2232
        %2248 = vmatpush.bf16.msra.mxu0 %v2231
        %2249 = vmatpush.bf16.msra.mxu0 %v2230
        %2250 = vmatmul.bf16.gmra.mxu0 %v2240
        %v2251 = vpop.f32.mrf.mxu0
        %v2252 = vadd.f32 %v2212, %v2251
        %v2253 = vpop.f32.mrf.mxu0
        %2254 = vdwg.mxu0
        %v2255 = vperm.slane %v1705, 0
        %2257 = vrot.lane.b32.xlu0 %v2252, 32
        %v2258 = vpop.permute.xlu0 %2257
        %v2260 = vmul.f32 %v2255, %v2258
        %2262 = vrot.lane.b32.xlu0 %v2260, 96
        %v2263 = vpop.permute.xlu0 %2262
        %v2265 = vadd.f32 %v2124, %v2263
        %v2266 = vld [vmem:[%s49] sm:$0xff]
        %v2267 = vld [vmem:[%s49 + $0x8] sm:$0xff]
        %v2268 = vld [vmem:[%s49 + $0x10] sm:$0xff]
        %v2269 = vld [vmem:[%s49 + $0x18] sm:$0xff]
        %v2270 = vld [vmem:[%s51] sm:$0x3]
        %v2275 = vunpack.c.l.b16 %v2266
        %v2276 = vunpack.c.h.b16 %v2266
        %v2277 = vunpack.c.l.b16 %v2267
        %v2278 = vunpack.c.h.b16 %v2267
        %v2279 = vunpack.c.l.b16 %v2268
        %v2280 = vunpack.c.h.b16 %v2268
        %v2281 = vunpack.c.l.b16 %v2269
        %v2282 = vunpack.c.h.b16 %v2269
        %v2283 = vpack.c.b16 %v2277, %v2275
        %v2284 = vpack.c.b16 %v2278, %v2276
        %v2285 = vpack.c.b16 %v2281, %v2279
        %v2286 = vpack.c.b16 %v2282, %v2280
        %v2292 = vperm.slane %v2270, 0
        %v2293 = vperm.slane %v2270, 1
        %2296 = vmatpush.bf16.msra.mxu0 0
        %2297 = vmatpush.bf16.msra.mxu0 0
        %2298 = vmatpush.bf16.msra.mxu0 0
        %2299 = vmatpush.bf16.msra.mxu0 0
        %2300 = vmatpush.bf16.msra.mxu0 0
        %2301 = vmatpush.bf16.msra.mxu0 0
        %2302 = vmatpush.bf16.msra.mxu0 %v2285
        %2303 = vmatpush.bf16.msra.mxu0 %v2283
        %2304 = vmatmul.bf16.gmra.mxu0 %v1680
        %v2305 = vpop.f32.mrf.mxu0
        %v2306 = vadd.f32 %v2292, %v2305
        %v2307 = vpop.f32.mrf.mxu0
        %2308 = vdwg.mxu0
        %2309 = vmatpush.bf16.msra.mxu0 0
        %2310 = vmatpush.bf16.msra.mxu0 0
        %2311 = vmatpush.bf16.msra.mxu0 0
        %2312 = vmatpush.bf16.msra.mxu0 0
        %2313 = vmatpush.bf16.msra.mxu0 0
        %2314 = vmatpush.bf16.msra.mxu0 0
        %2315 = vmatpush.bf16.msra.mxu0 %v2286
        %2316 = vmatpush.bf16.msra.mxu0 %v2284
        %2317 = vmatmul.bf16.gmra.mxu0 %v1680
        %v2318 = vpop.f32.mrf.mxu0
        %v2319 = vadd.f32 %v2293, %v2318
        %v2320 = vpop.f32.mrf.mxu0
        %2321 = vdwg.mxu0
        %v2322 = vsel %vm1609, %v2265, 0.0
        %2323 = vadd.xlane.f32.xlu0 %v2322
        %v2324 = vpop.xlane.xlu0 %2323
        %v2325 = vmul.f32 %v2324, %v1717
        %v2326 = vsub.f32 %v2265, %v2325
        %v2327 = vmul.f32 %v2326, %v2326
        %v2328 = vsel %vm1609, %v2327, 0.0
        %2329 = vadd.xlane.f32.xlu0 %v2328
        %v2330 = vpop.xlane.xlu0 %2329
        %v2331 = vmul.f32 %v2330, %v1717
        %v2332 = vadd.f32 %v2331, 1e-06
        %v2333 = vrsqrt.pop %v2332
        %v2334 = vmul.f32 %v2333, %v2332
        %v2335 = vmul.f32 %v2334, %v2333
        %v2336 = vmul.f32 0.5, %v2335
        %v2337 = vsub.f32 1.5, %v2336
        %v2338 = vmul.f32 %v2333, %v2337
        %vm2339 = vweird.f32 %v2332
        %vm2340 = vweird.f32 %v2333
        %vm2341 = vmor %vm2339, %vm2340
        %v2342 = vsel %vm2341, %v2333, %v2338
        %v2343 = vmul.f32 %v2326, %v2342
        %v2344 = vadd.f32 %v2306, 1.0
        %v2345 = vperm.slane %v2344, 0
        %2347 = vrot.lane.b32.xlu0 %v2345, 96
        %v2348 = vpop.permute.xlu0 %2347
        %v2350 = vmul.f32 %v2343, %v2348
        %v2351 = vperm.slane %v2306, 0
        %v2352 = vadd.f32 %v2350, %v2351
        %v2353 = vld [vmem:[%s53] sm:$0xf]
        %v2354 = vld [vmem:[%s53 + $0x4] sm:$0xf]
        %v2355 = vld [vmem:[%s53 + $0x8] sm:$0xf]
        %v2356 = vld [vmem:[%s53 + $0xc] sm:$0xf]
        %v2357 = vpack.c.bf16 %v2352, %v2352
        %v2358 = vld [vmem:[%s55] sm:$0x1]
        %v2360 = vperm.slane %v2358, 0
        %v2366 = vunpack.c.l.b16 %v2353
        %v2367 = vunpack.c.l.b16 %v2354
        %v2368 = vunpack.c.l.b16 %v2355
        %v2369 = vunpack.c.l.b16 %v2356
        %v2370 = vpack.c.b16 %v2367, %v2366
        %v2371 = vpack.c.b16 %v2369, %v2368
        %v2375 = vsel %vm1609, %v2357, 0
        %2377 = vmatpush.bf16.msra.mxu0 0
        %2378 = vmatpush.bf16.msra.mxu0 0
        %2379 = vmatpush.bf16.msra.mxu0 0
        %2380 = vmatpush.bf16.msra.mxu0 0
        %2381 = vmatpush.bf16.msra.mxu0 0
        %2382 = vmatpush.bf16.msra.mxu0 0
        %2383 = vmatpush.bf16.msra.mxu0 %v2371
        %2384 = vmatpush.bf16.msra.mxu0 %v2370
        %2385 = vmatmul.bf16.gmra.mxu0 %v2375
        %v2386 = vpop.f32.mrf.mxu0
        %v2387 = vadd.f32 %v2360, %v2386
        %v2388 = vpop.f32.mrf.mxu0
        %2389 = vdwg.mxu0
        %v2390 = vld [vmem:[%s57] sm:$0xff]
        %v2391 = vld [vmem:[%s57 + $0x8] sm:$0xff]
        %v2392 = vld [vmem:[%s57 + $0x10] sm:$0xff]
        %v2393 = vld [vmem:[%s57 + $0x18] sm:$0xff]
        %v2394 = vpack.c.bf16 %v2387, %v2387
        %2396 = vrot.lane.b32.xlu0 %v2394, 96
        %v2397 = vpop.permute.xlu0 %2396
        %v2399 = vsel %vm1791, %v2394, 0
        %v2402 = vsel %vm1791, %v2397, 0
        %2404 = vmatpush.bf16.xpose.msra.mxu0 0
        %2405 = vmatpush.bf16.xpose.msra.mxu0 0
        %2406 = vmatpush.bf16.xpose.msra.mxu0 0
        %2407 = vmatpush.bf16.xpose.msra.mxu0 0
        %2408 = vmatpush.bf16.xpose.msra.mxu0 0
        %2409 = vmatpush.bf16.xpose.msra.mxu0 0
        %2410 = vmatpush.bf16.xpose.msra.mxu0 0
        %2411 = vmatpush.bf16.xpose.msra.mxu0 %v2402
        %2412 = vmatmul.bf16.gmra.mxu0 %v2399
        %v2413 = vpop.f32.mrf.mxu0
        %v2414 = vadd.f32 0.0, %v2413
        %v2415 = vpop.f32.mrf.mxu0
        %2416 = vdwg.mxu0
        %v2417 = vmul.f32 %v2414, 0.35355338
        %v2418 = vadd.f32 %v2417, %v1813
        %v2419 = vsel %vm1791, %v2418, -inf
        %2420 = vmax.xlane.f32.xlu0 %v2419
        %v2421 = vpop.xlane.xlu0 %2420
        %v2422 = vsub.f32 %v2418, %v2421
        %v2423 = vmul.f32 %v2422, 1.442695
        %v2424 = vpow.pop %v2423
        %v2425 = vsel %vm1791, %v2424, 0.0
        %2426 = vadd.xlane.f32.xlu0 %v2425
        %v2427 = vpop.xlane.xlu0 %2426
        %v2428 = vrcp.pop %v2427
        %v2429 = vmul.f32 %v2424, %v2428
        %v2430 = vpack.c.bf16 %v2429, %v2429
        %2431 = vrot.lane.b32.xlu0 %v2394, 64
        %v2432 = vpop.permute.xlu0 %2431
        %v2434 = vsel %vm1791, %v2430, 0
        %v2437 = vsel %vm1833, %v2432, 0
        %2439 = vmatpush.bf16.msra.mxu0 0
        %2440 = vmatpush.bf16.msra.mxu0 0
        %2441 = vmatpush.bf16.msra.mxu0 0
        %2442 = vmatpush.bf16.msra.mxu0 0
        %2443 = vmatpush.bf16.msra.mxu0 0
        %2444 = vmatpush.bf16.msra.mxu0 0
        %2445 = vmatpush.bf16.msra.mxu0 0
        %2446 = vmatpush.bf16.msra.mxu0 %v2437
        %2447 = vmatmul.bf16.gmra.mxu0 %v2434
        %v2448 = vpop.f32.mrf.mxu0
        %v2449 = vadd.f32 0.0, %v2448
        %v2450 = vpop.f32.mrf.mxu0
        %2451 = vdwg.mxu0
        %v2452 = vpack.c.bf16 %v2449, %v2449
        %v2453 = vpack.c.bf16 %v2390, %v2390
        %2454 = vrot.lane.b32.xlu0 %v2394, 120
        %v2455 = vpop.permute.xlu0 %2454
        %2456 = vrot.lane.b32.xlu0 %v2394, 88
        %v2457 = vpop.permute.xlu0 %2456
        %v2459 = vsel %vm1791, %v2455, 0
        %v2462 = vsel %vm1791, %v2457, 0
        %2464 = vmatpush.bf16.xpose.msra.mxu0 0
        %2465 = vmatpush.bf16.xpose.msra.mxu0 0
        %2466 = vmatpush.bf16.xpose.msra.mxu0 0
        %2467 = vmatpush.bf16.xpose.msra.mxu0 0
        %2468 = vmatpush.bf16.xpose.msra.mxu0 0
        %2469 = vmatpush.bf16.xpose.msra.mxu0 0
        %2470 = vmatpush.bf16.xpose.msra.mxu0 0
        %2471 = vmatpush.bf16.xpose.msra.mxu0 %v2462
        %2472 = vmatmul.bf16.gmra.mxu0 %v2459
        %v2473 = vpop.f32.mrf.mxu0
        %v2474 = vadd.f32 0.0, %v2473
        %v2475 = vpop.f32.mrf.mxu0
        %2476 = vdwg.mxu0
        %v2477 = vmul.f32 %v2474, 0.35355338
        %v2478 = vadd.f32 %v2477, %v1813
        %v2479 = vsel %vm1791, %v2478, -inf
        %2480 = vmax.xlane.f32.xlu0 %v2479
        %v2481 = vpop.xlane.xlu0 %2480
        %v2482 = vsub.f32 %v2478, %v2481
        %v2483 = vmul.f32 %v2482, 1.442695
        %v2484 = vpow.pop %v2483
        %v2485 = vsel %vm1791, %v2484, 0.0
        %2486 = vadd.xlane.f32.xlu0 %v2485
        %v2487 = vpop.xlane.xlu0 %2486
        %v2488 = vrcp.pop %v2487
        %v2489 = vmul.f32 %v2484, %v2488
        %v2490 = vpack.c.bf16 %v2489, %v2489
        %2491 = vrot.lane.b32.xlu0 %v2394, 56
        %v2492 = vpop.permute.xlu0 %2491
        %v2494 = vsel %vm1791, %v2490, 0
        %v2497 = vsel %vm1833, %v2492, 0
        %2499 = vmatpush.bf16.msra.mxu0 0
        %2500 = vmatpush.bf16.msra.mxu0 0
        %2501 = vmatpush.bf16.msra.mxu0 0
        %2502 = vmatpush.bf16.msra.mxu0 0
        %2503 = vmatpush.bf16.msra.mxu0 0
        %2504 = vmatpush.bf16.msra.mxu0 0
        %2505 = vmatpush.bf16.msra.mxu0 0
        %2506 = vmatpush.bf16.msra.mxu0 %v2497
        %2507 = vmatmul.bf16.gmra.mxu0 %v2494
        %v2508 = vpop.f32.mrf.mxu0
        %v2509 = vadd.f32 0.0, %v2508
        %v2510 = vpop.f32.mrf.mxu0
        %2511 = vdwg.mxu0
        %v2512 = vpack.c.bf16 %v2509, %v2509
        %v2513 = vpack.c.bf16 %v2391, %v2391
        %v2515 = vsel %vm1791, %v2512, 0
        %v2518 = vsel %vm1833, %v2513, 0
        %2520 = vmatpush.bf16.msra.mxu0 0
        %2521 = vmatpush.bf16.msra.mxu0 0
        %2522 = vmatpush.bf16.msra.mxu0 0
        %2523 = vmatpush.bf16.msra.mxu0 0
        %2524 = vmatpush.bf16.msra.mxu0 0
        %2525 = vmatpush.bf16.msra.mxu0 0
        %2526 = vmatpush.bf16.msra.mxu0 0
        %2527 = vmatpush.bf16.msra.mxu0 %v2518
        %2528 = vmatmul.bf16.gmra.mxu0 %v2515
        %v2529 = vpop.f32.mrf.mxu0
        %v2530 = vadd.f32 0.0, %v2529
        %v2531 = vpop.f32.mrf.mxu0
        %2532 = vdwg.mxu0
        %v2534 = vsel %vm1791, %v2452, 0
        %v2537 = vsel %vm1833, %v2453, 0
        %2539 = vmatpush.bf16.msra.mxu0 0
        %2540 = vmatpush.bf16.msra.mxu0 0
        %2541 = vmatpush.bf16.msra.mxu0 0
        %2542 = vmatpush.bf16.msra.mxu0 0
        %2543 = vmatpush.bf16.msra.mxu0 0
        %2544 = vmatpush.bf16.msra.mxu0 0
        %2545 = vmatpush.bf16.msra.mxu0 0
        %2546 = vmatpush.bf16.msra.mxu0 %v2537
        %2547 = vmatmul.bf16.gmra.mxu0 %v2534
        %v2548 = vpop.f32.mrf.mxu0
        %v2549 = vadd.f32 %v2530, %v2548
        %v2550 = vpop.f32.mrf.mxu0
        %2551 = vdwg.mxu0
        %2552 = vrot.lane.b32.xlu0 %v2394, 112
        %v2553 = vpop.permute.xlu0 %2552
        %2554 = vrot.lane.b32.xlu0 %v2394, 80
        %v2555 = vpop.permute.xlu0 %2554
        %v2557 = vsel %vm1791, %v2553, 0
        %v2560 = vsel %vm1791, %v2555, 0
        %2562 = vmatpush.bf16.xpose.msra.mxu0 0
        %2563 = vmatpush.bf16.xpose.msra.mxu0 0
        %2564 = vmatpush.bf16.xpose.msra.mxu0 0
        %2565 = vmatpush.bf16.xpose.msra.mxu0 0
        %2566 = vmatpush.bf16.xpose.msra.mxu0 0
        %2567 = vmatpush.bf16.xpose.msra.mxu0 0
        %2568 = vmatpush.bf16.xpose.msra.mxu0 0
        %2569 = vmatpush.bf16.xpose.msra.mxu0 %v2560
        %2570 = vmatmul.bf16.gmra.mxu0 %v2557
        %v2571 = vpop.f32.mrf.mxu0
        %v2572 = vadd.f32 0.0, %v2571
        %v2573 = vpop.f32.mrf.mxu0
        %2574 = vdwg.mxu0
        %v2575 = vmul.f32 %v2572, 0.35355338
        %v2576 = vadd.f32 %v2575, %v1813
        %v2577 = vsel %vm1791, %v2576, -inf
        %2578 = vmax.xlane.f32.xlu0 %v2577
        %v2579 = vpop.xlane.xlu0 %2578
        %v2580 = vsub.f32 %v2576, %v2579
        %v2581 = vmul.f32 %v2580, 1.442695
        %v2582 = vpow.pop %v2581
        %v2583 = vsel %vm1791, %v2582, 0.0
        %2584 = vadd.xlane.f32.xlu0 %v2583
        %v2585 = vpop.xlane.xlu0 %2584
        %v2586 = vrcp.pop %v2585
        %v2587 = vmul.f32 %v2582, %v2586
        %v2588 = vpack.c.bf16 %v2587, %v2587
        %2589 = vrot.lane.b32.xlu0 %v2394, 48
        %v2590 = vpop.permute.xlu0 %2589
        %v2592 = vsel %vm1791, %v2588, 0
        %v2595 = vsel %vm1833, %v2590, 0
        %2597 = vmatpush.bf16.msra.mxu0 0
        %2598 = vmatpush.bf16.msra.mxu0 0
        %2599 = vmatpush.bf16.msra.mxu0 0
        %2600 = vmatpush.bf16.msra.mxu0 0
        %2601 = vmatpush.bf16.msra.mxu0 0
        %2602 = vmatpush.bf16.msra.mxu0 0
        %2603 = vmatpush.bf16.msra.mxu0 0
        %2604 = vmatpush.bf16.msra.mxu0 %v2595
        %2605 = vmatmul.bf16.gmra.mxu0 %v2592
        %v2606 = vpop.f32.mrf.mxu0
        %v2607 = vadd.f32 0.0, %v2606
        %v2608 = vpop.f32.mrf.mxu0
        %2609 = vdwg.mxu0
        %v2610 = vpack.c.bf16 %v2607, %v2607
        %v2611 = vpack.c.bf16 %v2392, %v2392
        %v2613 = vsel %vm1791, %v2610, 0
        %v2616 = vsel %vm1833, %v2611, 0
        %2618 = vmatpush.bf16.msra.mxu0 0
        %2619 = vmatpush.bf16.msra.mxu0 0
        %2620 = vmatpush.bf16.msra.mxu0 0
        %2621 = vmatpush.bf16.msra.mxu0 0
        %2622 = vmatpush.bf16.msra.mxu0 0
        %2623 = vmatpush.bf16.msra.mxu0 0
        %2624 = vmatpush.bf16.msra.mxu0 0
        %2625 = vmatpush.bf16.msra.mxu0 %v2616
        %2626 = vmatmul.bf16.gmra.mxu0 %v2613
        %v2627 = vpop.f32.mrf.mxu0
        %v2628 = vadd.f32 0.0, %v2627
        %v2629 = vpop.f32.mrf.mxu0
        %2630 = vdwg.mxu0
        %v2631 = vadd.f32 %v2549, %v2628
        %2632 = vrot.lane.b32.xlu0 %v2394, 104
        %v2633 = vpop.permute.xlu0 %2632
        %2634 = vrot.lane.b32.xlu0 %v2394, 72
        %v2635 = vpop.permute.xlu0 %2634
        %v2637 = vsel %vm1791, %v2633, 0
        %v2640 = vsel %vm1791, %v2635, 0
        %2642 = vmatpush.bf16.xpose.msra.mxu0 0
        %2643 = vmatpush.bf16.xpose.msra.mxu0 0
        %2644 = vmatpush.bf16.xpose.msra.mxu0 0
        %2645 = vmatpush.bf16.xpose.msra.mxu0 0
        %2646 = vmatpush.bf16.xpose.msra.mxu0 0
        %2647 = vmatpush.bf16.xpose.msra.mxu0 0
        %2648 = vmatpush.bf16.xpose.msra.mxu0 0
        %2649 = vmatpush.bf16.xpose.msra.mxu0 %v2640
        %2650 = vmatmul.bf16.gmra.mxu0 %v2637
        %v2651 = vpop.f32.mrf.mxu0
        %v2652 = vadd.f32 0.0, %v2651
        %v2653 = vpop.f32.mrf.mxu0
        %2654 = vdwg.mxu0
        %v2655 = vmul.f32 %v2652, 0.35355338
        %v2656 = vadd.f32 %v2655, %v1813
        %v2657 = vsel %vm1791, %v2656, -inf
        %2658 = vmax.xlane.f32.xlu0 %v2657
        %v2659 = vpop.xlane.xlu0 %2658
        %v2660 = vsub.f32 %v2656, %v2659
        %v2661 = vmul.f32 %v2660, 1.442695
        %v2662 = vpow.pop %v2661
        %v2663 = vsel %vm1791, %v2662, 0.0
        %2664 = vadd.xlane.f32.xlu0 %v2663
        %v2665 = vpop.xlane.xlu0 %2664
        %v2666 = vrcp.pop %v2665
        %v2667 = vmul.f32 %v2662, %v2666
        %v2668 = vpack.c.bf16 %v2667, %v2667
        %2669 = vrot.lane.b32.xlu0 %v2394, 40
        %v2670 = vpop.permute.xlu0 %2669
        %v2672 = vsel %vm1791, %v2668, 0
        %v2675 = vsel %vm1833, %v2670, 0
        %2677 = vmatpush.bf16.msra.mxu0 0
        %2678 = vmatpush.bf16.msra.mxu0 0
        %2679 = vmatpush.bf16.msra.mxu0 0
        %2680 = vmatpush.bf16.msra.mxu0 0
        %2681 = vmatpush.bf16.msra.mxu0 0
        %2682 = vmatpush.bf16.msra.mxu0 0
        %2683 = vmatpush.bf16.msra.mxu0 0
        %2684 = vmatpush.bf16.msra.mxu0 %v2675
        %2685 = vmatmul.bf16.gmra.mxu0 %v2672
        %v2686 = vpop.f32.mrf.mxu0
        %v2687 = vadd.f32 0.0, %v2686
        %v2688 = vpop.f32.mrf.mxu0
        %2689 = vdwg.mxu0
        %v2690 = vpack.c.bf16 %v2687, %v2687
        %v2691 = vpack.c.bf16 %v2393, %v2393
        %v2693 = vsel %vm1791, %v2690, 0
        %v2696 = vsel %vm1833, %v2691, 0
        %2698 = vmatpush.bf16.msra.mxu0 0
        %2699 = vmatpush.bf16.msra.mxu0 0
        %2700 = vmatpush.bf16.msra.mxu0 0
        %2701 = vmatpush.bf16.msra.mxu0 0
        %2702 = vmatpush.bf16.msra.mxu0 0
        %2703 = vmatpush.bf16.msra.mxu0 0
        %2704 = vmatpush.bf16.msra.mxu0 0
        %2705 = vmatpush.bf16.msra.mxu0 %v2696
        %2706 = vmatmul.bf16.gmra.mxu0 %v2693
        %v2707 = vpop.f32.mrf.mxu0
        %v2708 = vadd.f32 0.0, %v2707
        %v2709 = vpop.f32.mrf.mxu0
        %2710 = vdwg.mxu0
        %v2711 = vadd.f32 %v2631, %v2708
        %v2712 = vld [vmem:[%s59] sm:$0x1]
        %v2714 = vperm.slane %v2712, 0
        %v2716 = vadd.f32 %v2711, %v2714
        %2718 = vrot.lane.b32.xlu0 %v2716, 64
        %v2719 = vpop.permute.xlu0 %2718
        %v2721 = vmul.f32 %v2351, %v2719
        %2723 = vrot.lane.b32.xlu0 %v2721, 64
        %v2724 = vpop.permute.xlu0 %2723
        %v2726 = vadd.f32 %v2265, %v2724
        %v2727 = vsel %vm1609, %v2726, 0.0
        %2728 = vadd.xlane.f32.xlu0 %v2727
        %v2729 = vpop.xlane.xlu0 %2728
        %v2730 = vmul.f32 %v2729, %v1717
        %v2731 = vsub.f32 %v2726, %v2730
        %v2732 = vmul.f32 %v2731, %v2731
        %v2733 = vsel %vm1609, %v2732, 0.0
        %2734 = vadd.xlane.f32.xlu0 %v2733
        %v2735 = vpop.xlane.xlu0 %2734
        %v2736 = vmul.f32 %v2735, %v1717
        %v2737 = vadd.f32 %v2736, 1e-06
        %v2738 = vrsqrt.pop %v2737
        %v2739 = vmul.f32 %v2738, %v2737
        %v2740 = vmul.f32 %v2739, %v2738
        %v2741 = vmul.f32 0.5, %v2740
        %v2742 = vsub.f32 1.5, %v2741
        %v2743 = vmul.f32 %v2738, %v2742
        %vm2744 = vweird.f32 %v2737
        %vm2745 = vweird.f32 %v2738
        %vm2746 = vmor %vm2744, %vm2745
        %v2747 = vsel %vm2746, %v2738, %v2743
        %v2748 = vmul.f32 %v2731, %v2747
        %v2749 = vadd.f32 %v2319, 1.0
        %v2750 = vperm.slane %v2749, 0
        %v2751 = vmul.f32 %v2748, %v2750
        %2753 = vrot.lane.b32.xlu0 %v2351, 32
        %v2754 = vpop.permute.xlu0 %2753
        %v2756 = vadd.f32 %v2751, %v2754
        %v2757 = vld [vmem:[%s61] sm:$0xf]
        %v2758 = vld [vmem:[%s61 + $0x4] sm:$0xf]
        %v2759 = vld [vmem:[%s61 + $0x8] sm:$0xf]
        %v2760 = vld [vmem:[%s61 + $0xc] sm:$0xf]
        %v2761 = vpack.c.bf16 %v2756, %v2756
        %v2762 = vld [vmem:[%s63] sm:$0x1]
        %v2764 = vperm.slane %v2762, 0
        %v2770 = vunpack.c.l.b16 %v2757
        %v2771 = vunpack.c.l.b16 %v2758
        %v2772 = vunpack.c.l.b16 %v2759
        %v2773 = vunpack.c.l.b16 %v2760
        %v2774 = vpack.c.b16 %v2771, %v2770
        %v2775 = vpack.c.b16 %v2773, %v2772
        %v2779 = vsel %vm1609, %v2761, 0
        %2781 = vmatpush.bf16.msra.mxu0 0
        %2782 = vmatpush.bf16.msra.mxu0 0
        %2783 = vmatpush.bf16.msra.mxu0 0
        %2784 = vmatpush.bf16.msra.mxu0 0
        %2785 = vmatpush.bf16.msra.mxu0 0
        %2786 = vmatpush.bf16.msra.mxu0 0
        %2787 = vmatpush.bf16.msra.mxu0 %v2775
        %2788 = vmatpush.bf16.msra.mxu0 %v2774
        %2789 = vmatmul.bf16.gmra.mxu0 %v2779
        %v2790 = vpop.f32.mrf.mxu0
        %v2791 = vadd.f32 %v2764, %v2790
        %v2792 = vpop.f32.mrf.mxu0
        %2793 = vdwg.mxu0
        %v2794 = vmul.f32 %v2791, %v2791
        %v2795 = vmul.f32 %v2791, %v2794
        %v2796 = vmul.f32 %v2795, 0.044715
        %v2797 = vadd.f32 %v2791, %v2796
        %v2798 = vmul.f32 %v2797, 0.7978846
        %v2799 = vtanh.pop %v2798
        %v2800 = vadd.f32 %v2799, 1.0
        %v2801 = vmul.f32 %v2800, 0.5
        %v2802 = vmul.f32 %v2791, %v2801
        %v2803 = vld [vmem:[%s65] sm:$0xf]
        %v2804 = vld [vmem:[%s65 + $0x4] sm:$0xf]
        %v2805 = vld [vmem:[%s65 + $0x8] sm:$0xf]
        %v2806 = vld [vmem:[%s65 + $0xc] sm:$0xf]
        %v2807 = vld [vmem:[%s65 + $0x10] sm:$0xf]
        %v2808 = vld [vmem:[%s65 + $0x14] sm:$0xf]
        %v2809 = vld [vmem:[%s65 + $0x18] sm:$0xf]
        %v2810 = vld [vmem:[%s65 + $0x1c] sm:$0xf]
        %v2811 = vpack.c.bf16 %v2802, %v2802
        %v2812 = vld [vmem:[%s67] sm:$0x1]
        %v2814 = vperm.slane %v2812, 0
        %v2824 = vunpack.c.l.b16 %v2803
        %v2825 = vunpack.c.l.b16 %v2804
        %v2826 = vunpack.c.l.b16 %v2805
        %v2827 = vunpack.c.l.b16 %v2806
        %v2828 = vunpack.c.l.b16 %v2807
        %v2829 = vunpack.c.l.b16 %v2808
        %v2830 = vunpack.c.l.b16 %v2809
        %v2831 = vunpack.c.l.b16 %v2810
        %v2832 = vpack.c.b16 %v2825, %v2824
        %v2833 = vpack.c.b16 %v2827, %v2826
        %v2834 = vpack.c.b16 %v2829, %v2828
        %v2835 = vpack.c.b16 %v2831, %v2830
        %v2841 = vsel %vm2238, %v2811, 0
        %2843 = vmatpush.bf16.msra.mxu0 0
        %2844 = vmatpush.bf16.msra.mxu0 0
        %2845 = vmatpush.bf16.msra.mxu0 0
        %2846 = vmatpush.bf16.msra.mxu0 0
        %2847 = vmatpush.bf16.msra.mxu0 %v2835
        %2848 = vmatpush.bf16.msra.mxu0 %v2834
        %2849 = vmatpush.bf16.msra.mxu0 %v2833
        %2850 = vmatpush.bf16.msra.mxu0 %v2832
        %2851 = vmatmul.bf16.gmra.mxu0 %v2841
        %v2852 = vpop.f32.mrf.mxu0
        %v2853 = vadd.f32 %v2814, %v2852
        %v2854 = vpop.f32.mrf.mxu0
        %2855 = vdwg.mxu0
        %v2856 = vperm.slane %v2319, 0
        %2858 = vrot.lane.b32.xlu0 %v2853, 32
        %v2859 = vpop.permute.xlu0 %2858
        %v2861 = vmul.f32 %v2856, %v2859
        %2863 = vrot.lane.b32.xlu0 %v2861, 96
        %v2864 = vpop.permute.xlu0 %2863
        %v2866 = vadd.f32 %v2726, %v2864
        %v2867 = vld [vmem:[%s69] sm:$0xf]
        %v2868 = vld [vmem:[%s69 + $0x4] sm:$0xf]
        %v2869 = vld [vmem:[%s69 + $0x8] sm:$0xf]
        %v2870 = vld [vmem:[%s69 + $0xc] sm:$0xf]
        %v2871 = vld [vmem:[%s71] sm:$0x1]
        %v2876 = vunpack.c.l.b16 %v2867
        %v2877 = vunpack.c.l.b16 %v2868
        %v2878 = vunpack.c.l.b16 %v2869
        %v2879 = vunpack.c.l.b16 %v2870
        %v2880 = vpack.c.b16 %v2877, %v2876
        %v2881 = vpack.c.b16 %v2879, %v2878
        %2884 = vmatpush.bf16.msra.mxu0 0
        %2885 = vmatpush.bf16.msra.mxu0 0
        %2886 = vmatpush.bf16.msra.mxu0 0
        %2887 = vmatpush.bf16.msra.mxu0 0
        %2888 = vmatpush.bf16.msra.mxu0 0
        %2889 = vmatpush.bf16.msra.mxu0 0
        %2890 = vmatpush.bf16.msra.mxu0 %v2881
        %2891 = vmatpush.bf16.msra.mxu0 %v2880
        %2892 = vmatmul.bf16.gmra.mxu0 %v1680
        %v2893 = vpop.f32.mrf.mxu0
        %v2894 = vadd.f32 %v2871, %v2893
        %v2895 = vpop.f32.mrf.mxu0
        %2896 = vdwg.mxu0
        %v2897 = vsel %vm1609, %v2866, 0.0
        %2898 = vadd.xlane.f32.xlu0 %v2897
        %v2899 = vpop.xlane.xlu0 %2898
        %v2900 = vmul.f32 %v2899, %v1717
        %v2901 = vsub.f32 %v2866, %v2900
        %v2902 = vmul.f32 %v2901, %v2901
        %v2903 = vsel %vm1609, %v2902, 0.0
        %2904 = vadd.xlane.f32.xlu0 %v2903
        %v2905 = vpop.xlane.xlu0 %2904
        %v2906 = vmul.f32 %v2905, %v1717
        %v2907 = vadd.f32 %v2906, 1e-06
        %v2908 = vrsqrt.pop %v2907
        %v2909 = vmul.f32 %v2908, %v2907
        %v2910 = vmul.f32 %v2909, %v2908
        %v2911 = vmul.f32 0.5, %v2910
        %v2912 = vsub.f32 1.5, %v2911
        %v2913 = vmul.f32 %v2908, %v2912
        %vm2914 = vweird.f32 %v2907
        %vm2915 = vweird.f32 %v2908
        %vm2916 = vmor %vm2914, %vm2915
        %v2917 = vsel %vm2916, %v2908, %v2913
        %v2918 = vmul.f32 %v2901, %v2917
        %v2919 = vadd.f32 %v2894, 1.0
        %v2920 = vperm.slane %v2919, 0
        %2922 = vrot.lane.b32.xlu0 %v2920, 96
        %v2923 = vpop.permute.xlu0 %2922
        %v2925 = vmul.f32 %v2918, %v2923
        %v2926 = vperm.slane %v2894, 0
        %v2927 = vadd.f32 %v2925, %v2926
        %v2928 = vld [vmem:[%s73] sm:$0xf]
        %v2929 = vld [vmem:[%s73 + $0x4] sm:$0xf]
        %v2930 = vld [vmem:[%s73 + $0x8] sm:$0xf]
        %v2931 = vld [vmem:[%s73 + $0xc] sm:$0xf]
        %v2932 = vpack.c.bf16 %v2927, %v2927
        %v2933 = vld [vmem:[%s75] sm:$0x1]
        %v2935 = vperm.slane %v2933, 0
        %v2941 = vunpack.c.l.b16 %v2928
        %v2942 = vunpack.c.l.b16 %v2929
        %v2943 = vunpack.c.l.b16 %v2930
        %v2944 = vunpack.c.l.b16 %v2931
        %v2945 = vpack.c.b16 %v2942, %v2941
        %v2946 = vpack.c.b16 %v2944, %v2943
        %v2950 = vsel %vm1609, %v2932, 0
        %2952 = vmatpush.bf16.msra.mxu0 0
        %2953 = vmatpush.bf16.msra.mxu0 0
        %2954 = vmatpush.bf16.msra.mxu0 0
        %2955 = vmatpush.bf16.msra.mxu0 0
        %2956 = vmatpush.bf16.msra.mxu0 0
        %2957 = vmatpush.bf16.msra.mxu0 0
        %2958 = vmatpush.bf16.msra.mxu0 %v2946
        %2959 = vmatpush.bf16.msra.mxu0 %v2945
        %2960 = vmatmul.bf16.gmra.mxu0 %v2950
        %v2961 = vpop.f32.mrf.mxu0
        %v2962 = vadd.f32 %v2935, %v2961
        %v2963 = vpop.f32.mrf.mxu0
        %2964 = vdwg.mxu0
        %v2965 = vmul.f32 %v2962, %v1394
        %v2966 = vsel %vm1288, %v2965, 0.0
        %v2967 = vrot.slane %v2966, 4
        %v2968 = vadd.f32 %v2966, %v2967
        %v2969 = vrot.slane %v2968, 2
        %v2970 = vadd.f32 %v2968, %v2969
        %v2971 = vrot.slane %v2970, 1
        %v2972 = vadd.f32 %v2970, %v2971
        %v2973 = vmul.f32 %v2972, %v1283
        %v2974 = vmul.f32 %v2973, %v1394
        %v2975 = vsub.f32 %v2965, %v2974
        %v2976 = vpack.c.bf16 %v2975, %v2975
        %v2978 = vsel %vm1288, %v2976, 0
        %v2980 = vsel %vm1288, %v1309, 0
        %2982 = vmatpush.bf16.xpose.msra.mxu0 0
        %2983 = vmatpush.bf16.xpose.msra.mxu0 0
        %2984 = vmatpush.bf16.xpose.msra.mxu0 0
        %2985 = vmatpush.bf16.xpose.msra.mxu0 0
        %2986 = vmatpush.bf16.xpose.msra.mxu0 0
        %2987 = vmatpush.bf16.xpose.msra.mxu0 0
        %2988 = vmatpush.bf16.xpose.msra.mxu0 0
        %2989 = vmatpush.bf16.xpose.msra.mxu0 %v2980
        %2990 = vmatmul.bf16.gmra.mxu0 %v2978
        %v2991 = vpop.f32.mrf.mxu0
        %v2992 = vadd.f32 0.0, %v2991
        %v2993 = vpop.f32.mrf.mxu0
        %2994 = vdwg.mxu0
        %2995 = vst.msk [vmem:[%s1234] sm:$0xff] %vm1791, %v2965
        %2996 = vst.msk [vmem:[%s1234] sm:$0xff] %vm1288, %v2992
        %s2997 = sand.u32 %s937, 1
        %s2998 = scalar_lea.sflag [#allocation4], %s2997
        %s2999 = sand.u32 %s937, 1
        %s3000 = smul.addr %s2999, 8
        %s3001 = scalar_lea.vmem [#allocation3], %s3000
        // Predicated region
        $region173: #{forward.3} parent=171 // pred_check
          %p3002 = pneg %p947
        $region174: #{forward.3} parent=171 // pred_check_branch
          %3004 = sbr.rel (%p3002) target = $region176
        $region175: #{forward.3} parent=171 // pred_region
          %3006 = vsyncadd %s2998, 0
          %s3007 = smul.addr %s91, 8
          %s3008 = scalar_lea.hbm %s77, %s3007
          %s3010 = sshll.u32 %s3001, 4
          %s3011 = int_to_ptr.vmem [resolvable:$true] %s3010
          %s3012 = sshll.u32 %s3008, 4
          %s3013 = int_to_ptr.hbm [resolvable:$true] %s3012
          %3015 = dma.vmem_to_hbm [thread:$0]  %s3011, 128, %s3013, %s2998
        $region176: #{forward.3} parent=171 // pred_fallthru
          _
      $region172: #{forward.3} parent=5 // pred_fallthru
        _
      %p3016 = scmp.le.s32.totalorder 2, %s86
      // Predicated region
      $region177: #{forward.3} parent=5 // pred_check
        %p3017 = pneg %p3016
      $region178: #{forward.3} parent=5 // pred_check_branch
        %3019 = sbr.rel (%p3017) target = $region180
      $region179: #{forward.3} parent=5 // pred_region
        %s3020 = ssub.s32 %s86, 2
        // Predicated region
        $region181: #{forward.3} parent=179 // pred_check
          %p3021 = pneg %p953
        $region182: #{forward.3} parent=179 // pred_check_branch
          %3023 = sbr.rel (%p3021) target = $region184
        $region183: #{forward.3} parent=179 // pred_region
          %s3024 = sand.u32 %s938, 1
          %s3025 = scalar_lea.sflag [#allocation4], %s3024
          %s3026 = sand.u32 %s938, 1
          %s3027 = smul.addr %s3026, 8
          %s3028 = scalar_lea.vmem [#allocation3], %s3027
          %3030 = dma.done %s3025, 128
        $region184: #{forward.3} parent=179 // pred_fallthru
          _
      $region180: #{forward.3} parent=5 // pred_fallthru
        _
    $region6: #{forward.3} parent=1 // loop_footer
      %s90 = sadd.s32 1, %s86
    $region7: #{forward.3} parent=1 // loop_footer_branch
      %85 = sbr.rel target = $region3
    $region8: #{forward.3} parent=1 // loop_exit
      _
    %3031 = vsyncpa [#allocation4], 1
    %s3032 = scalar_lea.sflag [#allocation4], 1
    %3033 = vsyncpa %s3032, 1

</llo_original>
